<compile_context>
chip_gen: v7x
topology: tpu7x:2x2x1
jax: 0.10.0
libtpu: 0.0.40
codegen_flags: <defaults>
</compile_context>

<pallas_src>
import jax
import jax.numpy as jnp
import numpy as np
from jax import lax
from jax.experimental import pallas as pl
from jax.experimental.pallas import tpu as pltpu

_NEG_INF = -1e30   # finite "-inf" for the h == g diagonal mask (cheaper than inf math)


# ----------------------------------------------------------------------------
# One criss-cross attention block (runs on in-VMEM values inside the kernel).
# ----------------------------------------------------------------------------
def _cca_block(x_r, wp, bp, gamma, n_extra):
    """x_r: (B, H, W, C) channel-last activations (B = per-grid-step batch).
    wp: (C, 2C + n_extra) fused [Wq@Wk^T | Wv | extra]; bp: matching (1, .) bias.
    Returns (block output (B,H,W,C), extra projection (B*H*W, n_extra) or None)."""
    B, H, W, C = x_r.shape
    n = B * H * W

    # In-kernel H<->W swap (replaces the second, transposed HBM input).
    x_c = jnp.transpose(x_r, (0, 2, 1, 3))                      # (B, W, H, C)

    # Row-path projection.  For block 1 the third weight chunk is the x-branch
    # of the final 1x1 conv (x @ Wcx + bc), fused into this same matmul.
    y_r = jnp.dot(x_r.reshape(n, C), wp,
                  preferred_element_type=jnp.float32) + bp
    xa_r = y_r[:, :C].reshape(B * H, W, C)
    v_r = y_r[:, C:2 * C].reshape(B * H, W, C)
    extra = y_r[:, 2 * C:] if n_extra else None

    # Column-path projection only needs the energy/value chunks.
    wp_c = wp if n_extra == 0 else wp[:, :2 * C]
    bp_c = bp if n_extra == 0 else bp[:, :2 * C]
    y_c = jnp.dot(x_c.reshape(n, C), wp_c,
                  preferred_element_type=jnp.float32) + bp_c
    xa_c = y_c[:, :C].reshape(B * W, H, C)
    v_c = y_c[:, C:2 * C].reshape(B * W, H, C)

    xr3 = x_r.reshape(B * H, W, C)
    xc3 = x_c.reshape(B * W, H, C)

    # Energies with contraction depth C (softmax-equivalent to q . k; the
    # query-only bias terms cancel inside the joint softmax).
    e_w = jnp.einsum('nwc,ngc->nwg', xa_r, xr3,
                     preferred_element_type=jnp.float32)        # (B*H, W, W)
    e_h = jnp.einsum('nhc,ngc->nhg', xa_c, xc3,
                     preferred_element_type=jnp.float32)        # (B*W, H, H)
    diag = (lax.broadcasted_iota(jnp.int32, (1, H, H), 1) ==
            lax.broadcasted_iota(jnp.int32, (1, H, H), 2))
    e_h = jnp.where(diag, _NEG_INF, e_h)                        # the INF() term

    # Joint softmax over the concatenated (H + W) key axis WITHOUT relayouting
    # the full column energies / attention weights: only per-query (..,..,1)
    # statistics cross between row and column layouts.
    mh_c = jnp.max(e_h, axis=-1)                                # (B*W, H)
    mh_r = jnp.transpose(mh_c.reshape(B, W, H),
                         (0, 2, 1)).reshape(B * H, W, 1)
    m_r = jnp.maximum(jnp.max(e_w, axis=-1, keepdims=True), mh_r)
    m_c = jnp.transpose(m_r.reshape(B, H, W),
                        (0, 2, 1)).reshape(B * W, H, 1)
    p_w = jnp.exp(e_w - m_r)                                    # row layout
    p_h = jnp.exp(e_h - m_c)                                    # column layout
    sh_c = jnp.sum(p_h, axis=-1)                                # (B*W, H)
    sh_r = jnp.transpose(sh_c.reshape(B, W, H),
                         (0, 2, 1)).reshape(B * H, W, 1)
    denom_r = jnp.sum(p_w, axis=-1, keepdims=True) + sh_r
    inv_r = pl.reciprocal(denom_r, approx=True)                 # EUP slot, off VALU
    inv_c = jnp.transpose(inv_r.reshape(B, H, W),
                          (0, 2, 1)).reshape(B * W, H, 1)
    a_w = p_w * inv_r                                           # (B*H, W, W)
    a_h_c = p_h * inv_c                                         # (B*W, H, H)

    # Attention-weighted values; only the column OUTPUT is relayouted to rows.
    out_w = jnp.einsum('nwg,ngc->nwc', a_w, v_r,
                       preferred_element_type=jnp.float32)      # (B*H, W, C)
    out_h_c = jnp.einsum('nhg,ngc->nhc', a_h_c, v_c,
                         preferred_element_type=jnp.float32)    # (B*W, H, C)
    out_h = jnp.transpose(out_h_c.reshape(B, W, H, C), (0, 2, 1, 3))

    out = gamma * (out_h + out_w.reshape(B, H, W, C)) + x_r
    return out, extra


# ----------------------------------------------------------------------------
# Fused kernel: CCA block 1 -> CCA block 2 -> 1x1 conv on cat([x, h], channel).
# ----------------------------------------------------------------------------
def _ccmodule_kernel(xr_ref, wp1_ref, bp1_ref, wp2_ref, bp2_ref, wch_ref,
                     gam_ref, out_ref):
    x_r = xr_ref[...]                                           # (bb, H, W, C)
    bb, H, W, C = x_r.shape

    # Block 1 also yields conv_x = x @ Wcx + bc (fused third projection chunk).
    h1, conv_x = _cca_block(x_r, wp1_ref[...], bp1_ref[...], gam_ref[0],
                            n_extra=C)
    h2, _ = _cca_block(h1, wp2_ref[...], bp2_ref[...], gam_ref[1], n_extra=0)

    # Final 1x1 conv without materializing the channel concatenation:
    # cat([x, h]) @ W + b == (x @ W[:C] + b) + h @ W[C:].
    n = bb * H * W
    out = conv_x + jnp.dot(h2.reshape(n, C), wch_ref[...],
                           preferred_element_type=jnp.float32)
    out_ref[...] = out.reshape(bb, H, W, C).astype(out_ref.dtype)


# ----------------------------------------------------------------------------
# Wrapper: NCHW in/out, parameter fusion, single pallas_call.
# ----------------------------------------------------------------------------
def cc_module(x_nchw, params, *, batch_block=None):
    B, C, H, W = x_nchw.shape
    # Default grid length >= 2 so the "parallel" batch axis shards across v7x's
    # two TensorCores.  On single-TC v5e/v6e, pass batch_block=B to use one step.
    bb = batch_block if batch_block is not None else max(1, B // 2)
    assert B % bb == 0

    # Channel-last view of the input (cheap XLA transpose).
    # TODO(synk): if the surrounding model can stay NHWC, drop this transpose and
    # the final one -- each is a separate HBM round-trip op at this size.
    x_r = jnp.transpose(x_nchw, (0, 2, 3, 1))                   # (B, H, W, C)

    wcx = params['conv_w'][:C]                                  # x-branch of conv
    wch = params['conv_w'][C:]                                  # h-branch of conv
    bc = params['conv_b']

    # Fold each block's q/k projections into one (C, C) energy matrix
    # (softmax-equivalent; query-side bias terms cancel) and fuse it with the
    # value projection (and, for block 1, the conv x-branch) into one weight.
    def fuse(p, extra_w=None, extra_b=None):
        wq, bq, wk, bk, wv, bv, gamma = p
        a = wq @ wk.T                                           # (C, C)
        ba = (wk @ bq[0]).reshape(1, C)                         # key-side bias term
        ws = [a, wv] if extra_w is None else [a, wv, extra_w]
        bs = [ba, bv] if extra_b is None else [ba, bv, extra_b]
        return (jnp.concatenate(ws, axis=1),
                jnp.concatenate(bs, axis=1), gamma[0])

    wp1, bp1, g1 = fuse(params['cca'][0], wcx, bc)              # (C, 3C), (1, 3C)
    wp2, bp2, g2 = fuse(params['cca'][1])                       # (C, 2C), (1, 2C)
    gammas = jnp.stack([g1, g2])                                # (2,) scalars -> SMEM

    out = pl.pallas_call(
        _ccmodule_kernel,
        out_shape=jax.ShapeDtypeStruct((B, H, W, C), x_r.dtype),
        grid=(B // bb,),
        in_specs=[
            pl.BlockSpec((bb, H, W, C), lambda b: (b, 0, 0, 0)),
            pl.BlockSpec((C, 3 * C), lambda b: (0, 0)),
            pl.BlockSpec((1, 3 * C), lambda b: (0, 0)),
            pl.BlockSpec((C, 2 * C), lambda b: (0, 0)),
            pl.BlockSpec((1, 2 * C), lambda b: (0, 0)),
            pl.BlockSpec((C, C), lambda b: (0, 0)),
            pl.BlockSpec(memory_space=pltpu.MemorySpace.SMEM),  # gamma scalars
        ],
        out_specs=pl.BlockSpec((bb, H, W, C), lambda b: (b, 0, 0, 0)),
        compiler_params=pltpu.CompilerParams(
            dimension_semantics=("parallel",),                  # batch -> megacore
            vmem_limit_bytes=32 * 1024 * 1024),
    )(x_r, wp1, bp1, wp2, bp2, wch, gammas)
    return jnp.transpose(out, (0, 3, 1, 2))                     # NHWC -> NCHW


# ----------------------------------------------------------------------------
# Deterministic parameter initialization (shapes per the PyTorch __init__).
# ----------------------------------------------------------------------------
def init_params(key, n_feats):
    C = n_feats
    Cq = C // 8
    keys = list(jax.random.split(key, 16))
    it = iter(keys)

    def dense(k, cin, cout, scale=0.1):
        return scale * jax.random.normal(k, (cin, cout), jnp.float32)

    cca = []
    for blk in range(2):                                        # R = 2 blocks
        wq = dense(next(it), C, Cq)
        bq = 0.01 * jax.random.normal(next(it), (1, Cq), jnp.float32)
        wk = dense(next(it), C, Cq)
        bk = 0.01 * jax.random.normal(next(it), (1, Cq), jnp.float32)
        wv = dense(next(it), C, C)
        bv = 0.01 * jax.random.normal(next(it), (1, C), jnp.float32)
        # NOTE: PyTorch initializes gamma = 0 (attention contributes nothing);
        # use a deterministic nonzero value so the attention path is exercised.
        gamma = jnp.full((1,), 0.1 * (blk + 1), jnp.float32)
        cca.append((wq, bq, wk, bk, wv, bv, gamma))

    conv_w = dense(next(it), 2 * C, C)
    conv_b = 0.01 * jax.random.normal(next(it), (1, C), jnp.float32)
    return {'cca': cca, 'conv_w': conv_w, 'conv_b': conv_b}


# ----------------------------------------------------------------------------
# Pure-JAX reference (original q/k/concat/softmax formulation, no Pallas).
# ----------------------------------------------------------------------------
def _cca_ref(x, p):
    wq, bq, wk, bk, wv, bv, gamma = p
    B, H, W, C = x.shape
    q = jnp.einsum('bhwc,cd->bhwd', x, wq) + bq[0]
    k = jnp.einsum('bhwc,cd->bhwd', x, wk) + bk[0]
    v = jnp.einsum('bhwc,cd->bhwd', x, wv) + bv[0]
    e_h = jnp.einsum('bhwc,bgwc->bhwg', q, k)
    diag = jnp.eye(H, dtype=bool)[None, :, None, :]
    e_h = jnp.where(diag, -jnp.inf, e_h)
    e_w = jnp.einsum('bhwc,bhgc->bhwg', q, k)
    att = jax.nn.softmax(jnp.concatenate([e_h, e_w], axis=-1), axis=-1)
    att_h, att_w = att[..., :H], att[..., H:]
    out_h = jnp.einsum('bhwg,bgwc->bhwc', att_h, v)
    out_w = jnp.einsum('bhwg,bhgc->bhwc', att_w, v)
    return gamma[0] * (out_h + out_w) + x


def cc_module_ref(x_nchw, params):
    x = jnp.transpose(x_nchw, (0, 2, 3, 1))
    h = x
    for p in params['cca']:
        h = _cca_ref(h, p)
    cat = jnp.concatenate([x, h], axis=-1)
    out = jnp.einsum('bhwc,cd->bhwd', cat, params['conv_w']) + params['conv_b'][0]
    return jnp.transpose(out, (0, 3, 1, 2))


if __name__ == "__main__":
    key = jax.random.PRNGKey(0)
    kx, kp = jax.random.split(key)
    B, C, H, W = 2, 32, 8, 8                                    # n_feats = 32 -> q/k dim 4
    x = jax.random.normal(kx, (B, C, H, W), jnp.float32)        # NCHW, like PyTorch
    params = init_params(kp, C)

    out = jax.jit(lambda xx: cc_module(xx, params))(x)
    out = jax.block_until_ready(out)

    ref = cc_module_ref(x, params)
    # Tolerance loosened slightly for the EUP approximate reciprocal and the
    # softmax-equivalent energy reformulation (both f32, exact math otherwise).
    np.testing.assert_allclose(np.asarray(out), np.asarray(ref),
                               rtol=5e-3, atol=5e-3)
    assert out.shape == (B, C, H, W)
    print("KERNEL_OK")
</pallas_src>

<mosaic_0001>
module attributes {stable_mosaic.version = 11 : i64} {
  func.func @_ccmodule_kernel(%arg0: i32, %arg1: memref<1x8x8x32xf32, #tpu.memory_space<vmem>>, %arg2: memref<32x96xf32, #tpu.memory_space<vmem>>, %arg3: memref<1x96xf32, #tpu.memory_space<vmem>>, %arg4: memref<32x64xf32, #tpu.memory_space<vmem>>, %arg5: memref<1x64xf32, #tpu.memory_space<vmem>>, %arg6: memref<32x32xf32, #tpu.memory_space<vmem>>, %arg7: memref<2xf32, #tpu.memory_space<smem>>, %arg8: memref<1x8x8x32xf32, #tpu.memory_space<vmem>>) attributes {dimension_semantics = [#tpu.dimension_semantics<parallel>], iteration_bounds = array<i64: 2>, scalar_prefetch = 0 : i64, scratch_operands = 0 : i64, tpu.core_type = #tpu.core_type<tc>, window_params = [{transform_indices = @transform_0, window_bounds = array<i64: 1, 8, 8, 32>}, {pipeline_mode = #tpu.pipeline_mode<synchronous>, transform_indices = @transform_1, window_bounds = array<i64: 32, 96>}, {pipeline_mode = #tpu.pipeline_mode<synchronous>, transform_indices = @transform_2, window_bounds = array<i64: 1, 96>}, {pipeline_mode = #tpu.pipeline_mode<synchronous>, transform_indices = @transform_3, window_bounds = array<i64: 32, 64>}, {pipeline_mode = #tpu.pipeline_mode<synchronous>, transform_indices = @transform_4, window_bounds = array<i64: 1, 64>}, {pipeline_mode = #tpu.pipeline_mode<synchronous>, transform_indices = @transform_5, window_bounds = array<i64: 32, 32>}, {transform_indices = @transform_6, window_bounds = array<i64: 2>}, {transform_indices = @transform_7, window_bounds = array<i64: 1, 8, 8, 32>}]} {
    %c0 = arith.constant 0 : index
    %c0_0 = arith.constant 0 : index
    %c0_1 = arith.constant 0 : index
    %c0_2 = arith.constant 0 : index
    %0 = vector.load %arg1[%c0, %c0_0, %c0_1, %c0_2] : memref<1x8x8x32xf32, #tpu.memory_space<vmem>>, vector<1x8x8x32xf32>
    %c0_3 = arith.constant 0 : index
    %c0_4 = arith.constant 0 : index
    %1 = vector.load %arg2[%c0_3, %c0_4] : memref<32x96xf32, #tpu.memory_space<vmem>>, vector<32x96xf32>
    %c0_5 = arith.constant 0 : index
    %c0_6 = arith.constant 0 : index
    %2 = vector.load %arg3[%c0_5, %c0_6] : memref<1x96xf32, #tpu.memory_space<vmem>>, vector<1x96xf32>
    %c0_7 = arith.constant 0 : index
    %3 = memref.load %arg7[%c0_7] : memref<2xf32, #tpu.memory_space<smem>>
    %4 = tpu.transpose %0, [0, 2, 1, 3] : vector<1x8x8x32xf32> -> vector<1x8x8x32xf32>
    %5 = vector.shape_cast %0 : vector<1x8x8x32xf32> to vector<64x32xf32>
    %cst = arith.constant dense<0.000000e+00> : vector<64x96xf32>
    %6 = tpu.matmul %5, %1, %cst {dimension_numbers = #tpu.dot_dimension_numbers<[1], [0], [0], [1], [0, 0, 1, 1], [], []>} : vector<64x32xf32>, vector<32x96xf32>, vector<64x96xf32> -> vector<64x96xf32>
    %7 = vector.broadcast %2 : vector<1x96xf32> to vector<64x96xf32>
    %8 = arith.addf %6, %7 : vector<64x96xf32>
    %9 = vector.extract_strided_slice %8 {offsets = [0, 0], sizes = [64, 32], strides = [1, 1]} : vector<64x96xf32> to vector<64x32xf32>
    %10 = vector.shape_cast %9 : vector<64x32xf32> to vector<8x8x32xf32>
    %11 = vector.extract_strided_slice %8 {offsets = [0, 32], sizes = [64, 32], strides = [1, 1]} : vector<64x96xf32> to vector<64x32xf32>
    %12 = vector.shape_cast %11 : vector<64x32xf32> to vector<8x8x32xf32>
    %13 = vector.extract_strided_slice %8 {offsets = [0, 64], sizes = [64, 32], strides = [1, 1]} : vector<64x96xf32> to vector<64x32xf32>
    %14 = vector.extract_strided_slice %1 {offsets = [0, 0], sizes = [32, 64], strides = [1, 1]} : vector<32x96xf32> to vector<32x64xf32>
    %15 = vector.extract_strided_slice %2 {offsets = [0, 0], sizes = [1, 64], strides = [1, 1]} : vector<1x96xf32> to vector<1x64xf32>
    %16 = vector.shape_cast %4 : vector<1x8x8x32xf32> to vector<64x32xf32>
    %cst_8 = arith.constant dense<0.000000e+00> : vector<64x64xf32>
    %17 = tpu.matmul %16, %14, %cst_8 {dimension_numbers = #tpu.dot_dimension_numbers<[1], [0], [0], [1], [0, 0, 1, 1], [], []>} : vector<64x32xf32>, vector<32x64xf32>, vector<64x64xf32> -> vector<64x64xf32>
    %18 = vector.broadcast %15 : vector<1x64xf32> to vector<64x64xf32>
    %19 = arith.addf %17, %18 : vector<64x64xf32>
    %20 = vector.extract_strided_slice %19 {offsets = [0, 0], sizes = [64, 32], strides = [1, 1]} : vector<64x64xf32> to vector<64x32xf32>
    %21 = vector.shape_cast %20 : vector<64x32xf32> to vector<8x8x32xf32>
    %22 = vector.extract_strided_slice %19 {offsets = [0, 32], sizes = [64, 32], strides = [1, 1]} : vector<64x64xf32> to vector<64x32xf32>
    %23 = vector.shape_cast %22 : vector<64x32xf32> to vector<8x8x32xf32>
    %24 = vector.shape_cast %0 : vector<1x8x8x32xf32> to vector<8x8x32xf32>
    %25 = vector.shape_cast %4 : vector<1x8x8x32xf32> to vector<8x8x32xf32>
    "tpu.trace_start"() <{level = 10 : i32, message = "nwc,ngc->nwg"}> : () -> ()
    %cst_9 = arith.constant dense<0.000000e+00> : vector<8x8x8xf32>
    %26 = tpu.matmul %10, %24, %cst_9 {dimension_numbers = #tpu.dot_dimension_numbers<[2], [2], [1], [1], [0, 0, 0, 1, 1, 1], [0], [0]>} : vector<8x8x32xf32>, vector<8x8x32xf32>, vector<8x8x8xf32> -> vector<8x8x8xf32>
    "tpu.trace_stop"() : () -> ()
    "tpu.trace_start"() <{level = 10 : i32, message = "nhc,ngc->nhg"}> : () -> ()
    %cst_10 = arith.constant dense<0.000000e+00> : vector<8x8x8xf32>
    %27 = tpu.matmul %21, %25, %cst_10 {dimension_numbers = #tpu.dot_dimension_numbers<[2], [2], [1], [1], [0, 0, 0, 1, 1, 1], [0], [0]>} : vector<8x8x32xf32>, vector<8x8x32xf32>, vector<8x8x8xf32> -> vector<8x8x8xf32>
    "tpu.trace_stop"() : () -> ()
    %28 = tpu.iota {dimensions = array<i32: 1>} : vector<1x8x8xi32>
    %29 = tpu.iota {dimensions = array<i32: 2>} : vector<1x8x8xi32>
    %30 = arith.cmpi eq, %28, %29 : vector<1x8x8xi32>
    %cst_11 = arith.constant -1.000000e+30 : f32
    %31 = vector.shape_cast %30 : vector<1x8x8xi1> to vector<1x8x8xi1>
    %32 = vector.broadcast %31 : vector<1x8x8xi1> to vector<8x8x8xi1>
    %33 = vector.broadcast %cst_11 : f32 to vector<8x8x8xf32>
    %34 = arith.select %32, %33, %27 : vector<8x8x8xi1>, vector<8x8x8xf32>
    %cst_12 = arith.constant dense<0xFF800000> : vector<8x8xf32>
    %35 = vector.multi_reduction <maximumf>, %34, %cst_12 [2] : vector<8x8x8xf32> to vector<8x8xf32>
    %36 = vector.shape_cast %35 : vector<8x8xf32> to vector<1x8x8xf32>
    %37 = tpu.transpose %36, [0, 2, 1] : vector<1x8x8xf32> -> vector<1x8x8xf32>
    %38 = vector.shape_cast %37 : vector<1x8x8xf32> to vector<8x8x1xf32>
    %cst_13 = arith.constant dense<0xFF800000> : vector<8x8xf32>
    %39 = vector.multi_reduction <maximumf>, %26, %cst_13 [2] : vector<8x8x8xf32> to vector<8x8xf32>
    %40 = vector.shape_cast %39 : vector<8x8xf32> to vector<8x8x1xf32>
    %41 = arith.maximumf %40, %38 : vector<8x8x1xf32>
    %42 = vector.shape_cast %41 : vector<8x8x1xf32> to vector<1x8x8xf32>
    %43 = tpu.transpose %42, [0, 2, 1] : vector<1x8x8xf32> -> vector<1x8x8xf32>
    %44 = vector.shape_cast %43 : vector<1x8x8xf32> to vector<8x8x1xf32>
    %45 = vector.broadcast %41 : vector<8x8x1xf32> to vector<8x8x8xf32>
    %46 = arith.subf %26, %45 : vector<8x8x8xf32>
    %47 = math.exp %46 : vector<8x8x8xf32>
    %48 = vector.broadcast %44 : vector<8x8x1xf32> to vector<8x8x8xf32>
    %49 = arith.subf %34, %48 : vector<8x8x8xf32>
    %50 = math.exp %49 : vector<8x8x8xf32>
    %cst_14 = arith.constant dense<0.000000e+00> : vector<8x8xf32>
    %51 = vector.multi_reduction <add>, %50, %cst_14 [2] : vector<8x8x8xf32> to vector<8x8xf32>
    %52 = vector.shape_cast %51 : vector<8x8xf32> to vector<1x8x8xf32>
    %53 = tpu.transpose %52, [0, 2, 1] : vector<1x8x8xf32> -> vector<1x8x8xf32>
    %54 = vector.shape_cast %53 : vector<1x8x8xf32> to vector<8x8x1xf32>
    %cst_15 = arith.constant dense<0.000000e+00> : vector<8x8xf32>
    %55 = vector.multi_reduction <add>, %47, %cst_15 [2] : vector<8x8x8xf32> to vector<8x8xf32>
    %56 = vector.shape_cast %55 : vector<8x8xf32> to vector<8x8x1xf32>
    %57 = arith.addf %56, %54 : vector<8x8x1xf32>
    %58 = tpu.reciprocal %57 {approx = true} : vector<8x8x1xf32> -> vector<8x8x1xf32>
    %59 = vector.shape_cast %58 : vector<8x8x1xf32> to vector<1x8x8xf32>
    %60 = tpu.transpose %59, [0, 2, 1] : vector<1x8x8xf32> -> vector<1x8x8xf32>
    %61 = vector.shape_cast %60 : vector<1x8x8xf32> to vector<8x8x1xf32>
    %62 = vector.broadcast %58 : vector<8x8x1xf32> to vector<8x8x8xf32>
    %63 = arith.mulf %47, %62 : vector<8x8x8xf32>
    %64 = vector.broadcast %61 : vector<8x8x1xf32> to vector<8x8x8xf32>
    %65 = arith.mulf %50, %64 : vector<8x8x8xf32>
    "tpu.trace_start"() <{level = 10 : i32, message = "nwg,ngc->nwc"}> : () -> ()
    %cst_16 = arith.constant dense<0.000000e+00> : vector<8x8x32xf32>
    %66 = tpu.matmul %63, %12, %cst_16 {dimension_numbers = #tpu.dot_dimension_numbers<[2], [1], [1], [2], [0, 0, 0, 1, 1, 2], [0], [0]>} : vector<8x8x8xf32>, vector<8x8x32xf32>, vector<8x8x32xf32> -> vector<8x8x32xf32>
    "tpu.trace_stop"() : () -> ()
    "tpu.trace_start"() <{level = 10 : i32, message = "nhg,ngc->nhc"}> : () -> ()
    %cst_17 = arith.constant dense<0.000000e+00> : vector<8x8x32xf32>
    %67 = tpu.matmul %65, %23, %cst_17 {dimension_numbers = #tpu.dot_dimension_numbers<[2], [1], [1], [2], [0, 0, 0, 1, 1, 2], [0], [0]>} : vector<8x8x8xf32>, vector<8x8x32xf32>, vector<8x8x32xf32> -> vector<8x8x32xf32>
    "tpu.trace_stop"() : () -> ()
    %68 = vector.shape_cast %67 : vector<8x8x32xf32> to vector<1x8x8x32xf32>
    %69 = tpu.transpose %68, [0, 2, 1, 3] : vector<1x8x8x32xf32> -> vector<1x8x8x32xf32>
    %70 = vector.shape_cast %66 : vector<8x8x32xf32> to vector<1x8x8x32xf32>
    %71 = arith.addf %69, %70 : vector<1x8x8x32xf32>
    %72 = vector.broadcast %3 : f32 to vector<1x8x8x32xf32>
    %73 = arith.mulf %72, %71 : vector<1x8x8x32xf32>
    %74 = arith.addf %73, %0 : vector<1x8x8x32xf32>
    %c0_18 = arith.constant 0 : index
    %c0_19 = arith.constant 0 : index
    %75 = vector.load %arg4[%c0_18, %c0_19] : memref<32x64xf32, #tpu.memory_space<vmem>>, vector<32x64xf32>
    %c0_20 = arith.constant 0 : index
    %c0_21 = arith.constant 0 : index
    %76 = vector.load %arg5[%c0_20, %c0_21] : memref<1x64xf32, #tpu.memory_space<vmem>>, vector<1x64xf32>
    %c1 = arith.constant 1 : index
    %77 = memref.load %arg7[%c1] : memref<2xf32, #tpu.memory_space<smem>>
    %78 = tpu.transpose %74, [0, 2, 1, 3] : vector<1x8x8x32xf32> -> vector<1x8x8x32xf32>
    %79 = vector.shape_cast %74 : vector<1x8x8x32xf32> to vector<64x32xf32>
    %cst_22 = arith.constant dense<0.000000e+00> : vector<64x64xf32>
    %80 = tpu.matmul %79, %75, %cst_22 {dimension_numbers = #tpu.dot_dimension_numbers<[1], [0], [0], [1], [0, 0, 1, 1], [], []>} : vector<64x32xf32>, vector<32x64xf32>, vector<64x64xf32> -> vector<64x64xf32>
    %81 = vector.broadcast %76 : vector<1x64xf32> to vector<64x64xf32>
    %82 = arith.addf %80, %81 : vector<64x64xf32>
    %83 = vector.extract_strided_slice %82 {offsets = [0, 0], sizes = [64, 32], strides = [1, 1]} : vector<64x64xf32> to vector<64x32xf32>
    %84 = vector.shape_cast %83 : vector<64x32xf32> to vector<8x8x32xf32>
    %85 = vector.extract_strided_slice %82 {offsets = [0, 32], sizes = [64, 32], strides = [1, 1]} : vector<64x64xf32> to vector<64x32xf32>
    %86 = vector.shape_cast %85 : vector<64x32xf32> to vector<8x8x32xf32>
    %87 = vector.shape_cast %78 : vector<1x8x8x32xf32> to vector<64x32xf32>
    %cst_23 = arith.constant dense<0.000000e+00> : vector<64x64xf32>
    %88 = tpu.matmul %87, %75, %cst_23 {dimension_numbers = #tpu.dot_dimension_numbers<[1], [0], [0], [1], [0, 0, 1, 1], [], []>} : vector<64x32xf32>, vector<32x64xf32>, vector<64x64xf32> -> vector<64x64xf32>
    %89 = vector.broadcast %76 : vector<1x64xf32> to vector<64x64xf32>
    %90 = arith.addf %88, %89 : vector<64x64xf32>
    %91 = vector.extract_strided_slice %90 {offsets = [0, 0], sizes = [64, 32], strides = [1, 1]} : vector<64x64xf32> to vector<64x32xf32>
    %92 = vector.shape_cast %91 : vector<64x32xf32> to vector<8x8x32xf32>
    %93 = vector.extract_strided_slice %90 {offsets = [0, 32], sizes = [64, 32], strides = [1, 1]} : vector<64x64xf32> to vector<64x32xf32>
    %94 = vector.shape_cast %93 : vector<64x32xf32> to vector<8x8x32xf32>
    %95 = vector.shape_cast %74 : vector<1x8x8x32xf32> to vector<8x8x32xf32>
    %96 = vector.shape_cast %78 : vector<1x8x8x32xf32> to vector<8x8x32xf32>
    "tpu.trace_start"() <{level = 10 : i32, message = "nwc,ngc->nwg"}> : () -> ()
    %cst_24 = arith.constant dense<0.000000e+00> : vector<8x8x8xf32>
    %97 = tpu.matmul %84, %95, %cst_24 {dimension_numbers = #tpu.dot_dimension_numbers<[2], [2], [1], [1], [0, 0, 0, 1, 1, 1], [0], [0]>} : vector<8x8x32xf32>, vector<8x8x32xf32>, vector<8x8x8xf32> -> vector<8x8x8xf32>
    "tpu.trace_stop"() : () -> ()
    "tpu.trace_start"() <{level = 10 : i32, message = "nhc,ngc->nhg"}> : () -> ()
    %cst_25 = arith.constant dense<0.000000e+00> : vector<8x8x8xf32>
    %98 = tpu.matmul %92, %96, %cst_25 {dimension_numbers = #tpu.dot_dimension_numbers<[2], [2], [1], [1], [0, 0, 0, 1, 1, 1], [0], [0]>} : vector<8x8x32xf32>, vector<8x8x32xf32>, vector<8x8x8xf32> -> vector<8x8x8xf32>
    "tpu.trace_stop"() : () -> ()
    %99 = tpu.iota {dimensions = array<i32: 1>} : vector<1x8x8xi32>
    %100 = tpu.iota {dimensions = array<i32: 2>} : vector<1x8x8xi32>
    %101 = arith.cmpi eq, %99, %100 : vector<1x8x8xi32>
    %cst_26 = arith.constant -1.000000e+30 : f32
    %102 = vector.shape_cast %101 : vector<1x8x8xi1> to vector<1x8x8xi1>
    %103 = vector.broadcast %102 : vector<1x8x8xi1> to vector<8x8x8xi1>
    %104 = vector.broadcast %cst_26 : f32 to vector<8x8x8xf32>
    %105 = arith.select %103, %104, %98 : vector<8x8x8xi1>, vector<8x8x8xf32>
    %cst_27 = arith.constant dense<0xFF800000> : vector<8x8xf32>
    %106 = vector.multi_reduction <maximumf>, %105, %cst_27 [2] : vector<8x8x8xf32> to vector<8x8xf32>
    %107 = vector.shape_cast %106 : vector<8x8xf32> to vector<1x8x8xf32>
    %108 = tpu.transpose %107, [0, 2, 1] : vector<1x8x8xf32> -> vector<1x8x8xf32>
    %109 = vector.shape_cast %108 : vector<1x8x8xf32> to vector<8x8x1xf32>
    %cst_28 = arith.constant dense<0xFF800000> : vector<8x8xf32>
    %110 = vector.multi_reduction <maximumf>, %97, %cst_28 [2] : vector<8x8x8xf32> to vector<8x8xf32>
    %111 = vector.shape_cast %110 : vector<8x8xf32> to vector<8x8x1xf32>
    %112 = arith.maximumf %111, %109 : vector<8x8x1xf32>
    %113 = vector.shape_cast %112 : vector<8x8x1xf32> to vector<1x8x8xf32>
    %114 = tpu.transpose %113, [0, 2, 1] : vector<1x8x8xf32> -> vector<1x8x8xf32>
    %115 = vector.shape_cast %114 : vector<1x8x8xf32> to vector<8x8x1xf32>
    %116 = vector.broadcast %112 : vector<8x8x1xf32> to vector<8x8x8xf32>
    %117 = arith.subf %97, %116 : vector<8x8x8xf32>
    %118 = math.exp %117 : vector<8x8x8xf32>
    %119 = vector.broadcast %115 : vector<8x8x1xf32> to vector<8x8x8xf32>
    %120 = arith.subf %105, %119 : vector<8x8x8xf32>
    %121 = math.exp %120 : vector<8x8x8xf32>
    %cst_29 = arith.constant dense<0.000000e+00> : vector<8x8xf32>
    %122 = vector.multi_reduction <add>, %121, %cst_29 [2] : vector<8x8x8xf32> to vector<8x8xf32>
    %123 = vector.shape_cast %122 : vector<8x8xf32> to vector<1x8x8xf32>
    %124 = tpu.transpose %123, [0, 2, 1] : vector<1x8x8xf32> -> vector<1x8x8xf32>
    %125 = vector.shape_cast %124 : vector<1x8x8xf32> to vector<8x8x1xf32>
    %cst_30 = arith.constant dense<0.000000e+00> : vector<8x8xf32>
    %126 = vector.multi_reduction <add>, %118, %cst_30 [2] : vector<8x8x8xf32> to vector<8x8xf32>
    %127 = vector.shape_cast %126 : vector<8x8xf32> to vector<8x8x1xf32>
    %128 = arith.addf %127, %125 : vector<8x8x1xf32>
    %129 = tpu.reciprocal %128 {approx = true} : vector<8x8x1xf32> -> vector<8x8x1xf32>
    %130 = vector.shape_cast %129 : vector<8x8x1xf32> to vector<1x8x8xf32>
    %131 = tpu.transpose %130, [0, 2, 1] : vector<1x8x8xf32> -> vector<1x8x8xf32>
    %132 = vector.shape_cast %131 : vector<1x8x8xf32> to vector<8x8x1xf32>
    %133 = vector.broadcast %129 : vector<8x8x1xf32> to vector<8x8x8xf32>
    %134 = arith.mulf %118, %133 : vector<8x8x8xf32>
    %135 = vector.broadcast %132 : vector<8x8x1xf32> to vector<8x8x8xf32>
    %136 = arith.mulf %121, %135 : vector<8x8x8xf32>
    "tpu.trace_start"() <{level = 10 : i32, message = "nwg,ngc->nwc"}> : () -> ()
    %cst_31 = arith.constant dense<0.000000e+00> : vector<8x8x32xf32>
    %137 = tpu.matmul %134, %86, %cst_31 {dimension_numbers = #tpu.dot_dimension_numbers<[2], [1], [1], [2], [0, 0, 0, 1, 1, 2], [0], [0]>} : vector<8x8x8xf32>, vector<8x8x32xf32>, vector<8x8x32xf32> -> vector<8x8x32xf32>
    "tpu.trace_stop"() : () -> ()
    "tpu.trace_start"() <{level = 10 : i32, message = "nhg,ngc->nhc"}> : () -> ()
    %cst_32 = arith.constant dense<0.000000e+00> : vector<8x8x32xf32>
    %138 = tpu.matmul %136, %94, %cst_32 {dimension_numbers = #tpu.dot_dimension_numbers<[2], [1], [1], [2], [0, 0, 0, 1, 1, 2], [0], [0]>} : vector<8x8x8xf32>, vector<8x8x32xf32>, vector<8x8x32xf32> -> vector<8x8x32xf32>
    "tpu.trace_stop"() : () -> ()
    %139 = vector.shape_cast %138 : vector<8x8x32xf32> to vector<1x8x8x32xf32>
    %140 = tpu.transpose %139, [0, 2, 1, 3] : vector<1x8x8x32xf32> -> vector<1x8x8x32xf32>
    %141 = vector.shape_cast %137 : vector<8x8x32xf32> to vector<1x8x8x32xf32>
    %142 = arith.addf %140, %141 : vector<1x8x8x32xf32>
    %143 = vector.broadcast %77 : f32 to vector<1x8x8x32xf32>
    %144 = arith.mulf %143, %142 : vector<1x8x8x32xf32>
    %145 = arith.addf %144, %74 : vector<1x8x8x32xf32>
    %146 = vector.shape_cast %145 : vector<1x8x8x32xf32> to vector<64x32xf32>
    %c0_33 = arith.constant 0 : index
    %c0_34 = arith.constant 0 : index
    %147 = vector.load %arg6[%c0_33, %c0_34] : memref<32x32xf32, #tpu.memory_space<vmem>>, vector<32x32xf32>
    %cst_35 = arith.constant dense<0.000000e+00> : vector<64x32xf32>
    %148 = tpu.matmul %146, %147, %cst_35 {dimension_numbers = #tpu.dot_dimension_numbers<[1], [0], [0], [1], [0, 0, 1, 1], [], []>} : vector<64x32xf32>, vector<32x32xf32>, vector<64x32xf32> -> vector<64x32xf32>
    %149 = arith.addf %13, %148 : vector<64x32xf32>
    %150 = vector.shape_cast %149 : vector<64x32xf32> to vector<1x8x8x32xf32>
    %c0_36 = arith.constant 0 : index
    %c0_37 = arith.constant 0 : index
    %c0_38 = arith.constant 0 : index
    %c0_39 = arith.constant 0 : index
    %151 = vector.load %arg8[%c0_36, %c0_37, %c0_38, %c0_39] : memref<1x8x8x32xf32, #tpu.memory_space<vmem>>, vector<1x8x8x32xf32>
    tpu.vector_store %arg8[%c0_36, %c0_37, %c0_38, %c0_39], %150 {strides = array<i32>} : memref<1x8x8x32xf32, #tpu.memory_space<vmem>>, vector<1x8x8x32xf32>,
    return
  }
  func.func @transform_0(%arg0: i32) -> (i32, i32, i32, i32) {
    %c0_i32 = arith.constant 0 : i32
    %c0_i32_0 = arith.constant 0 : i32
    %c0_i32_1 = arith.constant 0 : i32
    %c0_i32_2 = arith.constant 0 : i32
    return %arg0, %c0_i32, %c0_i32_0, %c0_i32_1 : i32, i32, i32, i32
  }
  func.func @transform_1(%arg0: i32) -> (i32, i32) {
    %c0_i32 = arith.constant 0 : i32
    %c0_i32_0 = arith.constant 0 : i32
    %c0_i32_1 = arith.constant 0 : i32
    return %c0_i32, %c0_i32_0 : i32, i32
  }
  func.func @transform_2(%arg0: i32) -> (i32, i32) {
    %c0_i32 = arith.constant 0 : i32
    %c0_i32_0 = arith.constant 0 : i32
    %c0_i32_1 = arith.constant 0 : i32
    return %c0_i32, %c0_i32_0 : i32, i32
  }
  func.func @transform_3(%arg0: i32) -> (i32, i32) {
    %c0_i32 = arith.constant 0 : i32
    %c0_i32_0 = arith.constant 0 : i32
    %c0_i32_1 = arith.constant 0 : i32
    return %c0_i32, %c0_i32_0 : i32, i32
  }
  func.func @transform_4(%arg0: i32) -> (i32, i32) {
    %c0_i32 = arith.constant 0 : i32
    %c0_i32_0 = arith.constant 0 : i32
    %c0_i32_1 = arith.constant 0 : i32
    return %c0_i32, %c0_i32_0 : i32, i32
  }
  func.func @transform_5(%arg0: i32) -> (i32, i32) {
    %c0_i32 = arith.constant 0 : i32
    %c0_i32_0 = arith.constant 0 : i32
    %c0_i32_1 = arith.constant 0 : i32
    return %c0_i32, %c0_i32_0 : i32, i32
  }
  func.func @transform_6(%arg0: i32) -> i32 {
    %c0_i32 = arith.constant 0 : i32
    %c0_i32_0 = arith.constant 0 : i32
    return %c0_i32 : i32
  }
  func.func @transform_7(%arg0: i32) -> (i32, i32, i32, i32) {
    %c0_i32 = arith.constant 0 : i32
    %c0_i32_0 = arith.constant 0 : i32
    %c0_i32_1 = arith.constant 0 : i32
    %c0_i32_2 = arith.constant 0 : i32
    return %arg0, %c0_i32, %c0_i32_0, %c0_i32_1 : i32, i32, i32, i32
  }
}

</mosaic_0001>

<llo_original>
// kernel: _lambda_.1
$region0: #{_lambda_.1}
  #allocation0 [shape = 'u32[]', space=smem, size = 0x4, offset = 0x4, fixed_abs, tag = 'smem constant byte address 0x4 - core index']
  #allocation1 [shape = 'u32[144,128]{1,0:T(1,128)}', space=vmem, size = 0x12000, scoped, tag = 'internal scratch']
  %s0 = inlined_call_operand.hbm [shape: f32[2,8,8,32], index: 0, kind: input, shape index: {}]
  %s1 = inlined_call_operand.hbm [shape: f32[32,96], index: 1, kind: input, shape index: {}]
  %s2 = inlined_call_operand.vmem [shape: f32[1,96], index: 2, kind: input, shape index: {}]
  %s3 = inlined_call_operand.hbm [shape: f32[32,64], index: 3, kind: input, shape index: {}]
  %s4 = inlined_call_operand.vmem [shape: f32[1,64], index: 4, kind: input, shape index: {}]
  %s5 = inlined_call_operand.hbm [shape: f32[32,32], index: 5, kind: input, shape index: {}]
  %s6 = inlined_call_operand.vmem [shape: f32[2], index: 6, kind: input, shape index: {}]
  %s7 = inlined_call_operand.hbm [shape: f32[2,8,8,32], index: 7, kind: output, shape index: {}]
  %s8 = sld [smem:[#allocation0]]
  $region81: #{_lambda_.1} parent=0
    _
  %s10 = ssub.s32 1, %s8
  %s11 = scalar_select 0, %s10, %s8
  $region1: #{_lambda_.1} parent=0
    #allocation2 [shape = 'u8[65536]{0}', space=vmem, size = 0x10000, scoped, tag = 'input window, operand 0']
    #allocation3 [shape = 's32[2]{0}', space=sflag, size = 0x8, scoped, tag = 'scoped memory for _lambda_.1']
    #allocation4 [shape = 's32[2]{0}', space=sflag, size = 0x8, scoped, tag = 'scoped memory for _lambda_.1']
    #allocation5 [shape = 's32[2]{0}', space=sflag, size = 0x8, scoped, tag = 'scoped memory for _lambda_.1']
    #allocation6 [shape = 'u8[16384]{0}', space=vmem, size = 0x4000, scoped, tag = 'input window, operand 1, single buffered']
    #allocation7 [shape = 's32[1]{0}', space=sflag, size = 0x4, scoped, tag = 'scoped memory for _lambda_.1']
    #allocation8 [shape = 'u8[16384]{0}', space=vmem, size = 0x4000, scoped, tag = 'input window, operand 3, single buffered']
    #allocation9 [shape = 'u8[16384]{0}', space=vmem, size = 0x4000, scoped, tag = 'input window, operand 5, single buffered']
    #allocation10 [shape = 's32[1]{0}', space=sflag, size = 0x4, scoped, tag = 'scoped memory for _lambda_.1']
    #allocation11 [shape = 'u8[512]{0}', space=smem, size = 0x200, scoped, tag = 'input window, operand 6, single buffered']
    #allocation12 [shape = 'u8[65536]{0}', space=vmem, size = 0x10000, scoped, tag = 'output window, operand 0']
    %12 = vsyncpa [#allocation3], 0
    %s13 = scalar_lea.sflag [#allocation3], 1
    %14 = vsyncpa %s13, 0
    %15 = vsyncpa [#allocation7], 0
    %16 = vsyncpa [#allocation10], 0
    %17 = vsyncpa [#allocation5], 0
    %18 = vsyncpa [#allocation4], 0
    %s19 = scalar_lea.sflag [#allocation4], 1
    %20 = vsyncpa %s19, 0
    loop: start=0, step=1, limit=4
    $region2: #{_lambda_.1} parent=1 // loop_pre_header
      _
    $region3: #{_lambda_.1} parent=1 // loop_header
      %s22 = sphi 0, %s26
      %p23 = scmp.ge.s32.totalorder %s22, 4
      %s32 = sphi 0, %s34
      %s35 = sphi 0, %s32
      %s36 = sphi 0, %s35
      %s52 = sphi 0, %s36
      %s56 = sphi 0, %s56
      %s58 = sphi 0, %s56
      %s59 = sphi 0, %s58
      %s73 = sphi 0, %s59
      %s77 = sphi 0, %s77
      %s79 = sphi 0, %s77
      %s80 = sphi 0, %s79
      %s94 = sphi 0, %s80
      %s98 = sphi 0, %s98
      %s100 = sphi 0, %s98
      %s101 = sphi 0, %s100
      %s115 = sphi 0, %s101
      %s119 = sphi 0, %s119
      %s121 = sphi 0, %s119
      %s122 = sphi 0, %s121
      %s136 = sphi 0, %s122
      %s140 = sphi 0, %s140
      %s142 = sphi 0, %s140
      %s143 = sphi 0, %s142
      %s157 = sphi 0, %s143
      %s161 = sphi 0, %s161
      %s163 = sphi 0, %s161
      %s164 = sphi 0, %s163
      %s178 = sphi 0, %s164
      %s184 = sphi 0, %s186
      %s187 = sphi 0, %s184
      %s188 = sphi 0, %s187
      %s204 = sphi 0, %s188
    $region4: #{_lambda_.1} parent=1 // loop_header_branch
      %25 = sbr.rel (%p23) target = $region8
    $region5: #{_lambda_.1} parent=1 // loop_body
      %s27 = ssub.s32 %s22, 1
      %s28 = ssub.s32 %s22, 2
      %s29 = sadd.s32 %s22, 1
      %s30 = ssub.s32 %s22, %s29
      %p31 = scmp.eq.s32.totalorder %s30, 0
      %s33 = sadd.s32 %s32, 1
      %s34 = scalar_select %p31, %s32, %s33
      %p37 = pneg %p31
      %p38 = scmp.eq.s32.totalorder %s22, 1
      %p39 = por %p37, %p38
      %p40 = scmp.ne.s32.totalorder %s32, %s35
      %p41 = scmp.eq.s32.totalorder %s22, 0
      %p42 = por %p40, %p41
      %p43 = scmp.ne.s32.totalorder %s32, %s35
      %p44 = scmp.eq.s32.totalorder %s27, 1
      %p45 = por %p43, %p44
      %p46 = scmp.ne.s32.totalorder %s35, %s36
      %p47 = scmp.eq.s32.totalorder %s27, 0
      %p48 = por %p46, %p47
      %p49 = scmp.ne.s32.totalorder %s35, %s36
      %p50 = scmp.eq.s32.totalorder %s28, 1
      %p51 = por %p49, %p50
      %p53 = scmp.ne.s32.totalorder %s36, %s52
      %p54 = scmp.eq.s32.totalorder %s28, 0
      %p55 = por %p53, %p54
      %s57 = sadd.s32 %s56, 1
      %p60 = scmp.eq.s32.totalorder %s22, 1
      %p61 = scmp.ne.s32.totalorder %s56, %s58
      %p62 = scmp.eq.s32.totalorder %s22, 0
      %p63 = por %p61, %p62
      %p64 = scmp.ne.s32.totalorder %s56, %s58
      %p65 = scmp.eq.s32.totalorder %s27, 1
      %p66 = por %p64, %p65
      %p67 = scmp.ne.s32.totalorder %s58, %s59
      %p68 = scmp.eq.s32.totalorder %s27, 0
      %p69 = por %p67, %p68
      %p70 = scmp.ne.s32.totalorder %s58, %s59
      %p71 = scmp.eq.s32.totalorder %s28, 1
      %p72 = por %p70, %p71
      %p74 = scmp.ne.s32.totalorder %s59, %s73
      %p75 = scmp.eq.s32.totalorder %s28, 0
      %p76 = por %p74, %p75
      %s78 = sadd.s32 %s77, 1
      %p81 = scmp.eq.s32.totalorder %s22, 1
      %p82 = scmp.ne.s32.totalorder %s77, %s79
      %p83 = scmp.eq.s32.totalorder %s22, 0
      %p84 = por %p82, %p83
      %p85 = scmp.ne.s32.totalorder %s77, %s79
      %p86 = scmp.eq.s32.totalorder %s27, 1
      %p87 = por %p85, %p86
      %p88 = scmp.ne.s32.totalorder %s79, %s80
      %p89 = scmp.eq.s32.totalorder %s27, 0
      %p90 = por %p88, %p89
      %p91 = scmp.ne.s32.totalorder %s79, %s80
      %p92 = scmp.eq.s32.totalorder %s28, 1
      %p93 = por %p91, %p92
      %p95 = scmp.ne.s32.totalorder %s80, %s94
      %p96 = scmp.eq.s32.totalorder %s28, 0
      %p97 = por %p95, %p96
      %s99 = sadd.s32 %s98, 1
      %p102 = scmp.eq.s32.totalorder %s22, 1
      %p103 = scmp.ne.s32.totalorder %s98, %s100
      %p104 = scmp.eq.s32.totalorder %s22, 0
      %p105 = por %p103, %p104
      %p106 = scmp.ne.s32.totalorder %s98, %s100
      %p107 = scmp.eq.s32.totalorder %s27, 1
      %p108 = por %p106, %p107
      %p109 = scmp.ne.s32.totalorder %s100, %s101
      %p110 = scmp.eq.s32.totalorder %s27, 0
      %p111 = por %p109, %p110
      %p112 = scmp.ne.s32.totalorder %s100, %s101
      %p113 = scmp.eq.s32.totalorder %s28, 1
      %p114 = por %p112, %p113
      %p116 = scmp.ne.s32.totalorder %s101, %s115
      %p117 = scmp.eq.s32.totalorder %s28, 0
      %p118 = por %p116, %p117
      %s120 = sadd.s32 %s119, 1
      %p123 = scmp.eq.s32.totalorder %s22, 1
      %p124 = scmp.ne.s32.totalorder %s119, %s121
      %p125 = scmp.eq.s32.totalorder %s22, 0
      %p126 = por %p124, %p125
      %p127 = scmp.ne.s32.totalorder %s119, %s121
      %p128 = scmp.eq.s32.totalorder %s27, 1
      %p129 = por %p127, %p128
      %p130 = scmp.ne.s32.totalorder %s121, %s122
      %p131 = scmp.eq.s32.totalorder %s27, 0
      %p132 = por %p130, %p131
      %p133 = scmp.ne.s32.totalorder %s121, %s122
      %p134 = scmp.eq.s32.totalorder %s28, 1
      %p135 = por %p133, %p134
      %p137 = scmp.ne.s32.totalorder %s122, %s136
      %p138 = scmp.eq.s32.totalorder %s28, 0
      %p139 = por %p137, %p138
      %s141 = sadd.s32 %s140, 1
      %p144 = scmp.eq.s32.totalorder %s22, 1
      %p145 = scmp.ne.s32.totalorder %s140, %s142
      %p146 = scmp.eq.s32.totalorder %s22, 0
      %p147 = por %p145, %p146
      %p148 = scmp.ne.s32.totalorder %s140, %s142
      %p149 = scmp.eq.s32.totalorder %s27, 1
      %p150 = por %p148, %p149
      %p151 = scmp.ne.s32.totalorder %s142, %s143
      %p152 = scmp.eq.s32.totalorder %s27, 0
      %p153 = por %p151, %p152
      %p154 = scmp.ne.s32.totalorder %s142, %s143
      %p155 = scmp.eq.s32.totalorder %s28, 1
      %p156 = por %p154, %p155
      %p158 = scmp.ne.s32.totalorder %s143, %s157
      %p159 = scmp.eq.s32.totalorder %s28, 0
      %p160 = por %p158, %p159
      %s162 = sadd.s32 %s161, 1
      %p165 = scmp.eq.s32.totalorder %s22, 1
      %p166 = scmp.ne.s32.totalorder %s161, %s163
      %p167 = scmp.eq.s32.totalorder %s22, 0
      %p168 = por %p166, %p167
      %p169 = scmp.ne.s32.totalorder %s161, %s163
      %p170 = scmp.eq.s32.totalorder %s27, 1
      %p171 = por %p169, %p170
      %p172 = scmp.ne.s32.totalorder %s163, %s164
      %p173 = scmp.eq.s32.totalorder %s27, 0
      %p174 = por %p172, %p173
      %p175 = scmp.ne.s32.totalorder %s163, %s164
      %p176 = scmp.eq.s32.totalorder %s28, 1
      %p177 = por %p175, %p176
      %p179 = scmp.ne.s32.totalorder %s164, %s178
      %p180 = scmp.eq.s32.totalorder %s28, 0
      %p181 = por %p179, %p180
      %s182 = ssub.s32 %s22, %s29
      %p183 = scmp.eq.s32.totalorder %s182, 0
      %s185 = sadd.s32 %s184, 1
      %s186 = scalar_select %p183, %s184, %s185
      %p189 = pneg %p183
      %p190 = scmp.eq.s32.totalorder %s22, 1
      %p191 = por %p189, %p190
      %p192 = scmp.ne.s32.totalorder %s184, %s187
      %p193 = scmp.eq.s32.totalorder %s22, 0
      %p194 = por %p192, %p193
      %p195 = scmp.ne.s32.totalorder %s184, %s187
      %p196 = scmp.eq.s32.totalorder %s27, 1
      %p197 = por %p195, %p196
      %p198 = scmp.ne.s32.totalorder %s187, %s188
      %p199 = scmp.eq.s32.totalorder %s27, 0
      %p200 = por %p198, %p199
      %p201 = scmp.ne.s32.totalorder %s187, %s188
      %p202 = scmp.eq.s32.totalorder %s28, 1
      %p203 = por %p201, %p202
      %p205 = scmp.ne.s32.totalorder %s188, %s204
      %p206 = scmp.eq.s32.totalorder %s28, 0
      %p207 = por %p205, %p206
      %p208 = scmp.le.s32.totalorder 1, %s22
      %p209 = scmp.lt.s32.totalorder %s22, 3
      %p210 = pnand %p208, %p209
      %p211 = pneg %p210
      // Predicated region
      $region9: #{_lambda_.1} parent=5 // pred_check
        _
      $region10: #{_lambda_.1} parent=5 // pred_check_branch
        %213 = sbr.rel (%p210) target = $region12
      $region11: #{_lambda_.1} parent=5 // pred_region
        %s214 = ssub.s32 %s22, 1
        // Predicated region
        $region13: #{_lambda_.1} parent=11 // pred_check
          %p215 = pneg %p69
        $region14: #{_lambda_.1} parent=11 // pred_check_branch
          %217 = sbr.rel (%p215) target = $region16
        $region15: #{_lambda_.1} parent=11 // pred_region
          %s219 = ssub.s32 512, 512
          %220 = vsyncadd [#allocation7], %s219
          %s221 = sshll.u32 [#allocation6], 4
          %s222 = int_to_ptr.vmem [resolvable:$true] %s221
          %227 = dma.hbm_to_vmem [thread:$0]  %s1, 512, %s222, [#allocation7], 128, 128, 8
        $region16: #{_lambda_.1} parent=11 // pred_fallthru
          _
        // Predicated region
        $region17: #{_lambda_.1} parent=11 // pred_check
          %p228 = pneg %p90
        $region18: #{_lambda_.1} parent=11 // pred_check_branch
          %230 = sbr.rel (%p228) target = $region20
        $region19: #{_lambda_.1} parent=11 // pred_region
          _
        $region20: #{_lambda_.1} parent=11 // pred_fallthru
          _
        // Predicated region
        $region21: #{_lambda_.1} parent=11 // pred_check
          %p231 = pneg %p111
        $region22: #{_lambda_.1} parent=11 // pred_check_branch
          %233 = sbr.rel (%p231) target = $region24
        $region23: #{_lambda_.1} parent=11 // pred_region
          %s235 = ssub.s32 512, 512
          %236 = vsyncadd [#allocation7], %s235
          %s237 = sshll.u32 [#allocation8], 4
          %s238 = int_to_ptr.vmem [resolvable:$true] %s237
          %243 = dma.hbm_to_vmem [thread:$0]  %s3, 512, %s238, [#allocation7], 128, 128, 8
        $region24: #{_lambda_.1} parent=11 // pred_fallthru
          _
        // Predicated region
        $region25: #{_lambda_.1} parent=11 // pred_check
          %p244 = pneg %p132
        $region26: #{_lambda_.1} parent=11 // pred_check_branch
          %246 = sbr.rel (%p244) target = $region28
        $region27: #{_lambda_.1} parent=11 // pred_region
          _
        $region28: #{_lambda_.1} parent=11 // pred_fallthru
          _
        // Predicated region
        $region29: #{_lambda_.1} parent=11 // pred_check
          %p247 = pneg %p153
        $region30: #{_lambda_.1} parent=11 // pred_check_branch
          %249 = sbr.rel (%p247) target = $region32
        $region31: #{_lambda_.1} parent=11 // pred_region
          %s251 = ssub.s32 512, 512
          %252 = vsyncadd [#allocation10], %s251
          %s253 = sshll.u32 [#allocation9], 4
          %s254 = int_to_ptr.vmem [resolvable:$true] %s253
          %259 = dma.hbm_to_vmem [thread:$0]  %s5, 512, %s254, [#allocation10], 128, 128, 8
        $region32: #{_lambda_.1} parent=11 // pred_fallthru
          _
        // Predicated region
        $region33: #{_lambda_.1} parent=11 // pred_check
          %p260 = pneg %p174
        $region34: #{_lambda_.1} parent=11 // pred_check_branch
          %262 = sbr.rel (%p260) target = $region36
        $region35: #{_lambda_.1} parent=11 // pred_region
          %s264 = ssub.s32 16, 16
          %265 = vsyncadd [#allocation5], %s264
          %s267 = sshll.u32 %s6, 4
          %s268 = int_to_ptr.vmem [resolvable:$true] %s267
          %270 = dma.vmem_to_smem %s268, 16, [#allocation11], [#allocation5]
        $region36: #{_lambda_.1} parent=11 // pred_fallthru
          _
      $region12: #{_lambda_.1} parent=5 // pred_fallthru
        _
      %p271 = scmp.lt.s32.totalorder %s22, 2
      // Predicated region
      $region37: #{_lambda_.1} parent=5 // pred_check
        %p272 = pneg %p271
      $region38: #{_lambda_.1} parent=5 // pred_check_branch
        %274 = sbr.rel (%p272) target = $region40
      $region39: #{_lambda_.1} parent=5 // pred_region
        // Predicated region
        $region41: #{_lambda_.1} parent=39 // pred_check
          %p275 = pneg %p42
        $region42: #{_lambda_.1} parent=39 // pred_check_branch
          %277 = sbr.rel (%p275) target = $region44
        $region43: #{_lambda_.1} parent=39 // pred_region
          %s278 = sand.u32 %s32, 1
          %s279 = scalar_lea.sflag [#allocation3], %s278
          %s280 = sand.u32 %s32, 1
          %s281 = smul.addr %s280, 64
          %s282 = scalar_lea.vmem [#allocation2], %s281
          %s284 = ssub.s32 1024, 1024
          %285 = vsyncadd %s279, %s284
          %s286 = smul.addr %s22, 8
          %s287 = smul.addr %s286, 128
          %s288 = scalar_lea.hbm %s0, %s287
          %s289 = sshll.u32 %s282, 4
          %s290 = int_to_ptr.vmem [resolvable:$true] %s289
          %295 = dma.hbm_to_vmem [thread:$0]  %s288, 1024, %s290, %s279, 128, 128, 8
        $region44: #{_lambda_.1} parent=39 // pred_fallthru
          _
      $region40: #{_lambda_.1} parent=5 // pred_fallthru
        _
      %p296 = scmp.le.s32.totalorder 1, %s22
      %p297 = scmp.lt.s32.totalorder %s22, 3
      %p298 = pnand %p296, %p297
      %p299 = pneg %p298
      // Predicated region
      $region45: #{_lambda_.1} parent=5 // pred_check
        _
      $region46: #{_lambda_.1} parent=5 // pred_check_branch
        %301 = sbr.rel (%p298) target = $region48
      $region47: #{_lambda_.1} parent=5 // pred_region
        %s302 = ssub.s32 %s22, 1
        %s303 = sand.u32 %s35, 1
        %s304 = scalar_lea.sflag [#allocation3], %s303
        %s305 = sand.u32 %s35, 1
        %s306 = smul.addr %s305, 64
        %s307 = scalar_lea.vmem [#allocation2], %s306
        // Predicated region
        $region49: #{_lambda_.1} parent=47 // pred_check
          %p308 = pneg %p48
        $region50: #{_lambda_.1} parent=47 // pred_check_branch
          %310 = sbr.rel (%p308) target = $region52
        $region51: #{_lambda_.1} parent=47 // pred_region
          %311 = dma.done %s304, 1024
        $region52: #{_lambda_.1} parent=47 // pred_fallthru
          _
        // Predicated region
        $region53: #{_lambda_.1} parent=47 // pred_check
          %p312 = pneg %p69
        $region54: #{_lambda_.1} parent=47 // pred_check_branch
          %314 = sbr.rel (%p312) target = $region56
        $region55: #{_lambda_.1} parent=47 // pred_region
          %315 = dma.done [#allocation7], 512
        $region56: #{_lambda_.1} parent=47 // pred_fallthru
          _
        // Predicated region
        $region57: #{_lambda_.1} parent=47 // pred_check
          %p316 = pneg %p111
        $region58: #{_lambda_.1} parent=47 // pred_check_branch
          %318 = sbr.rel (%p316) target = $region60
        $region59: #{_lambda_.1} parent=47 // pred_region
          %319 = dma.done [#allocation7], 512
        $region60: #{_lambda_.1} parent=47 // pred_fallthru
          _
        // Predicated region
        $region61: #{_lambda_.1} parent=47 // pred_check
          %p320 = pneg %p153
        $region62: #{_lambda_.1} parent=47 // pred_check_branch
          %322 = sbr.rel (%p320) target = $region64
        $region63: #{_lambda_.1} parent=47 // pred_region
          %323 = dma.done [#allocation10], 512
        $region64: #{_lambda_.1} parent=47 // pred_fallthru
          _
        // Predicated region
        $region65: #{_lambda_.1} parent=47 // pred_check
          %p324 = pneg %p174
        $region66: #{_lambda_.1} parent=47 // pred_check_branch
          %326 = sbr.rel (%p324) target = $region68
        $region67: #{_lambda_.1} parent=47 // pred_region
          %327 = dma.done [#allocation5], 16
        $region68: #{_lambda_.1} parent=47 // pred_fallthru
          _
        %328 = sfence
        %s329 = sand.u32 %s35, 1
        %s330 = scalar_lea.sflag [#allocation3], %s329
        %s331 = sand.u32 %s35, 1
        %s332 = smul.addr %s331, 64
        %s333 = scalar_lea.vmem [#allocation2], %s332
        %p334 = pneg %p48
        %p335 = pneg %p45
        %p336 = pneg %p69
        %p337 = pneg %p66
        %p338 = pneg %p90
        %p339 = pneg %p87
        %p340 = pneg %p111
        %p341 = pneg %p108
        %p342 = pneg %p132
        %p343 = pneg %p129
        %p344 = pneg %p153
        %p345 = pneg %p150
        %p346 = pneg %p174
        %p347 = pneg %p171
        %p348 = pneg %p200
        %p349 = pneg %p197
        %s350 = sand.u32 %s187, 1
        %s351 = scalar_lea.sflag [#allocation4], %s350
        %s352 = sand.u32 %s187, 1
        %s353 = smul.addr %s352, 64
        %s354 = scalar_lea.vmem [#allocation12], %s353
        %v355 = vld [vmem:[%s307] sm:$0xff]
        %v356 = vld [vmem:[%s307 + $0x8] sm:$0xff]
        %v357 = vld [vmem:[%s307 + $0x10] sm:$0xff]
        %v358 = vld [vmem:[%s307 + $0x18] sm:$0xff]
        %v359 = vld [vmem:[%s307 + $0x20] sm:$0xff]
        %v360 = vld [vmem:[%s307 + $0x28] sm:$0xff]
        %v361 = vld [vmem:[%s307 + $0x30] sm:$0xff]
        %v362 = vld [vmem:[%s307 + $0x38] sm:$0xff]
        %v363 = vld [vmem:[#allocation6] sm:$0xff]
        %v364 = vld [vmem:[#allocation6 + $0x8] sm:$0xff]
        %v365 = vld [vmem:[#allocation6 + $0x10] sm:$0xff]
        %v366 = vld [vmem:[#allocation6 + $0x18] sm:$0xff]
        %v367 = vld [vmem:[%s2] sm:$0x1]
        %s368 = sld [smem:[#allocation11]]
        %v369 = vcombine.low %v355, %v357
        %v370 = vcombine.high %v355, %v357
        %v372 = vunpack.c.l.s4 1983009808
        %v373 = vunpack.c.0.s8 %v372
        %v374 = vlaneseq
        %v375 = vshrl.u32 %v374, 7
        %v376 = vsub.s32 %v373, %v375
        %v377 = vrot.slane %v369, %v376
        %v379 = vunpack.c.l.s4 1983009808
        %v380 = vunpack.c.0.s8 %v379
        %v381 = vlaneseq
        %v382 = vshrl.u32 %v381, 7
        %v383 = vsub.s32 %v380, %v382
        %v384 = vrot.slane %v370, %v383
        %v385 = vcombine.low %v356, %v358
        %v386 = vcombine.high %v356, %v358
        %v388 = vunpack.c.l.s4 1983009808
        %v389 = vunpack.c.0.s8 %v388
        %v390 = vlaneseq
        %v391 = vshrl.u32 %v390, 7
        %v392 = vsub.s32 %v389, %v391
        %v393 = vrot.slane %v385, %v392
        %v395 = vunpack.c.l.s4 1983009808
        %v396 = vunpack.c.0.s8 %v395
        %v397 = vlaneseq
        %v398 = vshrl.u32 %v397, 7
        %v399 = vsub.s32 %v396, %v398
        %v400 = vrot.slane %v386, %v399
        %v401 = vcombine.low %v359, %v361
        %v402 = vcombine.high %v359, %v361
        %v404 = vunpack.c.l.s4 1983009808
        %v405 = vunpack.c.0.s8 %v404
        %v406 = vlaneseq
        %v407 = vshrl.u32 %v406, 7
        %v408 = vsub.s32 %v405, %v407
        %v409 = vrot.slane %v401, %v408
        %v411 = vunpack.c.l.s4 1983009808
        %v412 = vunpack.c.0.s8 %v411
        %v413 = vlaneseq
        %v414 = vshrl.u32 %v413, 7
        %v415 = vsub.s32 %v412, %v414
        %v416 = vrot.slane %v402, %v415
        %v417 = vcombine.low %v360, %v362
        %v418 = vcombine.high %v360, %v362
        %v420 = vunpack.c.l.s4 1983009808
        %v421 = vunpack.c.0.s8 %v420
        %v422 = vlaneseq
        %v423 = vshrl.u32 %v422, 7
        %v424 = vsub.s32 %v421, %v423
        %v425 = vrot.slane %v417, %v424
        %v427 = vunpack.c.l.s4 1983009808
        %v428 = vunpack.c.0.s8 %v427
        %v429 = vlaneseq
        %v430 = vshrl.u32 %v429, 7
        %v431 = vsub.s32 %v428, %v430
        %v432 = vrot.slane %v418, %v431
        %v433 = vcombine.low %v377, %v393
        %v434 = vcombine.high %v377, %v393
        %v436 = vunpack.c.l.s4 1934713408
        %v437 = vunpack.c.0.s8 %v436
        %v438 = vlaneseq
        %v439 = vshrl.u32 %v438, 7
        %v440 = vsub.s32 %v437, %v439
        %v441 = vrot.slane %v433, %v440
        %v443 = vunpack.c.l.s4 1934713408
        %v444 = vunpack.c.0.s8 %v443
        %v445 = vlaneseq
        %v446 = vshrl.u32 %v445, 7
        %v447 = vsub.s32 %v444, %v446
        %v448 = vrot.slane %v434, %v447
        %v449 = vcombine.low %v384, %v400
        %v450 = vcombine.high %v384, %v400
        %v452 = vunpack.c.l.s4 1934713408
        %v453 = vunpack.c.0.s8 %v452
        %v454 = vlaneseq
        %v455 = vshrl.u32 %v454, 7
        %v456 = vsub.s32 %v453, %v455
        %v457 = vrot.slane %v449, %v456
        %v459 = vunpack.c.l.s4 1934713408
        %v460 = vunpack.c.0.s8 %v459
        %v461 = vlaneseq
        %v462 = vshrl.u32 %v461, 7
        %v463 = vsub.s32 %v460, %v462
        %v464 = vrot.slane %v450, %v463
        %v465 = vcombine.low %v409, %v425
        %v466 = vcombine.high %v409, %v425
        %v468 = vunpack.c.l.s4 1934713408
        %v469 = vunpack.c.0.s8 %v468
        %v470 = vlaneseq
        %v471 = vshrl.u32 %v470, 7
        %v472 = vsub.s32 %v469, %v471
        %v473 = vrot.slane %v465, %v472
        %v475 = vunpack.c.l.s4 1934713408
        %v476 = vunpack.c.0.s8 %v475
        %v477 = vlaneseq
        %v478 = vshrl.u32 %v477, 7
        %v479 = vsub.s32 %v476, %v478
        %v480 = vrot.slane %v466, %v479
        %v481 = vcombine.low %v416, %v432
        %v482 = vcombine.high %v416, %v432
        %v484 = vunpack.c.l.s4 1934713408
        %v485 = vunpack.c.0.s8 %v484
        %v486 = vlaneseq
        %v487 = vshrl.u32 %v486, 7
        %v488 = vsub.s32 %v485, %v487
        %v489 = vrot.slane %v481, %v488
        %v491 = vunpack.c.l.s4 1934713408
        %v492 = vunpack.c.0.s8 %v491
        %v493 = vlaneseq
        %v494 = vshrl.u32 %v493, 7
        %v495 = vsub.s32 %v492, %v494
        %v496 = vrot.slane %v482, %v495
        %v497 = vcombine.low %v441, %v473
        %v498 = vcombine.high %v441, %v473
        %v499 = vcombine.low %v448, %v480
        %v500 = vcombine.high %v448, %v480
        %v501 = vcombine.low %v457, %v489
        %v502 = vcombine.high %v457, %v489
        %v503 = vcombine.low %v464, %v496
        %v504 = vcombine.high %v464, %v496
        %v506 = vlaneseq
        %v507 = vshrl.u32 %v506, 7
        %v508 = vsub.s32 0, %v507
        %v509 = vrot.slane %v367, %v508
        %vm511 = vcmask 261120
        %v513 = vsel %vm511, %v355, 0
        %v516 = vsel %vm511, %v356, 0
        %v519 = vsel %vm511, %v357, 0
        %v522 = vsel %vm511, %v358, 0
        %v525 = vsel %vm511, %v359, 0
        %v528 = vsel %vm511, %v360, 0
        %v531 = vsel %vm511, %v361, 0
        %v534 = vsel %vm511, %v362, 0
        %536 = vmatprep.subr.mxu0 0.0
        %537 = vmatpush1.msra.mxu0 %v363
        %538 = vmatprep.subr.mxu0 0.0
        %539 = vmatpush1.msra.mxu0 %v364
        %540 = vmatprep.subr.mxu0 0.0
        %541 = vmatpush1.msra.mxu0 %v365
        %542 = vmatprep.subr.mxu0 0.0
        %543 = vmatpush1.msra.mxu0 %v366
        %544 = vmatprep.subr.mxu0 0.0
        %545 = vmatpush1.msra.mxu0 0.0
        %546 = vmatprep.subr.mxu0 0.0
        %547 = vmatpush1.msra.mxu0 0.0
        %548 = vmatprep.subr.mxu0 0.0
        %549 = vmatpush1.msra.mxu0 0.0
        %550 = vmatprep.subr.mxu0 0.0
        %551 = vmatpush1.msra.mxu0 0.0
        %552 = vmatprep.subr.mxu0 0.0
        %553 = vmatpush1.msra.mxu0 0.0
        %554 = vmatprep.subr.mxu0 0.0
        %555 = vmatpush1.msra.mxu0 0.0
        %556 = vmatprep.subr.mxu0 0.0
        %557 = vmatpush1.msra.mxu0 0.0
        %558 = vmatprep.subr.mxu0 0.0
        %559 = vmatpush1.msra.mxu0 0.0
        %560 = vmatprep.subr.mxu0 0.0
        %561 = vmatpush1.msra.mxu0 0.0
        %562 = vmatprep.subr.mxu0 0.0
        %563 = vmatpush1.msra.mxu0 0.0
        %564 = vmatprep.subr.mxu0 0.0
        %565 = vmatpush1.msra.mxu0 0.0
        %566 = vmatprep.subr.mxu0 0.0
        %567 = vmatpush1.msra.mxu0 0.0
        %568 = vmatprep.subr.mxu0 0.0
        %569 = vmatpush1.msra.mxu0 0.0
        %570 = vmatprep.subr.mxu0 0.0
        %571 = vmatpush1.msra.mxu0 0.0
        %572 = vmatprep.subr.mxu0 0.0
        %573 = vmatpush1.msra.mxu0 0.0
        %574 = vmatprep.subr.mxu0 0.0
        %575 = vmatpush1.msra.mxu0 0.0
        %576 = vmatprep.subr.mxu0 0.0
        %577 = vmatpush1.msra.mxu0 0.0
        %578 = vmatprep.subr.mxu0 0.0
        %579 = vmatpush1.msra.mxu0 0.0
        %580 = vmatprep.subr.mxu0 0.0
        %581 = vmatpush1.msra.mxu0 0.0
        %582 = vmatprep.subr.mxu0 0.0
        %583 = vmatpush1.msra.mxu0 0.0
        %584 = vmatprep.subr.mxu0 0.0
        %585 = vmatpush1.msra.mxu0 0.0
        %586 = vmatprep.subr.mxu0 0.0
        %587 = vmatpush1.msra.mxu0 0.0
        %588 = vmatprep.subr.mxu0 0.0
        %589 = vmatpush1.msra.mxu0 0.0
        %590 = vmatprep.subr.mxu0 0.0
        %591 = vmatpush1.msra.mxu0 0.0
        %592 = vmatprep.subr.mxu0 0.0
        %593 = vmatpush1.msra.mxu0 0.0
        %594 = vmatprep.subr.mxu0 0.0
        %595 = vmatpush1.msra.mxu0 0.0
        %596 = vmatprep.subr.mxu0 0.0
        %597 = vmatpush1.msra.mxu0 0.0
        %598 = vmatprep.subr.mxu0 0.0
        %599 = vmatpush1.msra.mxu0 0.0
        %600 = vmatprep.mubr.f32.mxu0 0.0
        %601 = vmatmul.mubr.f32.gmra.mrb[0].mxu0 %v513
        %v602 = vpop.f32.mrb[0].mxu0
        %v603 = vadd.f32 %v509, %v602
        %v604 = vpop.f32.mrb[0].mxu0
        %605 = vmatprep.mubr.f32.mxu0 0.0
        %606 = vmatmul.mubr.f32.gmra.mrb[0].mxu0 %v516
        %v607 = vpop.f32.mrb[0].mxu0
        %v608 = vadd.f32 %v509, %v607
        %v609 = vpop.f32.mrb[0].mxu0
        %610 = vmatprep.mubr.f32.mxu0 0.0
        %611 = vmatmul.mubr.f32.gmra.mrb[0].mxu0 %v519
        %v612 = vpop.f32.mrb[0].mxu0
        %v613 = vadd.f32 %v509, %v612
        %v614 = vpop.f32.mrb[0].mxu0
        %615 = vmatprep.mubr.f32.mxu0 0.0
        %616 = vmatmul.mubr.f32.gmra.mrb[0].mxu0 %v522
        %v617 = vpop.f32.mrb[0].mxu0
        %v618 = vadd.f32 %v509, %v617
        %v619 = vpop.f32.mrb[0].mxu0
        %620 = vmatprep.mubr.f32.mxu0 0.0
        %621 = vmatmul.mubr.f32.gmra.mrb[0].mxu0 %v525
        %v622 = vpop.f32.mrb[0].mxu0
        %v623 = vadd.f32 %v509, %v622
        %v624 = vpop.f32.mrb[0].mxu0
        %625 = vmatprep.mubr.f32.mxu0 0.0
        %626 = vmatmul.mubr.f32.gmra.mrb[0].mxu0 %v528
        %v627 = vpop.f32.mrb[0].mxu0
        %v628 = vadd.f32 %v509, %v627
        %v629 = vpop.f32.mrb[0].mxu0
        %630 = vmatprep.mubr.f32.mxu0 0.0
        %631 = vmatmul.mubr.f32.gmra.mrb[0].mxu0 %v531
        %v632 = vpop.f32.mrb[0].mxu0
        %v633 = vadd.f32 %v509, %v632
        %v634 = vpop.f32.mrb[0].mxu0
        %635 = vmatprep.mubr.f32.mxu0 0.0
        %636 = vmatmul.mubr.f32.gmra.mrb[0].mxu0 %v534
        %v637 = vpop.f32.mrb[0].mxu0
        %v638 = vadd.f32 %v509, %v637
        %v639 = vpop.f32.mrb[0].mxu0
        %640 = vdwg.mxu0
        %v642 = vsel %vm511, %v497, 0
        %v645 = vsel %vm511, %v498, 0
        %v648 = vsel %vm511, %v499, 0
        %v651 = vsel %vm511, %v500, 0
        %v654 = vsel %vm511, %v501, 0
        %v657 = vsel %vm511, %v502, 0
        %v660 = vsel %vm511, %v503, 0
        %v663 = vsel %vm511, %v504, 0
        %665 = vmatprep.subr.mxu0 0.0
        %666 = vmatpush1.msra.mxu0 %v363
        %667 = vmatprep.subr.mxu0 0.0
        %668 = vmatpush1.msra.mxu0 %v364
        %669 = vmatprep.subr.mxu0 0.0
        %670 = vmatpush1.msra.mxu0 %v365
        %671 = vmatprep.subr.mxu0 0.0
        %672 = vmatpush1.msra.mxu0 %v366
        %673 = vmatprep.subr.mxu0 0.0
        %674 = vmatpush1.msra.mxu0 0.0
        %675 = vmatprep.subr.mxu0 0.0
        %676 = vmatpush1.msra.mxu0 0.0
        %677 = vmatprep.subr.mxu0 0.0
        %678 = vmatpush1.msra.mxu0 0.0
        %679 = vmatprep.subr.mxu0 0.0
        %680 = vmatpush1.msra.mxu0 0.0
        %681 = vmatprep.subr.mxu0 0.0
        %682 = vmatpush1.msra.mxu0 0.0
        %683 = vmatprep.subr.mxu0 0.0
        %684 = vmatpush1.msra.mxu0 0.0
        %685 = vmatprep.subr.mxu0 0.0
        %686 = vmatpush1.msra.mxu0 0.0
        %687 = vmatprep.subr.mxu0 0.0
        %688 = vmatpush1.msra.mxu0 0.0
        %689 = vmatprep.subr.mxu0 0.0
        %690 = vmatpush1.msra.mxu0 0.0
        %691 = vmatprep.subr.mxu0 0.0
        %692 = vmatpush1.msra.mxu0 0.0
        %693 = vmatprep.subr.mxu0 0.0
        %694 = vmatpush1.msra.mxu0 0.0
        %695 = vmatprep.subr.mxu0 0.0
        %696 = vmatpush1.msra.mxu0 0.0
        %697 = vmatprep.subr.mxu0 0.0
        %698 = vmatpush1.msra.mxu0 0.0
        %699 = vmatprep.subr.mxu0 0.0
        %700 = vmatpush1.msra.mxu0 0.0
        %701 = vmatprep.subr.mxu0 0.0
        %702 = vmatpush1.msra.mxu0 0.0
        %703 = vmatprep.subr.mxu0 0.0
        %704 = vmatpush1.msra.mxu0 0.0
        %705 = vmatprep.subr.mxu0 0.0
        %706 = vmatpush1.msra.mxu0 0.0
        %707 = vmatprep.subr.mxu0 0.0
        %708 = vmatpush1.msra.mxu0 0.0
        %709 = vmatprep.subr.mxu0 0.0
        %710 = vmatpush1.msra.mxu0 0.0
        %711 = vmatprep.subr.mxu0 0.0
        %712 = vmatpush1.msra.mxu0 0.0
        %713 = vmatprep.subr.mxu0 0.0
        %714 = vmatpush1.msra.mxu0 0.0
        %715 = vmatprep.subr.mxu0 0.0
        %716 = vmatpush1.msra.mxu0 0.0
        %717 = vmatprep.subr.mxu0 0.0
        %718 = vmatpush1.msra.mxu0 0.0
        %719 = vmatprep.subr.mxu0 0.0
        %720 = vmatpush1.msra.mxu0 0.0
        %721 = vmatprep.subr.mxu0 0.0
        %722 = vmatpush1.msra.mxu0 0.0
        %723 = vmatprep.subr.mxu0 0.0
        %724 = vmatpush1.msra.mxu0 0.0
        %725 = vmatprep.subr.mxu0 0.0
        %726 = vmatpush1.msra.mxu0 0.0
        %727 = vmatprep.subr.mxu0 0.0
        %728 = vmatpush1.msra.mxu0 0.0
        %729 = vmatprep.mubr.f32.mxu0 0.0
        %730 = vmatmul.mubr.f32.gmra.mrb[0].mxu0 %v642
        %v731 = vpop.f32.mrb[0].mxu0
        %v732 = vadd.f32 %v509, %v731
        %v733 = vpop.f32.mrb[0].mxu0
        %734 = vmatprep.mubr.f32.mxu0 0.0
        %735 = vmatmul.mubr.f32.gmra.mrb[0].mxu0 %v645
        %v736 = vpop.f32.mrb[0].mxu0
        %v737 = vadd.f32 %v509, %v736
        %v738 = vpop.f32.mrb[0].mxu0
        %739 = vmatprep.mubr.f32.mxu0 0.0
        %740 = vmatmul.mubr.f32.gmra.mrb[0].mxu0 %v648
        %v741 = vpop.f32.mrb[0].mxu0
        %v742 = vadd.f32 %v509, %v741
        %v743 = vpop.f32.mrb[0].mxu0
        %744 = vmatprep.mubr.f32.mxu0 0.0
        %745 = vmatmul.mubr.f32.gmra.mrb[0].mxu0 %v651
        %v746 = vpop.f32.mrb[0].mxu0
        %v747 = vadd.f32 %v509, %v746
        %v748 = vpop.f32.mrb[0].mxu0
        %749 = vmatprep.mubr.f32.mxu0 0.0
        %750 = vmatmul.mubr.f32.gmra.mrb[0].mxu0 %v654
        %v751 = vpop.f32.mrb[0].mxu0
        %v752 = vadd.f32 %v509, %v751
        %v753 = vpop.f32.mrb[0].mxu0
        %754 = vmatprep.mubr.f32.mxu0 0.0
        %755 = vmatmul.mubr.f32.gmra.mrb[0].mxu0 %v657
        %v756 = vpop.f32.mrb[0].mxu0
        %v757 = vadd.f32 %v509, %v756
        %v758 = vpop.f32.mrb[0].mxu0
        %759 = vmatprep.mubr.f32.mxu0 0.0
        %760 = vmatmul.mubr.f32.gmra.mrb[0].mxu0 %v660
        %v761 = vpop.f32.mrb[0].mxu0
        %v762 = vadd.f32 %v509, %v761
        %v763 = vpop.f32.mrb[0].mxu0
        %764 = vmatprep.mubr.f32.mxu0 0.0
        %765 = vmatmul.mubr.f32.gmra.mrb[0].mxu0 %v663
        %v766 = vpop.f32.mrb[0].mxu0
        %v767 = vadd.f32 %v509, %v766
        %v768 = vpop.f32.mrb[0].mxu0
        %769 = vdwg.mxu0
        %v771 = vsel %vm511, %v603, 0
        %773 = vmatprep.subr.mxu0 0.0
        %774 = vmatpush1.xpose.msra.mxu0 %v513
        %775 = vmatprep.subr.mxu0 0.0
        %776 = vmatpush1.xpose.msra.mxu0 0.0
        %777 = vmatprep.subr.mxu0 0.0
        %778 = vmatpush1.xpose.msra.mxu0 0.0
        %779 = vmatprep.subr.mxu0 0.0
        %780 = vmatpush1.xpose.msra.mxu0 0.0
        %781 = vmatprep.subr.mxu0 0.0
        %782 = vmatpush1.xpose.msra.mxu0 0.0
        %783 = vmatprep.subr.mxu0 0.0
        %784 = vmatpush1.xpose.msra.mxu0 0.0
        %785 = vmatprep.subr.mxu0 0.0
        %786 = vmatpush1.xpose.msra.mxu0 0.0
        %787 = vmatprep.subr.mxu0 0.0
        %788 = vmatpush1.xpose.msra.mxu0 0.0
        %789 = vmatprep.subr.mxu0 0.0
        %790 = vmatpush1.xpose.msra.mxu0 0.0
        %791 = vmatprep.subr.mxu0 0.0
        %792 = vmatpush1.xpose.msra.mxu0 0.0
        %793 = vmatprep.subr.mxu0 0.0
        %794 = vmatpush1.xpose.msra.mxu0 0.0
        %795 = vmatprep.subr.mxu0 0.0
        %796 = vmatpush1.xpose.msra.mxu0 0.0
        %797 = vmatprep.subr.mxu0 0.0
        %798 = vmatpush1.xpose.msra.mxu0 0.0
        %799 = vmatprep.subr.mxu0 0.0
        %800 = vmatpush1.xpose.msra.mxu0 0.0
        %801 = vmatprep.subr.mxu0 0.0
        %802 = vmatpush1.xpose.msra.mxu0 0.0
        %803 = vmatprep.subr.mxu0 0.0
        %804 = vmatpush1.xpose.msra.mxu0 0.0
        %805 = vmatprep.subr.mxu0 0.0
        %806 = vmatpush1.xpose.msra.mxu0 0.0
        %807 = vmatprep.subr.mxu0 0.0
        %808 = vmatpush1.xpose.msra.mxu0 0.0
        %809 = vmatprep.subr.mxu0 0.0
        %810 = vmatpush1.xpose.msra.mxu0 0.0
        %811 = vmatprep.subr.mxu0 0.0
        %812 = vmatpush1.xpose.msra.mxu0 0.0
        %813 = vmatprep.subr.mxu0 0.0
        %814 = vmatpush1.xpose.msra.mxu0 0.0
        %815 = vmatprep.subr.mxu0 0.0
        %816 = vmatpush1.xpose.msra.mxu0 0.0
        %817 = vmatprep.subr.mxu0 0.0
        %818 = vmatpush1.xpose.msra.mxu0 0.0
        %819 = vmatprep.subr.mxu0 0.0
        %820 = vmatpush1.xpose.msra.mxu0 0.0
        %821 = vmatprep.subr.mxu0 0.0
        %822 = vmatpush1.xpose.msra.mxu0 0.0
        %823 = vmatprep.subr.mxu0 0.0
        %824 = vmatpush1.xpose.msra.mxu0 0.0
        %825 = vmatprep.subr.mxu0 0.0
        %826 = vmatpush1.xpose.msra.mxu0 0.0
        %827 = vmatprep.subr.mxu0 0.0
        %828 = vmatpush1.xpose.msra.mxu0 0.0
        %829 = vmatprep.subr.mxu0 0.0
        %830 = vmatpush1.xpose.msra.mxu0 0.0
        %831 = vmatprep.subr.mxu0 0.0
        %832 = vmatpush1.xpose.msra.mxu0 0.0
        %833 = vmatprep.subr.mxu0 0.0
        %834 = vmatpush1.xpose.msra.mxu0 0.0
        %835 = vmatprep.subr.mxu0 0.0
        %836 = vmatpush1.xpose.msra.mxu0 0.0
        %837 = vmatprep.mubr.f32.mxu0 0.0
        %838 = vmatmul.mubr.f32.gmra.mrb[0].mxu0 %v771
        %v839 = vpop.f32.mrb[0].mxu0
        %v840 = vadd.f32 0.0, %v839
        %v841 = vpop.f32.mrb[0].mxu0
        %842 = vdwg.mxu0
        %v844 = vsel %vm511, %v608, 0
        %846 = vmatprep.subr.mxu0 0.0
        %847 = vmatpush1.xpose.msra.mxu0 %v516
        %848 = vmatprep.subr.mxu0 0.0
        %849 = vmatpush1.xpose.msra.mxu0 0.0
        %850 = vmatprep.subr.mxu0 0.0
        %851 = vmatpush1.xpose.msra.mxu0 0.0
        %852 = vmatprep.subr.mxu0 0.0
        %853 = vmatpush1.xpose.msra.mxu0 0.0
        %854 = vmatprep.subr.mxu0 0.0
        %855 = vmatpush1.xpose.msra.mxu0 0.0
        %856 = vmatprep.subr.mxu0 0.0
        %857 = vmatpush1.xpose.msra.mxu0 0.0
        %858 = vmatprep.subr.mxu0 0.0
        %859 = vmatpush1.xpose.msra.mxu0 0.0
        %860 = vmatprep.subr.mxu0 0.0
        %861 = vmatpush1.xpose.msra.mxu0 0.0
        %862 = vmatprep.subr.mxu0 0.0
        %863 = vmatpush1.xpose.msra.mxu0 0.0
        %864 = vmatprep.subr.mxu0 0.0
        %865 = vmatpush1.xpose.msra.mxu0 0.0
        %866 = vmatprep.subr.mxu0 0.0
        %867 = vmatpush1.xpose.msra.mxu0 0.0
        %868 = vmatprep.subr.mxu0 0.0
        %869 = vmatpush1.xpose.msra.mxu0 0.0
        %870 = vmatprep.subr.mxu0 0.0
        %871 = vmatpush1.xpose.msra.mxu0 0.0
        %872 = vmatprep.subr.mxu0 0.0
        %873 = vmatpush1.xpose.msra.mxu0 0.0
        %874 = vmatprep.subr.mxu0 0.0
        %875 = vmatpush1.xpose.msra.mxu0 0.0
        %876 = vmatprep.subr.mxu0 0.0
        %877 = vmatpush1.xpose.msra.mxu0 0.0
        %878 = vmatprep.subr.mxu0 0.0
        %879 = vmatpush1.xpose.msra.mxu0 0.0
        %880 = vmatprep.subr.mxu0 0.0
        %881 = vmatpush1.xpose.msra.mxu0 0.0
        %882 = vmatprep.subr.mxu0 0.0
        %883 = vmatpush1.xpose.msra.mxu0 0.0
        %884 = vmatprep.subr.mxu0 0.0
        %885 = vmatpush1.xpose.msra.mxu0 0.0
        %886 = vmatprep.subr.mxu0 0.0
        %887 = vmatpush1.xpose.msra.mxu0 0.0
        %888 = vmatprep.subr.mxu0 0.0
        %889 = vmatpush1.xpose.msra.mxu0 0.0
        %890 = vmatprep.subr.mxu0 0.0
        %891 = vmatpush1.xpose.msra.mxu0 0.0
        %892 = vmatprep.subr.mxu0 0.0
        %893 = vmatpush1.xpose.msra.mxu0 0.0
        %894 = vmatprep.subr.mxu0 0.0
        %895 = vmatpush1.xpose.msra.mxu0 0.0
        %896 = vmatprep.subr.mxu0 0.0
        %897 = vmatpush1.xpose.msra.mxu0 0.0
        %898 = vmatprep.subr.mxu0 0.0
        %899 = vmatpush1.xpose.msra.mxu0 0.0
        %900 = vmatprep.subr.mxu0 0.0
        %901 = vmatpush1.xpose.msra.mxu0 0.0
        %902 = vmatprep.subr.mxu0 0.0
        %903 = vmatpush1.xpose.msra.mxu0 0.0
        %904 = vmatprep.subr.mxu0 0.0
        %905 = vmatpush1.xpose.msra.mxu0 0.0
        %906 = vmatprep.subr.mxu0 0.0
        %907 = vmatpush1.xpose.msra.mxu0 0.0
        %908 = vmatprep.subr.mxu0 0.0
        %909 = vmatpush1.xpose.msra.mxu0 0.0
        %910 = vmatprep.mubr.f32.mxu0 0.0
        %911 = vmatmul.mubr.f32.gmra.mrb[0].mxu0 %v844
        %v912 = vpop.f32.mrb[0].mxu0
        %v913 = vadd.f32 0.0, %v912
        %v914 = vpop.f32.mrb[0].mxu0
        %915 = vdwg.mxu0
        %v917 = vsel %vm511, %v613, 0
        %919 = vmatprep.subr.mxu0 0.0
        %920 = vmatpush1.xpose.msra.mxu0 %v519
        %921 = vmatprep.subr.mxu0 0.0
        %922 = vmatpush1.xpose.msra.mxu0 0.0
        %923 = vmatprep.subr.mxu0 0.0
        %924 = vmatpush1.xpose.msra.mxu0 0.0
        %925 = vmatprep.subr.mxu0 0.0
        %926 = vmatpush1.xpose.msra.mxu0 0.0
        %927 = vmatprep.subr.mxu0 0.0
        %928 = vmatpush1.xpose.msra.mxu0 0.0
        %929 = vmatprep.subr.mxu0 0.0
        %930 = vmatpush1.xpose.msra.mxu0 0.0
        %931 = vmatprep.subr.mxu0 0.0
        %932 = vmatpush1.xpose.msra.mxu0 0.0
        %933 = vmatprep.subr.mxu0 0.0
        %934 = vmatpush1.xpose.msra.mxu0 0.0
        %935 = vmatprep.subr.mxu0 0.0
        %936 = vmatpush1.xpose.msra.mxu0 0.0
        %937 = vmatprep.subr.mxu0 0.0
        %938 = vmatpush1.xpose.msra.mxu0 0.0
        %939 = vmatprep.subr.mxu0 0.0
        %940 = vmatpush1.xpose.msra.mxu0 0.0
        %941 = vmatprep.subr.mxu0 0.0
        %942 = vmatpush1.xpose.msra.mxu0 0.0
        %943 = vmatprep.subr.mxu0 0.0
        %944 = vmatpush1.xpose.msra.mxu0 0.0
        %945 = vmatprep.subr.mxu0 0.0
        %946 = vmatpush1.xpose.msra.mxu0 0.0
        %947 = vmatprep.subr.mxu0 0.0
        %948 = vmatpush1.xpose.msra.mxu0 0.0
        %949 = vmatprep.subr.mxu0 0.0
        %950 = vmatpush1.xpose.msra.mxu0 0.0
        %951 = vmatprep.subr.mxu0 0.0
        %952 = vmatpush1.xpose.msra.mxu0 0.0
        %953 = vmatprep.subr.mxu0 0.0
        %954 = vmatpush1.xpose.msra.mxu0 0.0
        %955 = vmatprep.subr.mxu0 0.0
        %956 = vmatpush1.xpose.msra.mxu0 0.0
        %957 = vmatprep.subr.mxu0 0.0
        %958 = vmatpush1.xpose.msra.mxu0 0.0
        %959 = vmatprep.subr.mxu0 0.0
        %960 = vmatpush1.xpose.msra.mxu0 0.0
        %961 = vmatprep.subr.mxu0 0.0
        %962 = vmatpush1.xpose.msra.mxu0 0.0
        %963 = vmatprep.subr.mxu0 0.0
        %964 = vmatpush1.xpose.msra.mxu0 0.0
        %965 = vmatprep.subr.mxu0 0.0
        %966 = vmatpush1.xpose.msra.mxu0 0.0
        %967 = vmatprep.subr.mxu0 0.0
        %968 = vmatpush1.xpose.msra.mxu0 0.0
        %969 = vmatprep.subr.mxu0 0.0
        %970 = vmatpush1.xpose.msra.mxu0 0.0
        %971 = vmatprep.subr.mxu0 0.0
        %972 = vmatpush1.xpose.msra.mxu0 0.0
        %973 = vmatprep.subr.mxu0 0.0
        %974 = vmatpush1.xpose.msra.mxu0 0.0
        %975 = vmatprep.subr.mxu0 0.0
        %976 = vmatpush1.xpose.msra.mxu0 0.0
        %977 = vmatprep.subr.mxu0 0.0
        %978 = vmatpush1.xpose.msra.mxu0 0.0
        %979 = vmatprep.subr.mxu0 0.0
        %980 = vmatpush1.xpose.msra.mxu0 0.0
        %981 = vmatprep.subr.mxu0 0.0
        %982 = vmatpush1.xpose.msra.mxu0 0.0
        %983 = vmatprep.mubr.f32.mxu0 0.0
        %984 = vmatmul.mubr.f32.gmra.mrb[0].mxu0 %v917
        %v985 = vpop.f32.mrb[0].mxu0
        %v986 = vadd.f32 0.0, %v985
        %v987 = vpop.f32.mrb[0].mxu0
        %988 = vdwg.mxu0
        %v990 = vsel %vm511, %v618, 0
        %992 = vmatprep.subr.mxu0 0.0
        %993 = vmatpush1.xpose.msra.mxu0 %v522
        %994 = vmatprep.subr.mxu0 0.0
        %995 = vmatpush1.xpose.msra.mxu0 0.0
        %996 = vmatprep.subr.mxu0 0.0
        %997 = vmatpush1.xpose.msra.mxu0 0.0
        %998 = vmatprep.subr.mxu0 0.0
        %999 = vmatpush1.xpose.msra.mxu0 0.0
        %1000 = vmatprep.subr.mxu0 0.0
        %1001 = vmatpush1.xpose.msra.mxu0 0.0
        %1002 = vmatprep.subr.mxu0 0.0
        %1003 = vmatpush1.xpose.msra.mxu0 0.0
        %1004 = vmatprep.subr.mxu0 0.0
        %1005 = vmatpush1.xpose.msra.mxu0 0.0
        %1006 = vmatprep.subr.mxu0 0.0
        %1007 = vmatpush1.xpose.msra.mxu0 0.0
        %1008 = vmatprep.subr.mxu0 0.0
        %1009 = vmatpush1.xpose.msra.mxu0 0.0
        %1010 = vmatprep.subr.mxu0 0.0
        %1011 = vmatpush1.xpose.msra.mxu0 0.0
        %1012 = vmatprep.subr.mxu0 0.0
        %1013 = vmatpush1.xpose.msra.mxu0 0.0
        %1014 = vmatprep.subr.mxu0 0.0
        %1015 = vmatpush1.xpose.msra.mxu0 0.0
        %1016 = vmatprep.subr.mxu0 0.0
        %1017 = vmatpush1.xpose.msra.mxu0 0.0
        %1018 = vmatprep.subr.mxu0 0.0
        %1019 = vmatpush1.xpose.msra.mxu0 0.0
        %1020 = vmatprep.subr.mxu0 0.0
        %1021 = vmatpush1.xpose.msra.mxu0 0.0
        %1022 = vmatprep.subr.mxu0 0.0
        %1023 = vmatpush1.xpose.msra.mxu0 0.0
        %1024 = vmatprep.subr.mxu0 0.0
        %1025 = vmatpush1.xpose.msra.mxu0 0.0
        %1026 = vmatprep.subr.mxu0 0.0
        %1027 = vmatpush1.xpose.msra.mxu0 0.0
        %1028 = vmatprep.subr.mxu0 0.0
        %1029 = vmatpush1.xpose.msra.mxu0 0.0
        %1030 = vmatprep.subr.mxu0 0.0
        %1031 = vmatpush1.xpose.msra.mxu0 0.0
        %1032 = vmatprep.subr.mxu0 0.0
        %1033 = vmatpush1.xpose.msra.mxu0 0.0
        %1034 = vmatprep.subr.mxu0 0.0
        %1035 = vmatpush1.xpose.msra.mxu0 0.0
        %1036 = vmatprep.subr.mxu0 0.0
        %1037 = vmatpush1.xpose.msra.mxu0 0.0
        %1038 = vmatprep.subr.mxu0 0.0
        %1039 = vmatpush1.xpose.msra.mxu0 0.0
        %1040 = vmatprep.subr.mxu0 0.0
        %1041 = vmatpush1.xpose.msra.mxu0 0.0
        %1042 = vmatprep.subr.mxu0 0.0
        %1043 = vmatpush1.xpose.msra.mxu0 0.0
        %1044 = vmatprep.subr.mxu0 0.0
        %1045 = vmatpush1.xpose.msra.mxu0 0.0
        %1046 = vmatprep.subr.mxu0 0.0
        %1047 = vmatpush1.xpose.msra.mxu0 0.0
        %1048 = vmatprep.subr.mxu0 0.0
        %1049 = vmatpush1.xpose.msra.mxu0 0.0
        %1050 = vmatprep.subr.mxu0 0.0
        %1051 = vmatpush1.xpose.msra.mxu0 0.0
        %1052 = vmatprep.subr.mxu0 0.0
        %1053 = vmatpush1.xpose.msra.mxu0 0.0
        %1054 = vmatprep.subr.mxu0 0.0
        %1055 = vmatpush1.xpose.msra.mxu0 0.0
        %1056 = vmatprep.mubr.f32.mxu0 0.0
        %1057 = vmatmul.mubr.f32.gmra.mrb[0].mxu0 %v990
        %v1058 = vpop.f32.mrb[0].mxu0
        %v1059 = vadd.f32 0.0, %v1058
        %v1060 = vpop.f32.mrb[0].mxu0
        %1061 = vdwg.mxu0
        %v1063 = vsel %vm511, %v623, 0
        %1065 = vmatprep.subr.mxu0 0.0
        %1066 = vmatpush1.xpose.msra.mxu0 %v525
        %1067 = vmatprep.subr.mxu0 0.0
        %1068 = vmatpush1.xpose.msra.mxu0 0.0
        %1069 = vmatprep.subr.mxu0 0.0
        %1070 = vmatpush1.xpose.msra.mxu0 0.0
        %1071 = vmatprep.subr.mxu0 0.0
        %1072 = vmatpush1.xpose.msra.mxu0 0.0
        %1073 = vmatprep.subr.mxu0 0.0
        %1074 = vmatpush1.xpose.msra.mxu0 0.0
        %1075 = vmatprep.subr.mxu0 0.0
        %1076 = vmatpush1.xpose.msra.mxu0 0.0
        %1077 = vmatprep.subr.mxu0 0.0
        %1078 = vmatpush1.xpose.msra.mxu0 0.0
        %1079 = vmatprep.subr.mxu0 0.0
        %1080 = vmatpush1.xpose.msra.mxu0 0.0
        %1081 = vmatprep.subr.mxu0 0.0
        %1082 = vmatpush1.xpose.msra.mxu0 0.0
        %1083 = vmatprep.subr.mxu0 0.0
        %1084 = vmatpush1.xpose.msra.mxu0 0.0
        %1085 = vmatprep.subr.mxu0 0.0
        %1086 = vmatpush1.xpose.msra.mxu0 0.0
        %1087 = vmatprep.subr.mxu0 0.0
        %1088 = vmatpush1.xpose.msra.mxu0 0.0
        %1089 = vmatprep.subr.mxu0 0.0
        %1090 = vmatpush1.xpose.msra.mxu0 0.0
        %1091 = vmatprep.subr.mxu0 0.0
        %1092 = vmatpush1.xpose.msra.mxu0 0.0
        %1093 = vmatprep.subr.mxu0 0.0
        %1094 = vmatpush1.xpose.msra.mxu0 0.0
        %1095 = vmatprep.subr.mxu0 0.0
        %1096 = vmatpush1.xpose.msra.mxu0 0.0
        %1097 = vmatprep.subr.mxu0 0.0
        %1098 = vmatpush1.xpose.msra.mxu0 0.0
        %1099 = vmatprep.subr.mxu0 0.0
        %1100 = vmatpush1.xpose.msra.mxu0 0.0
        %1101 = vmatprep.subr.mxu0 0.0
        %1102 = vmatpush1.xpose.msra.mxu0 0.0
        %1103 = vmatprep.subr.mxu0 0.0
        %1104 = vmatpush1.xpose.msra.mxu0 0.0
        %1105 = vmatprep.subr.mxu0 0.0
        %1106 = vmatpush1.xpose.msra.mxu0 0.0
        %1107 = vmatprep.subr.mxu0 0.0
        %1108 = vmatpush1.xpose.msra.mxu0 0.0
        %1109 = vmatprep.subr.mxu0 0.0
        %1110 = vmatpush1.xpose.msra.mxu0 0.0
        %1111 = vmatprep.subr.mxu0 0.0
        %1112 = vmatpush1.xpose.msra.mxu0 0.0
        %1113 = vmatprep.subr.mxu0 0.0
        %1114 = vmatpush1.xpose.msra.mxu0 0.0
        %1115 = vmatprep.subr.mxu0 0.0
        %1116 = vmatpush1.xpose.msra.mxu0 0.0
        %1117 = vmatprep.subr.mxu0 0.0
        %1118 = vmatpush1.xpose.msra.mxu0 0.0
        %1119 = vmatprep.subr.mxu0 0.0
        %1120 = vmatpush1.xpose.msra.mxu0 0.0
        %1121 = vmatprep.subr.mxu0 0.0
        %1122 = vmatpush1.xpose.msra.mxu0 0.0
        %1123 = vmatprep.subr.mxu0 0.0
        %1124 = vmatpush1.xpose.msra.mxu0 0.0
        %1125 = vmatprep.subr.mxu0 0.0
        %1126 = vmatpush1.xpose.msra.mxu0 0.0
        %1127 = vmatprep.subr.mxu0 0.0
        %1128 = vmatpush1.xpose.msra.mxu0 0.0
        %1129 = vmatprep.mubr.f32.mxu0 0.0
        %1130 = vmatmul.mubr.f32.gmra.mrb[0].mxu0 %v1063
        %v1131 = vpop.f32.mrb[0].mxu0
        %v1132 = vadd.f32 0.0, %v1131
        %v1133 = vpop.f32.mrb[0].mxu0
        %1134 = vdwg.mxu0
        %v1136 = vsel %vm511, %v628, 0
        %1138 = vmatprep.subr.mxu0 0.0
        %1139 = vmatpush1.xpose.msra.mxu0 %v528
        %1140 = vmatprep.subr.mxu0 0.0
        %1141 = vmatpush1.xpose.msra.mxu0 0.0
        %1142 = vmatprep.subr.mxu0 0.0
        %1143 = vmatpush1.xpose.msra.mxu0 0.0
        %1144 = vmatprep.subr.mxu0 0.0
        %1145 = vmatpush1.xpose.msra.mxu0 0.0
        %1146 = vmatprep.subr.mxu0 0.0
        %1147 = vmatpush1.xpose.msra.mxu0 0.0
        %1148 = vmatprep.subr.mxu0 0.0
        %1149 = vmatpush1.xpose.msra.mxu0 0.0
        %1150 = vmatprep.subr.mxu0 0.0
        %1151 = vmatpush1.xpose.msra.mxu0 0.0
        %1152 = vmatprep.subr.mxu0 0.0
        %1153 = vmatpush1.xpose.msra.mxu0 0.0
        %1154 = vmatprep.subr.mxu0 0.0
        %1155 = vmatpush1.xpose.msra.mxu0 0.0
        %1156 = vmatprep.subr.mxu0 0.0
        %1157 = vmatpush1.xpose.msra.mxu0 0.0
        %1158 = vmatprep.subr.mxu0 0.0
        %1159 = vmatpush1.xpose.msra.mxu0 0.0
        %1160 = vmatprep.subr.mxu0 0.0
        %1161 = vmatpush1.xpose.msra.mxu0 0.0
        %1162 = vmatprep.subr.mxu0 0.0
        %1163 = vmatpush1.xpose.msra.mxu0 0.0
        %1164 = vmatprep.subr.mxu0 0.0
        %1165 = vmatpush1.xpose.msra.mxu0 0.0
        %1166 = vmatprep.subr.mxu0 0.0
        %1167 = vmatpush1.xpose.msra.mxu0 0.0
        %1168 = vmatprep.subr.mxu0 0.0
        %1169 = vmatpush1.xpose.msra.mxu0 0.0
        %1170 = vmatprep.subr.mxu0 0.0
        %1171 = vmatpush1.xpose.msra.mxu0 0.0
        %1172 = vmatprep.subr.mxu0 0.0
        %1173 = vmatpush1.xpose.msra.mxu0 0.0
        %1174 = vmatprep.subr.mxu0 0.0
        %1175 = vmatpush1.xpose.msra.mxu0 0.0
        %1176 = vmatprep.subr.mxu0 0.0
        %1177 = vmatpush1.xpose.msra.mxu0 0.0
        %1178 = vmatprep.subr.mxu0 0.0
        %1179 = vmatpush1.xpose.msra.mxu0 0.0
        %1180 = vmatprep.subr.mxu0 0.0
        %1181 = vmatpush1.xpose.msra.mxu0 0.0
        %1182 = vmatprep.subr.mxu0 0.0
        %1183 = vmatpush1.xpose.msra.mxu0 0.0
        %1184 = vmatprep.subr.mxu0 0.0
        %1185 = vmatpush1.xpose.msra.mxu0 0.0
        %1186 = vmatprep.subr.mxu0 0.0
        %1187 = vmatpush1.xpose.msra.mxu0 0.0
        %1188 = vmatprep.subr.mxu0 0.0
        %1189 = vmatpush1.xpose.msra.mxu0 0.0
        %1190 = vmatprep.subr.mxu0 0.0
        %1191 = vmatpush1.xpose.msra.mxu0 0.0
        %1192 = vmatprep.subr.mxu0 0.0
        %1193 = vmatpush1.xpose.msra.mxu0 0.0
        %1194 = vmatprep.subr.mxu0 0.0
        %1195 = vmatpush1.xpose.msra.mxu0 0.0
        %1196 = vmatprep.subr.mxu0 0.0
        %1197 = vmatpush1.xpose.msra.mxu0 0.0
        %1198 = vmatprep.subr.mxu0 0.0
        %1199 = vmatpush1.xpose.msra.mxu0 0.0
        %1200 = vmatprep.subr.mxu0 0.0
        %1201 = vmatpush1.xpose.msra.mxu0 0.0
        %1202 = vmatprep.mubr.f32.mxu0 0.0
        %1203 = vmatmul.mubr.f32.gmra.mrb[0].mxu0 %v1136
        %v1204 = vpop.f32.mrb[0].mxu0
        %v1205 = vadd.f32 0.0, %v1204
        %v1206 = vpop.f32.mrb[0].mxu0
        %1207 = vdwg.mxu0
        %v1209 = vsel %vm511, %v633, 0
        %1211 = vmatprep.subr.mxu0 0.0
        %1212 = vmatpush1.xpose.msra.mxu0 %v531
        %1213 = vmatprep.subr.mxu0 0.0
        %1214 = vmatpush1.xpose.msra.mxu0 0.0
        %1215 = vmatprep.subr.mxu0 0.0
        %1216 = vmatpush1.xpose.msra.mxu0 0.0
        %1217 = vmatprep.subr.mxu0 0.0
        %1218 = vmatpush1.xpose.msra.mxu0 0.0
        %1219 = vmatprep.subr.mxu0 0.0
        %1220 = vmatpush1.xpose.msra.mxu0 0.0
        %1221 = vmatprep.subr.mxu0 0.0
        %1222 = vmatpush1.xpose.msra.mxu0 0.0
        %1223 = vmatprep.subr.mxu0 0.0
        %1224 = vmatpush1.xpose.msra.mxu0 0.0
        %1225 = vmatprep.subr.mxu0 0.0
        %1226 = vmatpush1.xpose.msra.mxu0 0.0
        %1227 = vmatprep.subr.mxu0 0.0
        %1228 = vmatpush1.xpose.msra.mxu0 0.0
        %1229 = vmatprep.subr.mxu0 0.0
        %1230 = vmatpush1.xpose.msra.mxu0 0.0
        %1231 = vmatprep.subr.mxu0 0.0
        %1232 = vmatpush1.xpose.msra.mxu0 0.0
        %1233 = vmatprep.subr.mxu0 0.0
        %1234 = vmatpush1.xpose.msra.mxu0 0.0
        %1235 = vmatprep.subr.mxu0 0.0
        %1236 = vmatpush1.xpose.msra.mxu0 0.0
        %1237 = vmatprep.subr.mxu0 0.0
        %1238 = vmatpush1.xpose.msra.mxu0 0.0
        %1239 = vmatprep.subr.mxu0 0.0
        %1240 = vmatpush1.xpose.msra.mxu0 0.0
        %1241 = vmatprep.subr.mxu0 0.0
        %1242 = vmatpush1.xpose.msra.mxu0 0.0
        %1243 = vmatprep.subr.mxu0 0.0
        %1244 = vmatpush1.xpose.msra.mxu0 0.0
        %1245 = vmatprep.subr.mxu0 0.0
        %1246 = vmatpush1.xpose.msra.mxu0 0.0
        %1247 = vmatprep.subr.mxu0 0.0
        %1248 = vmatpush1.xpose.msra.mxu0 0.0
        %1249 = vmatprep.subr.mxu0 0.0
        %1250 = vmatpush1.xpose.msra.mxu0 0.0
        %1251 = vmatprep.subr.mxu0 0.0
        %1252 = vmatpush1.xpose.msra.mxu0 0.0
        %1253 = vmatprep.subr.mxu0 0.0
        %1254 = vmatpush1.xpose.msra.mxu0 0.0
        %1255 = vmatprep.subr.mxu0 0.0
        %1256 = vmatpush1.xpose.msra.mxu0 0.0
        %1257 = vmatprep.subr.mxu0 0.0
        %1258 = vmatpush1.xpose.msra.mxu0 0.0
        %1259 = vmatprep.subr.mxu0 0.0
        %1260 = vmatpush1.xpose.msra.mxu0 0.0
        %1261 = vmatprep.subr.mxu0 0.0
        %1262 = vmatpush1.xpose.msra.mxu0 0.0
        %1263 = vmatprep.subr.mxu0 0.0
        %1264 = vmatpush1.xpose.msra.mxu0 0.0
        %1265 = vmatprep.subr.mxu0 0.0
        %1266 = vmatpush1.xpose.msra.mxu0 0.0
        %1267 = vmatprep.subr.mxu0 0.0
        %1268 = vmatpush1.xpose.msra.mxu0 0.0
        %1269 = vmatprep.subr.mxu0 0.0
        %1270 = vmatpush1.xpose.msra.mxu0 0.0
        %1271 = vmatprep.subr.mxu0 0.0
        %1272 = vmatpush1.xpose.msra.mxu0 0.0
        %1273 = vmatprep.subr.mxu0 0.0
        %1274 = vmatpush1.xpose.msra.mxu0 0.0
        %1275 = vmatprep.mubr.f32.mxu0 0.0
        %1276 = vmatmul.mubr.f32.gmra.mrb[0].mxu0 %v1209
        %v1277 = vpop.f32.mrb[0].mxu0
        %v1278 = vadd.f32 0.0, %v1277
        %v1279 = vpop.f32.mrb[0].mxu0
        %1280 = vdwg.mxu0
        %v1282 = vsel %vm511, %v638, 0
        %1284 = vmatprep.subr.mxu0 0.0
        %1285 = vmatpush1.xpose.msra.mxu0 %v534
        %1286 = vmatprep.subr.mxu0 0.0
        %1287 = vmatpush1.xpose.msra.mxu0 0.0
        %1288 = vmatprep.subr.mxu0 0.0
        %1289 = vmatpush1.xpose.msra.mxu0 0.0
        %1290 = vmatprep.subr.mxu0 0.0
        %1291 = vmatpush1.xpose.msra.mxu0 0.0
        %1292 = vmatprep.subr.mxu0 0.0
        %1293 = vmatpush1.xpose.msra.mxu0 0.0
        %1294 = vmatprep.subr.mxu0 0.0
        %1295 = vmatpush1.xpose.msra.mxu0 0.0
        %1296 = vmatprep.subr.mxu0 0.0
        %1297 = vmatpush1.xpose.msra.mxu0 0.0
        %1298 = vmatprep.subr.mxu0 0.0
        %1299 = vmatpush1.xpose.msra.mxu0 0.0
        %1300 = vmatprep.subr.mxu0 0.0
        %1301 = vmatpush1.xpose.msra.mxu0 0.0
        %1302 = vmatprep.subr.mxu0 0.0
        %1303 = vmatpush1.xpose.msra.mxu0 0.0
        %1304 = vmatprep.subr.mxu0 0.0
        %1305 = vmatpush1.xpose.msra.mxu0 0.0
        %1306 = vmatprep.subr.mxu0 0.0
        %1307 = vmatpush1.xpose.msra.mxu0 0.0
        %1308 = vmatprep.subr.mxu0 0.0
        %1309 = vmatpush1.xpose.msra.mxu0 0.0
        %1310 = vmatprep.subr.mxu0 0.0
        %1311 = vmatpush1.xpose.msra.mxu0 0.0
        %1312 = vmatprep.subr.mxu0 0.0
        %1313 = vmatpush1.xpose.msra.mxu0 0.0
        %1314 = vmatprep.subr.mxu0 0.0
        %1315 = vmatpush1.xpose.msra.mxu0 0.0
        %1316 = vmatprep.subr.mxu0 0.0
        %1317 = vmatpush1.xpose.msra.mxu0 0.0
        %1318 = vmatprep.subr.mxu0 0.0
        %1319 = vmatpush1.xpose.msra.mxu0 0.0
        %1320 = vmatprep.subr.mxu0 0.0
        %1321 = vmatpush1.xpose.msra.mxu0 0.0
        %1322 = vmatprep.subr.mxu0 0.0
        %1323 = vmatpush1.xpose.msra.mxu0 0.0
        %1324 = vmatprep.subr.mxu0 0.0
        %1325 = vmatpush1.xpose.msra.mxu0 0.0
        %1326 = vmatprep.subr.mxu0 0.0
        %1327 = vmatpush1.xpose.msra.mxu0 0.0
        %1328 = vmatprep.subr.mxu0 0.0
        %1329 = vmatpush1.xpose.msra.mxu0 0.0
        %1330 = vmatprep.subr.mxu0 0.0
        %1331 = vmatpush1.xpose.msra.mxu0 0.0
        %1332 = vmatprep.subr.mxu0 0.0
        %1333 = vmatpush1.xpose.msra.mxu0 0.0
        %1334 = vmatprep.subr.mxu0 0.0
        %1335 = vmatpush1.xpose.msra.mxu0 0.0
        %1336 = vmatprep.subr.mxu0 0.0
        %1337 = vmatpush1.xpose.msra.mxu0 0.0
        %1338 = vmatprep.subr.mxu0 0.0
        %1339 = vmatpush1.xpose.msra.mxu0 0.0
        %1340 = vmatprep.subr.mxu0 0.0
        %1341 = vmatpush1.xpose.msra.mxu0 0.0
        %1342 = vmatprep.subr.mxu0 0.0
        %1343 = vmatpush1.xpose.msra.mxu0 0.0
        %1344 = vmatprep.subr.mxu0 0.0
        %1345 = vmatpush1.xpose.msra.mxu0 0.0
        %1346 = vmatprep.subr.mxu0 0.0
        %1347 = vmatpush1.xpose.msra.mxu0 0.0
        %1348 = vmatprep.mubr.f32.mxu0 0.0
        %1349 = vmatmul.mubr.f32.gmra.mrb[0].mxu0 %v1282
        %v1350 = vpop.f32.mrb[0].mxu0
        %v1351 = vadd.f32 0.0, %v1350
        %v1352 = vpop.f32.mrb[0].mxu0
        %1353 = vdwg.mxu0
        %v1355 = vsel %vm511, %v732, 0
        %1357 = vmatprep.subr.mxu0 0.0
        %1358 = vmatpush1.xpose.msra.mxu0 %v642
        %1359 = vmatprep.subr.mxu0 0.0
        %1360 = vmatpush1.xpose.msra.mxu0 0.0
        %1361 = vmatprep.subr.mxu0 0.0
        %1362 = vmatpush1.xpose.msra.mxu0 0.0
        %1363 = vmatprep.subr.mxu0 0.0
        %1364 = vmatpush1.xpose.msra.mxu0 0.0
        %1365 = vmatprep.subr.mxu0 0.0
        %1366 = vmatpush1.xpose.msra.mxu0 0.0
        %1367 = vmatprep.subr.mxu0 0.0
        %1368 = vmatpush1.xpose.msra.mxu0 0.0
        %1369 = vmatprep.subr.mxu0 0.0
        %1370 = vmatpush1.xpose.msra.mxu0 0.0
        %1371 = vmatprep.subr.mxu0 0.0
        %1372 = vmatpush1.xpose.msra.mxu0 0.0
        %1373 = vmatprep.subr.mxu0 0.0
        %1374 = vmatpush1.xpose.msra.mxu0 0.0
        %1375 = vmatprep.subr.mxu0 0.0
        %1376 = vmatpush1.xpose.msra.mxu0 0.0
        %1377 = vmatprep.subr.mxu0 0.0
        %1378 = vmatpush1.xpose.msra.mxu0 0.0
        %1379 = vmatprep.subr.mxu0 0.0
        %1380 = vmatpush1.xpose.msra.mxu0 0.0
        %1381 = vmatprep.subr.mxu0 0.0
        %1382 = vmatpush1.xpose.msra.mxu0 0.0
        %1383 = vmatprep.subr.mxu0 0.0
        %1384 = vmatpush1.xpose.msra.mxu0 0.0
        %1385 = vmatprep.subr.mxu0 0.0
        %1386 = vmatpush1.xpose.msra.mxu0 0.0
        %1387 = vmatprep.subr.mxu0 0.0
        %1388 = vmatpush1.xpose.msra.mxu0 0.0
        %1389 = vmatprep.subr.mxu0 0.0
        %1390 = vmatpush1.xpose.msra.mxu0 0.0
        %1391 = vmatprep.subr.mxu0 0.0
        %1392 = vmatpush1.xpose.msra.mxu0 0.0
        %1393 = vmatprep.subr.mxu0 0.0
        %1394 = vmatpush1.xpose.msra.mxu0 0.0
        %1395 = vmatprep.subr.mxu0 0.0
        %1396 = vmatpush1.xpose.msra.mxu0 0.0
        %1397 = vmatprep.subr.mxu0 0.0
        %1398 = vmatpush1.xpose.msra.mxu0 0.0
        %1399 = vmatprep.subr.mxu0 0.0
        %1400 = vmatpush1.xpose.msra.mxu0 0.0
        %1401 = vmatprep.subr.mxu0 0.0
        %1402 = vmatpush1.xpose.msra.mxu0 0.0
        %1403 = vmatprep.subr.mxu0 0.0
        %1404 = vmatpush1.xpose.msra.mxu0 0.0
        %1405 = vmatprep.subr.mxu0 0.0
        %1406 = vmatpush1.xpose.msra.mxu0 0.0
        %1407 = vmatprep.subr.mxu0 0.0
        %1408 = vmatpush1.xpose.msra.mxu0 0.0
        %1409 = vmatprep.subr.mxu0 0.0
        %1410 = vmatpush1.xpose.msra.mxu0 0.0
        %1411 = vmatprep.subr.mxu0 0.0
        %1412 = vmatpush1.xpose.msra.mxu0 0.0
        %1413 = vmatprep.subr.mxu0 0.0
        %1414 = vmatpush1.xpose.msra.mxu0 0.0
        %1415 = vmatprep.subr.mxu0 0.0
        %1416 = vmatpush1.xpose.msra.mxu0 0.0
        %1417 = vmatprep.subr.mxu0 0.0
        %1418 = vmatpush1.xpose.msra.mxu0 0.0
        %1419 = vmatprep.subr.mxu0 0.0
        %1420 = vmatpush1.xpose.msra.mxu0 0.0
        %1421 = vmatprep.mubr.f32.mxu0 0.0
        %1422 = vmatmul.mubr.f32.gmra.mrb[0].mxu0 %v1355
        %v1423 = vpop.f32.mrb[0].mxu0
        %v1424 = vadd.f32 0.0, %v1423
        %v1425 = vpop.f32.mrb[0].mxu0
        %1426 = vdwg.mxu0
        %v1428 = vsel %vm511, %v737, 0
        %1430 = vmatprep.subr.mxu0 0.0
        %1431 = vmatpush1.xpose.msra.mxu0 %v645
        %1432 = vmatprep.subr.mxu0 0.0
        %1433 = vmatpush1.xpose.msra.mxu0 0.0
        %1434 = vmatprep.subr.mxu0 0.0
        %1435 = vmatpush1.xpose.msra.mxu0 0.0
        %1436 = vmatprep.subr.mxu0 0.0
        %1437 = vmatpush1.xpose.msra.mxu0 0.0
        %1438 = vmatprep.subr.mxu0 0.0
        %1439 = vmatpush1.xpose.msra.mxu0 0.0
        %1440 = vmatprep.subr.mxu0 0.0
        %1441 = vmatpush1.xpose.msra.mxu0 0.0
        %1442 = vmatprep.subr.mxu0 0.0
        %1443 = vmatpush1.xpose.msra.mxu0 0.0
        %1444 = vmatprep.subr.mxu0 0.0
        %1445 = vmatpush1.xpose.msra.mxu0 0.0
        %1446 = vmatprep.subr.mxu0 0.0
        %1447 = vmatpush1.xpose.msra.mxu0 0.0
        %1448 = vmatprep.subr.mxu0 0.0
        %1449 = vmatpush1.xpose.msra.mxu0 0.0
        %1450 = vmatprep.subr.mxu0 0.0
        %1451 = vmatpush1.xpose.msra.mxu0 0.0
        %1452 = vmatprep.subr.mxu0 0.0
        %1453 = vmatpush1.xpose.msra.mxu0 0.0
        %1454 = vmatprep.subr.mxu0 0.0
        %1455 = vmatpush1.xpose.msra.mxu0 0.0
        %1456 = vmatprep.subr.mxu0 0.0
        %1457 = vmatpush1.xpose.msra.mxu0 0.0
        %1458 = vmatprep.subr.mxu0 0.0
        %1459 = vmatpush1.xpose.msra.mxu0 0.0
        %1460 = vmatprep.subr.mxu0 0.0
        %1461 = vmatpush1.xpose.msra.mxu0 0.0
        %1462 = vmatprep.subr.mxu0 0.0
        %1463 = vmatpush1.xpose.msra.mxu0 0.0
        %1464 = vmatprep.subr.mxu0 0.0
        %1465 = vmatpush1.xpose.msra.mxu0 0.0
        %1466 = vmatprep.subr.mxu0 0.0
        %1467 = vmatpush1.xpose.msra.mxu0 0.0
        %1468 = vmatprep.subr.mxu0 0.0
        %1469 = vmatpush1.xpose.msra.mxu0 0.0
        %1470 = vmatprep.subr.mxu0 0.0
        %1471 = vmatpush1.xpose.msra.mxu0 0.0
        %1472 = vmatprep.subr.mxu0 0.0
        %1473 = vmatpush1.xpose.msra.mxu0 0.0
        %1474 = vmatprep.subr.mxu0 0.0
        %1475 = vmatpush1.xpose.msra.mxu0 0.0
        %1476 = vmatprep.subr.mxu0 0.0
        %1477 = vmatpush1.xpose.msra.mxu0 0.0
        %1478 = vmatprep.subr.mxu0 0.0
        %1479 = vmatpush1.xpose.msra.mxu0 0.0
        %1480 = vmatprep.subr.mxu0 0.0
        %1481 = vmatpush1.xpose.msra.mxu0 0.0
        %1482 = vmatprep.subr.mxu0 0.0
        %1483 = vmatpush1.xpose.msra.mxu0 0.0
        %1484 = vmatprep.subr.mxu0 0.0
        %1485 = vmatpush1.xpose.msra.mxu0 0.0
        %1486 = vmatprep.subr.mxu0 0.0
        %1487 = vmatpush1.xpose.msra.mxu0 0.0
        %1488 = vmatprep.subr.mxu0 0.0
        %1489 = vmatpush1.xpose.msra.mxu0 0.0
        %1490 = vmatprep.subr.mxu0 0.0
        %1491 = vmatpush1.xpose.msra.mxu0 0.0
        %1492 = vmatprep.subr.mxu0 0.0
        %1493 = vmatpush1.xpose.msra.mxu0 0.0
        %1494 = vmatprep.mubr.f32.mxu0 0.0
        %1495 = vmatmul.mubr.f32.gmra.mrb[0].mxu0 %v1428
        %v1496 = vpop.f32.mrb[0].mxu0
        %v1497 = vadd.f32 0.0, %v1496
        %v1498 = vpop.f32.mrb[0].mxu0
        %1499 = vdwg.mxu0
        %v1501 = vsel %vm511, %v742, 0
        %1503 = vmatprep.subr.mxu0 0.0
        %1504 = vmatpush1.xpose.msra.mxu0 %v648
        %1505 = vmatprep.subr.mxu0 0.0
        %1506 = vmatpush1.xpose.msra.mxu0 0.0
        %1507 = vmatprep.subr.mxu0 0.0
        %1508 = vmatpush1.xpose.msra.mxu0 0.0
        %1509 = vmatprep.subr.mxu0 0.0
        %1510 = vmatpush1.xpose.msra.mxu0 0.0
        %1511 = vmatprep.subr.mxu0 0.0
        %1512 = vmatpush1.xpose.msra.mxu0 0.0
        %1513 = vmatprep.subr.mxu0 0.0
        %1514 = vmatpush1.xpose.msra.mxu0 0.0
        %1515 = vmatprep.subr.mxu0 0.0
        %1516 = vmatpush1.xpose.msra.mxu0 0.0
        %1517 = vmatprep.subr.mxu0 0.0
        %1518 = vmatpush1.xpose.msra.mxu0 0.0
        %1519 = vmatprep.subr.mxu0 0.0
        %1520 = vmatpush1.xpose.msra.mxu0 0.0
        %1521 = vmatprep.subr.mxu0 0.0
        %1522 = vmatpush1.xpose.msra.mxu0 0.0
        %1523 = vmatprep.subr.mxu0 0.0
        %1524 = vmatpush1.xpose.msra.mxu0 0.0
        %1525 = vmatprep.subr.mxu0 0.0
        %1526 = vmatpush1.xpose.msra.mxu0 0.0
        %1527 = vmatprep.subr.mxu0 0.0
        %1528 = vmatpush1.xpose.msra.mxu0 0.0
        %1529 = vmatprep.subr.mxu0 0.0
        %1530 = vmatpush1.xpose.msra.mxu0 0.0
        %1531 = vmatprep.subr.mxu0 0.0
        %1532 = vmatpush1.xpose.msra.mxu0 0.0
        %1533 = vmatprep.subr.mxu0 0.0
        %1534 = vmatpush1.xpose.msra.mxu0 0.0
        %1535 = vmatprep.subr.mxu0 0.0
        %1536 = vmatpush1.xpose.msra.mxu0 0.0
        %1537 = vmatprep.subr.mxu0 0.0
        %1538 = vmatpush1.xpose.msra.mxu0 0.0
        %1539 = vmatprep.subr.mxu0 0.0
        %1540 = vmatpush1.xpose.msra.mxu0 0.0
        %1541 = vmatprep.subr.mxu0 0.0
        %1542 = vmatpush1.xpose.msra.mxu0 0.0
        %1543 = vmatprep.subr.mxu0 0.0
        %1544 = vmatpush1.xpose.msra.mxu0 0.0
        %1545 = vmatprep.subr.mxu0 0.0
        %1546 = vmatpush1.xpose.msra.mxu0 0.0
        %1547 = vmatprep.subr.mxu0 0.0
        %1548 = vmatpush1.xpose.msra.mxu0 0.0
        %1549 = vmatprep.subr.mxu0 0.0
        %1550 = vmatpush1.xpose.msra.mxu0 0.0
        %1551 = vmatprep.subr.mxu0 0.0
        %1552 = vmatpush1.xpose.msra.mxu0 0.0
        %1553 = vmatprep.subr.mxu0 0.0
        %1554 = vmatpush1.xpose.msra.mxu0 0.0
        %1555 = vmatprep.subr.mxu0 0.0
        %1556 = vmatpush1.xpose.msra.mxu0 0.0
        %1557 = vmatprep.subr.mxu0 0.0
        %1558 = vmatpush1.xpose.msra.mxu0 0.0
        %1559 = vmatprep.subr.mxu0 0.0
        %1560 = vmatpush1.xpose.msra.mxu0 0.0
        %1561 = vmatprep.subr.mxu0 0.0
        %1562 = vmatpush1.xpose.msra.mxu0 0.0
        %1563 = vmatprep.subr.mxu0 0.0
        %1564 = vmatpush1.xpose.msra.mxu0 0.0
        %1565 = vmatprep.subr.mxu0 0.0
        %1566 = vmatpush1.xpose.msra.mxu0 0.0
        %1567 = vmatprep.mubr.f32.mxu0 0.0
        %1568 = vmatmul.mubr.f32.gmra.mrb[0].mxu0 %v1501
        %v1569 = vpop.f32.mrb[0].mxu0
        %v1570 = vadd.f32 0.0, %v1569
        %v1571 = vpop.f32.mrb[0].mxu0
        %1572 = vdwg.mxu0
        %v1574 = vsel %vm511, %v747, 0
        %1576 = vmatprep.subr.mxu0 0.0
        %1577 = vmatpush1.xpose.msra.mxu0 %v651
        %1578 = vmatprep.subr.mxu0 0.0
        %1579 = vmatpush1.xpose.msra.mxu0 0.0
        %1580 = vmatprep.subr.mxu0 0.0
        %1581 = vmatpush1.xpose.msra.mxu0 0.0
        %1582 = vmatprep.subr.mxu0 0.0
        %1583 = vmatpush1.xpose.msra.mxu0 0.0
        %1584 = vmatprep.subr.mxu0 0.0
        %1585 = vmatpush1.xpose.msra.mxu0 0.0
        %1586 = vmatprep.subr.mxu0 0.0
        %1587 = vmatpush1.xpose.msra.mxu0 0.0
        %1588 = vmatprep.subr.mxu0 0.0
        %1589 = vmatpush1.xpose.msra.mxu0 0.0
        %1590 = vmatprep.subr.mxu0 0.0
        %1591 = vmatpush1.xpose.msra.mxu0 0.0
        %1592 = vmatprep.subr.mxu0 0.0
        %1593 = vmatpush1.xpose.msra.mxu0 0.0
        %1594 = vmatprep.subr.mxu0 0.0
        %1595 = vmatpush1.xpose.msra.mxu0 0.0
        %1596 = vmatprep.subr.mxu0 0.0
        %1597 = vmatpush1.xpose.msra.mxu0 0.0
        %1598 = vmatprep.subr.mxu0 0.0
        %1599 = vmatpush1.xpose.msra.mxu0 0.0
        %1600 = vmatprep.subr.mxu0 0.0
        %1601 = vmatpush1.xpose.msra.mxu0 0.0
        %1602 = vmatprep.subr.mxu0 0.0
        %1603 = vmatpush1.xpose.msra.mxu0 0.0
        %1604 = vmatprep.subr.mxu0 0.0
        %1605 = vmatpush1.xpose.msra.mxu0 0.0
        %1606 = vmatprep.subr.mxu0 0.0
        %1607 = vmatpush1.xpose.msra.mxu0 0.0
        %1608 = vmatprep.subr.mxu0 0.0
        %1609 = vmatpush1.xpose.msra.mxu0 0.0
        %1610 = vmatprep.subr.mxu0 0.0
        %1611 = vmatpush1.xpose.msra.mxu0 0.0
        %1612 = vmatprep.subr.mxu0 0.0
        %1613 = vmatpush1.xpose.msra.mxu0 0.0
        %1614 = vmatprep.subr.mxu0 0.0
        %1615 = vmatpush1.xpose.msra.mxu0 0.0
        %1616 = vmatprep.subr.mxu0 0.0
        %1617 = vmatpush1.xpose.msra.mxu0 0.0
        %1618 = vmatprep.subr.mxu0 0.0
        %1619 = vmatpush1.xpose.msra.mxu0 0.0
        %1620 = vmatprep.subr.mxu0 0.0
        %1621 = vmatpush1.xpose.msra.mxu0 0.0
        %1622 = vmatprep.subr.mxu0 0.0
        %1623 = vmatpush1.xpose.msra.mxu0 0.0
        %1624 = vmatprep.subr.mxu0 0.0
        %1625 = vmatpush1.xpose.msra.mxu0 0.0
        %1626 = vmatprep.subr.mxu0 0.0
        %1627 = vmatpush1.xpose.msra.mxu0 0.0
        %1628 = vmatprep.subr.mxu0 0.0
        %1629 = vmatpush1.xpose.msra.mxu0 0.0
        %1630 = vmatprep.subr.mxu0 0.0
        %1631 = vmatpush1.xpose.msra.mxu0 0.0
        %1632 = vmatprep.subr.mxu0 0.0
        %1633 = vmatpush1.xpose.msra.mxu0 0.0
        %1634 = vmatprep.subr.mxu0 0.0
        %1635 = vmatpush1.xpose.msra.mxu0 0.0
        %1636 = vmatprep.subr.mxu0 0.0
        %1637 = vmatpush1.xpose.msra.mxu0 0.0
        %1638 = vmatprep.subr.mxu0 0.0
        %1639 = vmatpush1.xpose.msra.mxu0 0.0
        %1640 = vmatprep.mubr.f32.mxu0 0.0
        %1641 = vmatmul.mubr.f32.gmra.mrb[0].mxu0 %v1574
        %v1642 = vpop.f32.mrb[0].mxu0
        %v1643 = vadd.f32 0.0, %v1642
        %v1644 = vpop.f32.mrb[0].mxu0
        %1645 = vdwg.mxu0
        %v1647 = vsel %vm511, %v752, 0
        %1649 = vmatprep.subr.mxu0 0.0
        %1650 = vmatpush1.xpose.msra.mxu0 %v654
        %1651 = vmatprep.subr.mxu0 0.0
        %1652 = vmatpush1.xpose.msra.mxu0 0.0
        %1653 = vmatprep.subr.mxu0 0.0
        %1654 = vmatpush1.xpose.msra.mxu0 0.0
        %1655 = vmatprep.subr.mxu0 0.0
        %1656 = vmatpush1.xpose.msra.mxu0 0.0
        %1657 = vmatprep.subr.mxu0 0.0
        %1658 = vmatpush1.xpose.msra.mxu0 0.0
        %1659 = vmatprep.subr.mxu0 0.0
        %1660 = vmatpush1.xpose.msra.mxu0 0.0
        %1661 = vmatprep.subr.mxu0 0.0
        %1662 = vmatpush1.xpose.msra.mxu0 0.0
        %1663 = vmatprep.subr.mxu0 0.0
        %1664 = vmatpush1.xpose.msra.mxu0 0.0
        %1665 = vmatprep.subr.mxu0 0.0
        %1666 = vmatpush1.xpose.msra.mxu0 0.0
        %1667 = vmatprep.subr.mxu0 0.0
        %1668 = vmatpush1.xpose.msra.mxu0 0.0
        %1669 = vmatprep.subr.mxu0 0.0
        %1670 = vmatpush1.xpose.msra.mxu0 0.0
        %1671 = vmatprep.subr.mxu0 0.0
        %1672 = vmatpush1.xpose.msra.mxu0 0.0
        %1673 = vmatprep.subr.mxu0 0.0
        %1674 = vmatpush1.xpose.msra.mxu0 0.0
        %1675 = vmatprep.subr.mxu0 0.0
        %1676 = vmatpush1.xpose.msra.mxu0 0.0
        %1677 = vmatprep.subr.mxu0 0.0
        %1678 = vmatpush1.xpose.msra.mxu0 0.0
        %1679 = vmatprep.subr.mxu0 0.0
        %1680 = vmatpush1.xpose.msra.mxu0 0.0
        %1681 = vmatprep.subr.mxu0 0.0
        %1682 = vmatpush1.xpose.msra.mxu0 0.0
        %1683 = vmatprep.subr.mxu0 0.0
        %1684 = vmatpush1.xpose.msra.mxu0 0.0
        %1685 = vmatprep.subr.mxu0 0.0
        %1686 = vmatpush1.xpose.msra.mxu0 0.0
        %1687 = vmatprep.subr.mxu0 0.0
        %1688 = vmatpush1.xpose.msra.mxu0 0.0
        %1689 = vmatprep.subr.mxu0 0.0
        %1690 = vmatpush1.xpose.msra.mxu0 0.0
        %1691 = vmatprep.subr.mxu0 0.0
        %1692 = vmatpush1.xpose.msra.mxu0 0.0
        %1693 = vmatprep.subr.mxu0 0.0
        %1694 = vmatpush1.xpose.msra.mxu0 0.0
        %1695 = vmatprep.subr.mxu0 0.0
        %1696 = vmatpush1.xpose.msra.mxu0 0.0
        %1697 = vmatprep.subr.mxu0 0.0
        %1698 = vmatpush1.xpose.msra.mxu0 0.0
        %1699 = vmatprep.subr.mxu0 0.0
        %1700 = vmatpush1.xpose.msra.mxu0 0.0
        %1701 = vmatprep.subr.mxu0 0.0
        %1702 = vmatpush1.xpose.msra.mxu0 0.0
        %1703 = vmatprep.subr.mxu0 0.0
        %1704 = vmatpush1.xpose.msra.mxu0 0.0
        %1705 = vmatprep.subr.mxu0 0.0
        %1706 = vmatpush1.xpose.msra.mxu0 0.0
        %1707 = vmatprep.subr.mxu0 0.0
        %1708 = vmatpush1.xpose.msra.mxu0 0.0
        %1709 = vmatprep.subr.mxu0 0.0
        %1710 = vmatpush1.xpose.msra.mxu0 0.0
        %1711 = vmatprep.subr.mxu0 0.0
        %1712 = vmatpush1.xpose.msra.mxu0 0.0
        %1713 = vmatprep.mubr.f32.mxu0 0.0
        %1714 = vmatmul.mubr.f32.gmra.mrb[0].mxu0 %v1647
        %v1715 = vpop.f32.mrb[0].mxu0
        %v1716 = vadd.f32 0.0, %v1715
        %v1717 = vpop.f32.mrb[0].mxu0
        %1718 = vdwg.mxu0
        %v1720 = vsel %vm511, %v757, 0
        %1722 = vmatprep.subr.mxu0 0.0
        %1723 = vmatpush1.xpose.msra.mxu0 %v657
        %1724 = vmatprep.subr.mxu0 0.0
        %1725 = vmatpush1.xpose.msra.mxu0 0.0
        %1726 = vmatprep.subr.mxu0 0.0
        %1727 = vmatpush1.xpose.msra.mxu0 0.0
        %1728 = vmatprep.subr.mxu0 0.0
        %1729 = vmatpush1.xpose.msra.mxu0 0.0
        %1730 = vmatprep.subr.mxu0 0.0
        %1731 = vmatpush1.xpose.msra.mxu0 0.0
        %1732 = vmatprep.subr.mxu0 0.0
        %1733 = vmatpush1.xpose.msra.mxu0 0.0
        %1734 = vmatprep.subr.mxu0 0.0
        %1735 = vmatpush1.xpose.msra.mxu0 0.0
        %1736 = vmatprep.subr.mxu0 0.0
        %1737 = vmatpush1.xpose.msra.mxu0 0.0
        %1738 = vmatprep.subr.mxu0 0.0
        %1739 = vmatpush1.xpose.msra.mxu0 0.0
        %1740 = vmatprep.subr.mxu0 0.0
        %1741 = vmatpush1.xpose.msra.mxu0 0.0
        %1742 = vmatprep.subr.mxu0 0.0
        %1743 = vmatpush1.xpose.msra.mxu0 0.0
        %1744 = vmatprep.subr.mxu0 0.0
        %1745 = vmatpush1.xpose.msra.mxu0 0.0
        %1746 = vmatprep.subr.mxu0 0.0
        %1747 = vmatpush1.xpose.msra.mxu0 0.0
        %1748 = vmatprep.subr.mxu0 0.0
        %1749 = vmatpush1.xpose.msra.mxu0 0.0
        %1750 = vmatprep.subr.mxu0 0.0
        %1751 = vmatpush1.xpose.msra.mxu0 0.0
        %1752 = vmatprep.subr.mxu0 0.0
        %1753 = vmatpush1.xpose.msra.mxu0 0.0
        %1754 = vmatprep.subr.mxu0 0.0
        %1755 = vmatpush1.xpose.msra.mxu0 0.0
        %1756 = vmatprep.subr.mxu0 0.0
        %1757 = vmatpush1.xpose.msra.mxu0 0.0
        %1758 = vmatprep.subr.mxu0 0.0
        %1759 = vmatpush1.xpose.msra.mxu0 0.0
        %1760 = vmatprep.subr.mxu0 0.0
        %1761 = vmatpush1.xpose.msra.mxu0 0.0
        %1762 = vmatprep.subr.mxu0 0.0
        %1763 = vmatpush1.xpose.msra.mxu0 0.0
        %1764 = vmatprep.subr.mxu0 0.0
        %1765 = vmatpush1.xpose.msra.mxu0 0.0
        %1766 = vmatprep.subr.mxu0 0.0
        %1767 = vmatpush1.xpose.msra.mxu0 0.0
        %1768 = vmatprep.subr.mxu0 0.0
        %1769 = vmatpush1.xpose.msra.mxu0 0.0
        %1770 = vmatprep.subr.mxu0 0.0
        %1771 = vmatpush1.xpose.msra.mxu0 0.0
        %1772 = vmatprep.subr.mxu0 0.0
        %1773 = vmatpush1.xpose.msra.mxu0 0.0
        %1774 = vmatprep.subr.mxu0 0.0
        %1775 = vmatpush1.xpose.msra.mxu0 0.0
        %1776 = vmatprep.subr.mxu0 0.0
        %1777 = vmatpush1.xpose.msra.mxu0 0.0
        %1778 = vmatprep.subr.mxu0 0.0
        %1779 = vmatpush1.xpose.msra.mxu0 0.0
        %1780 = vmatprep.subr.mxu0 0.0
        %1781 = vmatpush1.xpose.msra.mxu0 0.0
        %1782 = vmatprep.subr.mxu0 0.0
        %1783 = vmatpush1.xpose.msra.mxu0 0.0
        %1784 = vmatprep.subr.mxu0 0.0
        %1785 = vmatpush1.xpose.msra.mxu0 0.0
        %1786 = vmatprep.mubr.f32.mxu0 0.0
        %1787 = vmatmul.mubr.f32.gmra.mrb[0].mxu0 %v1720
        %v1788 = vpop.f32.mrb[0].mxu0
        %v1789 = vadd.f32 0.0, %v1788
        %v1790 = vpop.f32.mrb[0].mxu0
        %1791 = vdwg.mxu0
        %v1793 = vsel %vm511, %v762, 0
        %1795 = vmatprep.subr.mxu0 0.0
        %1796 = vmatpush1.xpose.msra.mxu0 %v660
        %1797 = vmatprep.subr.mxu0 0.0
        %1798 = vmatpush1.xpose.msra.mxu0 0.0
        %1799 = vmatprep.subr.mxu0 0.0
        %1800 = vmatpush1.xpose.msra.mxu0 0.0
        %1801 = vmatprep.subr.mxu0 0.0
        %1802 = vmatpush1.xpose.msra.mxu0 0.0
        %1803 = vmatprep.subr.mxu0 0.0
        %1804 = vmatpush1.xpose.msra.mxu0 0.0
        %1805 = vmatprep.subr.mxu0 0.0
        %1806 = vmatpush1.xpose.msra.mxu0 0.0
        %1807 = vmatprep.subr.mxu0 0.0
        %1808 = vmatpush1.xpose.msra.mxu0 0.0
        %1809 = vmatprep.subr.mxu0 0.0
        %1810 = vmatpush1.xpose.msra.mxu0 0.0
        %1811 = vmatprep.subr.mxu0 0.0
        %1812 = vmatpush1.xpose.msra.mxu0 0.0
        %1813 = vmatprep.subr.mxu0 0.0
        %1814 = vmatpush1.xpose.msra.mxu0 0.0
        %1815 = vmatprep.subr.mxu0 0.0
        %1816 = vmatpush1.xpose.msra.mxu0 0.0
        %1817 = vmatprep.subr.mxu0 0.0
        %1818 = vmatpush1.xpose.msra.mxu0 0.0
        %1819 = vmatprep.subr.mxu0 0.0
        %1820 = vmatpush1.xpose.msra.mxu0 0.0
        %1821 = vmatprep.subr.mxu0 0.0
        %1822 = vmatpush1.xpose.msra.mxu0 0.0
        %1823 = vmatprep.subr.mxu0 0.0
        %1824 = vmatpush1.xpose.msra.mxu0 0.0
        %1825 = vmatprep.subr.mxu0 0.0
        %1826 = vmatpush1.xpose.msra.mxu0 0.0
        %1827 = vmatprep.subr.mxu0 0.0
        %1828 = vmatpush1.xpose.msra.mxu0 0.0
        %1829 = vmatprep.subr.mxu0 0.0
        %1830 = vmatpush1.xpose.msra.mxu0 0.0
        %1831 = vmatprep.subr.mxu0 0.0
        %1832 = vmatpush1.xpose.msra.mxu0 0.0
        %1833 = vmatprep.subr.mxu0 0.0
        %1834 = vmatpush1.xpose.msra.mxu0 0.0
        %1835 = vmatprep.subr.mxu0 0.0
        %1836 = vmatpush1.xpose.msra.mxu0 0.0
        %1837 = vmatprep.subr.mxu0 0.0
        %1838 = vmatpush1.xpose.msra.mxu0 0.0
        %1839 = vmatprep.subr.mxu0 0.0
        %1840 = vmatpush1.xpose.msra.mxu0 0.0
        %1841 = vmatprep.subr.mxu0 0.0
        %1842 = vmatpush1.xpose.msra.mxu0 0.0
        %1843 = vmatprep.subr.mxu0 0.0
        %1844 = vmatpush1.xpose.msra.mxu0 0.0
        %1845 = vmatprep.subr.mxu0 0.0
        %1846 = vmatpush1.xpose.msra.mxu0 0.0
        %1847 = vmatprep.subr.mxu0 0.0
        %1848 = vmatpush1.xpose.msra.mxu0 0.0
        %1849 = vmatprep.subr.mxu0 0.0
        %1850 = vmatpush1.xpose.msra.mxu0 0.0
        %1851 = vmatprep.subr.mxu0 0.0
        %1852 = vmatpush1.xpose.msra.mxu0 0.0
        %1853 = vmatprep.subr.mxu0 0.0
        %1854 = vmatpush1.xpose.msra.mxu0 0.0
        %1855 = vmatprep.subr.mxu0 0.0
        %1856 = vmatpush1.xpose.msra.mxu0 0.0
        %1857 = vmatprep.subr.mxu0 0.0
        %1858 = vmatpush1.xpose.msra.mxu0 0.0
        %1859 = vmatprep.mubr.f32.mxu0 0.0
        %1860 = vmatmul.mubr.f32.gmra.mrb[0].mxu0 %v1793
        %v1861 = vpop.f32.mrb[0].mxu0
        %v1862 = vadd.f32 0.0, %v1861
        %v1863 = vpop.f32.mrb[0].mxu0
        %1864 = vdwg.mxu0
        %v1866 = vsel %vm511, %v767, 0
        %1868 = vmatprep.subr.mxu0 0.0
        %1869 = vmatpush1.xpose.msra.mxu0 %v663
        %1870 = vmatprep.subr.mxu0 0.0
        %1871 = vmatpush1.xpose.msra.mxu0 0.0
        %1872 = vmatprep.subr.mxu0 0.0
        %1873 = vmatpush1.xpose.msra.mxu0 0.0
        %1874 = vmatprep.subr.mxu0 0.0
        %1875 = vmatpush1.xpose.msra.mxu0 0.0
        %1876 = vmatprep.subr.mxu0 0.0
        %1877 = vmatpush1.xpose.msra.mxu0 0.0
        %1878 = vmatprep.subr.mxu0 0.0
        %1879 = vmatpush1.xpose.msra.mxu0 0.0
        %1880 = vmatprep.subr.mxu0 0.0
        %1881 = vmatpush1.xpose.msra.mxu0 0.0
        %1882 = vmatprep.subr.mxu0 0.0
        %1883 = vmatpush1.xpose.msra.mxu0 0.0
        %1884 = vmatprep.subr.mxu0 0.0
        %1885 = vmatpush1.xpose.msra.mxu0 0.0
        %1886 = vmatprep.subr.mxu0 0.0
        %1887 = vmatpush1.xpose.msra.mxu0 0.0
        %1888 = vmatprep.subr.mxu0 0.0
        %1889 = vmatpush1.xpose.msra.mxu0 0.0
        %1890 = vmatprep.subr.mxu0 0.0
        %1891 = vmatpush1.xpose.msra.mxu0 0.0
        %1892 = vmatprep.subr.mxu0 0.0
        %1893 = vmatpush1.xpose.msra.mxu0 0.0
        %1894 = vmatprep.subr.mxu0 0.0
        %1895 = vmatpush1.xpose.msra.mxu0 0.0
        %1896 = vmatprep.subr.mxu0 0.0
        %1897 = vmatpush1.xpose.msra.mxu0 0.0
        %1898 = vmatprep.subr.mxu0 0.0
        %1899 = vmatpush1.xpose.msra.mxu0 0.0
        %1900 = vmatprep.subr.mxu0 0.0
        %1901 = vmatpush1.xpose.msra.mxu0 0.0
        %1902 = vmatprep.subr.mxu0 0.0
        %1903 = vmatpush1.xpose.msra.mxu0 0.0
        %1904 = vmatprep.subr.mxu0 0.0
        %1905 = vmatpush1.xpose.msra.mxu0 0.0
        %1906 = vmatprep.subr.mxu0 0.0
        %1907 = vmatpush1.xpose.msra.mxu0 0.0
        %1908 = vmatprep.subr.mxu0 0.0
        %1909 = vmatpush1.xpose.msra.mxu0 0.0
        %1910 = vmatprep.subr.mxu0 0.0
        %1911 = vmatpush1.xpose.msra.mxu0 0.0
        %1912 = vmatprep.subr.mxu0 0.0
        %1913 = vmatpush1.xpose.msra.mxu0 0.0
        %1914 = vmatprep.subr.mxu0 0.0
        %1915 = vmatpush1.xpose.msra.mxu0 0.0
        %1916 = vmatprep.subr.mxu0 0.0
        %1917 = vmatpush1.xpose.msra.mxu0 0.0
        %1918 = vmatprep.subr.mxu0 0.0
        %1919 = vmatpush1.xpose.msra.mxu0 0.0
        %1920 = vmatprep.subr.mxu0 0.0
        %1921 = vmatpush1.xpose.msra.mxu0 0.0
        %1922 = vmatprep.subr.mxu0 0.0
        %1923 = vmatpush1.xpose.msra.mxu0 0.0
        %1924 = vmatprep.subr.mxu0 0.0
        %1925 = vmatpush1.xpose.msra.mxu0 0.0
        %1926 = vmatprep.subr.mxu0 0.0
        %1927 = vmatpush1.xpose.msra.mxu0 0.0
        %1928 = vmatprep.subr.mxu0 0.0
        %1929 = vmatpush1.xpose.msra.mxu0 0.0
        %1930 = vmatprep.subr.mxu0 0.0
        %1931 = vmatpush1.xpose.msra.mxu0 0.0
        %1932 = vmatprep.mubr.f32.mxu0 0.0
        %1933 = vmatmul.mubr.f32.gmra.mrb[0].mxu0 %v1866
        %v1934 = vpop.f32.mrb[0].mxu0
        %v1935 = vadd.f32 0.0, %v1934
        %v1936 = vpop.f32.mrb[0].mxu0
        %1937 = vdwg.mxu0
        %v1938 = vlaneseq
        %v1939 = vshrl.u32 %v1938, 7
        %v1940 = vlaneseq
        %v1941 = vand.u32 %v1940, 127
        %vm1942 = vcmp.eq.s32.totalorder %v1939, %v1941
        %v1943 = vsel %vm1942, 1, 0
        %vm1944 = vcmp.eq.s32.totalorder %v1943, 1
        %v1945 = vsel %vm1944, -1e+30, %v1424
        %v1946 = vsel %vm1944, -1e+30, %v1497
        %v1947 = vsel %vm1944, -1e+30, %v1570
        %v1948 = vsel %vm1944, -1e+30, %v1643
        %v1949 = vsel %vm1944, -1e+30, %v1716
        %v1950 = vsel %vm1944, -1e+30, %v1789
        %v1951 = vsel %vm1944, -1e+30, %v1862
        %v1952 = vsel %vm1944, -1e+30, %v1935
        %vm1953 = vcmask 64512
        %v1954 = vsel %vm1953, %v1945, -inf
        %1955 = vmax.xlane.f32.xlu0 %v1954
        %v1956 = vpop.xlane.xlu0 %1955
        %v1957 = vsel %vm1953, %v1946, -inf
        %1958 = vmax.xlane.f32.xlu0 %v1957
        %v1959 = vpop.xlane.xlu0 %1958
        %v1960 = vsel %vm1953, %v1947, -inf
        %1961 = vmax.xlane.f32.xlu0 %v1960
        %v1962 = vpop.xlane.xlu0 %1961
        %v1963 = vsel %vm1953, %v1948, -inf
        %1964 = vmax.xlane.f32.xlu0 %v1963
        %v1965 = vpop.xlane.xlu0 %1964
        %v1966 = vsel %vm1953, %v1949, -inf
        %1967 = vmax.xlane.f32.xlu0 %v1966
        %v1968 = vpop.xlane.xlu0 %1967
        %v1969 = vsel %vm1953, %v1950, -inf
        %1970 = vmax.xlane.f32.xlu0 %v1969
        %v1971 = vpop.xlane.xlu0 %1970
        %v1972 = vsel %vm1953, %v1951, -inf
        %1973 = vmax.xlane.f32.xlu0 %v1972
        %v1974 = vpop.xlane.xlu0 %1973
        %v1975 = vsel %vm1953, %v1952, -inf
        %1976 = vmax.xlane.f32.xlu0 %v1975
        %v1977 = vpop.xlane.xlu0 %1976
        %v1986 = vlaneseq
        %v1987 = vshrl.u32 %v1986, 7
        %v1988 = vsub.s32 %v1941, %v1987
        %v1989 = vrot.slane %v1956, %v1988
        %v1990 = vlaneseq
        %v1991 = vshrl.u32 %v1990, 7
        %v1992 = vsub.s32 %v1941, %v1991
        %v1993 = vrot.slane %v1959, %v1992
        %v1994 = vlaneseq
        %v1995 = vshrl.u32 %v1994, 7
        %v1996 = vsub.s32 %v1941, %v1995
        %v1997 = vrot.slane %v1962, %v1996
        %v1998 = vlaneseq
        %v1999 = vshrl.u32 %v1998, 7
        %v2000 = vsub.s32 %v1941, %v1999
        %v2001 = vrot.slane %v1965, %v2000
        %v2002 = vlaneseq
        %v2003 = vshrl.u32 %v2002, 7
        %v2004 = vsub.s32 %v1941, %v2003
        %v2005 = vrot.slane %v1968, %v2004
        %v2006 = vlaneseq
        %v2007 = vshrl.u32 %v2006, 7
        %v2008 = vsub.s32 %v1941, %v2007
        %v2009 = vrot.slane %v1971, %v2008
        %v2010 = vlaneseq
        %v2011 = vshrl.u32 %v2010, 7
        %v2012 = vsub.s32 %v1941, %v2011
        %v2013 = vrot.slane %v1974, %v2012
        %v2014 = vlaneseq
        %v2015 = vshrl.u32 %v2014, 7
        %v2016 = vsub.s32 %v1941, %v2015
        %v2017 = vrot.slane %v1977, %v2016
        %vm2018 = vcmask 1041409
        %v2019 = vsel %vm2018, %v1993, %v1989
        %vm2020 = vcmask 1042434
        %v2021 = vsel %vm2020, %v1997, %v2019
        %vm2022 = vcmask 1043459
        %v2023 = vsel %vm2022, %v2001, %v2021
        %vm2024 = vcmask 1044484
        %v2025 = vsel %vm2024, %v2005, %v2023
        %vm2026 = vcmask 1045509
        %v2027 = vsel %vm2026, %v2009, %v2025
        %vm2028 = vcmask 1046534
        %v2029 = vsel %vm2028, %v2013, %v2027
        %vm2030 = vcmask 1047559
        %v2031 = vsel %vm2030, %v2017, %v2029
        %2033 = vxpose.xlu0.b32.start [1/16] %v2031, 128
        %2034 = vxpose.xlu0.b32.cont [2/16] 0.0, 128
        %2035 = vxpose.xlu0.b32.cont [3/16] 0.0, 128
        %2036 = vxpose.xlu0.b32.cont [4/16] 0.0, 128
        %2037 = vxpose.xlu0.b32.cont [5/16] 0.0, 128
        %2038 = vxpose.xlu0.b32.cont [6/16] 0.0, 128
        %2039 = vxpose.xlu0.b32.cont [7/16] 0.0, 128
        %2040 = vxpose.xlu0.b32.cont [8/16] 0.0, 128
        %2041 = vxpose.xlu0.b32.cont [9/16] 0.0, 128
        %2042 = vxpose.xlu0.b32.cont [10/16] 0.0, 128
        %2043 = vxpose.xlu0.b32.cont [11/16] 0.0, 128
        %2044 = vxpose.xlu0.b32.cont [12/16] 0.0, 128
        %2045 = vxpose.xlu0.b32.cont [13/16] 0.0, 128
        %2046 = vxpose.xlu0.b32.cont [14/16] 0.0, 128
        %2047 = vxpose.xlu0.b32.cont [15/16] 0.0, 128
        %2048 = vxpose.xlu0.b32.end [16/16] 0.0, 128
        %v2049 = vpop.trf.xlu0
        %v2050 = vpop.trf.xlu0
        %v2051 = vpop.trf.xlu0
        %v2052 = vpop.trf.xlu0
        %v2053 = vpop.trf.xlu0
        %v2054 = vpop.trf.xlu0
        %v2055 = vpop.trf.xlu0
        %v2056 = vpop.trf.xlu0
        %v2057 = vpop.trf.xlu0
        %v2058 = vpop.trf.xlu0
        %v2059 = vpop.trf.xlu0
        %v2060 = vpop.trf.xlu0
        %v2061 = vpop.trf.xlu0
        %v2062 = vpop.trf.xlu0
        %v2063 = vpop.trf.xlu0
        %v2064 = vpop.trf.xlu0
        %v2065 = vlaneseq
        %v2066 = vshrl.u32 %v2065, 7
        %v2067 = vsub.s32 0, %v2066
        %v2068 = vrot.slane %v2049, %v2067
        %2070 = vbcast.lane.b32.xlu0 %v2068, 256
        %v2071 = vpop.permute.xlu0 %2070
        %v2072 = vlaneseq
        %v2073 = vshrl.u32 %v2072, 7
        %v2074 = vsub.s32 1, %v2073
        %v2075 = vrot.slane %v2049, %v2074
        %2077 = vbcast.lane.b32.xlu0 %v2075, 256
        %v2078 = vpop.permute.xlu0 %2077
        %v2079 = vlaneseq
        %v2080 = vshrl.u32 %v2079, 7
        %v2081 = vsub.s32 2, %v2080
        %v2082 = vrot.slane %v2049, %v2081
        %2084 = vbcast.lane.b32.xlu0 %v2082, 256
        %v2085 = vpop.permute.xlu0 %2084
        %v2086 = vlaneseq
        %v2087 = vshrl.u32 %v2086, 7
        %v2088 = vsub.s32 3, %v2087
        %v2089 = vrot.slane %v2049, %v2088
        %2091 = vbcast.lane.b32.xlu0 %v2089, 256
        %v2092 = vpop.permute.xlu0 %2091
        %v2093 = vlaneseq
        %v2094 = vshrl.u32 %v2093, 7
        %v2095 = vsub.s32 4, %v2094
        %v2096 = vrot.slane %v2049, %v2095
        %2098 = vbcast.lane.b32.xlu0 %v2096, 256
        %v2099 = vpop.permute.xlu0 %2098
        %v2100 = vlaneseq
        %v2101 = vshrl.u32 %v2100, 7
        %v2102 = vsub.s32 5, %v2101
        %v2103 = vrot.slane %v2049, %v2102
        %2105 = vbcast.lane.b32.xlu0 %v2103, 256
        %v2106 = vpop.permute.xlu0 %2105
        %v2107 = vlaneseq
        %v2108 = vshrl.u32 %v2107, 7
        %v2109 = vsub.s32 6, %v2108
        %v2110 = vrot.slane %v2049, %v2109
        %2112 = vbcast.lane.b32.xlu0 %v2110, 256
        %v2113 = vpop.permute.xlu0 %2112
        %v2114 = vlaneseq
        %v2115 = vshrl.u32 %v2114, 7
        %v2116 = vsub.s32 7, %v2115
        %v2117 = vrot.slane %v2049, %v2116
        %2119 = vbcast.lane.b32.xlu0 %v2117, 256
        %v2120 = vpop.permute.xlu0 %2119
        %v2121 = vsel %vm1953, %v840, -inf
        %2122 = vmax.xlane.f32.xlu0 %v2121
        %v2123 = vpop.xlane.xlu0 %2122
        %v2124 = vsel %vm1953, %v913, -inf
        %2125 = vmax.xlane.f32.xlu0 %v2124
        %v2126 = vpop.xlane.xlu0 %2125
        %v2127 = vsel %vm1953, %v986, -inf
        %2128 = vmax.xlane.f32.xlu0 %v2127
        %v2129 = vpop.xlane.xlu0 %2128
        %v2130 = vsel %vm1953, %v1059, -inf
        %2131 = vmax.xlane.f32.xlu0 %v2130
        %v2132 = vpop.xlane.xlu0 %2131
        %v2133 = vsel %vm1953, %v1132, -inf
        %2134 = vmax.xlane.f32.xlu0 %v2133
        %v2135 = vpop.xlane.xlu0 %2134
        %v2136 = vsel %vm1953, %v1205, -inf
        %2137 = vmax.xlane.f32.xlu0 %v2136
        %v2138 = vpop.xlane.xlu0 %2137
        %v2139 = vsel %vm1953, %v1278, -inf
        %2140 = vmax.xlane.f32.xlu0 %v2139
        %v2141 = vpop.xlane.xlu0 %2140
        %v2142 = vsel %vm1953, %v1351, -inf
        %2143 = vmax.xlane.f32.xlu0 %v2142
        %v2144 = vpop.xlane.xlu0 %2143
        %v2145 = vmax.f32 %v2123, %v2071
        %v2146 = vmax.f32 %v2126, %v2078
        %v2147 = vmax.f32 %v2129, %v2085
        %v2148 = vmax.f32 %v2132, %v2092
        %v2149 = vmax.f32 %v2135, %v2099
        %v2150 = vmax.f32 %v2138, %v2106
        %v2151 = vmax.f32 %v2141, %v2113
        %v2152 = vmax.f32 %v2144, %v2120
        %v2161 = vlaneseq
        %v2162 = vshrl.u32 %v2161, 7
        %v2163 = vsub.s32 %v1941, %v2162
        %v2164 = vrot.slane %v2145, %v2163
        %v2165 = vlaneseq
        %v2166 = vshrl.u32 %v2165, 7
        %v2167 = vsub.s32 %v1941, %v2166
        %v2168 = vrot.slane %v2146, %v2167
        %v2169 = vlaneseq
        %v2170 = vshrl.u32 %v2169, 7
        %v2171 = vsub.s32 %v1941, %v2170
        %v2172 = vrot.slane %v2147, %v2171
        %v2173 = vlaneseq
        %v2174 = vshrl.u32 %v2173, 7
        %v2175 = vsub.s32 %v1941, %v2174
        %v2176 = vrot.slane %v2148, %v2175
        %v2177 = vlaneseq
        %v2178 = vshrl.u32 %v2177, 7
        %v2179 = vsub.s32 %v1941, %v2178
        %v2180 = vrot.slane %v2149, %v2179
        %v2181 = vlaneseq
        %v2182 = vshrl.u32 %v2181, 7
        %v2183 = vsub.s32 %v1941, %v2182
        %v2184 = vrot.slane %v2150, %v2183
        %v2185 = vlaneseq
        %v2186 = vshrl.u32 %v2185, 7
        %v2187 = vsub.s32 %v1941, %v2186
        %v2188 = vrot.slane %v2151, %v2187
        %v2189 = vlaneseq
        %v2190 = vshrl.u32 %v2189, 7
        %v2191 = vsub.s32 %v1941, %v2190
        %v2192 = vrot.slane %v2152, %v2191
        %v2193 = vsel %vm2018, %v2168, %v2164
        %v2194 = vsel %vm2020, %v2172, %v2193
        %v2195 = vsel %vm2022, %v2176, %v2194
        %v2196 = vsel %vm2024, %v2180, %v2195
        %v2197 = vsel %vm2026, %v2184, %v2196
        %v2198 = vsel %vm2028, %v2188, %v2197
        %v2199 = vsel %vm2030, %v2192, %v2198
        %2201 = vxpose.xlu0.b32.start [1/16] %v2199, 128
        %2202 = vxpose.xlu0.b32.cont [2/16] 0.0, 128
        %2203 = vxpose.xlu0.b32.cont [3/16] 0.0, 128
        %2204 = vxpose.xlu0.b32.cont [4/16] 0.0, 128
        %2205 = vxpose.xlu0.b32.cont [5/16] 0.0, 128
        %2206 = vxpose.xlu0.b32.cont [6/16] 0.0, 128
        %2207 = vxpose.xlu0.b32.cont [7/16] 0.0, 128
        %2208 = vxpose.xlu0.b32.cont [8/16] 0.0, 128
        %2209 = vxpose.xlu0.b32.cont [9/16] 0.0, 128
        %2210 = vxpose.xlu0.b32.cont [10/16] 0.0, 128
        %2211 = vxpose.xlu0.b32.cont [11/16] 0.0, 128
        %2212 = vxpose.xlu0.b32.cont [12/16] 0.0, 128
        %2213 = vxpose.xlu0.b32.cont [13/16] 0.0, 128
        %2214 = vxpose.xlu0.b32.cont [14/16] 0.0, 128
        %2215 = vxpose.xlu0.b32.cont [15/16] 0.0, 128
        %2216 = vxpose.xlu0.b32.end [16/16] 0.0, 128
        %v2217 = vpop.trf.xlu0
        %v2218 = vpop.trf.xlu0
        %v2219 = vpop.trf.xlu0
        %v2220 = vpop.trf.xlu0
        %v2221 = vpop.trf.xlu0
        %v2222 = vpop.trf.xlu0
        %v2223 = vpop.trf.xlu0
        %v2224 = vpop.trf.xlu0
        %v2225 = vpop.trf.xlu0
        %v2226 = vpop.trf.xlu0
        %v2227 = vpop.trf.xlu0
        %v2228 = vpop.trf.xlu0
        %v2229 = vpop.trf.xlu0
        %v2230 = vpop.trf.xlu0
        %v2231 = vpop.trf.xlu0
        %v2232 = vpop.trf.xlu0
        %v2233 = vlaneseq
        %v2234 = vshrl.u32 %v2233, 7
        %v2235 = vsub.s32 0, %v2234
        %v2236 = vrot.slane %v2217, %v2235
        %2238 = vbcast.lane.b32.xlu0 %v2236, 256
        %v2239 = vpop.permute.xlu0 %2238
        %v2240 = vlaneseq
        %v2241 = vshrl.u32 %v2240, 7
        %v2242 = vsub.s32 1, %v2241
        %v2243 = vrot.slane %v2217, %v2242
        %2245 = vbcast.lane.b32.xlu0 %v2243, 256
        %v2246 = vpop.permute.xlu0 %2245
        %v2247 = vlaneseq
        %v2248 = vshrl.u32 %v2247, 7
        %v2249 = vsub.s32 2, %v2248
        %v2250 = vrot.slane %v2217, %v2249
        %2252 = vbcast.lane.b32.xlu0 %v2250, 256
        %v2253 = vpop.permute.xlu0 %2252
        %v2254 = vlaneseq
        %v2255 = vshrl.u32 %v2254, 7
        %v2256 = vsub.s32 3, %v2255
        %v2257 = vrot.slane %v2217, %v2256
        %2259 = vbcast.lane.b32.xlu0 %v2257, 256
        %v2260 = vpop.permute.xlu0 %2259
        %v2261 = vlaneseq
        %v2262 = vshrl.u32 %v2261, 7
        %v2263 = vsub.s32 4, %v2262
        %v2264 = vrot.slane %v2217, %v2263
        %2266 = vbcast.lane.b32.xlu0 %v2264, 256
        %v2267 = vpop.permute.xlu0 %2266
        %v2268 = vlaneseq
        %v2269 = vshrl.u32 %v2268, 7
        %v2270 = vsub.s32 5, %v2269
        %v2271 = vrot.slane %v2217, %v2270
        %2273 = vbcast.lane.b32.xlu0 %v2271, 256
        %v2274 = vpop.permute.xlu0 %2273
        %v2275 = vlaneseq
        %v2276 = vshrl.u32 %v2275, 7
        %v2277 = vsub.s32 6, %v2276
        %v2278 = vrot.slane %v2217, %v2277
        %2280 = vbcast.lane.b32.xlu0 %v2278, 256
        %v2281 = vpop.permute.xlu0 %2280
        %v2282 = vlaneseq
        %v2283 = vshrl.u32 %v2282, 7
        %v2284 = vsub.s32 7, %v2283
        %v2285 = vrot.slane %v2217, %v2284
        %2287 = vbcast.lane.b32.xlu0 %v2285, 256
        %v2288 = vpop.permute.xlu0 %2287
        %v2289 = vsub.f32 %v840, %v2145
        %v2290 = vsub.f32 %v913, %v2146
        %v2291 = vsub.f32 %v986, %v2147
        %v2292 = vsub.f32 %v1059, %v2148
        %v2293 = vsub.f32 %v1132, %v2149
        %v2294 = vsub.f32 %v1205, %v2150
        %v2295 = vsub.f32 %v1278, %v2151
        %v2296 = vsub.f32 %v1351, %v2152
        %v2297 = vmul.f32 %v2289, 1.442695
        %v2298 = vpow.pop %v2297
        %v2299 = vmul.f32 %v2290, 1.442695
        %v2300 = vpow.pop %v2299
        %v2301 = vmul.f32 %v2291, 1.442695
        %v2302 = vpow.pop %v2301
        %v2303 = vmul.f32 %v2292, 1.442695
        %v2304 = vpow.pop %v2303
        %v2305 = vmul.f32 %v2293, 1.442695
        %v2306 = vpow.pop %v2305
        %v2307 = vmul.f32 %v2294, 1.442695
        %v2308 = vpow.pop %v2307
        %v2309 = vmul.f32 %v2295, 1.442695
        %v2310 = vpow.pop %v2309
        %v2311 = vmul.f32 %v2296, 1.442695
        %v2312 = vpow.pop %v2311
        %v2313 = vsub.f32 %v1945, %v2239
        %v2314 = vsub.f32 %v1946, %v2246
        %v2315 = vsub.f32 %v1947, %v2253
        %v2316 = vsub.f32 %v1948, %v2260
        %v2317 = vsub.f32 %v1949, %v2267
        %v2318 = vsub.f32 %v1950, %v2274
        %v2319 = vsub.f32 %v1951, %v2281
        %v2320 = vsub.f32 %v1952, %v2288
        %v2321 = vmul.f32 %v2313, 1.442695
        %v2322 = vpow.pop %v2321
        %v2323 = vmul.f32 %v2314, 1.442695
        %v2324 = vpow.pop %v2323
        %v2325 = vmul.f32 %v2315, 1.442695
        %v2326 = vpow.pop %v2325
        %v2327 = vmul.f32 %v2316, 1.442695
        %v2328 = vpow.pop %v2327
        %v2329 = vmul.f32 %v2317, 1.442695
        %v2330 = vpow.pop %v2329
        %v2331 = vmul.f32 %v2318, 1.442695
        %v2332 = vpow.pop %v2331
        %v2333 = vmul.f32 %v2319, 1.442695
        %v2334 = vpow.pop %v2333
        %v2335 = vmul.f32 %v2320, 1.442695
        %v2336 = vpow.pop %v2335
        %v2337 = vsel %vm1953, %v2322, 0.0
        %2338 = vadd.xlane.f32.xlu0 %v2337
        %v2339 = vpop.xlane.xlu0 %2338
        %v2340 = vsel %vm1953, %v2324, 0.0
        %2341 = vadd.xlane.f32.xlu0 %v2340
        %v2342 = vpop.xlane.xlu0 %2341
        %v2343 = vsel %vm1953, %v2326, 0.0
        %2344 = vadd.xlane.f32.xlu0 %v2343
        %v2345 = vpop.xlane.xlu0 %2344
        %v2346 = vsel %vm1953, %v2328, 0.0
        %2347 = vadd.xlane.f32.xlu0 %v2346
        %v2348 = vpop.xlane.xlu0 %2347
        %v2349 = vsel %vm1953, %v2330, 0.0
        %2350 = vadd.xlane.f32.xlu0 %v2349
        %v2351 = vpop.xlane.xlu0 %2350
        %v2352 = vsel %vm1953, %v2332, 0.0
        %2353 = vadd.xlane.f32.xlu0 %v2352
        %v2354 = vpop.xlane.xlu0 %2353
        %v2355 = vsel %vm1953, %v2334, 0.0
        %2356 = vadd.xlane.f32.xlu0 %v2355
        %v2357 = vpop.xlane.xlu0 %2356
        %v2358 = vsel %vm1953, %v2336, 0.0
        %2359 = vadd.xlane.f32.xlu0 %v2358
        %v2360 = vpop.xlane.xlu0 %2359
        %v2369 = vlaneseq
        %v2370 = vshrl.u32 %v2369, 7
        %v2371 = vsub.s32 %v1941, %v2370
        %v2372 = vrot.slane %v2339, %v2371
        %v2373 = vlaneseq
        %v2374 = vshrl.u32 %v2373, 7
        %v2375 = vsub.s32 %v1941, %v2374
        %v2376 = vrot.slane %v2342, %v2375
        %v2377 = vlaneseq
        %v2378 = vshrl.u32 %v2377, 7
        %v2379 = vsub.s32 %v1941, %v2378
        %v2380 = vrot.slane %v2345, %v2379
        %v2381 = vlaneseq
        %v2382 = vshrl.u32 %v2381, 7
        %v2383 = vsub.s32 %v1941, %v2382
        %v2384 = vrot.slane %v2348, %v2383
        %v2385 = vlaneseq
        %v2386 = vshrl.u32 %v2385, 7
        %v2387 = vsub.s32 %v1941, %v2386
        %v2388 = vrot.slane %v2351, %v2387
        %v2389 = vlaneseq
        %v2390 = vshrl.u32 %v2389, 7
        %v2391 = vsub.s32 %v1941, %v2390
        %v2392 = vrot.slane %v2354, %v2391
        %v2393 = vlaneseq
        %v2394 = vshrl.u32 %v2393, 7
        %v2395 = vsub.s32 %v1941, %v2394
        %v2396 = vrot.slane %v2357, %v2395
        %v2397 = vlaneseq
        %v2398 = vshrl.u32 %v2397, 7
        %v2399 = vsub.s32 %v1941, %v2398
        %v2400 = vrot.slane %v2360, %v2399
        %v2401 = vsel %vm2018, %v2376, %v2372
        %v2402 = vsel %vm2020, %v2380, %v2401
        %v2403 = vsel %vm2022, %v2384, %v2402
        %v2404 = vsel %vm2024, %v2388, %v2403
        %v2405 = vsel %vm2026, %v2392, %v2404
        %v2406 = vsel %vm2028, %v2396, %v2405
        %v2407 = vsel %vm2030, %v2400, %v2406
        %2409 = vxpose.xlu0.b32.start [1/16] %v2407, 128
        %2410 = vxpose.xlu0.b32.cont [2/16] 0.0, 128
        %2411 = vxpose.xlu0.b32.cont [3/16] 0.0, 128
        %2412 = vxpose.xlu0.b32.cont [4/16] 0.0, 128
        %2413 = vxpose.xlu0.b32.cont [5/16] 0.0, 128
        %2414 = vxpose.xlu0.b32.cont [6/16] 0.0, 128
        %2415 = vxpose.xlu0.b32.cont [7/16] 0.0, 128
        %2416 = vxpose.xlu0.b32.cont [8/16] 0.0, 128
        %2417 = vxpose.xlu0.b32.cont [9/16] 0.0, 128
        %2418 = vxpose.xlu0.b32.cont [10/16] 0.0, 128
        %2419 = vxpose.xlu0.b32.cont [11/16] 0.0, 128
        %2420 = vxpose.xlu0.b32.cont [12/16] 0.0, 128
        %2421 = vxpose.xlu0.b32.cont [13/16] 0.0, 128
        %2422 = vxpose.xlu0.b32.cont [14/16] 0.0, 128
        %2423 = vxpose.xlu0.b32.cont [15/16] 0.0, 128
        %2424 = vxpose.xlu0.b32.end [16/16] 0.0, 128
        %v2425 = vpop.trf.xlu0
        %v2426 = vpop.trf.xlu0
        %v2427 = vpop.trf.xlu0
        %v2428 = vpop.trf.xlu0
        %v2429 = vpop.trf.xlu0
        %v2430 = vpop.trf.xlu0
        %v2431 = vpop.trf.xlu0
        %v2432 = vpop.trf.xlu0
        %v2433 = vpop.trf.xlu0
        %v2434 = vpop.trf.xlu0
        %v2435 = vpop.trf.xlu0
        %v2436 = vpop.trf.xlu0
        %v2437 = vpop.trf.xlu0
        %v2438 = vpop.trf.xlu0
        %v2439 = vpop.trf.xlu0
        %v2440 = vpop.trf.xlu0
        %v2441 = vlaneseq
        %v2442 = vshrl.u32 %v2441, 7
        %v2443 = vsub.s32 0, %v2442
        %v2444 = vrot.slane %v2425, %v2443
        %2446 = vbcast.lane.b32.xlu0 %v2444, 256
        %v2447 = vpop.permute.xlu0 %2446
        %v2448 = vlaneseq
        %v2449 = vshrl.u32 %v2448, 7
        %v2450 = vsub.s32 1, %v2449
        %v2451 = vrot.slane %v2425, %v2450
        %2453 = vbcast.lane.b32.xlu0 %v2451, 256
        %v2454 = vpop.permute.xlu0 %2453
        %v2455 = vlaneseq
        %v2456 = vshrl.u32 %v2455, 7
        %v2457 = vsub.s32 2, %v2456
        %v2458 = vrot.slane %v2425, %v2457
        %2460 = vbcast.lane.b32.xlu0 %v2458, 256
        %v2461 = vpop.permute.xlu0 %2460
        %v2462 = vlaneseq
        %v2463 = vshrl.u32 %v2462, 7
        %v2464 = vsub.s32 3, %v2463
        %v2465 = vrot.slane %v2425, %v2464
        %2467 = vbcast.lane.b32.xlu0 %v2465, 256
        %v2468 = vpop.permute.xlu0 %2467
        %v2469 = vlaneseq
        %v2470 = vshrl.u32 %v2469, 7
        %v2471 = vsub.s32 4, %v2470
        %v2472 = vrot.slane %v2425, %v2471
        %2474 = vbcast.lane.b32.xlu0 %v2472, 256
        %v2475 = vpop.permute.xlu0 %2474
        %v2476 = vlaneseq
        %v2477 = vshrl.u32 %v2476, 7
        %v2478 = vsub.s32 5, %v2477
        %v2479 = vrot.slane %v2425, %v2478
        %2481 = vbcast.lane.b32.xlu0 %v2479, 256
        %v2482 = vpop.permute.xlu0 %2481
        %v2483 = vlaneseq
        %v2484 = vshrl.u32 %v2483, 7
        %v2485 = vsub.s32 6, %v2484
        %v2486 = vrot.slane %v2425, %v2485
        %2488 = vbcast.lane.b32.xlu0 %v2486, 256
        %v2489 = vpop.permute.xlu0 %2488
        %v2490 = vlaneseq
        %v2491 = vshrl.u32 %v2490, 7
        %v2492 = vsub.s32 7, %v2491
        %v2493 = vrot.slane %v2425, %v2492
        %2495 = vbcast.lane.b32.xlu0 %v2493, 256
        %v2496 = vpop.permute.xlu0 %2495
        %v2497 = vsel %vm1953, %v2298, 0.0
        %2498 = vadd.xlane.f32.xlu0 %v2497
        %v2499 = vpop.xlane.xlu0 %2498
        %v2500 = vsel %vm1953, %v2300, 0.0
        %2501 = vadd.xlane.f32.xlu0 %v2500
        %v2502 = vpop.xlane.xlu0 %2501
        %v2503 = vsel %vm1953, %v2302, 0.0
        %2504 = vadd.xlane.f32.xlu0 %v2503
        %v2505 = vpop.xlane.xlu0 %2504
        %v2506 = vsel %vm1953, %v2304, 0.0
        %2507 = vadd.xlane.f32.xlu0 %v2506
        %v2508 = vpop.xlane.xlu0 %2507
        %v2509 = vsel %vm1953, %v2306, 0.0
        %2510 = vadd.xlane.f32.xlu0 %v2509
        %v2511 = vpop.xlane.xlu0 %2510
        %v2512 = vsel %vm1953, %v2308, 0.0
        %2513 = vadd.xlane.f32.xlu0 %v2512
        %v2514 = vpop.xlane.xlu0 %2513
        %v2515 = vsel %vm1953, %v2310, 0.0
        %2516 = vadd.xlane.f32.xlu0 %v2515
        %v2517 = vpop.xlane.xlu0 %2516
        %v2518 = vsel %vm1953, %v2312, 0.0
        %2519 = vadd.xlane.f32.xlu0 %v2518
        %v2520 = vpop.xlane.xlu0 %2519
        %v2521 = vadd.f32 %v2499, %v2447
        %v2522 = vadd.f32 %v2502, %v2454
        %v2523 = vadd.f32 %v2505, %v2461
        %v2524 = vadd.f32 %v2508, %v2468
        %v2525 = vadd.f32 %v2511, %v2475
        %v2526 = vadd.f32 %v2514, %v2482
        %v2527 = vadd.f32 %v2517, %v2489
        %v2528 = vadd.f32 %v2520, %v2496
        %v2529 = vrcp.pop %v2521
        %v2530 = vrcp.pop %v2522
        %v2531 = vrcp.pop %v2523
        %v2532 = vrcp.pop %v2524
        %v2533 = vrcp.pop %v2525
        %v2534 = vrcp.pop %v2526
        %v2535 = vrcp.pop %v2527
        %v2536 = vrcp.pop %v2528
        %v2545 = vlaneseq
        %v2546 = vshrl.u32 %v2545, 7
        %v2547 = vsub.s32 %v1941, %v2546
        %v2548 = vrot.slane %v2529, %v2547
        %v2549 = vlaneseq
        %v2550 = vshrl.u32 %v2549, 7
        %v2551 = vsub.s32 %v1941, %v2550
        %v2552 = vrot.slane %v2530, %v2551
        %v2553 = vlaneseq
        %v2554 = vshrl.u32 %v2553, 7
        %v2555 = vsub.s32 %v1941, %v2554
        %v2556 = vrot.slane %v2531, %v2555
        %v2557 = vlaneseq
        %v2558 = vshrl.u32 %v2557, 7
        %v2559 = vsub.s32 %v1941, %v2558
        %v2560 = vrot.slane %v2532, %v2559
        %v2561 = vlaneseq
        %v2562 = vshrl.u32 %v2561, 7
        %v2563 = vsub.s32 %v1941, %v2562
        %v2564 = vrot.slane %v2533, %v2563
        %v2565 = vlaneseq
        %v2566 = vshrl.u32 %v2565, 7
        %v2567 = vsub.s32 %v1941, %v2566
        %v2568 = vrot.slane %v2534, %v2567
        %v2569 = vlaneseq
        %v2570 = vshrl.u32 %v2569, 7
        %v2571 = vsub.s32 %v1941, %v2570
        %v2572 = vrot.slane %v2535, %v2571
        %v2573 = vlaneseq
        %v2574 = vshrl.u32 %v2573, 7
        %v2575 = vsub.s32 %v1941, %v2574
        %v2576 = vrot.slane %v2536, %v2575
        %v2577 = vsel %vm2018, %v2552, %v2548
        %v2578 = vsel %vm2020, %v2556, %v2577
        %v2579 = vsel %vm2022, %v2560, %v2578
        %v2580 = vsel %vm2024, %v2564, %v2579
        %v2581 = vsel %vm2026, %v2568, %v2580
        %v2582 = vsel %vm2028, %v2572, %v2581
        %v2583 = vsel %vm2030, %v2576, %v2582
        %2585 = vxpose.xlu0.b32.start [1/16] %v2583, 128
        %2586 = vxpose.xlu0.b32.cont [2/16] 0.0, 128
        %2587 = vxpose.xlu0.b32.cont [3/16] 0.0, 128
        %2588 = vxpose.xlu0.b32.cont [4/16] 0.0, 128
        %2589 = vxpose.xlu0.b32.cont [5/16] 0.0, 128
        %2590 = vxpose.xlu0.b32.cont [6/16] 0.0, 128
        %2591 = vxpose.xlu0.b32.cont [7/16] 0.0, 128
        %2592 = vxpose.xlu0.b32.cont [8/16] 0.0, 128
        %2593 = vxpose.xlu0.b32.cont [9/16] 0.0, 128
        %2594 = vxpose.xlu0.b32.cont [10/16] 0.0, 128
        %2595 = vxpose.xlu0.b32.cont [11/16] 0.0, 128
        %2596 = vxpose.xlu0.b32.cont [12/16] 0.0, 128
        %2597 = vxpose.xlu0.b32.cont [13/16] 0.0, 128
        %2598 = vxpose.xlu0.b32.cont [14/16] 0.0, 128
        %2599 = vxpose.xlu0.b32.cont [15/16] 0.0, 128
        %2600 = vxpose.xlu0.b32.end [16/16] 0.0, 128
        %v2601 = vpop.trf.xlu0
        %v2602 = vpop.trf.xlu0
        %v2603 = vpop.trf.xlu0
        %v2604 = vpop.trf.xlu0
        %v2605 = vpop.trf.xlu0
        %v2606 = vpop.trf.xlu0
        %v2607 = vpop.trf.xlu0
        %v2608 = vpop.trf.xlu0
        %v2609 = vpop.trf.xlu0
        %v2610 = vpop.trf.xlu0
        %v2611 = vpop.trf.xlu0
        %v2612 = vpop.trf.xlu0
        %v2613 = vpop.trf.xlu0
        %v2614 = vpop.trf.xlu0
        %v2615 = vpop.trf.xlu0
        %v2616 = vpop.trf.xlu0
        %v2617 = vlaneseq
        %v2618 = vshrl.u32 %v2617, 7
        %v2619 = vsub.s32 0, %v2618
        %v2620 = vrot.slane %v2601, %v2619
        %2622 = vbcast.lane.b32.xlu0 %v2620, 256
        %v2623 = vpop.permute.xlu0 %2622
        %v2624 = vlaneseq
        %v2625 = vshrl.u32 %v2624, 7
        %v2626 = vsub.s32 1, %v2625
        %v2627 = vrot.slane %v2601, %v2626
        %2629 = vbcast.lane.b32.xlu0 %v2627, 256
        %v2630 = vpop.permute.xlu0 %2629
        %v2631 = vlaneseq
        %v2632 = vshrl.u32 %v2631, 7
        %v2633 = vsub.s32 2, %v2632
        %v2634 = vrot.slane %v2601, %v2633
        %2636 = vbcast.lane.b32.xlu0 %v2634, 256
        %v2637 = vpop.permute.xlu0 %2636
        %v2638 = vlaneseq
        %v2639 = vshrl.u32 %v2638, 7
        %v2640 = vsub.s32 3, %v2639
        %v2641 = vrot.slane %v2601, %v2640
        %2643 = vbcast.lane.b32.xlu0 %v2641, 256
        %v2644 = vpop.permute.xlu0 %2643
        %v2645 = vlaneseq
        %v2646 = vshrl.u32 %v2645, 7
        %v2647 = vsub.s32 4, %v2646
        %v2648 = vrot.slane %v2601, %v2647
        %2650 = vbcast.lane.b32.xlu0 %v2648, 256
        %v2651 = vpop.permute.xlu0 %2650
        %v2652 = vlaneseq
        %v2653 = vshrl.u32 %v2652, 7
        %v2654 = vsub.s32 5, %v2653
        %v2655 = vrot.slane %v2601, %v2654
        %2657 = vbcast.lane.b32.xlu0 %v2655, 256
        %v2658 = vpop.permute.xlu0 %2657
        %v2659 = vlaneseq
        %v2660 = vshrl.u32 %v2659, 7
        %v2661 = vsub.s32 6, %v2660
        %v2662 = vrot.slane %v2601, %v2661
        %2664 = vbcast.lane.b32.xlu0 %v2662, 256
        %v2665 = vpop.permute.xlu0 %2664
        %v2666 = vlaneseq
        %v2667 = vshrl.u32 %v2666, 7
        %v2668 = vsub.s32 7, %v2667
        %v2669 = vrot.slane %v2601, %v2668
        %2671 = vbcast.lane.b32.xlu0 %v2669, 256
        %v2672 = vpop.permute.xlu0 %2671
        %v2673 = vmul.f32 %v2298, %v2529
        %v2674 = vmul.f32 %v2300, %v2530
        %v2675 = vmul.f32 %v2302, %v2531
        %v2676 = vmul.f32 %v2304, %v2532
        %v2677 = vmul.f32 %v2306, %v2533
        %v2678 = vmul.f32 %v2308, %v2534
        %v2679 = vmul.f32 %v2310, %v2535
        %v2680 = vmul.f32 %v2312, %v2536
        %v2681 = vmul.f32 %v2322, %v2623
        %v2682 = vmul.f32 %v2324, %v2630
        %v2683 = vmul.f32 %v2326, %v2637
        %v2684 = vmul.f32 %v2328, %v2644
        %v2685 = vmul.f32 %v2330, %v2651
        %v2686 = vmul.f32 %v2332, %v2658
        %v2687 = vmul.f32 %v2334, %v2665
        %v2688 = vmul.f32 %v2336, %v2672
        %2689 = vrot.lane.b32.xlu0 %v603, 96
        %v2690 = vpop.permute.xlu0 %2689
        %v2693 = vsel %vm1953, %v2673, 0
        %2695 = vmatprep.subr.mxu0 0.0
        %2696 = vmatpush1.msra.mxu0 %v2690
        %2697 = vmatprep.subr.mxu0 0.0
        %2698 = vmatpush1.msra.mxu0 0.0
        %2699 = vmatprep.subr.mxu0 0.0
        %2700 = vmatpush1.msra.mxu0 0.0
        %2701 = vmatprep.subr.mxu0 0.0
        %2702 = vmatpush1.msra.mxu0 0.0
        %2703 = vmatprep.subr.mxu0 0.0
        %2704 = vmatpush1.msra.mxu0 0.0
        %2705 = vmatprep.subr.mxu0 0.0
        %2706 = vmatpush1.msra.mxu0 0.0
        %2707 = vmatprep.subr.mxu0 0.0
        %2708 = vmatpush1.msra.mxu0 0.0
        %2709 = vmatprep.subr.mxu0 0.0
        %2710 = vmatpush1.msra.mxu0 0.0
        %2711 = vmatprep.subr.mxu0 0.0
        %2712 = vmatpush1.msra.mxu0 0.0
        %2713 = vmatprep.subr.mxu0 0.0
        %2714 = vmatpush1.msra.mxu0 0.0
        %2715 = vmatprep.subr.mxu0 0.0
        %2716 = vmatpush1.msra.mxu0 0.0
        %2717 = vmatprep.subr.mxu0 0.0
        %2718 = vmatpush1.msra.mxu0 0.0
        %2719 = vmatprep.subr.mxu0 0.0
        %2720 = vmatpush1.msra.mxu0 0.0
        %2721 = vmatprep.subr.mxu0 0.0
        %2722 = vmatpush1.msra.mxu0 0.0
        %2723 = vmatprep.subr.mxu0 0.0
        %2724 = vmatpush1.msra.mxu0 0.0
        %2725 = vmatprep.subr.mxu0 0.0
        %2726 = vmatpush1.msra.mxu0 0.0
        %2727 = vmatprep.subr.mxu0 0.0
        %2728 = vmatpush1.msra.mxu0 0.0
        %2729 = vmatprep.subr.mxu0 0.0
        %2730 = vmatpush1.msra.mxu0 0.0
        %2731 = vmatprep.subr.mxu0 0.0
        %2732 = vmatpush1.msra.mxu0 0.0
        %2733 = vmatprep.subr.mxu0 0.0
        %2734 = vmatpush1.msra.mxu0 0.0
        %2735 = vmatprep.subr.mxu0 0.0
        %2736 = vmatpush1.msra.mxu0 0.0
        %2737 = vmatprep.subr.mxu0 0.0
        %2738 = vmatpush1.msra.mxu0 0.0
        %2739 = vmatprep.subr.mxu0 0.0
        %2740 = vmatpush1.msra.mxu0 0.0
        %2741 = vmatprep.subr.mxu0 0.0
        %2742 = vmatpush1.msra.mxu0 0.0
        %2743 = vmatprep.subr.mxu0 0.0
        %2744 = vmatpush1.msra.mxu0 0.0
        %2745 = vmatprep.subr.mxu0 0.0
        %2746 = vmatpush1.msra.mxu0 0.0
        %2747 = vmatprep.subr.mxu0 0.0
        %2748 = vmatpush1.msra.mxu0 0.0
        %2749 = vmatprep.subr.mxu0 0.0
        %2750 = vmatpush1.msra.mxu0 0.0
        %2751 = vmatprep.subr.mxu0 0.0
        %2752 = vmatpush1.msra.mxu0 0.0
        %2753 = vmatprep.subr.mxu0 0.0
        %2754 = vmatpush1.msra.mxu0 0.0
        %2755 = vmatprep.subr.mxu0 0.0
        %2756 = vmatpush1.msra.mxu0 0.0
        %2757 = vmatprep.subr.mxu0 0.0
        %2758 = vmatpush1.msra.mxu0 0.0
        %2759 = vmatprep.mubr.f32.mxu0 0.0
        %2760 = vmatmul.mubr.f32.gmra.mrb[0].mxu0 %v2693
        %v2761 = vpop.f32.mrb[0].mxu0
        %v2762 = vadd.f32 0.0, %v2761
        %v2763 = vpop.f32.mrb[0].mxu0
        %2764 = vdwg.mxu0
        %2765 = vrot.lane.b32.xlu0 %v608, 96
        %v2766 = vpop.permute.xlu0 %2765
        %v2769 = vsel %vm1953, %v2674, 0
        %2771 = vmatprep.subr.mxu0 0.0
        %2772 = vmatpush1.msra.mxu0 %v2766
        %2773 = vmatprep.subr.mxu0 0.0
        %2774 = vmatpush1.msra.mxu0 0.0
        %2775 = vmatprep.subr.mxu0 0.0
        %2776 = vmatpush1.msra.mxu0 0.0
        %2777 = vmatprep.subr.mxu0 0.0
        %2778 = vmatpush1.msra.mxu0 0.0
        %2779 = vmatprep.subr.mxu0 0.0
        %2780 = vmatpush1.msra.mxu0 0.0
        %2781 = vmatprep.subr.mxu0 0.0
        %2782 = vmatpush1.msra.mxu0 0.0
        %2783 = vmatprep.subr.mxu0 0.0
        %2784 = vmatpush1.msra.mxu0 0.0
        %2785 = vmatprep.subr.mxu0 0.0
        %2786 = vmatpush1.msra.mxu0 0.0
        %2787 = vmatprep.subr.mxu0 0.0
        %2788 = vmatpush1.msra.mxu0 0.0
        %2789 = vmatprep.subr.mxu0 0.0
        %2790 = vmatpush1.msra.mxu0 0.0
        %2791 = vmatprep.subr.mxu0 0.0
        %2792 = vmatpush1.msra.mxu0 0.0
        %2793 = vmatprep.subr.mxu0 0.0
        %2794 = vmatpush1.msra.mxu0 0.0
        %2795 = vmatprep.subr.mxu0 0.0
        %2796 = vmatpush1.msra.mxu0 0.0
        %2797 = vmatprep.subr.mxu0 0.0
        %2798 = vmatpush1.msra.mxu0 0.0
        %2799 = vmatprep.subr.mxu0 0.0
        %2800 = vmatpush1.msra.mxu0 0.0
        %2801 = vmatprep.subr.mxu0 0.0
        %2802 = vmatpush1.msra.mxu0 0.0
        %2803 = vmatprep.subr.mxu0 0.0
        %2804 = vmatpush1.msra.mxu0 0.0
        %2805 = vmatprep.subr.mxu0 0.0
        %2806 = vmatpush1.msra.mxu0 0.0
        %2807 = vmatprep.subr.mxu0 0.0
        %2808 = vmatpush1.msra.mxu0 0.0
        %2809 = vmatprep.subr.mxu0 0.0
        %2810 = vmatpush1.msra.mxu0 0.0
        %2811 = vmatprep.subr.mxu0 0.0
        %2812 = vmatpush1.msra.mxu0 0.0
        %2813 = vmatprep.subr.mxu0 0.0
        %2814 = vmatpush1.msra.mxu0 0.0
        %2815 = vmatprep.subr.mxu0 0.0
        %2816 = vmatpush1.msra.mxu0 0.0
        %2817 = vmatprep.subr.mxu0 0.0
        %2818 = vmatpush1.msra.mxu0 0.0
        %2819 = vmatprep.subr.mxu0 0.0
        %2820 = vmatpush1.msra.mxu0 0.0
        %2821 = vmatprep.subr.mxu0 0.0
        %2822 = vmatpush1.msra.mxu0 0.0
        %2823 = vmatprep.subr.mxu0 0.0
        %2824 = vmatpush1.msra.mxu0 0.0
        %2825 = vmatprep.subr.mxu0 0.0
        %2826 = vmatpush1.msra.mxu0 0.0
        %2827 = vmatprep.subr.mxu0 0.0
        %2828 = vmatpush1.msra.mxu0 0.0
        %2829 = vmatprep.subr.mxu0 0.0
        %2830 = vmatpush1.msra.mxu0 0.0
        %2831 = vmatprep.subr.mxu0 0.0
        %2832 = vmatpush1.msra.mxu0 0.0
        %2833 = vmatprep.subr.mxu0 0.0
        %2834 = vmatpush1.msra.mxu0 0.0
        %2835 = vmatprep.mubr.f32.mxu0 0.0
        %2836 = vmatmul.mubr.f32.gmra.mrb[0].mxu0 %v2769
        %v2837 = vpop.f32.mrb[0].mxu0
        %v2838 = vadd.f32 0.0, %v2837
        %v2839 = vpop.f32.mrb[0].mxu0
        %2840 = vdwg.mxu0
        %2841 = vrot.lane.b32.xlu0 %v613, 96
        %v2842 = vpop.permute.xlu0 %2841
        %v2845 = vsel %vm1953, %v2675, 0
        %2847 = vmatprep.subr.mxu0 0.0
        %2848 = vmatpush1.msra.mxu0 %v2842
        %2849 = vmatprep.subr.mxu0 0.0
        %2850 = vmatpush1.msra.mxu0 0.0
        %2851 = vmatprep.subr.mxu0 0.0
        %2852 = vmatpush1.msra.mxu0 0.0
        %2853 = vmatprep.subr.mxu0 0.0
        %2854 = vmatpush1.msra.mxu0 0.0
        %2855 = vmatprep.subr.mxu0 0.0
        %2856 = vmatpush1.msra.mxu0 0.0
        %2857 = vmatprep.subr.mxu0 0.0
        %2858 = vmatpush1.msra.mxu0 0.0
        %2859 = vmatprep.subr.mxu0 0.0
        %2860 = vmatpush1.msra.mxu0 0.0
        %2861 = vmatprep.subr.mxu0 0.0
        %2862 = vmatpush1.msra.mxu0 0.0
        %2863 = vmatprep.subr.mxu0 0.0
        %2864 = vmatpush1.msra.mxu0 0.0
        %2865 = vmatprep.subr.mxu0 0.0
        %2866 = vmatpush1.msra.mxu0 0.0
        %2867 = vmatprep.subr.mxu0 0.0
        %2868 = vmatpush1.msra.mxu0 0.0
        %2869 = vmatprep.subr.mxu0 0.0
        %2870 = vmatpush1.msra.mxu0 0.0
        %2871 = vmatprep.subr.mxu0 0.0
        %2872 = vmatpush1.msra.mxu0 0.0
        %2873 = vmatprep.subr.mxu0 0.0
        %2874 = vmatpush1.msra.mxu0 0.0
        %2875 = vmatprep.subr.mxu0 0.0
        %2876 = vmatpush1.msra.mxu0 0.0
        %2877 = vmatprep.subr.mxu0 0.0
        %2878 = vmatpush1.msra.mxu0 0.0
        %2879 = vmatprep.subr.mxu0 0.0
        %2880 = vmatpush1.msra.mxu0 0.0
        %2881 = vmatprep.subr.mxu0 0.0
        %2882 = vmatpush1.msra.mxu0 0.0
        %2883 = vmatprep.subr.mxu0 0.0
        %2884 = vmatpush1.msra.mxu0 0.0
        %2885 = vmatprep.subr.mxu0 0.0
        %2886 = vmatpush1.msra.mxu0 0.0
        %2887 = vmatprep.subr.mxu0 0.0
        %2888 = vmatpush1.msra.mxu0 0.0
        %2889 = vmatprep.subr.mxu0 0.0
        %2890 = vmatpush1.msra.mxu0 0.0
        %2891 = vmatprep.subr.mxu0 0.0
        %2892 = vmatpush1.msra.mxu0 0.0
        %2893 = vmatprep.subr.mxu0 0.0
        %2894 = vmatpush1.msra.mxu0 0.0
        %2895 = vmatprep.subr.mxu0 0.0
        %2896 = vmatpush1.msra.mxu0 0.0
        %2897 = vmatprep.subr.mxu0 0.0
        %2898 = vmatpush1.msra.mxu0 0.0
        %2899 = vmatprep.subr.mxu0 0.0
        %2900 = vmatpush1.msra.mxu0 0.0
        %2901 = vmatprep.subr.mxu0 0.0
        %2902 = vmatpush1.msra.mxu0 0.0
        %2903 = vmatprep.subr.mxu0 0.0
        %2904 = vmatpush1.msra.mxu0 0.0
        %2905 = vmatprep.subr.mxu0 0.0
        %2906 = vmatpush1.msra.mxu0 0.0
        %2907 = vmatprep.subr.mxu0 0.0
        %2908 = vmatpush1.msra.mxu0 0.0
        %2909 = vmatprep.subr.mxu0 0.0
        %2910 = vmatpush1.msra.mxu0 0.0
        %2911 = vmatprep.mubr.f32.mxu0 0.0
        %2912 = vmatmul.mubr.f32.gmra.mrb[0].mxu0 %v2845
        %v2913 = vpop.f32.mrb[0].mxu0
        %v2914 = vadd.f32 0.0, %v2913
        %v2915 = vpop.f32.mrb[0].mxu0
        %2916 = vdwg.mxu0
        %2917 = vrot.lane.b32.xlu0 %v618, 96
        %v2918 = vpop.permute.xlu0 %2917
        %v2921 = vsel %vm1953, %v2676, 0
        %2923 = vmatprep.subr.mxu0 0.0
        %2924 = vmatpush1.msra.mxu0 %v2918
        %2925 = vmatprep.subr.mxu0 0.0
        %2926 = vmatpush1.msra.mxu0 0.0
        %2927 = vmatprep.subr.mxu0 0.0
        %2928 = vmatpush1.msra.mxu0 0.0
        %2929 = vmatprep.subr.mxu0 0.0
        %2930 = vmatpush1.msra.mxu0 0.0
        %2931 = vmatprep.subr.mxu0 0.0
        %2932 = vmatpush1.msra.mxu0 0.0
        %2933 = vmatprep.subr.mxu0 0.0
        %2934 = vmatpush1.msra.mxu0 0.0
        %2935 = vmatprep.subr.mxu0 0.0
        %2936 = vmatpush1.msra.mxu0 0.0
        %2937 = vmatprep.subr.mxu0 0.0
        %2938 = vmatpush1.msra.mxu0 0.0
        %2939 = vmatprep.subr.mxu0 0.0
        %2940 = vmatpush1.msra.mxu0 0.0
        %2941 = vmatprep.subr.mxu0 0.0
        %2942 = vmatpush1.msra.mxu0 0.0
        %2943 = vmatprep.subr.mxu0 0.0
        %2944 = vmatpush1.msra.mxu0 0.0
        %2945 = vmatprep.subr.mxu0 0.0
        %2946 = vmatpush1.msra.mxu0 0.0
        %2947 = vmatprep.subr.mxu0 0.0
        %2948 = vmatpush1.msra.mxu0 0.0
        %2949 = vmatprep.subr.mxu0 0.0
        %2950 = vmatpush1.msra.mxu0 0.0
        %2951 = vmatprep.subr.mxu0 0.0
        %2952 = vmatpush1.msra.mxu0 0.0
        %2953 = vmatprep.subr.mxu0 0.0
        %2954 = vmatpush1.msra.mxu0 0.0
        %2955 = vmatprep.subr.mxu0 0.0
        %2956 = vmatpush1.msra.mxu0 0.0
        %2957 = vmatprep.subr.mxu0 0.0
        %2958 = vmatpush1.msra.mxu0 0.0
        %2959 = vmatprep.subr.mxu0 0.0
        %2960 = vmatpush1.msra.mxu0 0.0
        %2961 = vmatprep.subr.mxu0 0.0
        %2962 = vmatpush1.msra.mxu0 0.0
        %2963 = vmatprep.subr.mxu0 0.0
        %2964 = vmatpush1.msra.mxu0 0.0
        %2965 = vmatprep.subr.mxu0 0.0
        %2966 = vmatpush1.msra.mxu0 0.0
        %2967 = vmatprep.subr.mxu0 0.0
        %2968 = vmatpush1.msra.mxu0 0.0
        %2969 = vmatprep.subr.mxu0 0.0
        %2970 = vmatpush1.msra.mxu0 0.0
        %2971 = vmatprep.subr.mxu0 0.0
        %2972 = vmatpush1.msra.mxu0 0.0
        %2973 = vmatprep.subr.mxu0 0.0
        %2974 = vmatpush1.msra.mxu0 0.0
        %2975 = vmatprep.subr.mxu0 0.0
        %2976 = vmatpush1.msra.mxu0 0.0
        %2977 = vmatprep.subr.mxu0 0.0
        %2978 = vmatpush1.msra.mxu0 0.0
        %2979 = vmatprep.subr.mxu0 0.0
        %2980 = vmatpush1.msra.mxu0 0.0
        %2981 = vmatprep.subr.mxu0 0.0
        %2982 = vmatpush1.msra.mxu0 0.0
        %2983 = vmatprep.subr.mxu0 0.0
        %2984 = vmatpush1.msra.mxu0 0.0
        %2985 = vmatprep.subr.mxu0 0.0
        %2986 = vmatpush1.msra.mxu0 0.0
        %2987 = vmatprep.mubr.f32.mxu0 0.0
        %2988 = vmatmul.mubr.f32.gmra.mrb[0].mxu0 %v2921
        %v2989 = vpop.f32.mrb[0].mxu0
        %v2990 = vadd.f32 0.0, %v2989
        %v2991 = vpop.f32.mrb[0].mxu0
        %2992 = vdwg.mxu0
        %2993 = vrot.lane.b32.xlu0 %v623, 96
        %v2994 = vpop.permute.xlu0 %2993
        %v2997 = vsel %vm1953, %v2677, 0
        %2999 = vmatprep.subr.mxu0 0.0
        %3000 = vmatpush1.msra.mxu0 %v2994
        %3001 = vmatprep.subr.mxu0 0.0
        %3002 = vmatpush1.msra.mxu0 0.0
        %3003 = vmatprep.subr.mxu0 0.0
        %3004 = vmatpush1.msra.mxu0 0.0
        %3005 = vmatprep.subr.mxu0 0.0
        %3006 = vmatpush1.msra.mxu0 0.0
        %3007 = vmatprep.subr.mxu0 0.0
        %3008 = vmatpush1.msra.mxu0 0.0
        %3009 = vmatprep.subr.mxu0 0.0
        %3010 = vmatpush1.msra.mxu0 0.0
        %3011 = vmatprep.subr.mxu0 0.0
        %3012 = vmatpush1.msra.mxu0 0.0
        %3013 = vmatprep.subr.mxu0 0.0
        %3014 = vmatpush1.msra.mxu0 0.0
        %3015 = vmatprep.subr.mxu0 0.0
        %3016 = vmatpush1.msra.mxu0 0.0
        %3017 = vmatprep.subr.mxu0 0.0
        %3018 = vmatpush1.msra.mxu0 0.0
        %3019 = vmatprep.subr.mxu0 0.0
        %3020 = vmatpush1.msra.mxu0 0.0
        %3021 = vmatprep.subr.mxu0 0.0
        %3022 = vmatpush1.msra.mxu0 0.0
        %3023 = vmatprep.subr.mxu0 0.0
        %3024 = vmatpush1.msra.mxu0 0.0
        %3025 = vmatprep.subr.mxu0 0.0
        %3026 = vmatpush1.msra.mxu0 0.0
        %3027 = vmatprep.subr.mxu0 0.0
        %3028 = vmatpush1.msra.mxu0 0.0
        %3029 = vmatprep.subr.mxu0 0.0
        %3030 = vmatpush1.msra.mxu0 0.0
        %3031 = vmatprep.subr.mxu0 0.0
        %3032 = vmatpush1.msra.mxu0 0.0
        %3033 = vmatprep.subr.mxu0 0.0
        %3034 = vmatpush1.msra.mxu0 0.0
        %3035 = vmatprep.subr.mxu0 0.0
        %3036 = vmatpush1.msra.mxu0 0.0
        %3037 = vmatprep.subr.mxu0 0.0
        %3038 = vmatpush1.msra.mxu0 0.0
        %3039 = vmatprep.subr.mxu0 0.0
        %3040 = vmatpush1.msra.mxu0 0.0
        %3041 = vmatprep.subr.mxu0 0.0
        %3042 = vmatpush1.msra.mxu0 0.0
        %3043 = vmatprep.subr.mxu0 0.0
        %3044 = vmatpush1.msra.mxu0 0.0
        %3045 = vmatprep.subr.mxu0 0.0
        %3046 = vmatpush1.msra.mxu0 0.0
        %3047 = vmatprep.subr.mxu0 0.0
        %3048 = vmatpush1.msra.mxu0 0.0
        %3049 = vmatprep.subr.mxu0 0.0
        %3050 = vmatpush1.msra.mxu0 0.0
        %3051 = vmatprep.subr.mxu0 0.0
        %3052 = vmatpush1.msra.mxu0 0.0
        %3053 = vmatprep.subr.mxu0 0.0
        %3054 = vmatpush1.msra.mxu0 0.0
        %3055 = vmatprep.subr.mxu0 0.0
        %3056 = vmatpush1.msra.mxu0 0.0
        %3057 = vmatprep.subr.mxu0 0.0
        %3058 = vmatpush1.msra.mxu0 0.0
        %3059 = vmatprep.subr.mxu0 0.0
        %3060 = vmatpush1.msra.mxu0 0.0
        %3061 = vmatprep.subr.mxu0 0.0
        %3062 = vmatpush1.msra.mxu0 0.0
        %3063 = vmatprep.mubr.f32.mxu0 0.0
        %3064 = vmatmul.mubr.f32.gmra.mrb[0].mxu0 %v2997
        %v3065 = vpop.f32.mrb[0].mxu0
        %v3066 = vadd.f32 0.0, %v3065
        %v3067 = vpop.f32.mrb[0].mxu0
        %3068 = vdwg.mxu0
        %3069 = vrot.lane.b32.xlu0 %v628, 96
        %v3070 = vpop.permute.xlu0 %3069
        %v3073 = vsel %vm1953, %v2678, 0
        %3075 = vmatprep.subr.mxu0 0.0
        %3076 = vmatpush1.msra.mxu0 %v3070
        %3077 = vmatprep.subr.mxu0 0.0
        %3078 = vmatpush1.msra.mxu0 0.0
        %3079 = vmatprep.subr.mxu0 0.0
        %3080 = vmatpush1.msra.mxu0 0.0
        %3081 = vmatprep.subr.mxu0 0.0
        %3082 = vmatpush1.msra.mxu0 0.0
        %3083 = vmatprep.subr.mxu0 0.0
        %3084 = vmatpush1.msra.mxu0 0.0
        %3085 = vmatprep.subr.mxu0 0.0
        %3086 = vmatpush1.msra.mxu0 0.0
        %3087 = vmatprep.subr.mxu0 0.0
        %3088 = vmatpush1.msra.mxu0 0.0
        %3089 = vmatprep.subr.mxu0 0.0
        %3090 = vmatpush1.msra.mxu0 0.0
        %3091 = vmatprep.subr.mxu0 0.0
        %3092 = vmatpush1.msra.mxu0 0.0
        %3093 = vmatprep.subr.mxu0 0.0
        %3094 = vmatpush1.msra.mxu0 0.0
        %3095 = vmatprep.subr.mxu0 0.0
        %3096 = vmatpush1.msra.mxu0 0.0
        %3097 = vmatprep.subr.mxu0 0.0
        %3098 = vmatpush1.msra.mxu0 0.0
        %3099 = vmatprep.subr.mxu0 0.0
        %3100 = vmatpush1.msra.mxu0 0.0
        %3101 = vmatprep.subr.mxu0 0.0
        %3102 = vmatpush1.msra.mxu0 0.0
        %3103 = vmatprep.subr.mxu0 0.0
        %3104 = vmatpush1.msra.mxu0 0.0
        %3105 = vmatprep.subr.mxu0 0.0
        %3106 = vmatpush1.msra.mxu0 0.0
        %3107 = vmatprep.subr.mxu0 0.0
        %3108 = vmatpush1.msra.mxu0 0.0
        %3109 = vmatprep.subr.mxu0 0.0
        %3110 = vmatpush1.msra.mxu0 0.0
        %3111 = vmatprep.subr.mxu0 0.0
        %3112 = vmatpush1.msra.mxu0 0.0
        %3113 = vmatprep.subr.mxu0 0.0
        %3114 = vmatpush1.msra.mxu0 0.0
        %3115 = vmatprep.subr.mxu0 0.0
        %3116 = vmatpush1.msra.mxu0 0.0
        %3117 = vmatprep.subr.mxu0 0.0
        %3118 = vmatpush1.msra.mxu0 0.0
        %3119 = vmatprep.subr.mxu0 0.0
        %3120 = vmatpush1.msra.mxu0 0.0
        %3121 = vmatprep.subr.mxu0 0.0
        %3122 = vmatpush1.msra.mxu0 0.0
        %3123 = vmatprep.subr.mxu0 0.0
        %3124 = vmatpush1.msra.mxu0 0.0
        %3125 = vmatprep.subr.mxu0 0.0
        %3126 = vmatpush1.msra.mxu0 0.0
        %3127 = vmatprep.subr.mxu0 0.0
        %3128 = vmatpush1.msra.mxu0 0.0
        %3129 = vmatprep.subr.mxu0 0.0
        %3130 = vmatpush1.msra.mxu0 0.0
        %3131 = vmatprep.subr.mxu0 0.0
        %3132 = vmatpush1.msra.mxu0 0.0
        %3133 = vmatprep.subr.mxu0 0.0
        %3134 = vmatpush1.msra.mxu0 0.0
        %3135 = vmatprep.subr.mxu0 0.0
        %3136 = vmatpush1.msra.mxu0 0.0
        %3137 = vmatprep.subr.mxu0 0.0
        %3138 = vmatpush1.msra.mxu0 0.0
        %3139 = vmatprep.mubr.f32.mxu0 0.0
        %3140 = vmatmul.mubr.f32.gmra.mrb[0].mxu0 %v3073
        %v3141 = vpop.f32.mrb[0].mxu0
        %v3142 = vadd.f32 0.0, %v3141
        %v3143 = vpop.f32.mrb[0].mxu0
        %3144 = vdwg.mxu0
        %3145 = vrot.lane.b32.xlu0 %v633, 96
        %v3146 = vpop.permute.xlu0 %3145
        %v3149 = vsel %vm1953, %v2679, 0
        %3151 = vmatprep.subr.mxu0 0.0
        %3152 = vmatpush1.msra.mxu0 %v3146
        %3153 = vmatprep.subr.mxu0 0.0
        %3154 = vmatpush1.msra.mxu0 0.0
        %3155 = vmatprep.subr.mxu0 0.0
        %3156 = vmatpush1.msra.mxu0 0.0
        %3157 = vmatprep.subr.mxu0 0.0
        %3158 = vmatpush1.msra.mxu0 0.0
        %3159 = vmatprep.subr.mxu0 0.0
        %3160 = vmatpush1.msra.mxu0 0.0
        %3161 = vmatprep.subr.mxu0 0.0
        %3162 = vmatpush1.msra.mxu0 0.0
        %3163 = vmatprep.subr.mxu0 0.0
        %3164 = vmatpush1.msra.mxu0 0.0
        %3165 = vmatprep.subr.mxu0 0.0
        %3166 = vmatpush1.msra.mxu0 0.0
        %3167 = vmatprep.subr.mxu0 0.0
        %3168 = vmatpush1.msra.mxu0 0.0
        %3169 = vmatprep.subr.mxu0 0.0
        %3170 = vmatpush1.msra.mxu0 0.0
        %3171 = vmatprep.subr.mxu0 0.0
        %3172 = vmatpush1.msra.mxu0 0.0
        %3173 = vmatprep.subr.mxu0 0.0
        %3174 = vmatpush1.msra.mxu0 0.0
        %3175 = vmatprep.subr.mxu0 0.0
        %3176 = vmatpush1.msra.mxu0 0.0
        %3177 = vmatprep.subr.mxu0 0.0
        %3178 = vmatpush1.msra.mxu0 0.0
        %3179 = vmatprep.subr.mxu0 0.0
        %3180 = vmatpush1.msra.mxu0 0.0
        %3181 = vmatprep.subr.mxu0 0.0
        %3182 = vmatpush1.msra.mxu0 0.0
        %3183 = vmatprep.subr.mxu0 0.0
        %3184 = vmatpush1.msra.mxu0 0.0
        %3185 = vmatprep.subr.mxu0 0.0
        %3186 = vmatpush1.msra.mxu0 0.0
        %3187 = vmatprep.subr.mxu0 0.0
        %3188 = vmatpush1.msra.mxu0 0.0
        %3189 = vmatprep.subr.mxu0 0.0
        %3190 = vmatpush1.msra.mxu0 0.0
        %3191 = vmatprep.subr.mxu0 0.0
        %3192 = vmatpush1.msra.mxu0 0.0
        %3193 = vmatprep.subr.mxu0 0.0
        %3194 = vmatpush1.msra.mxu0 0.0
        %3195 = vmatprep.subr.mxu0 0.0
        %3196 = vmatpush1.msra.mxu0 0.0
        %3197 = vmatprep.subr.mxu0 0.0
        %3198 = vmatpush1.msra.mxu0 0.0
        %3199 = vmatprep.subr.mxu0 0.0
        %3200 = vmatpush1.msra.mxu0 0.0
        %3201 = vmatprep.subr.mxu0 0.0
        %3202 = vmatpush1.msra.mxu0 0.0
        %3203 = vmatprep.subr.mxu0 0.0
        %3204 = vmatpush1.msra.mxu0 0.0
        %3205 = vmatprep.subr.mxu0 0.0
        %3206 = vmatpush1.msra.mxu0 0.0
        %3207 = vmatprep.subr.mxu0 0.0
        %3208 = vmatpush1.msra.mxu0 0.0
        %3209 = vmatprep.subr.mxu0 0.0
        %3210 = vmatpush1.msra.mxu0 0.0
        %3211 = vmatprep.subr.mxu0 0.0
        %3212 = vmatpush1.msra.mxu0 0.0
        %3213 = vmatprep.subr.mxu0 0.0
        %3214 = vmatpush1.msra.mxu0 0.0
        %3215 = vmatprep.mubr.f32.mxu0 0.0
        %3216 = vmatmul.mubr.f32.gmra.mrb[0].mxu0 %v3149
        %v3217 = vpop.f32.mrb[0].mxu0
        %v3218 = vadd.f32 0.0, %v3217
        %v3219 = vpop.f32.mrb[0].mxu0
        %3220 = vdwg.mxu0
        %3221 = vrot.lane.b32.xlu0 %v638, 96
        %v3222 = vpop.permute.xlu0 %3221
        %v3225 = vsel %vm1953, %v2680, 0
        %3227 = vmatprep.subr.mxu0 0.0
        %3228 = vmatpush1.msra.mxu0 %v3222
        %3229 = vmatprep.subr.mxu0 0.0
        %3230 = vmatpush1.msra.mxu0 0.0
        %3231 = vmatprep.subr.mxu0 0.0
        %3232 = vmatpush1.msra.mxu0 0.0
        %3233 = vmatprep.subr.mxu0 0.0
        %3234 = vmatpush1.msra.mxu0 0.0
        %3235 = vmatprep.subr.mxu0 0.0
        %3236 = vmatpush1.msra.mxu0 0.0
        %3237 = vmatprep.subr.mxu0 0.0
        %3238 = vmatpush1.msra.mxu0 0.0
        %3239 = vmatprep.subr.mxu0 0.0
        %3240 = vmatpush1.msra.mxu0 0.0
        %3241 = vmatprep.subr.mxu0 0.0
        %3242 = vmatpush1.msra.mxu0 0.0
        %3243 = vmatprep.subr.mxu0 0.0
        %3244 = vmatpush1.msra.mxu0 0.0
        %3245 = vmatprep.subr.mxu0 0.0
        %3246 = vmatpush1.msra.mxu0 0.0
        %3247 = vmatprep.subr.mxu0 0.0
        %3248 = vmatpush1.msra.mxu0 0.0
        %3249 = vmatprep.subr.mxu0 0.0
        %3250 = vmatpush1.msra.mxu0 0.0
        %3251 = vmatprep.subr.mxu0 0.0
        %3252 = vmatpush1.msra.mxu0 0.0
        %3253 = vmatprep.subr.mxu0 0.0
        %3254 = vmatpush1.msra.mxu0 0.0
        %3255 = vmatprep.subr.mxu0 0.0
        %3256 = vmatpush1.msra.mxu0 0.0
        %3257 = vmatprep.subr.mxu0 0.0
        %3258 = vmatpush1.msra.mxu0 0.0
        %3259 = vmatprep.subr.mxu0 0.0
        %3260 = vmatpush1.msra.mxu0 0.0
        %3261 = vmatprep.subr.mxu0 0.0
        %3262 = vmatpush1.msra.mxu0 0.0
        %3263 = vmatprep.subr.mxu0 0.0
        %3264 = vmatpush1.msra.mxu0 0.0
        %3265 = vmatprep.subr.mxu0 0.0
        %3266 = vmatpush1.msra.mxu0 0.0
        %3267 = vmatprep.subr.mxu0 0.0
        %3268 = vmatpush1.msra.mxu0 0.0
        %3269 = vmatprep.subr.mxu0 0.0
        %3270 = vmatpush1.msra.mxu0 0.0
        %3271 = vmatprep.subr.mxu0 0.0
        %3272 = vmatpush1.msra.mxu0 0.0
        %3273 = vmatprep.subr.mxu0 0.0
        %3274 = vmatpush1.msra.mxu0 0.0
        %3275 = vmatprep.subr.mxu0 0.0
        %3276 = vmatpush1.msra.mxu0 0.0
        %3277 = vmatprep.subr.mxu0 0.0
        %3278 = vmatpush1.msra.mxu0 0.0
        %3279 = vmatprep.subr.mxu0 0.0
        %3280 = vmatpush1.msra.mxu0 0.0
        %3281 = vmatprep.subr.mxu0 0.0
        %3282 = vmatpush1.msra.mxu0 0.0
        %3283 = vmatprep.subr.mxu0 0.0
        %3284 = vmatpush1.msra.mxu0 0.0
        %3285 = vmatprep.subr.mxu0 0.0
        %3286 = vmatpush1.msra.mxu0 0.0
        %3287 = vmatprep.subr.mxu0 0.0
        %3288 = vmatpush1.msra.mxu0 0.0
        %3289 = vmatprep.subr.mxu0 0.0
        %3290 = vmatpush1.msra.mxu0 0.0
        %3291 = vmatprep.mubr.f32.mxu0 0.0
        %3292 = vmatmul.mubr.f32.gmra.mrb[0].mxu0 %v3225
        %v3293 = vpop.f32.mrb[0].mxu0
        %v3294 = vadd.f32 0.0, %v3293
        %v3295 = vpop.f32.mrb[0].mxu0
        %3296 = vdwg.mxu0
        %3297 = vrot.lane.b32.xlu0 %v732, 96
        %v3298 = vpop.permute.xlu0 %3297
        %v3301 = vsel %vm1953, %v2681, 0
        %3303 = vmatprep.subr.mxu0 0.0
        %3304 = vmatpush1.msra.mxu0 %v3298
        %3305 = vmatprep.subr.mxu0 0.0
        %3306 = vmatpush1.msra.mxu0 0.0
        %3307 = vmatprep.subr.mxu0 0.0
        %3308 = vmatpush1.msra.mxu0 0.0
        %3309 = vmatprep.subr.mxu0 0.0
        %3310 = vmatpush1.msra.mxu0 0.0
        %3311 = vmatprep.subr.mxu0 0.0
        %3312 = vmatpush1.msra.mxu0 0.0
        %3313 = vmatprep.subr.mxu0 0.0
        %3314 = vmatpush1.msra.mxu0 0.0
        %3315 = vmatprep.subr.mxu0 0.0
        %3316 = vmatpush1.msra.mxu0 0.0
        %3317 = vmatprep.subr.mxu0 0.0
        %3318 = vmatpush1.msra.mxu0 0.0
        %3319 = vmatprep.subr.mxu0 0.0
        %3320 = vmatpush1.msra.mxu0 0.0
        %3321 = vmatprep.subr.mxu0 0.0
        %3322 = vmatpush1.msra.mxu0 0.0
        %3323 = vmatprep.subr.mxu0 0.0
        %3324 = vmatpush1.msra.mxu0 0.0
        %3325 = vmatprep.subr.mxu0 0.0
        %3326 = vmatpush1.msra.mxu0 0.0
        %3327 = vmatprep.subr.mxu0 0.0
        %3328 = vmatpush1.msra.mxu0 0.0
        %3329 = vmatprep.subr.mxu0 0.0
        %3330 = vmatpush1.msra.mxu0 0.0
        %3331 = vmatprep.subr.mxu0 0.0
        %3332 = vmatpush1.msra.mxu0 0.0
        %3333 = vmatprep.subr.mxu0 0.0
        %3334 = vmatpush1.msra.mxu0 0.0
        %3335 = vmatprep.subr.mxu0 0.0
        %3336 = vmatpush1.msra.mxu0 0.0
        %3337 = vmatprep.subr.mxu0 0.0
        %3338 = vmatpush1.msra.mxu0 0.0
        %3339 = vmatprep.subr.mxu0 0.0
        %3340 = vmatpush1.msra.mxu0 0.0
        %3341 = vmatprep.subr.mxu0 0.0
        %3342 = vmatpush1.msra.mxu0 0.0
        %3343 = vmatprep.subr.mxu0 0.0
        %3344 = vmatpush1.msra.mxu0 0.0
        %3345 = vmatprep.subr.mxu0 0.0
        %3346 = vmatpush1.msra.mxu0 0.0
        %3347 = vmatprep.subr.mxu0 0.0
        %3348 = vmatpush1.msra.mxu0 0.0
        %3349 = vmatprep.subr.mxu0 0.0
        %3350 = vmatpush1.msra.mxu0 0.0
        %3351 = vmatprep.subr.mxu0 0.0
        %3352 = vmatpush1.msra.mxu0 0.0
        %3353 = vmatprep.subr.mxu0 0.0
        %3354 = vmatpush1.msra.mxu0 0.0
        %3355 = vmatprep.subr.mxu0 0.0
        %3356 = vmatpush1.msra.mxu0 0.0
        %3357 = vmatprep.subr.mxu0 0.0
        %3358 = vmatpush1.msra.mxu0 0.0
        %3359 = vmatprep.subr.mxu0 0.0
        %3360 = vmatpush1.msra.mxu0 0.0
        %3361 = vmatprep.subr.mxu0 0.0
        %3362 = vmatpush1.msra.mxu0 0.0
        %3363 = vmatprep.subr.mxu0 0.0
        %3364 = vmatpush1.msra.mxu0 0.0
        %3365 = vmatprep.subr.mxu0 0.0
        %3366 = vmatpush1.msra.mxu0 0.0
        %3367 = vmatprep.mubr.f32.mxu0 0.0
        %3368 = vmatmul.mubr.f32.gmra.mrb[0].mxu0 %v3301
        %v3369 = vpop.f32.mrb[0].mxu0
        %v3370 = vadd.f32 0.0, %v3369
        %v3371 = vpop.f32.mrb[0].mxu0
        %3372 = vdwg.mxu0
        %3373 = vrot.lane.b32.xlu0 %v737, 96
        %v3374 = vpop.permute.xlu0 %3373
        %v3377 = vsel %vm1953, %v2682, 0
        %3379 = vmatprep.subr.mxu0 0.0
        %3380 = vmatpush1.msra.mxu0 %v3374
        %3381 = vmatprep.subr.mxu0 0.0
        %3382 = vmatpush1.msra.mxu0 0.0
        %3383 = vmatprep.subr.mxu0 0.0
        %3384 = vmatpush1.msra.mxu0 0.0
        %3385 = vmatprep.subr.mxu0 0.0
        %3386 = vmatpush1.msra.mxu0 0.0
        %3387 = vmatprep.subr.mxu0 0.0
        %3388 = vmatpush1.msra.mxu0 0.0
        %3389 = vmatprep.subr.mxu0 0.0
        %3390 = vmatpush1.msra.mxu0 0.0
        %3391 = vmatprep.subr.mxu0 0.0
        %3392 = vmatpush1.msra.mxu0 0.0
        %3393 = vmatprep.subr.mxu0 0.0
        %3394 = vmatpush1.msra.mxu0 0.0
        %3395 = vmatprep.subr.mxu0 0.0
        %3396 = vmatpush1.msra.mxu0 0.0
        %3397 = vmatprep.subr.mxu0 0.0
        %3398 = vmatpush1.msra.mxu0 0.0
        %3399 = vmatprep.subr.mxu0 0.0
        %3400 = vmatpush1.msra.mxu0 0.0
        %3401 = vmatprep.subr.mxu0 0.0
        %3402 = vmatpush1.msra.mxu0 0.0
        %3403 = vmatprep.subr.mxu0 0.0
        %3404 = vmatpush1.msra.mxu0 0.0
        %3405 = vmatprep.subr.mxu0 0.0
        %3406 = vmatpush1.msra.mxu0 0.0
        %3407 = vmatprep.subr.mxu0 0.0
        %3408 = vmatpush1.msra.mxu0 0.0
        %3409 = vmatprep.subr.mxu0 0.0
        %3410 = vmatpush1.msra.mxu0 0.0
        %3411 = vmatprep.subr.mxu0 0.0
        %3412 = vmatpush1.msra.mxu0 0.0
        %3413 = vmatprep.subr.mxu0 0.0
        %3414 = vmatpush1.msra.mxu0 0.0
        %3415 = vmatprep.subr.mxu0 0.0
        %3416 = vmatpush1.msra.mxu0 0.0
        %3417 = vmatprep.subr.mxu0 0.0
        %3418 = vmatpush1.msra.mxu0 0.0
        %3419 = vmatprep.subr.mxu0 0.0
        %3420 = vmatpush1.msra.mxu0 0.0
        %3421 = vmatprep.subr.mxu0 0.0
        %3422 = vmatpush1.msra.mxu0 0.0
        %3423 = vmatprep.subr.mxu0 0.0
        %3424 = vmatpush1.msra.mxu0 0.0
        %3425 = vmatprep.subr.mxu0 0.0
        %3426 = vmatpush1.msra.mxu0 0.0
        %3427 = vmatprep.subr.mxu0 0.0
        %3428 = vmatpush1.msra.mxu0 0.0
        %3429 = vmatprep.subr.mxu0 0.0
        %3430 = vmatpush1.msra.mxu0 0.0
        %3431 = vmatprep.subr.mxu0 0.0
        %3432 = vmatpush1.msra.mxu0 0.0
        %3433 = vmatprep.subr.mxu0 0.0
        %3434 = vmatpush1.msra.mxu0 0.0
        %3435 = vmatprep.subr.mxu0 0.0
        %3436 = vmatpush1.msra.mxu0 0.0
        %3437 = vmatprep.subr.mxu0 0.0
        %3438 = vmatpush1.msra.mxu0 0.0
        %3439 = vmatprep.subr.mxu0 0.0
        %3440 = vmatpush1.msra.mxu0 0.0
        %3441 = vmatprep.subr.mxu0 0.0
        %3442 = vmatpush1.msra.mxu0 0.0
        %3443 = vmatprep.mubr.f32.mxu0 0.0
        %3444 = vmatmul.mubr.f32.gmra.mrb[0].mxu0 %v3377
        %v3445 = vpop.f32.mrb[0].mxu0
        %v3446 = vadd.f32 0.0, %v3445
        %v3447 = vpop.f32.mrb[0].mxu0
        %3448 = vdwg.mxu0
        %3449 = vrot.lane.b32.xlu0 %v742, 96
        %v3450 = vpop.permute.xlu0 %3449
        %v3453 = vsel %vm1953, %v2683, 0
        %3455 = vmatprep.subr.mxu0 0.0
        %3456 = vmatpush1.msra.mxu0 %v3450
        %3457 = vmatprep.subr.mxu0 0.0
        %3458 = vmatpush1.msra.mxu0 0.0
        %3459 = vmatprep.subr.mxu0 0.0
        %3460 = vmatpush1.msra.mxu0 0.0
        %3461 = vmatprep.subr.mxu0 0.0
        %3462 = vmatpush1.msra.mxu0 0.0
        %3463 = vmatprep.subr.mxu0 0.0
        %3464 = vmatpush1.msra.mxu0 0.0
        %3465 = vmatprep.subr.mxu0 0.0
        %3466 = vmatpush1.msra.mxu0 0.0
        %3467 = vmatprep.subr.mxu0 0.0
        %3468 = vmatpush1.msra.mxu0 0.0
        %3469 = vmatprep.subr.mxu0 0.0
        %3470 = vmatpush1.msra.mxu0 0.0
        %3471 = vmatprep.subr.mxu0 0.0
        %3472 = vmatpush1.msra.mxu0 0.0
        %3473 = vmatprep.subr.mxu0 0.0
        %3474 = vmatpush1.msra.mxu0 0.0
        %3475 = vmatprep.subr.mxu0 0.0
        %3476 = vmatpush1.msra.mxu0 0.0
        %3477 = vmatprep.subr.mxu0 0.0
        %3478 = vmatpush1.msra.mxu0 0.0
        %3479 = vmatprep.subr.mxu0 0.0
        %3480 = vmatpush1.msra.mxu0 0.0
        %3481 = vmatprep.subr.mxu0 0.0
        %3482 = vmatpush1.msra.mxu0 0.0
        %3483 = vmatprep.subr.mxu0 0.0
        %3484 = vmatpush1.msra.mxu0 0.0
        %3485 = vmatprep.subr.mxu0 0.0
        %3486 = vmatpush1.msra.mxu0 0.0
        %3487 = vmatprep.subr.mxu0 0.0
        %3488 = vmatpush1.msra.mxu0 0.0
        %3489 = vmatprep.subr.mxu0 0.0
        %3490 = vmatpush1.msra.mxu0 0.0
        %3491 = vmatprep.subr.mxu0 0.0
        %3492 = vmatpush1.msra.mxu0 0.0
        %3493 = vmatprep.subr.mxu0 0.0
        %3494 = vmatpush1.msra.mxu0 0.0
        %3495 = vmatprep.subr.mxu0 0.0
        %3496 = vmatpush1.msra.mxu0 0.0
        %3497 = vmatprep.subr.mxu0 0.0
        %3498 = vmatpush1.msra.mxu0 0.0
        %3499 = vmatprep.subr.mxu0 0.0
        %3500 = vmatpush1.msra.mxu0 0.0
        %3501 = vmatprep.subr.mxu0 0.0
        %3502 = vmatpush1.msra.mxu0 0.0
        %3503 = vmatprep.subr.mxu0 0.0
        %3504 = vmatpush1.msra.mxu0 0.0
        %3505 = vmatprep.subr.mxu0 0.0
        %3506 = vmatpush1.msra.mxu0 0.0
        %3507 = vmatprep.subr.mxu0 0.0
        %3508 = vmatpush1.msra.mxu0 0.0
        %3509 = vmatprep.subr.mxu0 0.0
        %3510 = vmatpush1.msra.mxu0 0.0
        %3511 = vmatprep.subr.mxu0 0.0
        %3512 = vmatpush1.msra.mxu0 0.0
        %3513 = vmatprep.subr.mxu0 0.0
        %3514 = vmatpush1.msra.mxu0 0.0
        %3515 = vmatprep.subr.mxu0 0.0
        %3516 = vmatpush1.msra.mxu0 0.0
        %3517 = vmatprep.subr.mxu0 0.0
        %3518 = vmatpush1.msra.mxu0 0.0
        %3519 = vmatprep.mubr.f32.mxu0 0.0
        %3520 = vmatmul.mubr.f32.gmra.mrb[0].mxu0 %v3453
        %v3521 = vpop.f32.mrb[0].mxu0
        %v3522 = vadd.f32 0.0, %v3521
        %v3523 = vpop.f32.mrb[0].mxu0
        %3524 = vdwg.mxu0
        %3525 = vrot.lane.b32.xlu0 %v747, 96
        %v3526 = vpop.permute.xlu0 %3525
        %v3529 = vsel %vm1953, %v2684, 0
        %3531 = vmatprep.subr.mxu0 0.0
        %3532 = vmatpush1.msra.mxu0 %v3526
        %3533 = vmatprep.subr.mxu0 0.0
        %3534 = vmatpush1.msra.mxu0 0.0
        %3535 = vmatprep.subr.mxu0 0.0
        %3536 = vmatpush1.msra.mxu0 0.0
        %3537 = vmatprep.subr.mxu0 0.0
        %3538 = vmatpush1.msra.mxu0 0.0
        %3539 = vmatprep.subr.mxu0 0.0
        %3540 = vmatpush1.msra.mxu0 0.0
        %3541 = vmatprep.subr.mxu0 0.0
        %3542 = vmatpush1.msra.mxu0 0.0
        %3543 = vmatprep.subr.mxu0 0.0
        %3544 = vmatpush1.msra.mxu0 0.0
        %3545 = vmatprep.subr.mxu0 0.0
        %3546 = vmatpush1.msra.mxu0 0.0
        %3547 = vmatprep.subr.mxu0 0.0
        %3548 = vmatpush1.msra.mxu0 0.0
        %3549 = vmatprep.subr.mxu0 0.0
        %3550 = vmatpush1.msra.mxu0 0.0
        %3551 = vmatprep.subr.mxu0 0.0
        %3552 = vmatpush1.msra.mxu0 0.0
        %3553 = vmatprep.subr.mxu0 0.0
        %3554 = vmatpush1.msra.mxu0 0.0
        %3555 = vmatprep.subr.mxu0 0.0
        %3556 = vmatpush1.msra.mxu0 0.0
        %3557 = vmatprep.subr.mxu0 0.0
        %3558 = vmatpush1.msra.mxu0 0.0
        %3559 = vmatprep.subr.mxu0 0.0
        %3560 = vmatpush1.msra.mxu0 0.0
        %3561 = vmatprep.subr.mxu0 0.0
        %3562 = vmatpush1.msra.mxu0 0.0
        %3563 = vmatprep.subr.mxu0 0.0
        %3564 = vmatpush1.msra.mxu0 0.0
        %3565 = vmatprep.subr.mxu0 0.0
        %3566 = vmatpush1.msra.mxu0 0.0
        %3567 = vmatprep.subr.mxu0 0.0
        %3568 = vmatpush1.msra.mxu0 0.0
        %3569 = vmatprep.subr.mxu0 0.0
        %3570 = vmatpush1.msra.mxu0 0.0
        %3571 = vmatprep.subr.mxu0 0.0
        %3572 = vmatpush1.msra.mxu0 0.0
        %3573 = vmatprep.subr.mxu0 0.0
        %3574 = vmatpush1.msra.mxu0 0.0
        %3575 = vmatprep.subr.mxu0 0.0
        %3576 = vmatpush1.msra.mxu0 0.0
        %3577 = vmatprep.subr.mxu0 0.0
        %3578 = vmatpush1.msra.mxu0 0.0
        %3579 = vmatprep.subr.mxu0 0.0
        %3580 = vmatpush1.msra.mxu0 0.0
        %3581 = vmatprep.subr.mxu0 0.0
        %3582 = vmatpush1.msra.mxu0 0.0
        %3583 = vmatprep.subr.mxu0 0.0
        %3584 = vmatpush1.msra.mxu0 0.0
        %3585 = vmatprep.subr.mxu0 0.0
        %3586 = vmatpush1.msra.mxu0 0.0
        %3587 = vmatprep.subr.mxu0 0.0
        %3588 = vmatpush1.msra.mxu0 0.0
        %3589 = vmatprep.subr.mxu0 0.0
        %3590 = vmatpush1.msra.mxu0 0.0
        %3591 = vmatprep.subr.mxu0 0.0
        %3592 = vmatpush1.msra.mxu0 0.0
        %3593 = vmatprep.subr.mxu0 0.0
        %3594 = vmatpush1.msra.mxu0 0.0
        %3595 = vmatprep.mubr.f32.mxu0 0.0
        %3596 = vmatmul.mubr.f32.gmra.mrb[0].mxu0 %v3529
        %v3597 = vpop.f32.mrb[0].mxu0
        %v3598 = vadd.f32 0.0, %v3597
        %v3599 = vpop.f32.mrb[0].mxu0
        %3600 = vdwg.mxu0
        %3601 = vrot.lane.b32.xlu0 %v752, 96
        %v3602 = vpop.permute.xlu0 %3601
        %v3605 = vsel %vm1953, %v2685, 0
        %3607 = vmatprep.subr.mxu0 0.0
        %3608 = vmatpush1.msra.mxu0 %v3602
        %3609 = vmatprep.subr.mxu0 0.0
        %3610 = vmatpush1.msra.mxu0 0.0
        %3611 = vmatprep.subr.mxu0 0.0
        %3612 = vmatpush1.msra.mxu0 0.0
        %3613 = vmatprep.subr.mxu0 0.0
        %3614 = vmatpush1.msra.mxu0 0.0
        %3615 = vmatprep.subr.mxu0 0.0
        %3616 = vmatpush1.msra.mxu0 0.0
        %3617 = vmatprep.subr.mxu0 0.0
        %3618 = vmatpush1.msra.mxu0 0.0
        %3619 = vmatprep.subr.mxu0 0.0
        %3620 = vmatpush1.msra.mxu0 0.0
        %3621 = vmatprep.subr.mxu0 0.0
        %3622 = vmatpush1.msra.mxu0 0.0
        %3623 = vmatprep.subr.mxu0 0.0
        %3624 = vmatpush1.msra.mxu0 0.0
        %3625 = vmatprep.subr.mxu0 0.0
        %3626 = vmatpush1.msra.mxu0 0.0
        %3627 = vmatprep.subr.mxu0 0.0
        %3628 = vmatpush1.msra.mxu0 0.0
        %3629 = vmatprep.subr.mxu0 0.0
        %3630 = vmatpush1.msra.mxu0 0.0
        %3631 = vmatprep.subr.mxu0 0.0
        %3632 = vmatpush1.msra.mxu0 0.0
        %3633 = vmatprep.subr.mxu0 0.0
        %3634 = vmatpush1.msra.mxu0 0.0
        %3635 = vmatprep.subr.mxu0 0.0
        %3636 = vmatpush1.msra.mxu0 0.0
        %3637 = vmatprep.subr.mxu0 0.0
        %3638 = vmatpush1.msra.mxu0 0.0
        %3639 = vmatprep.subr.mxu0 0.0
        %3640 = vmatpush1.msra.mxu0 0.0
        %3641 = vmatprep.subr.mxu0 0.0
        %3642 = vmatpush1.msra.mxu0 0.0
        %3643 = vmatprep.subr.mxu0 0.0
        %3644 = vmatpush1.msra.mxu0 0.0
        %3645 = vmatprep.subr.mxu0 0.0
        %3646 = vmatpush1.msra.mxu0 0.0
        %3647 = vmatprep.subr.mxu0 0.0
        %3648 = vmatpush1.msra.mxu0 0.0
        %3649 = vmatprep.subr.mxu0 0.0
        %3650 = vmatpush1.msra.mxu0 0.0
        %3651 = vmatprep.subr.mxu0 0.0
        %3652 = vmatpush1.msra.mxu0 0.0
        %3653 = vmatprep.subr.mxu0 0.0
        %3654 = vmatpush1.msra.mxu0 0.0
        %3655 = vmatprep.subr.mxu0 0.0
        %3656 = vmatpush1.msra.mxu0 0.0
        %3657 = vmatprep.subr.mxu0 0.0
        %3658 = vmatpush1.msra.mxu0 0.0
        %3659 = vmatprep.subr.mxu0 0.0
        %3660 = vmatpush1.msra.mxu0 0.0
        %3661 = vmatprep.subr.mxu0 0.0
        %3662 = vmatpush1.msra.mxu0 0.0
        %3663 = vmatprep.subr.mxu0 0.0
        %3664 = vmatpush1.msra.mxu0 0.0
        %3665 = vmatprep.subr.mxu0 0.0
        %3666 = vmatpush1.msra.mxu0 0.0
        %3667 = vmatprep.subr.mxu0 0.0
        %3668 = vmatpush1.msra.mxu0 0.0
        %3669 = vmatprep.subr.mxu0 0.0
        %3670 = vmatpush1.msra.mxu0 0.0
        %3671 = vmatprep.mubr.f32.mxu0 0.0
        %3672 = vmatmul.mubr.f32.gmra.mrb[0].mxu0 %v3605
        %v3673 = vpop.f32.mrb[0].mxu0
        %v3674 = vadd.f32 0.0, %v3673
        %v3675 = vpop.f32.mrb[0].mxu0
        %3676 = vdwg.mxu0
        %3677 = vrot.lane.b32.xlu0 %v757, 96
        %v3678 = vpop.permute.xlu0 %3677
        %v3681 = vsel %vm1953, %v2686, 0
        %3683 = vmatprep.subr.mxu0 0.0
        %3684 = vmatpush1.msra.mxu0 %v3678
        %3685 = vmatprep.subr.mxu0 0.0
        %3686 = vmatpush1.msra.mxu0 0.0
        %3687 = vmatprep.subr.mxu0 0.0
        %3688 = vmatpush1.msra.mxu0 0.0
        %3689 = vmatprep.subr.mxu0 0.0
        %3690 = vmatpush1.msra.mxu0 0.0
        %3691 = vmatprep.subr.mxu0 0.0
        %3692 = vmatpush1.msra.mxu0 0.0
        %3693 = vmatprep.subr.mxu0 0.0
        %3694 = vmatpush1.msra.mxu0 0.0
        %3695 = vmatprep.subr.mxu0 0.0
        %3696 = vmatpush1.msra.mxu0 0.0
        %3697 = vmatprep.subr.mxu0 0.0
        %3698 = vmatpush1.msra.mxu0 0.0
        %3699 = vmatprep.subr.mxu0 0.0
        %3700 = vmatpush1.msra.mxu0 0.0
        %3701 = vmatprep.subr.mxu0 0.0
        %3702 = vmatpush1.msra.mxu0 0.0
        %3703 = vmatprep.subr.mxu0 0.0
        %3704 = vmatpush1.msra.mxu0 0.0
        %3705 = vmatprep.subr.mxu0 0.0
        %3706 = vmatpush1.msra.mxu0 0.0
        %3707 = vmatprep.subr.mxu0 0.0
        %3708 = vmatpush1.msra.mxu0 0.0
        %3709 = vmatprep.subr.mxu0 0.0
        %3710 = vmatpush1.msra.mxu0 0.0
        %3711 = vmatprep.subr.mxu0 0.0
        %3712 = vmatpush1.msra.mxu0 0.0
        %3713 = vmatprep.subr.mxu0 0.0
        %3714 = vmatpush1.msra.mxu0 0.0
        %3715 = vmatprep.subr.mxu0 0.0
        %3716 = vmatpush1.msra.mxu0 0.0
        %3717 = vmatprep.subr.mxu0 0.0
        %3718 = vmatpush1.msra.mxu0 0.0
        %3719 = vmatprep.subr.mxu0 0.0
        %3720 = vmatpush1.msra.mxu0 0.0
        %3721 = vmatprep.subr.mxu0 0.0
        %3722 = vmatpush1.msra.mxu0 0.0
        %3723 = vmatprep.subr.mxu0 0.0
        %3724 = vmatpush1.msra.mxu0 0.0
        %3725 = vmatprep.subr.mxu0 0.0
        %3726 = vmatpush1.msra.mxu0 0.0
        %3727 = vmatprep.subr.mxu0 0.0
        %3728 = vmatpush1.msra.mxu0 0.0
        %3729 = vmatprep.subr.mxu0 0.0
        %3730 = vmatpush1.msra.mxu0 0.0
        %3731 = vmatprep.subr.mxu0 0.0
        %3732 = vmatpush1.msra.mxu0 0.0
        %3733 = vmatprep.subr.mxu0 0.0
        %3734 = vmatpush1.msra.mxu0 0.0
        %3735 = vmatprep.subr.mxu0 0.0
        %3736 = vmatpush1.msra.mxu0 0.0
        %3737 = vmatprep.subr.mxu0 0.0
        %3738 = vmatpush1.msra.mxu0 0.0
        %3739 = vmatprep.subr.mxu0 0.0
        %3740 = vmatpush1.msra.mxu0 0.0
        %3741 = vmatprep.subr.mxu0 0.0
        %3742 = vmatpush1.msra.mxu0 0.0
        %3743 = vmatprep.subr.mxu0 0.0
        %3744 = vmatpush1.msra.mxu0 0.0
        %3745 = vmatprep.subr.mxu0 0.0
        %3746 = vmatpush1.msra.mxu0 0.0
        %3747 = vmatprep.mubr.f32.mxu0 0.0
        %3748 = vmatmul.mubr.f32.gmra.mrb[0].mxu0 %v3681
        %v3749 = vpop.f32.mrb[0].mxu0
        %v3750 = vadd.f32 0.0, %v3749
        %v3751 = vpop.f32.mrb[0].mxu0
        %3752 = vdwg.mxu0
        %3753 = vrot.lane.b32.xlu0 %v762, 96
        %v3754 = vpop.permute.xlu0 %3753
        %v3757 = vsel %vm1953, %v2687, 0
        %3759 = vmatprep.subr.mxu0 0.0
        %3760 = vmatpush1.msra.mxu0 %v3754
        %3761 = vmatprep.subr.mxu0 0.0
        %3762 = vmatpush1.msra.mxu0 0.0
        %3763 = vmatprep.subr.mxu0 0.0
        %3764 = vmatpush1.msra.mxu0 0.0
        %3765 = vmatprep.subr.mxu0 0.0
        %3766 = vmatpush1.msra.mxu0 0.0
        %3767 = vmatprep.subr.mxu0 0.0
        %3768 = vmatpush1.msra.mxu0 0.0
        %3769 = vmatprep.subr.mxu0 0.0
        %3770 = vmatpush1.msra.mxu0 0.0
        %3771 = vmatprep.subr.mxu0 0.0
        %3772 = vmatpush1.msra.mxu0 0.0
        %3773 = vmatprep.subr.mxu0 0.0
        %3774 = vmatpush1.msra.mxu0 0.0
        %3775 = vmatprep.subr.mxu0 0.0
        %3776 = vmatpush1.msra.mxu0 0.0
        %3777 = vmatprep.subr.mxu0 0.0
        %3778 = vmatpush1.msra.mxu0 0.0
        %3779 = vmatprep.subr.mxu0 0.0
        %3780 = vmatpush1.msra.mxu0 0.0
        %3781 = vmatprep.subr.mxu0 0.0
        %3782 = vmatpush1.msra.mxu0 0.0
        %3783 = vmatprep.subr.mxu0 0.0
        %3784 = vmatpush1.msra.mxu0 0.0
        %3785 = vmatprep.subr.mxu0 0.0
        %3786 = vmatpush1.msra.mxu0 0.0
        %3787 = vmatprep.subr.mxu0 0.0
        %3788 = vmatpush1.msra.mxu0 0.0
        %3789 = vmatprep.subr.mxu0 0.0
        %3790 = vmatpush1.msra.mxu0 0.0
        %3791 = vmatprep.subr.mxu0 0.0
        %3792 = vmatpush1.msra.mxu0 0.0
        %3793 = vmatprep.subr.mxu0 0.0
        %3794 = vmatpush1.msra.mxu0 0.0
        %3795 = vmatprep.subr.mxu0 0.0
        %3796 = vmatpush1.msra.mxu0 0.0
        %3797 = vmatprep.subr.mxu0 0.0
        %3798 = vmatpush1.msra.mxu0 0.0
        %3799 = vmatprep.subr.mxu0 0.0
        %3800 = vmatpush1.msra.mxu0 0.0
        %3801 = vmatprep.subr.mxu0 0.0
        %3802 = vmatpush1.msra.mxu0 0.0
        %3803 = vmatprep.subr.mxu0 0.0
        %3804 = vmatpush1.msra.mxu0 0.0
        %3805 = vmatprep.subr.mxu0 0.0
        %3806 = vmatpush1.msra.mxu0 0.0
        %3807 = vmatprep.subr.mxu0 0.0
        %3808 = vmatpush1.msra.mxu0 0.0
        %3809 = vmatprep.subr.mxu0 0.0
        %3810 = vmatpush1.msra.mxu0 0.0
        %3811 = vmatprep.subr.mxu0 0.0
        %3812 = vmatpush1.msra.mxu0 0.0
        %3813 = vmatprep.subr.mxu0 0.0
        %3814 = vmatpush1.msra.mxu0 0.0
        %3815 = vmatprep.subr.mxu0 0.0
        %3816 = vmatpush1.msra.mxu0 0.0
        %3817 = vmatprep.subr.mxu0 0.0
        %3818 = vmatpush1.msra.mxu0 0.0
        %3819 = vmatprep.subr.mxu0 0.0
        %3820 = vmatpush1.msra.mxu0 0.0
        %3821 = vmatprep.subr.mxu0 0.0
        %3822 = vmatpush1.msra.mxu0 0.0
        %3823 = vmatprep.mubr.f32.mxu0 0.0
        %3824 = vmatmul.mubr.f32.gmra.mrb[0].mxu0 %v3757
        %v3825 = vpop.f32.mrb[0].mxu0
        %v3826 = vadd.f32 0.0, %v3825
        %v3827 = vpop.f32.mrb[0].mxu0
        %3828 = vdwg.mxu0
        %3829 = vrot.lane.b32.xlu0 %v767, 96
        %v3830 = vpop.permute.xlu0 %3829
        %v3833 = vsel %vm1953, %v2688, 0
        %3835 = vmatprep.subr.mxu0 0.0
        %3836 = vmatpush1.msra.mxu0 %v3830
        %3837 = vmatprep.subr.mxu0 0.0
        %3838 = vmatpush1.msra.mxu0 0.0
        %3839 = vmatprep.subr.mxu0 0.0
        %3840 = vmatpush1.msra.mxu0 0.0
        %3841 = vmatprep.subr.mxu0 0.0
        %3842 = vmatpush1.msra.mxu0 0.0
        %3843 = vmatprep.subr.mxu0 0.0
        %3844 = vmatpush1.msra.mxu0 0.0
        %3845 = vmatprep.subr.mxu0 0.0
        %3846 = vmatpush1.msra.mxu0 0.0
        %3847 = vmatprep.subr.mxu0 0.0
        %3848 = vmatpush1.msra.mxu0 0.0
        %3849 = vmatprep.subr.mxu0 0.0
        %3850 = vmatpush1.msra.mxu0 0.0
        %3851 = vmatprep.subr.mxu0 0.0
        %3852 = vmatpush1.msra.mxu0 0.0
        %3853 = vmatprep.subr.mxu0 0.0
        %3854 = vmatpush1.msra.mxu0 0.0
        %3855 = vmatprep.subr.mxu0 0.0
        %3856 = vmatpush1.msra.mxu0 0.0
        %3857 = vmatprep.subr.mxu0 0.0
        %3858 = vmatpush1.msra.mxu0 0.0
        %3859 = vmatprep.subr.mxu0 0.0
        %3860 = vmatpush1.msra.mxu0 0.0
        %3861 = vmatprep.subr.mxu0 0.0
        %3862 = vmatpush1.msra.mxu0 0.0
        %3863 = vmatprep.subr.mxu0 0.0
        %3864 = vmatpush1.msra.mxu0 0.0
        %3865 = vmatprep.subr.mxu0 0.0
        %3866 = vmatpush1.msra.mxu0 0.0
        %3867 = vmatprep.subr.mxu0 0.0
        %3868 = vmatpush1.msra.mxu0 0.0
        %3869 = vmatprep.subr.mxu0 0.0
        %3870 = vmatpush1.msra.mxu0 0.0
        %3871 = vmatprep.subr.mxu0 0.0
        %3872 = vmatpush1.msra.mxu0 0.0
        %3873 = vmatprep.subr.mxu0 0.0
        %3874 = vmatpush1.msra.mxu0 0.0
        %3875 = vmatprep.subr.mxu0 0.0
        %3876 = vmatpush1.msra.mxu0 0.0
        %3877 = vmatprep.subr.mxu0 0.0
        %3878 = vmatpush1.msra.mxu0 0.0
        %3879 = vmatprep.subr.mxu0 0.0
        %3880 = vmatpush1.msra.mxu0 0.0
        %3881 = vmatprep.subr.mxu0 0.0
        %3882 = vmatpush1.msra.mxu0 0.0
        %3883 = vmatprep.subr.mxu0 0.0
        %3884 = vmatpush1.msra.mxu0 0.0
        %3885 = vmatprep.subr.mxu0 0.0
        %3886 = vmatpush1.msra.mxu0 0.0
        %3887 = vmatprep.subr.mxu0 0.0
        %3888 = vmatpush1.msra.mxu0 0.0
        %3889 = vmatprep.subr.mxu0 0.0
        %3890 = vmatpush1.msra.mxu0 0.0
        %3891 = vmatprep.subr.mxu0 0.0
        %3892 = vmatpush1.msra.mxu0 0.0
        %3893 = vmatprep.subr.mxu0 0.0
        %3894 = vmatpush1.msra.mxu0 0.0
        %3895 = vmatprep.subr.mxu0 0.0
        %3896 = vmatpush1.msra.mxu0 0.0
        %3897 = vmatprep.subr.mxu0 0.0
        %3898 = vmatpush1.msra.mxu0 0.0
        %3899 = vmatprep.mubr.f32.mxu0 0.0
        %3900 = vmatmul.mubr.f32.gmra.mrb[0].mxu0 %v3833
        %v3901 = vpop.f32.mrb[0].mxu0
        %v3902 = vadd.f32 0.0, %v3901
        %v3903 = vpop.f32.mrb[0].mxu0
        %3904 = vdwg.mxu0
        %v3905 = vcombine.low %v3370, %v3522
        %v3906 = vcombine.high %v3370, %v3522
        %v3908 = vunpack.c.l.s4 1983009808
        %v3909 = vunpack.c.0.s8 %v3908
        %v3910 = vlaneseq
        %v3911 = vshrl.u32 %v3910, 7
        %v3912 = vsub.s32 %v3909, %v3911
        %v3913 = vrot.slane %v3905, %v3912
        %v3915 = vunpack.c.l.s4 1983009808
        %v3916 = vunpack.c.0.s8 %v3915
        %v3917 = vlaneseq
        %v3918 = vshrl.u32 %v3917, 7
        %v3919 = vsub.s32 %v3916, %v3918
        %v3920 = vrot.slane %v3906, %v3919
        %v3921 = vcombine.low %v3446, %v3598
        %v3922 = vcombine.high %v3446, %v3598
        %v3924 = vunpack.c.l.s4 1983009808
        %v3925 = vunpack.c.0.s8 %v3924
        %v3926 = vlaneseq
        %v3927 = vshrl.u32 %v3926, 7
        %v3928 = vsub.s32 %v3925, %v3927
        %v3929 = vrot.slane %v3921, %v3928
        %v3931 = vunpack.c.l.s4 1983009808
        %v3932 = vunpack.c.0.s8 %v3931
        %v3933 = vlaneseq
        %v3934 = vshrl.u32 %v3933, 7
        %v3935 = vsub.s32 %v3932, %v3934
        %v3936 = vrot.slane %v3922, %v3935
        %v3937 = vcombine.low %v3674, %v3826
        %v3938 = vcombine.high %v3674, %v3826
        %v3940 = vunpack.c.l.s4 1983009808
        %v3941 = vunpack.c.0.s8 %v3940
        %v3942 = vlaneseq
        %v3943 = vshrl.u32 %v3942, 7
        %v3944 = vsub.s32 %v3941, %v3943
        %v3945 = vrot.slane %v3937, %v3944
        %v3947 = vunpack.c.l.s4 1983009808
        %v3948 = vunpack.c.0.s8 %v3947
        %v3949 = vlaneseq
        %v3950 = vshrl.u32 %v3949, 7
        %v3951 = vsub.s32 %v3948, %v3950
        %v3952 = vrot.slane %v3938, %v3951
        %v3953 = vcombine.low %v3750, %v3902
        %v3954 = vcombine.high %v3750, %v3902
        %v3956 = vunpack.c.l.s4 1983009808
        %v3957 = vunpack.c.0.s8 %v3956
        %v3958 = vlaneseq
        %v3959 = vshrl.u32 %v3958, 7
        %v3960 = vsub.s32 %v3957, %v3959
        %v3961 = vrot.slane %v3953, %v3960
        %v3963 = vunpack.c.l.s4 1983009808
        %v3964 = vunpack.c.0.s8 %v3963
        %v3965 = vlaneseq
        %v3966 = vshrl.u32 %v3965, 7
        %v3967 = vsub.s32 %v3964, %v3966
        %v3968 = vrot.slane %v3954, %v3967
        %v3969 = vcombine.low %v3913, %v3929
        %v3970 = vcombine.high %v3913, %v3929
        %v3972 = vunpack.c.l.s4 1934713408
        %v3973 = vunpack.c.0.s8 %v3972
        %v3974 = vlaneseq
        %v3975 = vshrl.u32 %v3974, 7
        %v3976 = vsub.s32 %v3973, %v3975
        %v3977 = vrot.slane %v3969, %v3976
        %v3979 = vunpack.c.l.s4 1934713408
        %v3980 = vunpack.c.0.s8 %v3979
        %v3981 = vlaneseq
        %v3982 = vshrl.u32 %v3981, 7
        %v3983 = vsub.s32 %v3980, %v3982
        %v3984 = vrot.slane %v3970, %v3983
        %v3985 = vcombine.low %v3920, %v3936
        %v3986 = vcombine.high %v3920, %v3936
        %v3988 = vunpack.c.l.s4 1934713408
        %v3989 = vunpack.c.0.s8 %v3988
        %v3990 = vlaneseq
        %v3991 = vshrl.u32 %v3990, 7
        %v3992 = vsub.s32 %v3989, %v3991
        %v3993 = vrot.slane %v3985, %v3992
        %v3995 = vunpack.c.l.s4 1934713408
        %v3996 = vunpack.c.0.s8 %v3995
        %v3997 = vlaneseq
        %v3998 = vshrl.u32 %v3997, 7
        %v3999 = vsub.s32 %v3996, %v3998
        %v4000 = vrot.slane %v3986, %v3999
        %v4001 = vcombine.low %v3945, %v3961
        %v4002 = vcombine.high %v3945, %v3961
        %v4004 = vunpack.c.l.s4 1934713408
        %v4005 = vunpack.c.0.s8 %v4004
        %v4006 = vlaneseq
        %v4007 = vshrl.u32 %v4006, 7
        %v4008 = vsub.s32 %v4005, %v4007
        %v4009 = vrot.slane %v4001, %v4008
        %v4011 = vunpack.c.l.s4 1934713408
        %v4012 = vunpack.c.0.s8 %v4011
        %v4013 = vlaneseq
        %v4014 = vshrl.u32 %v4013, 7
        %v4015 = vsub.s32 %v4012, %v4014
        %v4016 = vrot.slane %v4002, %v4015
        %v4017 = vcombine.low %v3952, %v3968
        %v4018 = vcombine.high %v3952, %v3968
        %v4020 = vunpack.c.l.s4 1934713408
        %v4021 = vunpack.c.0.s8 %v4020
        %v4022 = vlaneseq
        %v4023 = vshrl.u32 %v4022, 7
        %v4024 = vsub.s32 %v4021, %v4023
        %v4025 = vrot.slane %v4017, %v4024
        %v4027 = vunpack.c.l.s4 1934713408
        %v4028 = vunpack.c.0.s8 %v4027
        %v4029 = vlaneseq
        %v4030 = vshrl.u32 %v4029, 7
        %v4031 = vsub.s32 %v4028, %v4030
        %v4032 = vrot.slane %v4018, %v4031
        %v4033 = vcombine.low %v3977, %v4009
        %v4034 = vcombine.high %v3977, %v4009
        %v4035 = vcombine.low %v3984, %v4016
        %v4036 = vcombine.high %v3984, %v4016
        %v4037 = vcombine.low %v3993, %v4025
        %v4038 = vcombine.high %v3993, %v4025
        %v4039 = vcombine.low %v4000, %v4032
        %v4040 = vcombine.high %v4000, %v4032
        %v4041 = vadd.f32 %v4033, %v2762
        %v4042 = vadd.f32 %v4034, %v2838
        %v4043 = vadd.f32 %v4035, %v2914
        %v4044 = vadd.f32 %v4036, %v2990
        %v4045 = vadd.f32 %v4037, %v3066
        %v4046 = vadd.f32 %v4038, %v3142
        %v4047 = vadd.f32 %v4039, %v3218
        %v4048 = vadd.f32 %v4040, %v3294
        %v4049 = vstv %s368
        %v4050 = vmul.f32 %v4049, %v4041
        %v4051 = vmul.f32 %v4049, %v4042
        %v4052 = vmul.f32 %v4049, %v4043
        %v4053 = vmul.f32 %v4049, %v4044
        %v4054 = vmul.f32 %v4049, %v4045
        %v4055 = vmul.f32 %v4049, %v4046
        %v4056 = vmul.f32 %v4049, %v4047
        %v4057 = vmul.f32 %v4049, %v4048
        %v4058 = vadd.f32 %v4050, %v355
        %v4059 = vadd.f32 %v4051, %v356
        %v4060 = vadd.f32 %v4052, %v357
        %v4061 = vadd.f32 %v4053, %v358
        %v4062 = vadd.f32 %v4054, %v359
        %v4063 = vadd.f32 %v4055, %v360
        %v4064 = vadd.f32 %v4056, %v361
        %v4065 = vadd.f32 %v4057, %v362
        %v4066 = vld [vmem:[#allocation8] sm:$0xff]
        %v4067 = vld [vmem:[#allocation8 + $0x8] sm:$0xff]
        %v4068 = vld [vmem:[#allocation8 + $0x10] sm:$0xff]
        %v4069 = vld [vmem:[#allocation8 + $0x18] sm:$0xff]
        %v4070 = vld [vmem:[%s4] sm:$0x1]
        %s4071 = sld [smem:[#allocation11 + $0x1]]
        %v4072 = vcombine.low %v4058, %v4060
        %v4073 = vcombine.high %v4058, %v4060
        %v4075 = vunpack.c.l.s4 1983009808
        %v4076 = vunpack.c.0.s8 %v4075
        %v4077 = vlaneseq
        %v4078 = vshrl.u32 %v4077, 7
        %v4079 = vsub.s32 %v4076, %v4078
        %v4080 = vrot.slane %v4072, %v4079
        %v4082 = vunpack.c.l.s4 1983009808
        %v4083 = vunpack.c.0.s8 %v4082
        %v4084 = vlaneseq
        %v4085 = vshrl.u32 %v4084, 7
        %v4086 = vsub.s32 %v4083, %v4085
        %v4087 = vrot.slane %v4073, %v4086
        %v4088 = vcombine.low %v4059, %v4061
        %v4089 = vcombine.high %v4059, %v4061
        %v4091 = vunpack.c.l.s4 1983009808
        %v4092 = vunpack.c.0.s8 %v4091
        %v4093 = vlaneseq
        %v4094 = vshrl.u32 %v4093, 7
        %v4095 = vsub.s32 %v4092, %v4094
        %v4096 = vrot.slane %v4088, %v4095
        %v4098 = vunpack.c.l.s4 1983009808
        %v4099 = vunpack.c.0.s8 %v4098
        %v4100 = vlaneseq
        %v4101 = vshrl.u32 %v4100, 7
        %v4102 = vsub.s32 %v4099, %v4101
        %v4103 = vrot.slane %v4089, %v4102
        %v4104 = vcombine.low %v4062, %v4064
        %v4105 = vcombine.high %v4062, %v4064
        %v4107 = vunpack.c.l.s4 1983009808
        %v4108 = vunpack.c.0.s8 %v4107
        %v4109 = vlaneseq
        %v4110 = vshrl.u32 %v4109, 7
        %v4111 = vsub.s32 %v4108, %v4110
        %v4112 = vrot.slane %v4104, %v4111
        %v4114 = vunpack.c.l.s4 1983009808
        %v4115 = vunpack.c.0.s8 %v4114
        %v4116 = vlaneseq
        %v4117 = vshrl.u32 %v4116, 7
        %v4118 = vsub.s32 %v4115, %v4117
        %v4119 = vrot.slane %v4105, %v4118
        %v4120 = vcombine.low %v4063, %v4065
        %v4121 = vcombine.high %v4063, %v4065
        %v4123 = vunpack.c.l.s4 1983009808
        %v4124 = vunpack.c.0.s8 %v4123
        %v4125 = vlaneseq
        %v4126 = vshrl.u32 %v4125, 7
        %v4127 = vsub.s32 %v4124, %v4126
        %v4128 = vrot.slane %v4120, %v4127
        %v4130 = vunpack.c.l.s4 1983009808
        %v4131 = vunpack.c.0.s8 %v4130
        %v4132 = vlaneseq
        %v4133 = vshrl.u32 %v4132, 7
        %v4134 = vsub.s32 %v4131, %v4133
        %v4135 = vrot.slane %v4121, %v4134
        %v4136 = vcombine.low %v4080, %v4096
        %v4137 = vcombine.high %v4080, %v4096
        %v4139 = vunpack.c.l.s4 1934713408
        %v4140 = vunpack.c.0.s8 %v4139
        %v4141 = vlaneseq
        %v4142 = vshrl.u32 %v4141, 7
        %v4143 = vsub.s32 %v4140, %v4142
        %v4144 = vrot.slane %v4136, %v4143
        %v4146 = vunpack.c.l.s4 1934713408
        %v4147 = vunpack.c.0.s8 %v4146
        %v4148 = vlaneseq
        %v4149 = vshrl.u32 %v4148, 7
        %v4150 = vsub.s32 %v4147, %v4149
        %v4151 = vrot.slane %v4137, %v4150
        %v4152 = vcombine.low %v4087, %v4103
        %v4153 = vcombine.high %v4087, %v4103
        %v4155 = vunpack.c.l.s4 1934713408
        %v4156 = vunpack.c.0.s8 %v4155
        %v4157 = vlaneseq
        %v4158 = vshrl.u32 %v4157, 7
        %v4159 = vsub.s32 %v4156, %v4158
        %v4160 = vrot.slane %v4152, %v4159
        %v4162 = vunpack.c.l.s4 1934713408
        %v4163 = vunpack.c.0.s8 %v4162
        %v4164 = vlaneseq
        %v4165 = vshrl.u32 %v4164, 7
        %v4166 = vsub.s32 %v4163, %v4165
        %v4167 = vrot.slane %v4153, %v4166
        %v4168 = vcombine.low %v4112, %v4128
        %v4169 = vcombine.high %v4112, %v4128
        %v4171 = vunpack.c.l.s4 1934713408
        %v4172 = vunpack.c.0.s8 %v4171
        %v4173 = vlaneseq
        %v4174 = vshrl.u32 %v4173, 7
        %v4175 = vsub.s32 %v4172, %v4174
        %v4176 = vrot.slane %v4168, %v4175
        %v4178 = vunpack.c.l.s4 1934713408
        %v4179 = vunpack.c.0.s8 %v4178
        %v4180 = vlaneseq
        %v4181 = vshrl.u32 %v4180, 7
        %v4182 = vsub.s32 %v4179, %v4181
        %v4183 = vrot.slane %v4169, %v4182
        %v4184 = vcombine.low %v4119, %v4135
        %v4185 = vcombine.high %v4119, %v4135
        %v4187 = vunpack.c.l.s4 1934713408
        %v4188 = vunpack.c.0.s8 %v4187
        %v4189 = vlaneseq
        %v4190 = vshrl.u32 %v4189, 7
        %v4191 = vsub.s32 %v4188, %v4190
        %v4192 = vrot.slane %v4184, %v4191
        %v4194 = vunpack.c.l.s4 1934713408
        %v4195 = vunpack.c.0.s8 %v4194
        %v4196 = vlaneseq
        %v4197 = vshrl.u32 %v4196, 7
        %v4198 = vsub.s32 %v4195, %v4197
        %v4199 = vrot.slane %v4185, %v4198
        %v4200 = vcombine.low %v4144, %v4176
        %v4201 = vcombine.high %v4144, %v4176
        %v4202 = vcombine.low %v4151, %v4183
        %v4203 = vcombine.high %v4151, %v4183
        %v4204 = vcombine.low %v4160, %v4192
        %v4205 = vcombine.high %v4160, %v4192
        %v4206 = vcombine.low %v4167, %v4199
        %v4207 = vcombine.high %v4167, %v4199
        %v4209 = vlaneseq
        %v4210 = vshrl.u32 %v4209, 7
        %v4211 = vsub.s32 0, %v4210
        %v4212 = vrot.slane %v4070, %v4211
        %v4215 = vsel %vm511, %v4058, 0
        %v4218 = vsel %vm511, %v4059, 0
        %v4221 = vsel %vm511, %v4060, 0
        %v4224 = vsel %vm511, %v4061, 0
        %v4227 = vsel %vm511, %v4062, 0
        %v4230 = vsel %vm511, %v4063, 0
        %v4233 = vsel %vm511, %v4064, 0
        %v4236 = vsel %vm511, %v4065, 0
        %4238 = vmatprep.subr.mxu0 0.0
        %4239 = vmatpush1.msra.mxu0 %v4066
        %4240 = vmatprep.subr.mxu0 0.0
        %4241 = vmatpush1.msra.mxu0 %v4067
        %4242 = vmatprep.subr.mxu0 0.0
        %4243 = vmatpush1.msra.mxu0 %v4068
        %4244 = vmatprep.subr.mxu0 0.0
        %4245 = vmatpush1.msra.mxu0 %v4069
        %4246 = vmatprep.subr.mxu0 0.0
        %4247 = vmatpush1.msra.mxu0 0.0
        %4248 = vmatprep.subr.mxu0 0.0
        %4249 = vmatpush1.msra.mxu0 0.0
        %4250 = vmatprep.subr.mxu0 0.0
        %4251 = vmatpush1.msra.mxu0 0.0
        %4252 = vmatprep.subr.mxu0 0.0
        %4253 = vmatpush1.msra.mxu0 0.0
        %4254 = vmatprep.subr.mxu0 0.0
        %4255 = vmatpush1.msra.mxu0 0.0
        %4256 = vmatprep.subr.mxu0 0.0
        %4257 = vmatpush1.msra.mxu0 0.0
        %4258 = vmatprep.subr.mxu0 0.0
        %4259 = vmatpush1.msra.mxu0 0.0
        %4260 = vmatprep.subr.mxu0 0.0
        %4261 = vmatpush1.msra.mxu0 0.0
        %4262 = vmatprep.subr.mxu0 0.0
        %4263 = vmatpush1.msra.mxu0 0.0
        %4264 = vmatprep.subr.mxu0 0.0
        %4265 = vmatpush1.msra.mxu0 0.0
        %4266 = vmatprep.subr.mxu0 0.0
        %4267 = vmatpush1.msra.mxu0 0.0
        %4268 = vmatprep.subr.mxu0 0.0
        %4269 = vmatpush1.msra.mxu0 0.0
        %4270 = vmatprep.subr.mxu0 0.0
        %4271 = vmatpush1.msra.mxu0 0.0
        %4272 = vmatprep.subr.mxu0 0.0
        %4273 = vmatpush1.msra.mxu0 0.0
        %4274 = vmatprep.subr.mxu0 0.0
        %4275 = vmatpush1.msra.mxu0 0.0
        %4276 = vmatprep.subr.mxu0 0.0
        %4277 = vmatpush1.msra.mxu0 0.0
        %4278 = vmatprep.subr.mxu0 0.0
        %4279 = vmatpush1.msra.mxu0 0.0
        %4280 = vmatprep.subr.mxu0 0.0
        %4281 = vmatpush1.msra.mxu0 0.0
        %4282 = vmatprep.subr.mxu0 0.0
        %4283 = vmatpush1.msra.mxu0 0.0
        %4284 = vmatprep.subr.mxu0 0.0
        %4285 = vmatpush1.msra.mxu0 0.0
        %4286 = vmatprep.subr.mxu0 0.0
        %4287 = vmatpush1.msra.mxu0 0.0
        %4288 = vmatprep.subr.mxu0 0.0
        %4289 = vmatpush1.msra.mxu0 0.0
        %4290 = vmatprep.subr.mxu0 0.0
        %4291 = vmatpush1.msra.mxu0 0.0
        %4292 = vmatprep.subr.mxu0 0.0
        %4293 = vmatpush1.msra.mxu0 0.0
        %4294 = vmatprep.subr.mxu0 0.0
        %4295 = vmatpush1.msra.mxu0 0.0
        %4296 = vmatprep.subr.mxu0 0.0
        %4297 = vmatpush1.msra.mxu0 0.0
        %4298 = vmatprep.subr.mxu0 0.0
        %4299 = vmatpush1.msra.mxu0 0.0
        %4300 = vmatprep.subr.mxu0 0.0
        %4301 = vmatpush1.msra.mxu0 0.0
        %4302 = vmatprep.mubr.f32.mxu0 0.0
        %4303 = vmatmul.mubr.f32.gmra.mrb[0].mxu0 %v4215
        %v4304 = vpop.f32.mrb[0].mxu0
        %v4305 = vadd.f32 %v4212, %v4304
        %v4306 = vpop.f32.mrb[0].mxu0
        %4307 = vmatprep.mubr.f32.mxu0 0.0
        %4308 = vmatmul.mubr.f32.gmra.mrb[0].mxu0 %v4218
        %v4309 = vpop.f32.mrb[0].mxu0
        %v4310 = vadd.f32 %v4212, %v4309
        %v4311 = vpop.f32.mrb[0].mxu0
        %4312 = vmatprep.mubr.f32.mxu0 0.0
        %4313 = vmatmul.mubr.f32.gmra.mrb[0].mxu0 %v4221
        %v4314 = vpop.f32.mrb[0].mxu0
        %v4315 = vadd.f32 %v4212, %v4314
        %v4316 = vpop.f32.mrb[0].mxu0
        %4317 = vmatprep.mubr.f32.mxu0 0.0
        %4318 = vmatmul.mubr.f32.gmra.mrb[0].mxu0 %v4224
        %v4319 = vpop.f32.mrb[0].mxu0
        %v4320 = vadd.f32 %v4212, %v4319
        %v4321 = vpop.f32.mrb[0].mxu0
        %4322 = vmatprep.mubr.f32.mxu0 0.0
        %4323 = vmatmul.mubr.f32.gmra.mrb[0].mxu0 %v4227
        %v4324 = vpop.f32.mrb[0].mxu0
        %v4325 = vadd.f32 %v4212, %v4324
        %v4326 = vpop.f32.mrb[0].mxu0
        %4327 = vmatprep.mubr.f32.mxu0 0.0
        %4328 = vmatmul.mubr.f32.gmra.mrb[0].mxu0 %v4230
        %v4329 = vpop.f32.mrb[0].mxu0
        %v4330 = vadd.f32 %v4212, %v4329
        %v4331 = vpop.f32.mrb[0].mxu0
        %4332 = vmatprep.mubr.f32.mxu0 0.0
        %4333 = vmatmul.mubr.f32.gmra.mrb[0].mxu0 %v4233
        %v4334 = vpop.f32.mrb[0].mxu0
        %v4335 = vadd.f32 %v4212, %v4334
        %v4336 = vpop.f32.mrb[0].mxu0
        %4337 = vmatprep.mubr.f32.mxu0 0.0
        %4338 = vmatmul.mubr.f32.gmra.mrb[0].mxu0 %v4236
        %v4339 = vpop.f32.mrb[0].mxu0
        %v4340 = vadd.f32 %v4212, %v4339
        %v4341 = vpop.f32.mrb[0].mxu0
        %4342 = vdwg.mxu0
        %v4344 = vsel %vm511, %v4200, 0
        %v4347 = vsel %vm511, %v4201, 0
        %v4350 = vsel %vm511, %v4202, 0
        %v4353 = vsel %vm511, %v4203, 0
        %v4356 = vsel %vm511, %v4204, 0
        %v4359 = vsel %vm511, %v4205, 0
        %v4362 = vsel %vm511, %v4206, 0
        %v4365 = vsel %vm511, %v4207, 0
        %4367 = vmatprep.subr.mxu0 0.0
        %4368 = vmatpush1.msra.mxu0 %v4066
        %4369 = vmatprep.subr.mxu0 0.0
        %4370 = vmatpush1.msra.mxu0 %v4067
        %4371 = vmatprep.subr.mxu0 0.0
        %4372 = vmatpush1.msra.mxu0 %v4068
        %4373 = vmatprep.subr.mxu0 0.0
        %4374 = vmatpush1.msra.mxu0 %v4069
        %4375 = vmatprep.subr.mxu0 0.0
        %4376 = vmatpush1.msra.mxu0 0.0
        %4377 = vmatprep.subr.mxu0 0.0
        %4378 = vmatpush1.msra.mxu0 0.0
        %4379 = vmatprep.subr.mxu0 0.0
        %4380 = vmatpush1.msra.mxu0 0.0
        %4381 = vmatprep.subr.mxu0 0.0
        %4382 = vmatpush1.msra.mxu0 0.0
        %4383 = vmatprep.subr.mxu0 0.0
        %4384 = vmatpush1.msra.mxu0 0.0
        %4385 = vmatprep.subr.mxu0 0.0
        %4386 = vmatpush1.msra.mxu0 0.0
        %4387 = vmatprep.subr.mxu0 0.0
        %4388 = vmatpush1.msra.mxu0 0.0
        %4389 = vmatprep.subr.mxu0 0.0
        %4390 = vmatpush1.msra.mxu0 0.0
        %4391 = vmatprep.subr.mxu0 0.0
        %4392 = vmatpush1.msra.mxu0 0.0
        %4393 = vmatprep.subr.mxu0 0.0
        %4394 = vmatpush1.msra.mxu0 0.0
        %4395 = vmatprep.subr.mxu0 0.0
        %4396 = vmatpush1.msra.mxu0 0.0
        %4397 = vmatprep.subr.mxu0 0.0
        %4398 = vmatpush1.msra.mxu0 0.0
        %4399 = vmatprep.subr.mxu0 0.0
        %4400 = vmatpush1.msra.mxu0 0.0
        %4401 = vmatprep.subr.mxu0 0.0
        %4402 = vmatpush1.msra.mxu0 0.0
        %4403 = vmatprep.subr.mxu0 0.0
        %4404 = vmatpush1.msra.mxu0 0.0
        %4405 = vmatprep.subr.mxu0 0.0
        %4406 = vmatpush1.msra.mxu0 0.0
        %4407 = vmatprep.subr.mxu0 0.0
        %4408 = vmatpush1.msra.mxu0 0.0
        %4409 = vmatprep.subr.mxu0 0.0
        %4410 = vmatpush1.msra.mxu0 0.0
        %4411 = vmatprep.subr.mxu0 0.0
        %4412 = vmatpush1.msra.mxu0 0.0
        %4413 = vmatprep.subr.mxu0 0.0
        %4414 = vmatpush1.msra.mxu0 0.0
        %4415 = vmatprep.subr.mxu0 0.0
        %4416 = vmatpush1.msra.mxu0 0.0
        %4417 = vmatprep.subr.mxu0 0.0
        %4418 = vmatpush1.msra.mxu0 0.0
        %4419 = vmatprep.subr.mxu0 0.0
        %4420 = vmatpush1.msra.mxu0 0.0
        %4421 = vmatprep.subr.mxu0 0.0
        %4422 = vmatpush1.msra.mxu0 0.0
        %4423 = vmatprep.subr.mxu0 0.0
        %4424 = vmatpush1.msra.mxu0 0.0
        %4425 = vmatprep.subr.mxu0 0.0
        %4426 = vmatpush1.msra.mxu0 0.0
        %4427 = vmatprep.subr.mxu0 0.0
        %4428 = vmatpush1.msra.mxu0 0.0
        %4429 = vmatprep.subr.mxu0 0.0
        %4430 = vmatpush1.msra.mxu0 0.0
        %4431 = vmatprep.mubr.f32.mxu0 0.0
        %4432 = vmatmul.mubr.f32.gmra.mrb[0].mxu0 %v4344
        %v4433 = vpop.f32.mrb[0].mxu0
        %v4434 = vadd.f32 %v4212, %v4433
        %v4435 = vpop.f32.mrb[0].mxu0
        %4436 = vmatprep.mubr.f32.mxu0 0.0
        %4437 = vmatmul.mubr.f32.gmra.mrb[0].mxu0 %v4347
        %v4438 = vpop.f32.mrb[0].mxu0
        %v4439 = vadd.f32 %v4212, %v4438
        %v4440 = vpop.f32.mrb[0].mxu0
        %4441 = vmatprep.mubr.f32.mxu0 0.0
        %4442 = vmatmul.mubr.f32.gmra.mrb[0].mxu0 %v4350
        %v4443 = vpop.f32.mrb[0].mxu0
        %v4444 = vadd.f32 %v4212, %v4443
        %v4445 = vpop.f32.mrb[0].mxu0
        %4446 = vmatprep.mubr.f32.mxu0 0.0
        %4447 = vmatmul.mubr.f32.gmra.mrb[0].mxu0 %v4353
        %v4448 = vpop.f32.mrb[0].mxu0
        %v4449 = vadd.f32 %v4212, %v4448
        %v4450 = vpop.f32.mrb[0].mxu0
        %4451 = vmatprep.mubr.f32.mxu0 0.0
        %4452 = vmatmul.mubr.f32.gmra.mrb[0].mxu0 %v4356
        %v4453 = vpop.f32.mrb[0].mxu0
        %v4454 = vadd.f32 %v4212, %v4453
        %v4455 = vpop.f32.mrb[0].mxu0
        %4456 = vmatprep.mubr.f32.mxu0 0.0
        %4457 = vmatmul.mubr.f32.gmra.mrb[0].mxu0 %v4359
        %v4458 = vpop.f32.mrb[0].mxu0
        %v4459 = vadd.f32 %v4212, %v4458
        %v4460 = vpop.f32.mrb[0].mxu0
        %4461 = vmatprep.mubr.f32.mxu0 0.0
        %4462 = vmatmul.mubr.f32.gmra.mrb[0].mxu0 %v4362
        %v4463 = vpop.f32.mrb[0].mxu0
        %v4464 = vadd.f32 %v4212, %v4463
        %v4465 = vpop.f32.mrb[0].mxu0
        %4466 = vmatprep.mubr.f32.mxu0 0.0
        %4467 = vmatmul.mubr.f32.gmra.mrb[0].mxu0 %v4365
        %v4468 = vpop.f32.mrb[0].mxu0
        %v4469 = vadd.f32 %v4212, %v4468
        %v4470 = vpop.f32.mrb[0].mxu0
        %4471 = vdwg.mxu0
        %v4473 = vsel %vm511, %v4305, 0
        %4475 = vmatprep.subr.mxu0 0.0
        %4476 = vmatpush1.xpose.msra.mxu0 %v4215
        %4477 = vmatprep.subr.mxu0 0.0
        %4478 = vmatpush1.xpose.msra.mxu0 0.0
        %4479 = vmatprep.subr.mxu0 0.0
        %4480 = vmatpush1.xpose.msra.mxu0 0.0
        %4481 = vmatprep.subr.mxu0 0.0
        %4482 = vmatpush1.xpose.msra.mxu0 0.0
        %4483 = vmatprep.subr.mxu0 0.0
        %4484 = vmatpush1.xpose.msra.mxu0 0.0
        %4485 = vmatprep.subr.mxu0 0.0
        %4486 = vmatpush1.xpose.msra.mxu0 0.0
        %4487 = vmatprep.subr.mxu0 0.0
        %4488 = vmatpush1.xpose.msra.mxu0 0.0
        %4489 = vmatprep.subr.mxu0 0.0
        %4490 = vmatpush1.xpose.msra.mxu0 0.0
        %4491 = vmatprep.subr.mxu0 0.0
        %4492 = vmatpush1.xpose.msra.mxu0 0.0
        %4493 = vmatprep.subr.mxu0 0.0
        %4494 = vmatpush1.xpose.msra.mxu0 0.0
        %4495 = vmatprep.subr.mxu0 0.0
        %4496 = vmatpush1.xpose.msra.mxu0 0.0
        %4497 = vmatprep.subr.mxu0 0.0
        %4498 = vmatpush1.xpose.msra.mxu0 0.0
        %4499 = vmatprep.subr.mxu0 0.0
        %4500 = vmatpush1.xpose.msra.mxu0 0.0
        %4501 = vmatprep.subr.mxu0 0.0
        %4502 = vmatpush1.xpose.msra.mxu0 0.0
        %4503 = vmatprep.subr.mxu0 0.0
        %4504 = vmatpush1.xpose.msra.mxu0 0.0
        %4505 = vmatprep.subr.mxu0 0.0
        %4506 = vmatpush1.xpose.msra.mxu0 0.0
        %4507 = vmatprep.subr.mxu0 0.0
        %4508 = vmatpush1.xpose.msra.mxu0 0.0
        %4509 = vmatprep.subr.mxu0 0.0
        %4510 = vmatpush1.xpose.msra.mxu0 0.0
        %4511 = vmatprep.subr.mxu0 0.0
        %4512 = vmatpush1.xpose.msra.mxu0 0.0
        %4513 = vmatprep.subr.mxu0 0.0
        %4514 = vmatpush1.xpose.msra.mxu0 0.0
        %4515 = vmatprep.subr.mxu0 0.0
        %4516 = vmatpush1.xpose.msra.mxu0 0.0
        %4517 = vmatprep.subr.mxu0 0.0
        %4518 = vmatpush1.xpose.msra.mxu0 0.0
        %4519 = vmatprep.subr.mxu0 0.0
        %4520 = vmatpush1.xpose.msra.mxu0 0.0
        %4521 = vmatprep.subr.mxu0 0.0
        %4522 = vmatpush1.xpose.msra.mxu0 0.0
        %4523 = vmatprep.subr.mxu0 0.0
        %4524 = vmatpush1.xpose.msra.mxu0 0.0
        %4525 = vmatprep.subr.mxu0 0.0
        %4526 = vmatpush1.xpose.msra.mxu0 0.0
        %4527 = vmatprep.subr.mxu0 0.0
        %4528 = vmatpush1.xpose.msra.mxu0 0.0
        %4529 = vmatprep.subr.mxu0 0.0
        %4530 = vmatpush1.xpose.msra.mxu0 0.0
        %4531 = vmatprep.subr.mxu0 0.0
        %4532 = vmatpush1.xpose.msra.mxu0 0.0
        %4533 = vmatprep.subr.mxu0 0.0
        %4534 = vmatpush1.xpose.msra.mxu0 0.0
        %4535 = vmatprep.subr.mxu0 0.0
        %4536 = vmatpush1.xpose.msra.mxu0 0.0
        %4537 = vmatprep.subr.mxu0 0.0
        %4538 = vmatpush1.xpose.msra.mxu0 0.0
        %4539 = vmatprep.mubr.f32.mxu0 0.0
        %4540 = vmatmul.mubr.f32.gmra.mrb[0].mxu0 %v4473
        %v4541 = vpop.f32.mrb[0].mxu0
        %v4542 = vadd.f32 0.0, %v4541
        %v4543 = vpop.f32.mrb[0].mxu0
        %4544 = vdwg.mxu0
        %v4546 = vsel %vm511, %v4310, 0
        %4548 = vmatprep.subr.mxu0 0.0
        %4549 = vmatpush1.xpose.msra.mxu0 %v4218
        %4550 = vmatprep.subr.mxu0 0.0
        %4551 = vmatpush1.xpose.msra.mxu0 0.0
        %4552 = vmatprep.subr.mxu0 0.0
        %4553 = vmatpush1.xpose.msra.mxu0 0.0
        %4554 = vmatprep.subr.mxu0 0.0
        %4555 = vmatpush1.xpose.msra.mxu0 0.0
        %4556 = vmatprep.subr.mxu0 0.0
        %4557 = vmatpush1.xpose.msra.mxu0 0.0
        %4558 = vmatprep.subr.mxu0 0.0
        %4559 = vmatpush1.xpose.msra.mxu0 0.0
        %4560 = vmatprep.subr.mxu0 0.0
        %4561 = vmatpush1.xpose.msra.mxu0 0.0
        %4562 = vmatprep.subr.mxu0 0.0
        %4563 = vmatpush1.xpose.msra.mxu0 0.0
        %4564 = vmatprep.subr.mxu0 0.0
        %4565 = vmatpush1.xpose.msra.mxu0 0.0
        %4566 = vmatprep.subr.mxu0 0.0
        %4567 = vmatpush1.xpose.msra.mxu0 0.0
        %4568 = vmatprep.subr.mxu0 0.0
        %4569 = vmatpush1.xpose.msra.mxu0 0.0
        %4570 = vmatprep.subr.mxu0 0.0
        %4571 = vmatpush1.xpose.msra.mxu0 0.0
        %4572 = vmatprep.subr.mxu0 0.0
        %4573 = vmatpush1.xpose.msra.mxu0 0.0
        %4574 = vmatprep.subr.mxu0 0.0
        %4575 = vmatpush1.xpose.msra.mxu0 0.0
        %4576 = vmatprep.subr.mxu0 0.0
        %4577 = vmatpush1.xpose.msra.mxu0 0.0
        %4578 = vmatprep.subr.mxu0 0.0
        %4579 = vmatpush1.xpose.msra.mxu0 0.0
        %4580 = vmatprep.subr.mxu0 0.0
        %4581 = vmatpush1.xpose.msra.mxu0 0.0
        %4582 = vmatprep.subr.mxu0 0.0
        %4583 = vmatpush1.xpose.msra.mxu0 0.0
        %4584 = vmatprep.subr.mxu0 0.0
        %4585 = vmatpush1.xpose.msra.mxu0 0.0
        %4586 = vmatprep.subr.mxu0 0.0
        %4587 = vmatpush1.xpose.msra.mxu0 0.0
        %4588 = vmatprep.subr.mxu0 0.0
        %4589 = vmatpush1.xpose.msra.mxu0 0.0
        %4590 = vmatprep.subr.mxu0 0.0
        %4591 = vmatpush1.xpose.msra.mxu0 0.0
        %4592 = vmatprep.subr.mxu0 0.0
        %4593 = vmatpush1.xpose.msra.mxu0 0.0
        %4594 = vmatprep.subr.mxu0 0.0
        %4595 = vmatpush1.xpose.msra.mxu0 0.0
        %4596 = vmatprep.subr.mxu0 0.0
        %4597 = vmatpush1.xpose.msra.mxu0 0.0
        %4598 = vmatprep.subr.mxu0 0.0
        %4599 = vmatpush1.xpose.msra.mxu0 0.0
        %4600 = vmatprep.subr.mxu0 0.0
        %4601 = vmatpush1.xpose.msra.mxu0 0.0
        %4602 = vmatprep.subr.mxu0 0.0
        %4603 = vmatpush1.xpose.msra.mxu0 0.0
        %4604 = vmatprep.subr.mxu0 0.0
        %4605 = vmatpush1.xpose.msra.mxu0 0.0
        %4606 = vmatprep.subr.mxu0 0.0
        %4607 = vmatpush1.xpose.msra.mxu0 0.0
        %4608 = vmatprep.subr.mxu0 0.0
        %4609 = vmatpush1.xpose.msra.mxu0 0.0
        %4610 = vmatprep.subr.mxu0 0.0
        %4611 = vmatpush1.xpose.msra.mxu0 0.0
        %4612 = vmatprep.mubr.f32.mxu0 0.0
        %4613 = vmatmul.mubr.f32.gmra.mrb[0].mxu0 %v4546
        %v4614 = vpop.f32.mrb[0].mxu0
        %v4615 = vadd.f32 0.0, %v4614
        %v4616 = vpop.f32.mrb[0].mxu0
        %4617 = vdwg.mxu0
        %v4619 = vsel %vm511, %v4315, 0
        %4621 = vmatprep.subr.mxu0 0.0
        %4622 = vmatpush1.xpose.msra.mxu0 %v4221
        %4623 = vmatprep.subr.mxu0 0.0
        %4624 = vmatpush1.xpose.msra.mxu0 0.0
        %4625 = vmatprep.subr.mxu0 0.0
        %4626 = vmatpush1.xpose.msra.mxu0 0.0
        %4627 = vmatprep.subr.mxu0 0.0
        %4628 = vmatpush1.xpose.msra.mxu0 0.0
        %4629 = vmatprep.subr.mxu0 0.0
        %4630 = vmatpush1.xpose.msra.mxu0 0.0
        %4631 = vmatprep.subr.mxu0 0.0
        %4632 = vmatpush1.xpose.msra.mxu0 0.0
        %4633 = vmatprep.subr.mxu0 0.0
        %4634 = vmatpush1.xpose.msra.mxu0 0.0
        %4635 = vmatprep.subr.mxu0 0.0
        %4636 = vmatpush1.xpose.msra.mxu0 0.0
        %4637 = vmatprep.subr.mxu0 0.0
        %4638 = vmatpush1.xpose.msra.mxu0 0.0
        %4639 = vmatprep.subr.mxu0 0.0
        %4640 = vmatpush1.xpose.msra.mxu0 0.0
        %4641 = vmatprep.subr.mxu0 0.0
        %4642 = vmatpush1.xpose.msra.mxu0 0.0
        %4643 = vmatprep.subr.mxu0 0.0
        %4644 = vmatpush1.xpose.msra.mxu0 0.0
        %4645 = vmatprep.subr.mxu0 0.0
        %4646 = vmatpush1.xpose.msra.mxu0 0.0
        %4647 = vmatprep.subr.mxu0 0.0
        %4648 = vmatpush1.xpose.msra.mxu0 0.0
        %4649 = vmatprep.subr.mxu0 0.0
        %4650 = vmatpush1.xpose.msra.mxu0 0.0
        %4651 = vmatprep.subr.mxu0 0.0
        %4652 = vmatpush1.xpose.msra.mxu0 0.0
        %4653 = vmatprep.subr.mxu0 0.0
        %4654 = vmatpush1.xpose.msra.mxu0 0.0
        %4655 = vmatprep.subr.mxu0 0.0
        %4656 = vmatpush1.xpose.msra.mxu0 0.0
        %4657 = vmatprep.subr.mxu0 0.0
        %4658 = vmatpush1.xpose.msra.mxu0 0.0
        %4659 = vmatprep.subr.mxu0 0.0
        %4660 = vmatpush1.xpose.msra.mxu0 0.0
        %4661 = vmatprep.subr.mxu0 0.0
        %4662 = vmatpush1.xpose.msra.mxu0 0.0
        %4663 = vmatprep.subr.mxu0 0.0
        %4664 = vmatpush1.xpose.msra.mxu0 0.0
        %4665 = vmatprep.subr.mxu0 0.0
        %4666 = vmatpush1.xpose.msra.mxu0 0.0
        %4667 = vmatprep.subr.mxu0 0.0
        %4668 = vmatpush1.xpose.msra.mxu0 0.0
        %4669 = vmatprep.subr.mxu0 0.0
        %4670 = vmatpush1.xpose.msra.mxu0 0.0
        %4671 = vmatprep.subr.mxu0 0.0
        %4672 = vmatpush1.xpose.msra.mxu0 0.0
        %4673 = vmatprep.subr.mxu0 0.0
        %4674 = vmatpush1.xpose.msra.mxu0 0.0
        %4675 = vmatprep.subr.mxu0 0.0
        %4676 = vmatpush1.xpose.msra.mxu0 0.0
        %4677 = vmatprep.subr.mxu0 0.0
        %4678 = vmatpush1.xpose.msra.mxu0 0.0
        %4679 = vmatprep.subr.mxu0 0.0
        %4680 = vmatpush1.xpose.msra.mxu0 0.0
        %4681 = vmatprep.subr.mxu0 0.0
        %4682 = vmatpush1.xpose.msra.mxu0 0.0
        %4683 = vmatprep.subr.mxu0 0.0
        %4684 = vmatpush1.xpose.msra.mxu0 0.0
        %4685 = vmatprep.mubr.f32.mxu0 0.0
        %4686 = vmatmul.mubr.f32.gmra.mrb[0].mxu0 %v4619
        %v4687 = vpop.f32.mrb[0].mxu0
        %v4688 = vadd.f32 0.0, %v4687
        %v4689 = vpop.f32.mrb[0].mxu0
        %4690 = vdwg.mxu0
        %v4692 = vsel %vm511, %v4320, 0
        %4694 = vmatprep.subr.mxu0 0.0
        %4695 = vmatpush1.xpose.msra.mxu0 %v4224
        %4696 = vmatprep.subr.mxu0 0.0
        %4697 = vmatpush1.xpose.msra.mxu0 0.0
        %4698 = vmatprep.subr.mxu0 0.0
        %4699 = vmatpush1.xpose.msra.mxu0 0.0
        %4700 = vmatprep.subr.mxu0 0.0
        %4701 = vmatpush1.xpose.msra.mxu0 0.0
        %4702 = vmatprep.subr.mxu0 0.0
        %4703 = vmatpush1.xpose.msra.mxu0 0.0
        %4704 = vmatprep.subr.mxu0 0.0
        %4705 = vmatpush1.xpose.msra.mxu0 0.0
        %4706 = vmatprep.subr.mxu0 0.0
        %4707 = vmatpush1.xpose.msra.mxu0 0.0
        %4708 = vmatprep.subr.mxu0 0.0
        %4709 = vmatpush1.xpose.msra.mxu0 0.0
        %4710 = vmatprep.subr.mxu0 0.0
        %4711 = vmatpush1.xpose.msra.mxu0 0.0
        %4712 = vmatprep.subr.mxu0 0.0
        %4713 = vmatpush1.xpose.msra.mxu0 0.0
        %4714 = vmatprep.subr.mxu0 0.0
        %4715 = vmatpush1.xpose.msra.mxu0 0.0
        %4716 = vmatprep.subr.mxu0 0.0
        %4717 = vmatpush1.xpose.msra.mxu0 0.0
        %4718 = vmatprep.subr.mxu0 0.0
        %4719 = vmatpush1.xpose.msra.mxu0 0.0
        %4720 = vmatprep.subr.mxu0 0.0
        %4721 = vmatpush1.xpose.msra.mxu0 0.0
        %4722 = vmatprep.subr.mxu0 0.0
        %4723 = vmatpush1.xpose.msra.mxu0 0.0
        %4724 = vmatprep.subr.mxu0 0.0
        %4725 = vmatpush1.xpose.msra.mxu0 0.0
        %4726 = vmatprep.subr.mxu0 0.0
        %4727 = vmatpush1.xpose.msra.mxu0 0.0
        %4728 = vmatprep.subr.mxu0 0.0
        %4729 = vmatpush1.xpose.msra.mxu0 0.0
        %4730 = vmatprep.subr.mxu0 0.0
        %4731 = vmatpush1.xpose.msra.mxu0 0.0
        %4732 = vmatprep.subr.mxu0 0.0
        %4733 = vmatpush1.xpose.msra.mxu0 0.0
        %4734 = vmatprep.subr.mxu0 0.0
        %4735 = vmatpush1.xpose.msra.mxu0 0.0
        %4736 = vmatprep.subr.mxu0 0.0
        %4737 = vmatpush1.xpose.msra.mxu0 0.0
        %4738 = vmatprep.subr.mxu0 0.0
        %4739 = vmatpush1.xpose.msra.mxu0 0.0
        %4740 = vmatprep.subr.mxu0 0.0
        %4741 = vmatpush1.xpose.msra.mxu0 0.0
        %4742 = vmatprep.subr.mxu0 0.0
        %4743 = vmatpush1.xpose.msra.mxu0 0.0
        %4744 = vmatprep.subr.mxu0 0.0
        %4745 = vmatpush1.xpose.msra.mxu0 0.0
        %4746 = vmatprep.subr.mxu0 0.0
        %4747 = vmatpush1.xpose.msra.mxu0 0.0
        %4748 = vmatprep.subr.mxu0 0.0
        %4749 = vmatpush1.xpose.msra.mxu0 0.0
        %4750 = vmatprep.subr.mxu0 0.0
        %4751 = vmatpush1.xpose.msra.mxu0 0.0
        %4752 = vmatprep.subr.mxu0 0.0
        %4753 = vmatpush1.xpose.msra.mxu0 0.0
        %4754 = vmatprep.subr.mxu0 0.0
        %4755 = vmatpush1.xpose.msra.mxu0 0.0
        %4756 = vmatprep.subr.mxu0 0.0
        %4757 = vmatpush1.xpose.msra.mxu0 0.0
        %4758 = vmatprep.mubr.f32.mxu0 0.0
        %4759 = vmatmul.mubr.f32.gmra.mrb[0].mxu0 %v4692
        %v4760 = vpop.f32.mrb[0].mxu0
        %v4761 = vadd.f32 0.0, %v4760
        %v4762 = vpop.f32.mrb[0].mxu0
        %4763 = vdwg.mxu0
        %v4765 = vsel %vm511, %v4325, 0
        %4767 = vmatprep.subr.mxu0 0.0
        %4768 = vmatpush1.xpose.msra.mxu0 %v4227
        %4769 = vmatprep.subr.mxu0 0.0
        %4770 = vmatpush1.xpose.msra.mxu0 0.0
        %4771 = vmatprep.subr.mxu0 0.0
        %4772 = vmatpush1.xpose.msra.mxu0 0.0
        %4773 = vmatprep.subr.mxu0 0.0
        %4774 = vmatpush1.xpose.msra.mxu0 0.0
        %4775 = vmatprep.subr.mxu0 0.0
        %4776 = vmatpush1.xpose.msra.mxu0 0.0
        %4777 = vmatprep.subr.mxu0 0.0
        %4778 = vmatpush1.xpose.msra.mxu0 0.0
        %4779 = vmatprep.subr.mxu0 0.0
        %4780 = vmatpush1.xpose.msra.mxu0 0.0
        %4781 = vmatprep.subr.mxu0 0.0
        %4782 = vmatpush1.xpose.msra.mxu0 0.0
        %4783 = vmatprep.subr.mxu0 0.0
        %4784 = vmatpush1.xpose.msra.mxu0 0.0
        %4785 = vmatprep.subr.mxu0 0.0
        %4786 = vmatpush1.xpose.msra.mxu0 0.0
        %4787 = vmatprep.subr.mxu0 0.0
        %4788 = vmatpush1.xpose.msra.mxu0 0.0
        %4789 = vmatprep.subr.mxu0 0.0
        %4790 = vmatpush1.xpose.msra.mxu0 0.0
        %4791 = vmatprep.subr.mxu0 0.0
        %4792 = vmatpush1.xpose.msra.mxu0 0.0
        %4793 = vmatprep.subr.mxu0 0.0
        %4794 = vmatpush1.xpose.msra.mxu0 0.0
        %4795 = vmatprep.subr.mxu0 0.0
        %4796 = vmatpush1.xpose.msra.mxu0 0.0
        %4797 = vmatprep.subr.mxu0 0.0
        %4798 = vmatpush1.xpose.msra.mxu0 0.0
        %4799 = vmatprep.subr.mxu0 0.0
        %4800 = vmatpush1.xpose.msra.mxu0 0.0
        %4801 = vmatprep.subr.mxu0 0.0
        %4802 = vmatpush1.xpose.msra.mxu0 0.0
        %4803 = vmatprep.subr.mxu0 0.0
        %4804 = vmatpush1.xpose.msra.mxu0 0.0
        %4805 = vmatprep.subr.mxu0 0.0
        %4806 = vmatpush1.xpose.msra.mxu0 0.0
        %4807 = vmatprep.subr.mxu0 0.0
        %4808 = vmatpush1.xpose.msra.mxu0 0.0
        %4809 = vmatprep.subr.mxu0 0.0
        %4810 = vmatpush1.xpose.msra.mxu0 0.0
        %4811 = vmatprep.subr.mxu0 0.0
        %4812 = vmatpush1.xpose.msra.mxu0 0.0
        %4813 = vmatprep.subr.mxu0 0.0
        %4814 = vmatpush1.xpose.msra.mxu0 0.0
        %4815 = vmatprep.subr.mxu0 0.0
        %4816 = vmatpush1.xpose.msra.mxu0 0.0
        %4817 = vmatprep.subr.mxu0 0.0
        %4818 = vmatpush1.xpose.msra.mxu0 0.0
        %4819 = vmatprep.subr.mxu0 0.0
        %4820 = vmatpush1.xpose.msra.mxu0 0.0
        %4821 = vmatprep.subr.mxu0 0.0
        %4822 = vmatpush1.xpose.msra.mxu0 0.0
        %4823 = vmatprep.subr.mxu0 0.0
        %4824 = vmatpush1.xpose.msra.mxu0 0.0
        %4825 = vmatprep.subr.mxu0 0.0
        %4826 = vmatpush1.xpose.msra.mxu0 0.0
        %4827 = vmatprep.subr.mxu0 0.0
        %4828 = vmatpush1.xpose.msra.mxu0 0.0
        %4829 = vmatprep.subr.mxu0 0.0
        %4830 = vmatpush1.xpose.msra.mxu0 0.0
        %4831 = vmatprep.mubr.f32.mxu0 0.0
        %4832 = vmatmul.mubr.f32.gmra.mrb[0].mxu0 %v4765
        %v4833 = vpop.f32.mrb[0].mxu0
        %v4834 = vadd.f32 0.0, %v4833
        %v4835 = vpop.f32.mrb[0].mxu0
        %4836 = vdwg.mxu0
        %v4838 = vsel %vm511, %v4330, 0
        %4840 = vmatprep.subr.mxu0 0.0
        %4841 = vmatpush1.xpose.msra.mxu0 %v4230
        %4842 = vmatprep.subr.mxu0 0.0
        %4843 = vmatpush1.xpose.msra.mxu0 0.0
        %4844 = vmatprep.subr.mxu0 0.0
        %4845 = vmatpush1.xpose.msra.mxu0 0.0
        %4846 = vmatprep.subr.mxu0 0.0
        %4847 = vmatpush1.xpose.msra.mxu0 0.0
        %4848 = vmatprep.subr.mxu0 0.0
        %4849 = vmatpush1.xpose.msra.mxu0 0.0
        %4850 = vmatprep.subr.mxu0 0.0
        %4851 = vmatpush1.xpose.msra.mxu0 0.0
        %4852 = vmatprep.subr.mxu0 0.0
        %4853 = vmatpush1.xpose.msra.mxu0 0.0
        %4854 = vmatprep.subr.mxu0 0.0
        %4855 = vmatpush1.xpose.msra.mxu0 0.0
        %4856 = vmatprep.subr.mxu0 0.0
        %4857 = vmatpush1.xpose.msra.mxu0 0.0
        %4858 = vmatprep.subr.mxu0 0.0
        %4859 = vmatpush1.xpose.msra.mxu0 0.0
        %4860 = vmatprep.subr.mxu0 0.0
        %4861 = vmatpush1.xpose.msra.mxu0 0.0
        %4862 = vmatprep.subr.mxu0 0.0
        %4863 = vmatpush1.xpose.msra.mxu0 0.0
        %4864 = vmatprep.subr.mxu0 0.0
        %4865 = vmatpush1.xpose.msra.mxu0 0.0
        %4866 = vmatprep.subr.mxu0 0.0
        %4867 = vmatpush1.xpose.msra.mxu0 0.0
        %4868 = vmatprep.subr.mxu0 0.0
        %4869 = vmatpush1.xpose.msra.mxu0 0.0
        %4870 = vmatprep.subr.mxu0 0.0
        %4871 = vmatpush1.xpose.msra.mxu0 0.0
        %4872 = vmatprep.subr.mxu0 0.0
        %4873 = vmatpush1.xpose.msra.mxu0 0.0
        %4874 = vmatprep.subr.mxu0 0.0
        %4875 = vmatpush1.xpose.msra.mxu0 0.0
        %4876 = vmatprep.subr.mxu0 0.0
        %4877 = vmatpush1.xpose.msra.mxu0 0.0
        %4878 = vmatprep.subr.mxu0 0.0
        %4879 = vmatpush1.xpose.msra.mxu0 0.0
        %4880 = vmatprep.subr.mxu0 0.0
        %4881 = vmatpush1.xpose.msra.mxu0 0.0
        %4882 = vmatprep.subr.mxu0 0.0
        %4883 = vmatpush1.xpose.msra.mxu0 0.0
        %4884 = vmatprep.subr.mxu0 0.0
        %4885 = vmatpush1.xpose.msra.mxu0 0.0
        %4886 = vmatprep.subr.mxu0 0.0
        %4887 = vmatpush1.xpose.msra.mxu0 0.0
        %4888 = vmatprep.subr.mxu0 0.0
        %4889 = vmatpush1.xpose.msra.mxu0 0.0
        %4890 = vmatprep.subr.mxu0 0.0
        %4891 = vmatpush1.xpose.msra.mxu0 0.0
        %4892 = vmatprep.subr.mxu0 0.0
        %4893 = vmatpush1.xpose.msra.mxu0 0.0
        %4894 = vmatprep.subr.mxu0 0.0
        %4895 = vmatpush1.xpose.msra.mxu0 0.0
        %4896 = vmatprep.subr.mxu0 0.0
        %4897 = vmatpush1.xpose.msra.mxu0 0.0
        %4898 = vmatprep.subr.mxu0 0.0
        %4899 = vmatpush1.xpose.msra.mxu0 0.0
        %4900 = vmatprep.subr.mxu0 0.0
        %4901 = vmatpush1.xpose.msra.mxu0 0.0
        %4902 = vmatprep.subr.mxu0 0.0
        %4903 = vmatpush1.xpose.msra.mxu0 0.0
        %4904 = vmatprep.mubr.f32.mxu0 0.0
        %4905 = vmatmul.mubr.f32.gmra.mrb[0].mxu0 %v4838
        %v4906 = vpop.f32.mrb[0].mxu0
        %v4907 = vadd.f32 0.0, %v4906
        %v4908 = vpop.f32.mrb[0].mxu0
        %4909 = vdwg.mxu0
        %v4911 = vsel %vm511, %v4335, 0
        %4913 = vmatprep.subr.mxu0 0.0
        %4914 = vmatpush1.xpose.msra.mxu0 %v4233
        %4915 = vmatprep.subr.mxu0 0.0
        %4916 = vmatpush1.xpose.msra.mxu0 0.0
        %4917 = vmatprep.subr.mxu0 0.0
        %4918 = vmatpush1.xpose.msra.mxu0 0.0
        %4919 = vmatprep.subr.mxu0 0.0
        %4920 = vmatpush1.xpose.msra.mxu0 0.0
        %4921 = vmatprep.subr.mxu0 0.0
        %4922 = vmatpush1.xpose.msra.mxu0 0.0
        %4923 = vmatprep.subr.mxu0 0.0
        %4924 = vmatpush1.xpose.msra.mxu0 0.0
        %4925 = vmatprep.subr.mxu0 0.0
        %4926 = vmatpush1.xpose.msra.mxu0 0.0
        %4927 = vmatprep.subr.mxu0 0.0
        %4928 = vmatpush1.xpose.msra.mxu0 0.0
        %4929 = vmatprep.subr.mxu0 0.0
        %4930 = vmatpush1.xpose.msra.mxu0 0.0
        %4931 = vmatprep.subr.mxu0 0.0
        %4932 = vmatpush1.xpose.msra.mxu0 0.0
        %4933 = vmatprep.subr.mxu0 0.0
        %4934 = vmatpush1.xpose.msra.mxu0 0.0
        %4935 = vmatprep.subr.mxu0 0.0
        %4936 = vmatpush1.xpose.msra.mxu0 0.0
        %4937 = vmatprep.subr.mxu0 0.0
        %4938 = vmatpush1.xpose.msra.mxu0 0.0
        %4939 = vmatprep.subr.mxu0 0.0
        %4940 = vmatpush1.xpose.msra.mxu0 0.0
        %4941 = vmatprep.subr.mxu0 0.0
        %4942 = vmatpush1.xpose.msra.mxu0 0.0
        %4943 = vmatprep.subr.mxu0 0.0
        %4944 = vmatpush1.xpose.msra.mxu0 0.0
        %4945 = vmatprep.subr.mxu0 0.0
        %4946 = vmatpush1.xpose.msra.mxu0 0.0
        %4947 = vmatprep.subr.mxu0 0.0
        %4948 = vmatpush1.xpose.msra.mxu0 0.0
        %4949 = vmatprep.subr.mxu0 0.0
        %4950 = vmatpush1.xpose.msra.mxu0 0.0
        %4951 = vmatprep.subr.mxu0 0.0
        %4952 = vmatpush1.xpose.msra.mxu0 0.0
        %4953 = vmatprep.subr.mxu0 0.0
        %4954 = vmatpush1.xpose.msra.mxu0 0.0
        %4955 = vmatprep.subr.mxu0 0.0
        %4956 = vmatpush1.xpose.msra.mxu0 0.0
        %4957 = vmatprep.subr.mxu0 0.0
        %4958 = vmatpush1.xpose.msra.mxu0 0.0
        %4959 = vmatprep.subr.mxu0 0.0
        %4960 = vmatpush1.xpose.msra.mxu0 0.0
        %4961 = vmatprep.subr.mxu0 0.0
        %4962 = vmatpush1.xpose.msra.mxu0 0.0
        %4963 = vmatprep.subr.mxu0 0.0
        %4964 = vmatpush1.xpose.msra.mxu0 0.0
        %4965 = vmatprep.subr.mxu0 0.0
        %4966 = vmatpush1.xpose.msra.mxu0 0.0
        %4967 = vmatprep.subr.mxu0 0.0
        %4968 = vmatpush1.xpose.msra.mxu0 0.0
        %4969 = vmatprep.subr.mxu0 0.0
        %4970 = vmatpush1.xpose.msra.mxu0 0.0
        %4971 = vmatprep.subr.mxu0 0.0
        %4972 = vmatpush1.xpose.msra.mxu0 0.0
        %4973 = vmatprep.subr.mxu0 0.0
        %4974 = vmatpush1.xpose.msra.mxu0 0.0
        %4975 = vmatprep.subr.mxu0 0.0
        %4976 = vmatpush1.xpose.msra.mxu0 0.0
        %4977 = vmatprep.mubr.f32.mxu0 0.0
        %4978 = vmatmul.mubr.f32.gmra.mrb[0].mxu0 %v4911
        %v4979 = vpop.f32.mrb[0].mxu0
        %v4980 = vadd.f32 0.0, %v4979
        %v4981 = vpop.f32.mrb[0].mxu0
        %4982 = vdwg.mxu0
        %v4984 = vsel %vm511, %v4340, 0
        %4986 = vmatprep.subr.mxu0 0.0
        %4987 = vmatpush1.xpose.msra.mxu0 %v4236
        %4988 = vmatprep.subr.mxu0 0.0
        %4989 = vmatpush1.xpose.msra.mxu0 0.0
        %4990 = vmatprep.subr.mxu0 0.0
        %4991 = vmatpush1.xpose.msra.mxu0 0.0
        %4992 = vmatprep.subr.mxu0 0.0
        %4993 = vmatpush1.xpose.msra.mxu0 0.0
        %4994 = vmatprep.subr.mxu0 0.0
        %4995 = vmatpush1.xpose.msra.mxu0 0.0
        %4996 = vmatprep.subr.mxu0 0.0
        %4997 = vmatpush1.xpose.msra.mxu0 0.0
        %4998 = vmatprep.subr.mxu0 0.0
        %4999 = vmatpush1.xpose.msra.mxu0 0.0
        %5000 = vmatprep.subr.mxu0 0.0
        %5001 = vmatpush1.xpose.msra.mxu0 0.0
        %5002 = vmatprep.subr.mxu0 0.0
        %5003 = vmatpush1.xpose.msra.mxu0 0.0
        %5004 = vmatprep.subr.mxu0 0.0
        %5005 = vmatpush1.xpose.msra.mxu0 0.0
        %5006 = vmatprep.subr.mxu0 0.0
        %5007 = vmatpush1.xpose.msra.mxu0 0.0
        %5008 = vmatprep.subr.mxu0 0.0
        %5009 = vmatpush1.xpose.msra.mxu0 0.0
        %5010 = vmatprep.subr.mxu0 0.0
        %5011 = vmatpush1.xpose.msra.mxu0 0.0
        %5012 = vmatprep.subr.mxu0 0.0
        %5013 = vmatpush1.xpose.msra.mxu0 0.0
        %5014 = vmatprep.subr.mxu0 0.0
        %5015 = vmatpush1.xpose.msra.mxu0 0.0
        %5016 = vmatprep.subr.mxu0 0.0
        %5017 = vmatpush1.xpose.msra.mxu0 0.0
        %5018 = vmatprep.subr.mxu0 0.0
        %5019 = vmatpush1.xpose.msra.mxu0 0.0
        %5020 = vmatprep.subr.mxu0 0.0
        %5021 = vmatpush1.xpose.msra.mxu0 0.0
        %5022 = vmatprep.subr.mxu0 0.0
        %5023 = vmatpush1.xpose.msra.mxu0 0.0
        %5024 = vmatprep.subr.mxu0 0.0
        %5025 = vmatpush1.xpose.msra.mxu0 0.0
        %5026 = vmatprep.subr.mxu0 0.0
        %5027 = vmatpush1.xpose.msra.mxu0 0.0
        %5028 = vmatprep.subr.mxu0 0.0
        %5029 = vmatpush1.xpose.msra.mxu0 0.0
        %5030 = vmatprep.subr.mxu0 0.0
        %5031 = vmatpush1.xpose.msra.mxu0 0.0
        %5032 = vmatprep.subr.mxu0 0.0
        %5033 = vmatpush1.xpose.msra.mxu0 0.0
        %5034 = vmatprep.subr.mxu0 0.0
        %5035 = vmatpush1.xpose.msra.mxu0 0.0
        %5036 = vmatprep.subr.mxu0 0.0
        %5037 = vmatpush1.xpose.msra.mxu0 0.0
        %5038 = vmatprep.subr.mxu0 0.0
        %5039 = vmatpush1.xpose.msra.mxu0 0.0
        %5040 = vmatprep.subr.mxu0 0.0
        %5041 = vmatpush1.xpose.msra.mxu0 0.0
        %5042 = vmatprep.subr.mxu0 0.0
        %5043 = vmatpush1.xpose.msra.mxu0 0.0
        %5044 = vmatprep.subr.mxu0 0.0
        %5045 = vmatpush1.xpose.msra.mxu0 0.0
        %5046 = vmatprep.subr.mxu0 0.0
        %5047 = vmatpush1.xpose.msra.mxu0 0.0
        %5048 = vmatprep.subr.mxu0 0.0
        %5049 = vmatpush1.xpose.msra.mxu0 0.0
        %5050 = vmatprep.mubr.f32.mxu0 0.0
        %5051 = vmatmul.mubr.f32.gmra.mrb[0].mxu0 %v4984
        %v5052 = vpop.f32.mrb[0].mxu0
        %v5053 = vadd.f32 0.0, %v5052
        %v5054 = vpop.f32.mrb[0].mxu0
        %5055 = vdwg.mxu0
        %v5057 = vsel %vm511, %v4434, 0
        %5059 = vmatprep.subr.mxu0 0.0
        %5060 = vmatpush1.xpose.msra.mxu0 %v4344
        %5061 = vmatprep.subr.mxu0 0.0
        %5062 = vmatpush1.xpose.msra.mxu0 0.0
        %5063 = vmatprep.subr.mxu0 0.0
        %5064 = vmatpush1.xpose.msra.mxu0 0.0
        %5065 = vmatprep.subr.mxu0 0.0
        %5066 = vmatpush1.xpose.msra.mxu0 0.0
        %5067 = vmatprep.subr.mxu0 0.0
        %5068 = vmatpush1.xpose.msra.mxu0 0.0
        %5069 = vmatprep.subr.mxu0 0.0
        %5070 = vmatpush1.xpose.msra.mxu0 0.0
        %5071 = vmatprep.subr.mxu0 0.0
        %5072 = vmatpush1.xpose.msra.mxu0 0.0
        %5073 = vmatprep.subr.mxu0 0.0
        %5074 = vmatpush1.xpose.msra.mxu0 0.0
        %5075 = vmatprep.subr.mxu0 0.0
        %5076 = vmatpush1.xpose.msra.mxu0 0.0
        %5077 = vmatprep.subr.mxu0 0.0
        %5078 = vmatpush1.xpose.msra.mxu0 0.0
        %5079 = vmatprep.subr.mxu0 0.0
        %5080 = vmatpush1.xpose.msra.mxu0 0.0
        %5081 = vmatprep.subr.mxu0 0.0
        %5082 = vmatpush1.xpose.msra.mxu0 0.0
        %5083 = vmatprep.subr.mxu0 0.0
        %5084 = vmatpush1.xpose.msra.mxu0 0.0
        %5085 = vmatprep.subr.mxu0 0.0
        %5086 = vmatpush1.xpose.msra.mxu0 0.0
        %5087 = vmatprep.subr.mxu0 0.0
        %5088 = vmatpush1.xpose.msra.mxu0 0.0
        %5089 = vmatprep.subr.mxu0 0.0
        %5090 = vmatpush1.xpose.msra.mxu0 0.0
        %5091 = vmatprep.subr.mxu0 0.0
        %5092 = vmatpush1.xpose.msra.mxu0 0.0
        %5093 = vmatprep.subr.mxu0 0.0
        %5094 = vmatpush1.xpose.msra.mxu0 0.0
        %5095 = vmatprep.subr.mxu0 0.0
        %5096 = vmatpush1.xpose.msra.mxu0 0.0
        %5097 = vmatprep.subr.mxu0 0.0
        %5098 = vmatpush1.xpose.msra.mxu0 0.0
        %5099 = vmatprep.subr.mxu0 0.0
        %5100 = vmatpush1.xpose.msra.mxu0 0.0
        %5101 = vmatprep.subr.mxu0 0.0
        %5102 = vmatpush1.xpose.msra.mxu0 0.0
        %5103 = vmatprep.subr.mxu0 0.0
        %5104 = vmatpush1.xpose.msra.mxu0 0.0
        %5105 = vmatprep.subr.mxu0 0.0
        %5106 = vmatpush1.xpose.msra.mxu0 0.0
        %5107 = vmatprep.subr.mxu0 0.0
        %5108 = vmatpush1.xpose.msra.mxu0 0.0
        %5109 = vmatprep.subr.mxu0 0.0
        %5110 = vmatpush1.xpose.msra.mxu0 0.0
        %5111 = vmatprep.subr.mxu0 0.0
        %5112 = vmatpush1.xpose.msra.mxu0 0.0
        %5113 = vmatprep.subr.mxu0 0.0
        %5114 = vmatpush1.xpose.msra.mxu0 0.0
        %5115 = vmatprep.subr.mxu0 0.0
        %5116 = vmatpush1.xpose.msra.mxu0 0.0
        %5117 = vmatprep.subr.mxu0 0.0
        %5118 = vmatpush1.xpose.msra.mxu0 0.0
        %5119 = vmatprep.subr.mxu0 0.0
        %5120 = vmatpush1.xpose.msra.mxu0 0.0
        %5121 = vmatprep.subr.mxu0 0.0
        %5122 = vmatpush1.xpose.msra.mxu0 0.0
        %5123 = vmatprep.mubr.f32.mxu0 0.0
        %5124 = vmatmul.mubr.f32.gmra.mrb[0].mxu0 %v5057
        %v5125 = vpop.f32.mrb[0].mxu0
        %v5126 = vadd.f32 0.0, %v5125
        %v5127 = vpop.f32.mrb[0].mxu0
        %5128 = vdwg.mxu0
        %v5130 = vsel %vm511, %v4439, 0
        %5132 = vmatprep.subr.mxu0 0.0
        %5133 = vmatpush1.xpose.msra.mxu0 %v4347
        %5134 = vmatprep.subr.mxu0 0.0
        %5135 = vmatpush1.xpose.msra.mxu0 0.0
        %5136 = vmatprep.subr.mxu0 0.0
        %5137 = vmatpush1.xpose.msra.mxu0 0.0
        %5138 = vmatprep.subr.mxu0 0.0
        %5139 = vmatpush1.xpose.msra.mxu0 0.0
        %5140 = vmatprep.subr.mxu0 0.0
        %5141 = vmatpush1.xpose.msra.mxu0 0.0
        %5142 = vmatprep.subr.mxu0 0.0
        %5143 = vmatpush1.xpose.msra.mxu0 0.0
        %5144 = vmatprep.subr.mxu0 0.0
        %5145 = vmatpush1.xpose.msra.mxu0 0.0
        %5146 = vmatprep.subr.mxu0 0.0
        %5147 = vmatpush1.xpose.msra.mxu0 0.0
        %5148 = vmatprep.subr.mxu0 0.0
        %5149 = vmatpush1.xpose.msra.mxu0 0.0
        %5150 = vmatprep.subr.mxu0 0.0
        %5151 = vmatpush1.xpose.msra.mxu0 0.0
        %5152 = vmatprep.subr.mxu0 0.0
        %5153 = vmatpush1.xpose.msra.mxu0 0.0
        %5154 = vmatprep.subr.mxu0 0.0
        %5155 = vmatpush1.xpose.msra.mxu0 0.0
        %5156 = vmatprep.subr.mxu0 0.0
        %5157 = vmatpush1.xpose.msra.mxu0 0.0
        %5158 = vmatprep.subr.mxu0 0.0
        %5159 = vmatpush1.xpose.msra.mxu0 0.0
        %5160 = vmatprep.subr.mxu0 0.0
        %5161 = vmatpush1.xpose.msra.mxu0 0.0
        %5162 = vmatprep.subr.mxu0 0.0
        %5163 = vmatpush1.xpose.msra.mxu0 0.0
        %5164 = vmatprep.subr.mxu0 0.0
        %5165 = vmatpush1.xpose.msra.mxu0 0.0
        %5166 = vmatprep.subr.mxu0 0.0
        %5167 = vmatpush1.xpose.msra.mxu0 0.0
        %5168 = vmatprep.subr.mxu0 0.0
        %5169 = vmatpush1.xpose.msra.mxu0 0.0
        %5170 = vmatprep.subr.mxu0 0.0
        %5171 = vmatpush1.xpose.msra.mxu0 0.0
        %5172 = vmatprep.subr.mxu0 0.0
        %5173 = vmatpush1.xpose.msra.mxu0 0.0
        %5174 = vmatprep.subr.mxu0 0.0
        %5175 = vmatpush1.xpose.msra.mxu0 0.0
        %5176 = vmatprep.subr.mxu0 0.0
        %5177 = vmatpush1.xpose.msra.mxu0 0.0
        %5178 = vmatprep.subr.mxu0 0.0
        %5179 = vmatpush1.xpose.msra.mxu0 0.0
        %5180 = vmatprep.subr.mxu0 0.0
        %5181 = vmatpush1.xpose.msra.mxu0 0.0
        %5182 = vmatprep.subr.mxu0 0.0
        %5183 = vmatpush1.xpose.msra.mxu0 0.0
        %5184 = vmatprep.subr.mxu0 0.0
        %5185 = vmatpush1.xpose.msra.mxu0 0.0
        %5186 = vmatprep.subr.mxu0 0.0
        %5187 = vmatpush1.xpose.msra.mxu0 0.0
        %5188 = vmatprep.subr.mxu0 0.0
        %5189 = vmatpush1.xpose.msra.mxu0 0.0
        %5190 = vmatprep.subr.mxu0 0.0
        %5191 = vmatpush1.xpose.msra.mxu0 0.0
        %5192 = vmatprep.subr.mxu0 0.0
        %5193 = vmatpush1.xpose.msra.mxu0 0.0
        %5194 = vmatprep.subr.mxu0 0.0
        %5195 = vmatpush1.xpose.msra.mxu0 0.0
        %5196 = vmatprep.mubr.f32.mxu0 0.0
        %5197 = vmatmul.mubr.f32.gmra.mrb[0].mxu0 %v5130
        %v5198 = vpop.f32.mrb[0].mxu0
        %v5199 = vadd.f32 0.0, %v5198
        %v5200 = vpop.f32.mrb[0].mxu0
        %5201 = vdwg.mxu0
        %v5203 = vsel %vm511, %v4444, 0
        %5205 = vmatprep.subr.mxu0 0.0
        %5206 = vmatpush1.xpose.msra.mxu0 %v4350
        %5207 = vmatprep.subr.mxu0 0.0
        %5208 = vmatpush1.xpose.msra.mxu0 0.0
        %5209 = vmatprep.subr.mxu0 0.0
        %5210 = vmatpush1.xpose.msra.mxu0 0.0
        %5211 = vmatprep.subr.mxu0 0.0
        %5212 = vmatpush1.xpose.msra.mxu0 0.0
        %5213 = vmatprep.subr.mxu0 0.0
        %5214 = vmatpush1.xpose.msra.mxu0 0.0
        %5215 = vmatprep.subr.mxu0 0.0
        %5216 = vmatpush1.xpose.msra.mxu0 0.0
        %5217 = vmatprep.subr.mxu0 0.0
        %5218 = vmatpush1.xpose.msra.mxu0 0.0
        %5219 = vmatprep.subr.mxu0 0.0
        %5220 = vmatpush1.xpose.msra.mxu0 0.0
        %5221 = vmatprep.subr.mxu0 0.0
        %5222 = vmatpush1.xpose.msra.mxu0 0.0
        %5223 = vmatprep.subr.mxu0 0.0
        %5224 = vmatpush1.xpose.msra.mxu0 0.0
        %5225 = vmatprep.subr.mxu0 0.0
        %5226 = vmatpush1.xpose.msra.mxu0 0.0
        %5227 = vmatprep.subr.mxu0 0.0
        %5228 = vmatpush1.xpose.msra.mxu0 0.0
        %5229 = vmatprep.subr.mxu0 0.0
        %5230 = vmatpush1.xpose.msra.mxu0 0.0
        %5231 = vmatprep.subr.mxu0 0.0
        %5232 = vmatpush1.xpose.msra.mxu0 0.0
        %5233 = vmatprep.subr.mxu0 0.0
        %5234 = vmatpush1.xpose.msra.mxu0 0.0
        %5235 = vmatprep.subr.mxu0 0.0
        %5236 = vmatpush1.xpose.msra.mxu0 0.0
        %5237 = vmatprep.subr.mxu0 0.0
        %5238 = vmatpush1.xpose.msra.mxu0 0.0
        %5239 = vmatprep.subr.mxu0 0.0
        %5240 = vmatpush1.xpose.msra.mxu0 0.0
        %5241 = vmatprep.subr.mxu0 0.0
        %5242 = vmatpush1.xpose.msra.mxu0 0.0
        %5243 = vmatprep.subr.mxu0 0.0
        %5244 = vmatpush1.xpose.msra.mxu0 0.0
        %5245 = vmatprep.subr.mxu0 0.0
        %5246 = vmatpush1.xpose.msra.mxu0 0.0
        %5247 = vmatprep.subr.mxu0 0.0
        %5248 = vmatpush1.xpose.msra.mxu0 0.0
        %5249 = vmatprep.subr.mxu0 0.0
        %5250 = vmatpush1.xpose.msra.mxu0 0.0
        %5251 = vmatprep.subr.mxu0 0.0
        %5252 = vmatpush1.xpose.msra.mxu0 0.0
        %5253 = vmatprep.subr.mxu0 0.0
        %5254 = vmatpush1.xpose.msra.mxu0 0.0
        %5255 = vmatprep.subr.mxu0 0.0
        %5256 = vmatpush1.xpose.msra.mxu0 0.0
        %5257 = vmatprep.subr.mxu0 0.0
        %5258 = vmatpush1.xpose.msra.mxu0 0.0
        %5259 = vmatprep.subr.mxu0 0.0
        %5260 = vmatpush1.xpose.msra.mxu0 0.0
        %5261 = vmatprep.subr.mxu0 0.0
        %5262 = vmatpush1.xpose.msra.mxu0 0.0
        %5263 = vmatprep.subr.mxu0 0.0
        %5264 = vmatpush1.xpose.msra.mxu0 0.0
        %5265 = vmatprep.subr.mxu0 0.0
        %5266 = vmatpush1.xpose.msra.mxu0 0.0
        %5267 = vmatprep.subr.mxu0 0.0
        %5268 = vmatpush1.xpose.msra.mxu0 0.0
        %5269 = vmatprep.mubr.f32.mxu0 0.0
        %5270 = vmatmul.mubr.f32.gmra.mrb[0].mxu0 %v5203
        %v5271 = vpop.f32.mrb[0].mxu0
        %v5272 = vadd.f32 0.0, %v5271
        %v5273 = vpop.f32.mrb[0].mxu0
        %5274 = vdwg.mxu0
        %v5276 = vsel %vm511, %v4449, 0
        %5278 = vmatprep.subr.mxu0 0.0
        %5279 = vmatpush1.xpose.msra.mxu0 %v4353
        %5280 = vmatprep.subr.mxu0 0.0
        %5281 = vmatpush1.xpose.msra.mxu0 0.0
        %5282 = vmatprep.subr.mxu0 0.0
        %5283 = vmatpush1.xpose.msra.mxu0 0.0
        %5284 = vmatprep.subr.mxu0 0.0
        %5285 = vmatpush1.xpose.msra.mxu0 0.0
        %5286 = vmatprep.subr.mxu0 0.0
        %5287 = vmatpush1.xpose.msra.mxu0 0.0
        %5288 = vmatprep.subr.mxu0 0.0
        %5289 = vmatpush1.xpose.msra.mxu0 0.0
        %5290 = vmatprep.subr.mxu0 0.0
        %5291 = vmatpush1.xpose.msra.mxu0 0.0
        %5292 = vmatprep.subr.mxu0 0.0
        %5293 = vmatpush1.xpose.msra.mxu0 0.0
        %5294 = vmatprep.subr.mxu0 0.0
        %5295 = vmatpush1.xpose.msra.mxu0 0.0
        %5296 = vmatprep.subr.mxu0 0.0
        %5297 = vmatpush1.xpose.msra.mxu0 0.0
        %5298 = vmatprep.subr.mxu0 0.0
        %5299 = vmatpush1.xpose.msra.mxu0 0.0
        %5300 = vmatprep.subr.mxu0 0.0
        %5301 = vmatpush1.xpose.msra.mxu0 0.0
        %5302 = vmatprep.subr.mxu0 0.0
        %5303 = vmatpush1.xpose.msra.mxu0 0.0
        %5304 = vmatprep.subr.mxu0 0.0
        %5305 = vmatpush1.xpose.msra.mxu0 0.0
        %5306 = vmatprep.subr.mxu0 0.0
        %5307 = vmatpush1.xpose.msra.mxu0 0.0
        %5308 = vmatprep.subr.mxu0 0.0
        %5309 = vmatpush1.xpose.msra.mxu0 0.0
        %5310 = vmatprep.subr.mxu0 0.0
        %5311 = vmatpush1.xpose.msra.mxu0 0.0
        %5312 = vmatprep.subr.mxu0 0.0
        %5313 = vmatpush1.xpose.msra.mxu0 0.0
        %5314 = vmatprep.subr.mxu0 0.0
        %5315 = vmatpush1.xpose.msra.mxu0 0.0
        %5316 = vmatprep.subr.mxu0 0.0
        %5317 = vmatpush1.xpose.msra.mxu0 0.0
        %5318 = vmatprep.subr.mxu0 0.0
        %5319 = vmatpush1.xpose.msra.mxu0 0.0
        %5320 = vmatprep.subr.mxu0 0.0
        %5321 = vmatpush1.xpose.msra.mxu0 0.0
        %5322 = vmatprep.subr.mxu0 0.0
        %5323 = vmatpush1.xpose.msra.mxu0 0.0
        %5324 = vmatprep.subr.mxu0 0.0
        %5325 = vmatpush1.xpose.msra.mxu0 0.0
        %5326 = vmatprep.subr.mxu0 0.0
        %5327 = vmatpush1.xpose.msra.mxu0 0.0
        %5328 = vmatprep.subr.mxu0 0.0
        %5329 = vmatpush1.xpose.msra.mxu0 0.0
        %5330 = vmatprep.subr.mxu0 0.0
        %5331 = vmatpush1.xpose.msra.mxu0 0.0
        %5332 = vmatprep.subr.mxu0 0.0
        %5333 = vmatpush1.xpose.msra.mxu0 0.0
        %5334 = vmatprep.subr.mxu0 0.0
        %5335 = vmatpush1.xpose.msra.mxu0 0.0
        %5336 = vmatprep.subr.mxu0 0.0
        %5337 = vmatpush1.xpose.msra.mxu0 0.0
        %5338 = vmatprep.subr.mxu0 0.0
        %5339 = vmatpush1.xpose.msra.mxu0 0.0
        %5340 = vmatprep.subr.mxu0 0.0
        %5341 = vmatpush1.xpose.msra.mxu0 0.0
        %5342 = vmatprep.mubr.f32.mxu0 0.0
        %5343 = vmatmul.mubr.f32.gmra.mrb[0].mxu0 %v5276
        %v5344 = vpop.f32.mrb[0].mxu0
        %v5345 = vadd.f32 0.0, %v5344
        %v5346 = vpop.f32.mrb[0].mxu0
        %5347 = vdwg.mxu0
        %v5349 = vsel %vm511, %v4454, 0
        %5351 = vmatprep.subr.mxu0 0.0
        %5352 = vmatpush1.xpose.msra.mxu0 %v4356
        %5353 = vmatprep.subr.mxu0 0.0
        %5354 = vmatpush1.xpose.msra.mxu0 0.0
        %5355 = vmatprep.subr.mxu0 0.0
        %5356 = vmatpush1.xpose.msra.mxu0 0.0
        %5357 = vmatprep.subr.mxu0 0.0
        %5358 = vmatpush1.xpose.msra.mxu0 0.0
        %5359 = vmatprep.subr.mxu0 0.0
        %5360 = vmatpush1.xpose.msra.mxu0 0.0
        %5361 = vmatprep.subr.mxu0 0.0
        %5362 = vmatpush1.xpose.msra.mxu0 0.0
        %5363 = vmatprep.subr.mxu0 0.0
        %5364 = vmatpush1.xpose.msra.mxu0 0.0
        %5365 = vmatprep.subr.mxu0 0.0
        %5366 = vmatpush1.xpose.msra.mxu0 0.0
        %5367 = vmatprep.subr.mxu0 0.0
        %5368 = vmatpush1.xpose.msra.mxu0 0.0
        %5369 = vmatprep.subr.mxu0 0.0
        %5370 = vmatpush1.xpose.msra.mxu0 0.0
        %5371 = vmatprep.subr.mxu0 0.0
        %5372 = vmatpush1.xpose.msra.mxu0 0.0
        %5373 = vmatprep.subr.mxu0 0.0
        %5374 = vmatpush1.xpose.msra.mxu0 0.0
        %5375 = vmatprep.subr.mxu0 0.0
        %5376 = vmatpush1.xpose.msra.mxu0 0.0
        %5377 = vmatprep.subr.mxu0 0.0
        %5378 = vmatpush1.xpose.msra.mxu0 0.0
        %5379 = vmatprep.subr.mxu0 0.0
        %5380 = vmatpush1.xpose.msra.mxu0 0.0
        %5381 = vmatprep.subr.mxu0 0.0
        %5382 = vmatpush1.xpose.msra.mxu0 0.0
        %5383 = vmatprep.subr.mxu0 0.0
        %5384 = vmatpush1.xpose.msra.mxu0 0.0
        %5385 = vmatprep.subr.mxu0 0.0
        %5386 = vmatpush1.xpose.msra.mxu0 0.0
        %5387 = vmatprep.subr.mxu0 0.0
        %5388 = vmatpush1.xpose.msra.mxu0 0.0
        %5389 = vmatprep.subr.mxu0 0.0
        %5390 = vmatpush1.xpose.msra.mxu0 0.0
        %5391 = vmatprep.subr.mxu0 0.0
        %5392 = vmatpush1.xpose.msra.mxu0 0.0
        %5393 = vmatprep.subr.mxu0 0.0
        %5394 = vmatpush1.xpose.msra.mxu0 0.0
        %5395 = vmatprep.subr.mxu0 0.0
        %5396 = vmatpush1.xpose.msra.mxu0 0.0
        %5397 = vmatprep.subr.mxu0 0.0
        %5398 = vmatpush1.xpose.msra.mxu0 0.0
        %5399 = vmatprep.subr.mxu0 0.0
        %5400 = vmatpush1.xpose.msra.mxu0 0.0
        %5401 = vmatprep.subr.mxu0 0.0
        %5402 = vmatpush1.xpose.msra.mxu0 0.0
        %5403 = vmatprep.subr.mxu0 0.0
        %5404 = vmatpush1.xpose.msra.mxu0 0.0
        %5405 = vmatprep.subr.mxu0 0.0
        %5406 = vmatpush1.xpose.msra.mxu0 0.0
        %5407 = vmatprep.subr.mxu0 0.0
        %5408 = vmatpush1.xpose.msra.mxu0 0.0
        %5409 = vmatprep.subr.mxu0 0.0
        %5410 = vmatpush1.xpose.msra.mxu0 0.0
        %5411 = vmatprep.subr.mxu0 0.0
        %5412 = vmatpush1.xpose.msra.mxu0 0.0
        %5413 = vmatprep.subr.mxu0 0.0
        %5414 = vmatpush1.xpose.msra.mxu0 0.0
        %5415 = vmatprep.mubr.f32.mxu0 0.0
        %5416 = vmatmul.mubr.f32.gmra.mrb[0].mxu0 %v5349
        %v5417 = vpop.f32.mrb[0].mxu0
        %v5418 = vadd.f32 0.0, %v5417
        %v5419 = vpop.f32.mrb[0].mxu0
        %5420 = vdwg.mxu0
        %v5422 = vsel %vm511, %v4459, 0
        %5424 = vmatprep.subr.mxu0 0.0
        %5425 = vmatpush1.xpose.msra.mxu0 %v4359
        %5426 = vmatprep.subr.mxu0 0.0
        %5427 = vmatpush1.xpose.msra.mxu0 0.0
        %5428 = vmatprep.subr.mxu0 0.0
        %5429 = vmatpush1.xpose.msra.mxu0 0.0
        %5430 = vmatprep.subr.mxu0 0.0
        %5431 = vmatpush1.xpose.msra.mxu0 0.0
        %5432 = vmatprep.subr.mxu0 0.0
        %5433 = vmatpush1.xpose.msra.mxu0 0.0
        %5434 = vmatprep.subr.mxu0 0.0
        %5435 = vmatpush1.xpose.msra.mxu0 0.0
        %5436 = vmatprep.subr.mxu0 0.0
        %5437 = vmatpush1.xpose.msra.mxu0 0.0
        %5438 = vmatprep.subr.mxu0 0.0
        %5439 = vmatpush1.xpose.msra.mxu0 0.0
        %5440 = vmatprep.subr.mxu0 0.0
        %5441 = vmatpush1.xpose.msra.mxu0 0.0
        %5442 = vmatprep.subr.mxu0 0.0
        %5443 = vmatpush1.xpose.msra.mxu0 0.0
        %5444 = vmatprep.subr.mxu0 0.0
        %5445 = vmatpush1.xpose.msra.mxu0 0.0
        %5446 = vmatprep.subr.mxu0 0.0
        %5447 = vmatpush1.xpose.msra.mxu0 0.0
        %5448 = vmatprep.subr.mxu0 0.0
        %5449 = vmatpush1.xpose.msra.mxu0 0.0
        %5450 = vmatprep.subr.mxu0 0.0
        %5451 = vmatpush1.xpose.msra.mxu0 0.0
        %5452 = vmatprep.subr.mxu0 0.0
        %5453 = vmatpush1.xpose.msra.mxu0 0.0
        %5454 = vmatprep.subr.mxu0 0.0
        %5455 = vmatpush1.xpose.msra.mxu0 0.0
        %5456 = vmatprep.subr.mxu0 0.0
        %5457 = vmatpush1.xpose.msra.mxu0 0.0
        %5458 = vmatprep.subr.mxu0 0.0
        %5459 = vmatpush1.xpose.msra.mxu0 0.0
        %5460 = vmatprep.subr.mxu0 0.0
        %5461 = vmatpush1.xpose.msra.mxu0 0.0
        %5462 = vmatprep.subr.mxu0 0.0
        %5463 = vmatpush1.xpose.msra.mxu0 0.0
        %5464 = vmatprep.subr.mxu0 0.0
        %5465 = vmatpush1.xpose.msra.mxu0 0.0
        %5466 = vmatprep.subr.mxu0 0.0
        %5467 = vmatpush1.xpose.msra.mxu0 0.0
        %5468 = vmatprep.subr.mxu0 0.0
        %5469 = vmatpush1.xpose.msra.mxu0 0.0
        %5470 = vmatprep.subr.mxu0 0.0
        %5471 = vmatpush1.xpose.msra.mxu0 0.0
        %5472 = vmatprep.subr.mxu0 0.0
        %5473 = vmatpush1.xpose.msra.mxu0 0.0
        %5474 = vmatprep.subr.mxu0 0.0
        %5475 = vmatpush1.xpose.msra.mxu0 0.0
        %5476 = vmatprep.subr.mxu0 0.0
        %5477 = vmatpush1.xpose.msra.mxu0 0.0
        %5478 = vmatprep.subr.mxu0 0.0
        %5479 = vmatpush1.xpose.msra.mxu0 0.0
        %5480 = vmatprep.subr.mxu0 0.0
        %5481 = vmatpush1.xpose.msra.mxu0 0.0
        %5482 = vmatprep.subr.mxu0 0.0
        %5483 = vmatpush1.xpose.msra.mxu0 0.0
        %5484 = vmatprep.subr.mxu0 0.0
        %5485 = vmatpush1.xpose.msra.mxu0 0.0
        %5486 = vmatprep.subr.mxu0 0.0
        %5487 = vmatpush1.xpose.msra.mxu0 0.0
        %5488 = vmatprep.mubr.f32.mxu0 0.0
        %5489 = vmatmul.mubr.f32.gmra.mrb[0].mxu0 %v5422
        %v5490 = vpop.f32.mrb[0].mxu0
        %v5491 = vadd.f32 0.0, %v5490
        %v5492 = vpop.f32.mrb[0].mxu0
        %5493 = vdwg.mxu0
        %v5495 = vsel %vm511, %v4464, 0
        %5497 = vmatprep.subr.mxu0 0.0
        %5498 = vmatpush1.xpose.msra.mxu0 %v4362
        %5499 = vmatprep.subr.mxu0 0.0
        %5500 = vmatpush1.xpose.msra.mxu0 0.0
        %5501 = vmatprep.subr.mxu0 0.0
        %5502 = vmatpush1.xpose.msra.mxu0 0.0
        %5503 = vmatprep.subr.mxu0 0.0
        %5504 = vmatpush1.xpose.msra.mxu0 0.0
        %5505 = vmatprep.subr.mxu0 0.0
        %5506 = vmatpush1.xpose.msra.mxu0 0.0
        %5507 = vmatprep.subr.mxu0 0.0
        %5508 = vmatpush1.xpose.msra.mxu0 0.0
        %5509 = vmatprep.subr.mxu0 0.0
        %5510 = vmatpush1.xpose.msra.mxu0 0.0
        %5511 = vmatprep.subr.mxu0 0.0
        %5512 = vmatpush1.xpose.msra.mxu0 0.0
        %5513 = vmatprep.subr.mxu0 0.0
        %5514 = vmatpush1.xpose.msra.mxu0 0.0
        %5515 = vmatprep.subr.mxu0 0.0
        %5516 = vmatpush1.xpose.msra.mxu0 0.0
        %5517 = vmatprep.subr.mxu0 0.0
        %5518 = vmatpush1.xpose.msra.mxu0 0.0
        %5519 = vmatprep.subr.mxu0 0.0
        %5520 = vmatpush1.xpose.msra.mxu0 0.0
        %5521 = vmatprep.subr.mxu0 0.0
        %5522 = vmatpush1.xpose.msra.mxu0 0.0
        %5523 = vmatprep.subr.mxu0 0.0
        %5524 = vmatpush1.xpose.msra.mxu0 0.0
        %5525 = vmatprep.subr.mxu0 0.0
        %5526 = vmatpush1.xpose.msra.mxu0 0.0
        %5527 = vmatprep.subr.mxu0 0.0
        %5528 = vmatpush1.xpose.msra.mxu0 0.0
        %5529 = vmatprep.subr.mxu0 0.0
        %5530 = vmatpush1.xpose.msra.mxu0 0.0
        %5531 = vmatprep.subr.mxu0 0.0
        %5532 = vmatpush1.xpose.msra.mxu0 0.0
        %5533 = vmatprep.subr.mxu0 0.0
        %5534 = vmatpush1.xpose.msra.mxu0 0.0
        %5535 = vmatprep.subr.mxu0 0.0
        %5536 = vmatpush1.xpose.msra.mxu0 0.0
        %5537 = vmatprep.subr.mxu0 0.0
        %5538 = vmatpush1.xpose.msra.mxu0 0.0
        %5539 = vmatprep.subr.mxu0 0.0
        %5540 = vmatpush1.xpose.msra.mxu0 0.0
        %5541 = vmatprep.subr.mxu0 0.0
        %5542 = vmatpush1.xpose.msra.mxu0 0.0
        %5543 = vmatprep.subr.mxu0 0.0
        %5544 = vmatpush1.xpose.msra.mxu0 0.0
        %5545 = vmatprep.subr.mxu0 0.0
        %5546 = vmatpush1.xpose.msra.mxu0 0.0
        %5547 = vmatprep.subr.mxu0 0.0
        %5548 = vmatpush1.xpose.msra.mxu0 0.0
        %5549 = vmatprep.subr.mxu0 0.0
        %5550 = vmatpush1.xpose.msra.mxu0 0.0
        %5551 = vmatprep.subr.mxu0 0.0
        %5552 = vmatpush1.xpose.msra.mxu0 0.0
        %5553 = vmatprep.subr.mxu0 0.0
        %5554 = vmatpush1.xpose.msra.mxu0 0.0
        %5555 = vmatprep.subr.mxu0 0.0
        %5556 = vmatpush1.xpose.msra.mxu0 0.0
        %5557 = vmatprep.subr.mxu0 0.0
        %5558 = vmatpush1.xpose.msra.mxu0 0.0
        %5559 = vmatprep.subr.mxu0 0.0
        %5560 = vmatpush1.xpose.msra.mxu0 0.0
        %5561 = vmatprep.mubr.f32.mxu0 0.0
        %5562 = vmatmul.mubr.f32.gmra.mrb[0].mxu0 %v5495
        %v5563 = vpop.f32.mrb[0].mxu0
        %v5564 = vadd.f32 0.0, %v5563
        %v5565 = vpop.f32.mrb[0].mxu0
        %5566 = vdwg.mxu0
        %v5568 = vsel %vm511, %v4469, 0
        %5570 = vmatprep.subr.mxu0 0.0
        %5571 = vmatpush1.xpose.msra.mxu0 %v4365
        %5572 = vmatprep.subr.mxu0 0.0
        %5573 = vmatpush1.xpose.msra.mxu0 0.0
        %5574 = vmatprep.subr.mxu0 0.0
        %5575 = vmatpush1.xpose.msra.mxu0 0.0
        %5576 = vmatprep.subr.mxu0 0.0
        %5577 = vmatpush1.xpose.msra.mxu0 0.0
        %5578 = vmatprep.subr.mxu0 0.0
        %5579 = vmatpush1.xpose.msra.mxu0 0.0
        %5580 = vmatprep.subr.mxu0 0.0
        %5581 = vmatpush1.xpose.msra.mxu0 0.0
        %5582 = vmatprep.subr.mxu0 0.0
        %5583 = vmatpush1.xpose.msra.mxu0 0.0
        %5584 = vmatprep.subr.mxu0 0.0
        %5585 = vmatpush1.xpose.msra.mxu0 0.0
        %5586 = vmatprep.subr.mxu0 0.0
        %5587 = vmatpush1.xpose.msra.mxu0 0.0
        %5588 = vmatprep.subr.mxu0 0.0
        %5589 = vmatpush1.xpose.msra.mxu0 0.0
        %5590 = vmatprep.subr.mxu0 0.0
        %5591 = vmatpush1.xpose.msra.mxu0 0.0
        %5592 = vmatprep.subr.mxu0 0.0
        %5593 = vmatpush1.xpose.msra.mxu0 0.0
        %5594 = vmatprep.subr.mxu0 0.0
        %5595 = vmatpush1.xpose.msra.mxu0 0.0
        %5596 = vmatprep.subr.mxu0 0.0
        %5597 = vmatpush1.xpose.msra.mxu0 0.0
        %5598 = vmatprep.subr.mxu0 0.0
        %5599 = vmatpush1.xpose.msra.mxu0 0.0
        %5600 = vmatprep.subr.mxu0 0.0
        %5601 = vmatpush1.xpose.msra.mxu0 0.0
        %5602 = vmatprep.subr.mxu0 0.0
        %5603 = vmatpush1.xpose.msra.mxu0 0.0
        %5604 = vmatprep.subr.mxu0 0.0
        %5605 = vmatpush1.xpose.msra.mxu0 0.0
        %5606 = vmatprep.subr.mxu0 0.0
        %5607 = vmatpush1.xpose.msra.mxu0 0.0
        %5608 = vmatprep.subr.mxu0 0.0
        %5609 = vmatpush1.xpose.msra.mxu0 0.0
        %5610 = vmatprep.subr.mxu0 0.0
        %5611 = vmatpush1.xpose.msra.mxu0 0.0
        %5612 = vmatprep.subr.mxu0 0.0
        %5613 = vmatpush1.xpose.msra.mxu0 0.0
        %5614 = vmatprep.subr.mxu0 0.0
        %5615 = vmatpush1.xpose.msra.mxu0 0.0
        %5616 = vmatprep.subr.mxu0 0.0
        %5617 = vmatpush1.xpose.msra.mxu0 0.0
        %5618 = vmatprep.subr.mxu0 0.0
        %5619 = vmatpush1.xpose.msra.mxu0 0.0
        %5620 = vmatprep.subr.mxu0 0.0
        %5621 = vmatpush1.xpose.msra.mxu0 0.0
        %5622 = vmatprep.subr.mxu0 0.0
        %5623 = vmatpush1.xpose.msra.mxu0 0.0
        %5624 = vmatprep.subr.mxu0 0.0
        %5625 = vmatpush1.xpose.msra.mxu0 0.0
        %5626 = vmatprep.subr.mxu0 0.0
        %5627 = vmatpush1.xpose.msra.mxu0 0.0
        %5628 = vmatprep.subr.mxu0 0.0
        %5629 = vmatpush1.xpose.msra.mxu0 0.0
        %5630 = vmatprep.subr.mxu0 0.0
        %5631 = vmatpush1.xpose.msra.mxu0 0.0
        %5632 = vmatprep.subr.mxu0 0.0
        %5633 = vmatpush1.xpose.msra.mxu0 0.0
        %5634 = vmatprep.mubr.f32.mxu0 0.0
        %5635 = vmatmul.mubr.f32.gmra.mrb[0].mxu0 %v5568
        %v5636 = vpop.f32.mrb[0].mxu0
        %v5637 = vadd.f32 0.0, %v5636
        %v5638 = vpop.f32.mrb[0].mxu0
        %5639 = vdwg.mxu0
        %v5640 = vsel %vm1944, -1e+30, %v5126
        %v5641 = vsel %vm1944, -1e+30, %v5199
        %v5642 = vsel %vm1944, -1e+30, %v5272
        %v5643 = vsel %vm1944, -1e+30, %v5345
        %v5644 = vsel %vm1944, -1e+30, %v5418
        %v5645 = vsel %vm1944, -1e+30, %v5491
        %v5646 = vsel %vm1944, -1e+30, %v5564
        %v5647 = vsel %vm1944, -1e+30, %v5637
        %v5648 = vsel %vm1953, %v5640, -inf
        %5649 = vmax.xlane.f32.xlu0 %v5648
        %v5650 = vpop.xlane.xlu0 %5649
        %v5651 = vsel %vm1953, %v5641, -inf
        %5652 = vmax.xlane.f32.xlu0 %v5651
        %v5653 = vpop.xlane.xlu0 %5652
        %v5654 = vsel %vm1953, %v5642, -inf
        %5655 = vmax.xlane.f32.xlu0 %v5654
        %v5656 = vpop.xlane.xlu0 %5655
        %v5657 = vsel %vm1953, %v5643, -inf
        %5658 = vmax.xlane.f32.xlu0 %v5657
        %v5659 = vpop.xlane.xlu0 %5658
        %v5660 = vsel %vm1953, %v5644, -inf
        %5661 = vmax.xlane.f32.xlu0 %v5660
        %v5662 = vpop.xlane.xlu0 %5661
        %v5663 = vsel %vm1953, %v5645, -inf
        %5664 = vmax.xlane.f32.xlu0 %v5663
        %v5665 = vpop.xlane.xlu0 %5664
        %v5666 = vsel %vm1953, %v5646, -inf
        %5667 = vmax.xlane.f32.xlu0 %v5666
        %v5668 = vpop.xlane.xlu0 %5667
        %v5669 = vsel %vm1953, %v5647, -inf
        %5670 = vmax.xlane.f32.xlu0 %v5669
        %v5671 = vpop.xlane.xlu0 %5670
        %v5680 = vlaneseq
        %v5681 = vshrl.u32 %v5680, 7
        %v5682 = vsub.s32 %v1941, %v5681
        %v5683 = vrot.slane %v5650, %v5682
        %v5684 = vlaneseq
        %v5685 = vshrl.u32 %v5684, 7
        %v5686 = vsub.s32 %v1941, %v5685
        %v5687 = vrot.slane %v5653, %v5686
        %v5688 = vlaneseq
        %v5689 = vshrl.u32 %v5688, 7
        %v5690 = vsub.s32 %v1941, %v5689
        %v5691 = vrot.slane %v5656, %v5690
        %v5692 = vlaneseq
        %v5693 = vshrl.u32 %v5692, 7
        %v5694 = vsub.s32 %v1941, %v5693
        %v5695 = vrot.slane %v5659, %v5694
        %v5696 = vlaneseq
        %v5697 = vshrl.u32 %v5696, 7
        %v5698 = vsub.s32 %v1941, %v5697
        %v5699 = vrot.slane %v5662, %v5698
        %v5700 = vlaneseq
        %v5701 = vshrl.u32 %v5700, 7
        %v5702 = vsub.s32 %v1941, %v5701
        %v5703 = vrot.slane %v5665, %v5702
        %v5704 = vlaneseq
        %v5705 = vshrl.u32 %v5704, 7
        %v5706 = vsub.s32 %v1941, %v5705
        %v5707 = vrot.slane %v5668, %v5706
        %v5708 = vlaneseq
        %v5709 = vshrl.u32 %v5708, 7
        %v5710 = vsub.s32 %v1941, %v5709
        %v5711 = vrot.slane %v5671, %v5710
        %v5712 = vsel %vm2018, %v5687, %v5683
        %v5713 = vsel %vm2020, %v5691, %v5712
        %v5714 = vsel %vm2022, %v5695, %v5713
        %v5715 = vsel %vm2024, %v5699, %v5714
        %v5716 = vsel %vm2026, %v5703, %v5715
        %v5717 = vsel %vm2028, %v5707, %v5716
        %v5718 = vsel %vm2030, %v5711, %v5717
        %5720 = vxpose.xlu0.b32.start [1/16] %v5718, 128
        %5721 = vxpose.xlu0.b32.cont [2/16] 0.0, 128
        %5722 = vxpose.xlu0.b32.cont [3/16] 0.0, 128
        %5723 = vxpose.xlu0.b32.cont [4/16] 0.0, 128
        %5724 = vxpose.xlu0.b32.cont [5/16] 0.0, 128
        %5725 = vxpose.xlu0.b32.cont [6/16] 0.0, 128
        %5726 = vxpose.xlu0.b32.cont [7/16] 0.0, 128
        %5727 = vxpose.xlu0.b32.cont [8/16] 0.0, 128
        %5728 = vxpose.xlu0.b32.cont [9/16] 0.0, 128
        %5729 = vxpose.xlu0.b32.cont [10/16] 0.0, 128
        %5730 = vxpose.xlu0.b32.cont [11/16] 0.0, 128
        %5731 = vxpose.xlu0.b32.cont [12/16] 0.0, 128
        %5732 = vxpose.xlu0.b32.cont [13/16] 0.0, 128
        %5733 = vxpose.xlu0.b32.cont [14/16] 0.0, 128
        %5734 = vxpose.xlu0.b32.cont [15/16] 0.0, 128
        %5735 = vxpose.xlu0.b32.end [16/16] 0.0, 128
        %v5736 = vpop.trf.xlu0
        %v5737 = vpop.trf.xlu0
        %v5738 = vpop.trf.xlu0
        %v5739 = vpop.trf.xlu0
        %v5740 = vpop.trf.xlu0
        %v5741 = vpop.trf.xlu0
        %v5742 = vpop.trf.xlu0
        %v5743 = vpop.trf.xlu0
        %v5744 = vpop.trf.xlu0
        %v5745 = vpop.trf.xlu0
        %v5746 = vpop.trf.xlu0
        %v5747 = vpop.trf.xlu0
        %v5748 = vpop.trf.xlu0
        %v5749 = vpop.trf.xlu0
        %v5750 = vpop.trf.xlu0
        %v5751 = vpop.trf.xlu0
        %v5752 = vlaneseq
        %v5753 = vshrl.u32 %v5752, 7
        %v5754 = vsub.s32 0, %v5753
        %v5755 = vrot.slane %v5736, %v5754
        %5757 = vbcast.lane.b32.xlu0 %v5755, 256
        %v5758 = vpop.permute.xlu0 %5757
        %v5759 = vlaneseq
        %v5760 = vshrl.u32 %v5759, 7
        %v5761 = vsub.s32 1, %v5760
        %v5762 = vrot.slane %v5736, %v5761
        %5764 = vbcast.lane.b32.xlu0 %v5762, 256
        %v5765 = vpop.permute.xlu0 %5764
        %v5766 = vlaneseq
        %v5767 = vshrl.u32 %v5766, 7
        %v5768 = vsub.s32 2, %v5767
        %v5769 = vrot.slane %v5736, %v5768
        %5771 = vbcast.lane.b32.xlu0 %v5769, 256
        %v5772 = vpop.permute.xlu0 %5771
        %v5773 = vlaneseq
        %v5774 = vshrl.u32 %v5773, 7
        %v5775 = vsub.s32 3, %v5774
        %v5776 = vrot.slane %v5736, %v5775
        %5778 = vbcast.lane.b32.xlu0 %v5776, 256
        %v5779 = vpop.permute.xlu0 %5778
        %v5780 = vlaneseq
        %v5781 = vshrl.u32 %v5780, 7
        %v5782 = vsub.s32 4, %v5781
        %v5783 = vrot.slane %v5736, %v5782
        %5785 = vbcast.lane.b32.xlu0 %v5783, 256
        %v5786 = vpop.permute.xlu0 %5785
        %v5787 = vlaneseq
        %v5788 = vshrl.u32 %v5787, 7
        %v5789 = vsub.s32 5, %v5788
        %v5790 = vrot.slane %v5736, %v5789
        %5792 = vbcast.lane.b32.xlu0 %v5790, 256
        %v5793 = vpop.permute.xlu0 %5792
        %v5794 = vlaneseq
        %v5795 = vshrl.u32 %v5794, 7
        %v5796 = vsub.s32 6, %v5795
        %v5797 = vrot.slane %v5736, %v5796
        %5799 = vbcast.lane.b32.xlu0 %v5797, 256
        %v5800 = vpop.permute.xlu0 %5799
        %v5801 = vlaneseq
        %v5802 = vshrl.u32 %v5801, 7
        %v5803 = vsub.s32 7, %v5802
        %v5804 = vrot.slane %v5736, %v5803
        %5806 = vbcast.lane.b32.xlu0 %v5804, 256
        %v5807 = vpop.permute.xlu0 %5806
        %v5808 = vsel %vm1953, %v4542, -inf
        %5809 = vmax.xlane.f32.xlu0 %v5808
        %v5810 = vpop.xlane.xlu0 %5809
        %v5811 = vsel %vm1953, %v4615, -inf
        %5812 = vmax.xlane.f32.xlu0 %v5811
        %v5813 = vpop.xlane.xlu0 %5812
        %v5814 = vsel %vm1953, %v4688, -inf
        %5815 = vmax.xlane.f32.xlu0 %v5814
        %v5816 = vpop.xlane.xlu0 %5815
        %v5817 = vsel %vm1953, %v4761, -inf
        %5818 = vmax.xlane.f32.xlu0 %v5817
        %v5819 = vpop.xlane.xlu0 %5818
        %v5820 = vsel %vm1953, %v4834, -inf
        %5821 = vmax.xlane.f32.xlu0 %v5820
        %v5822 = vpop.xlane.xlu0 %5821
        %v5823 = vsel %vm1953, %v4907, -inf
        %5824 = vmax.xlane.f32.xlu0 %v5823
        %v5825 = vpop.xlane.xlu0 %5824
        %v5826 = vsel %vm1953, %v4980, -inf
        %5827 = vmax.xlane.f32.xlu0 %v5826
        %v5828 = vpop.xlane.xlu0 %5827
        %v5829 = vsel %vm1953, %v5053, -inf
        %5830 = vmax.xlane.f32.xlu0 %v5829
        %v5831 = vpop.xlane.xlu0 %5830
        %v5832 = vmax.f32 %v5810, %v5758
        %v5833 = vmax.f32 %v5813, %v5765
        %v5834 = vmax.f32 %v5816, %v5772
        %v5835 = vmax.f32 %v5819, %v5779
        %v5836 = vmax.f32 %v5822, %v5786
        %v5837 = vmax.f32 %v5825, %v5793
        %v5838 = vmax.f32 %v5828, %v5800
        %v5839 = vmax.f32 %v5831, %v5807
        %v5848 = vlaneseq
        %v5849 = vshrl.u32 %v5848, 7
        %v5850 = vsub.s32 %v1941, %v5849
        %v5851 = vrot.slane %v5832, %v5850
        %v5852 = vlaneseq
        %v5853 = vshrl.u32 %v5852, 7
        %v5854 = vsub.s32 %v1941, %v5853
        %v5855 = vrot.slane %v5833, %v5854
        %v5856 = vlaneseq
        %v5857 = vshrl.u32 %v5856, 7
        %v5858 = vsub.s32 %v1941, %v5857
        %v5859 = vrot.slane %v5834, %v5858
        %v5860 = vlaneseq
        %v5861 = vshrl.u32 %v5860, 7
        %v5862 = vsub.s32 %v1941, %v5861
        %v5863 = vrot.slane %v5835, %v5862
        %v5864 = vlaneseq
        %v5865 = vshrl.u32 %v5864, 7
        %v5866 = vsub.s32 %v1941, %v5865
        %v5867 = vrot.slane %v5836, %v5866
        %v5868 = vlaneseq
        %v5869 = vshrl.u32 %v5868, 7
        %v5870 = vsub.s32 %v1941, %v5869
        %v5871 = vrot.slane %v5837, %v5870
        %v5872 = vlaneseq
        %v5873 = vshrl.u32 %v5872, 7
        %v5874 = vsub.s32 %v1941, %v5873
        %v5875 = vrot.slane %v5838, %v5874
        %v5876 = vlaneseq
        %v5877 = vshrl.u32 %v5876, 7
        %v5878 = vsub.s32 %v1941, %v5877
        %v5879 = vrot.slane %v5839, %v5878
        %v5880 = vsel %vm2018, %v5855, %v5851
        %v5881 = vsel %vm2020, %v5859, %v5880
        %v5882 = vsel %vm2022, %v5863, %v5881
        %v5883 = vsel %vm2024, %v5867, %v5882
        %v5884 = vsel %vm2026, %v5871, %v5883
        %v5885 = vsel %vm2028, %v5875, %v5884
        %v5886 = vsel %vm2030, %v5879, %v5885
        %5888 = vxpose.xlu0.b32.start [1/16] %v5886, 128
        %5889 = vxpose.xlu0.b32.cont [2/16] 0.0, 128
        %5890 = vxpose.xlu0.b32.cont [3/16] 0.0, 128
        %5891 = vxpose.xlu0.b32.cont [4/16] 0.0, 128
        %5892 = vxpose.xlu0.b32.cont [5/16] 0.0, 128
        %5893 = vxpose.xlu0.b32.cont [6/16] 0.0, 128
        %5894 = vxpose.xlu0.b32.cont [7/16] 0.0, 128
        %5895 = vxpose.xlu0.b32.cont [8/16] 0.0, 128
        %5896 = vxpose.xlu0.b32.cont [9/16] 0.0, 128
        %5897 = vxpose.xlu0.b32.cont [10/16] 0.0, 128
        %5898 = vxpose.xlu0.b32.cont [11/16] 0.0, 128
        %5899 = vxpose.xlu0.b32.cont [12/16] 0.0, 128
        %5900 = vxpose.xlu0.b32.cont [13/16] 0.0, 128
        %5901 = vxpose.xlu0.b32.cont [14/16] 0.0, 128
        %5902 = vxpose.xlu0.b32.cont [15/16] 0.0, 128
        %5903 = vxpose.xlu0.b32.end [16/16] 0.0, 128
        %v5904 = vpop.trf.xlu0
        %v5905 = vpop.trf.xlu0
        %v5906 = vpop.trf.xlu0
        %v5907 = vpop.trf.xlu0
        %v5908 = vpop.trf.xlu0
        %v5909 = vpop.trf.xlu0
        %v5910 = vpop.trf.xlu0
        %v5911 = vpop.trf.xlu0
        %v5912 = vpop.trf.xlu0
        %v5913 = vpop.trf.xlu0
        %v5914 = vpop.trf.xlu0
        %v5915 = vpop.trf.xlu0
        %v5916 = vpop.trf.xlu0
        %v5917 = vpop.trf.xlu0
        %v5918 = vpop.trf.xlu0
        %v5919 = vpop.trf.xlu0
        %v5920 = vlaneseq
        %v5921 = vshrl.u32 %v5920, 7
        %v5922 = vsub.s32 0, %v5921
        %v5923 = vrot.slane %v5904, %v5922
        %5925 = vbcast.lane.b32.xlu0 %v5923, 256
        %v5926 = vpop.permute.xlu0 %5925
        %v5927 = vlaneseq
        %v5928 = vshrl.u32 %v5927, 7
        %v5929 = vsub.s32 1, %v5928
        %v5930 = vrot.slane %v5904, %v5929
        %5932 = vbcast.lane.b32.xlu0 %v5930, 256
        %v5933 = vpop.permute.xlu0 %5932
        %v5934 = vlaneseq
        %v5935 = vshrl.u32 %v5934, 7
        %v5936 = vsub.s32 2, %v5935
        %v5937 = vrot.slane %v5904, %v5936
        %5939 = vbcast.lane.b32.xlu0 %v5937, 256
        %v5940 = vpop.permute.xlu0 %5939
        %v5941 = vlaneseq
        %v5942 = vshrl.u32 %v5941, 7
        %v5943 = vsub.s32 3, %v5942
        %v5944 = vrot.slane %v5904, %v5943
        %5946 = vbcast.lane.b32.xlu0 %v5944, 256
        %v5947 = vpop.permute.xlu0 %5946
        %v5948 = vlaneseq
        %v5949 = vshrl.u32 %v5948, 7
        %v5950 = vsub.s32 4, %v5949
        %v5951 = vrot.slane %v5904, %v5950
        %5953 = vbcast.lane.b32.xlu0 %v5951, 256
        %v5954 = vpop.permute.xlu0 %5953
        %v5955 = vlaneseq
        %v5956 = vshrl.u32 %v5955, 7
        %v5957 = vsub.s32 5, %v5956
        %v5958 = vrot.slane %v5904, %v5957
        %5960 = vbcast.lane.b32.xlu0 %v5958, 256
        %v5961 = vpop.permute.xlu0 %5960
        %v5962 = vlaneseq
        %v5963 = vshrl.u32 %v5962, 7
        %v5964 = vsub.s32 6, %v5963
        %v5965 = vrot.slane %v5904, %v5964
        %5967 = vbcast.lane.b32.xlu0 %v5965, 256
        %v5968 = vpop.permute.xlu0 %5967
        %v5969 = vlaneseq
        %v5970 = vshrl.u32 %v5969, 7
        %v5971 = vsub.s32 7, %v5970
        %v5972 = vrot.slane %v5904, %v5971
        %5974 = vbcast.lane.b32.xlu0 %v5972, 256
        %v5975 = vpop.permute.xlu0 %5974
        %v5976 = vsub.f32 %v4542, %v5832
        %v5977 = vsub.f32 %v4615, %v5833
        %v5978 = vsub.f32 %v4688, %v5834
        %v5979 = vsub.f32 %v4761, %v5835
        %v5980 = vsub.f32 %v4834, %v5836
        %v5981 = vsub.f32 %v4907, %v5837
        %v5982 = vsub.f32 %v4980, %v5838
        %v5983 = vsub.f32 %v5053, %v5839
        %v5984 = vmul.f32 %v5976, 1.442695
        %v5985 = vpow.pop %v5984
        %v5986 = vmul.f32 %v5977, 1.442695
        %v5987 = vpow.pop %v5986
        %v5988 = vmul.f32 %v5978, 1.442695
        %v5989 = vpow.pop %v5988
        %v5990 = vmul.f32 %v5979, 1.442695
        %v5991 = vpow.pop %v5990
        %v5992 = vmul.f32 %v5980, 1.442695
        %v5993 = vpow.pop %v5992
        %v5994 = vmul.f32 %v5981, 1.442695
        %v5995 = vpow.pop %v5994
        %v5996 = vmul.f32 %v5982, 1.442695
        %v5997 = vpow.pop %v5996
        %v5998 = vmul.f32 %v5983, 1.442695
        %v5999 = vpow.pop %v5998
        %v6000 = vsub.f32 %v5640, %v5926
        %v6001 = vsub.f32 %v5641, %v5933
        %v6002 = vsub.f32 %v5642, %v5940
        %v6003 = vsub.f32 %v5643, %v5947
        %v6004 = vsub.f32 %v5644, %v5954
        %v6005 = vsub.f32 %v5645, %v5961
        %v6006 = vsub.f32 %v5646, %v5968
        %v6007 = vsub.f32 %v5647, %v5975
        %v6008 = vmul.f32 %v6000, 1.442695
        %v6009 = vpow.pop %v6008
        %v6010 = vmul.f32 %v6001, 1.442695
        %v6011 = vpow.pop %v6010
        %v6012 = vmul.f32 %v6002, 1.442695
        %v6013 = vpow.pop %v6012
        %v6014 = vmul.f32 %v6003, 1.442695
        %v6015 = vpow.pop %v6014
        %v6016 = vmul.f32 %v6004, 1.442695
        %v6017 = vpow.pop %v6016
        %v6018 = vmul.f32 %v6005, 1.442695
        %v6019 = vpow.pop %v6018
        %v6020 = vmul.f32 %v6006, 1.442695
        %v6021 = vpow.pop %v6020
        %v6022 = vmul.f32 %v6007, 1.442695
        %v6023 = vpow.pop %v6022
        %v6024 = vsel %vm1953, %v6009, 0.0
        %6025 = vadd.xlane.f32.xlu0 %v6024
        %v6026 = vpop.xlane.xlu0 %6025
        %v6027 = vsel %vm1953, %v6011, 0.0
        %6028 = vadd.xlane.f32.xlu0 %v6027
        %v6029 = vpop.xlane.xlu0 %6028
        %v6030 = vsel %vm1953, %v6013, 0.0
        %6031 = vadd.xlane.f32.xlu0 %v6030
        %v6032 = vpop.xlane.xlu0 %6031
        %v6033 = vsel %vm1953, %v6015, 0.0
        %6034 = vadd.xlane.f32.xlu0 %v6033
        %v6035 = vpop.xlane.xlu0 %6034
        %v6036 = vsel %vm1953, %v6017, 0.0
        %6037 = vadd.xlane.f32.xlu0 %v6036
        %v6038 = vpop.xlane.xlu0 %6037
        %v6039 = vsel %vm1953, %v6019, 0.0
        %6040 = vadd.xlane.f32.xlu0 %v6039
        %v6041 = vpop.xlane.xlu0 %6040
        %v6042 = vsel %vm1953, %v6021, 0.0
        %6043 = vadd.xlane.f32.xlu0 %v6042
        %v6044 = vpop.xlane.xlu0 %6043
        %v6045 = vsel %vm1953, %v6023, 0.0
        %6046 = vadd.xlane.f32.xlu0 %v6045
        %v6047 = vpop.xlane.xlu0 %6046
        %v6056 = vlaneseq
        %v6057 = vshrl.u32 %v6056, 7
        %v6058 = vsub.s32 %v1941, %v6057
        %v6059 = vrot.slane %v6026, %v6058
        %v6060 = vlaneseq
        %v6061 = vshrl.u32 %v6060, 7
        %v6062 = vsub.s32 %v1941, %v6061
        %v6063 = vrot.slane %v6029, %v6062
        %v6064 = vlaneseq
        %v6065 = vshrl.u32 %v6064, 7
        %v6066 = vsub.s32 %v1941, %v6065
        %v6067 = vrot.slane %v6032, %v6066
        %v6068 = vlaneseq
        %v6069 = vshrl.u32 %v6068, 7
        %v6070 = vsub.s32 %v1941, %v6069
        %v6071 = vrot.slane %v6035, %v6070
        %v6072 = vlaneseq
        %v6073 = vshrl.u32 %v6072, 7
        %v6074 = vsub.s32 %v1941, %v6073
        %v6075 = vrot.slane %v6038, %v6074
        %v6076 = vlaneseq
        %v6077 = vshrl.u32 %v6076, 7
        %v6078 = vsub.s32 %v1941, %v6077
        %v6079 = vrot.slane %v6041, %v6078
        %v6080 = vlaneseq
        %v6081 = vshrl.u32 %v6080, 7
        %v6082 = vsub.s32 %v1941, %v6081
        %v6083 = vrot.slane %v6044, %v6082
        %v6084 = vlaneseq
        %v6085 = vshrl.u32 %v6084, 7
        %v6086 = vsub.s32 %v1941, %v6085
        %v6087 = vrot.slane %v6047, %v6086
        %v6088 = vsel %vm2018, %v6063, %v6059
        %v6089 = vsel %vm2020, %v6067, %v6088
        %v6090 = vsel %vm2022, %v6071, %v6089
        %v6091 = vsel %vm2024, %v6075, %v6090
        %v6092 = vsel %vm2026, %v6079, %v6091
        %v6093 = vsel %vm2028, %v6083, %v6092
        %v6094 = vsel %vm2030, %v6087, %v6093
        %6096 = vxpose.xlu0.b32.start [1/16] %v6094, 128
        %6097 = vxpose.xlu0.b32.cont [2/16] 0.0, 128
        %6098 = vxpose.xlu0.b32.cont [3/16] 0.0, 128
        %6099 = vxpose.xlu0.b32.cont [4/16] 0.0, 128
        %6100 = vxpose.xlu0.b32.cont [5/16] 0.0, 128
        %6101 = vxpose.xlu0.b32.cont [6/16] 0.0, 128
        %6102 = vxpose.xlu0.b32.cont [7/16] 0.0, 128
        %6103 = vxpose.xlu0.b32.cont [8/16] 0.0, 128
        %6104 = vxpose.xlu0.b32.cont [9/16] 0.0, 128
        %6105 = vxpose.xlu0.b32.cont [10/16] 0.0, 128
        %6106 = vxpose.xlu0.b32.cont [11/16] 0.0, 128
        %6107 = vxpose.xlu0.b32.cont [12/16] 0.0, 128
        %6108 = vxpose.xlu0.b32.cont [13/16] 0.0, 128
        %6109 = vxpose.xlu0.b32.cont [14/16] 0.0, 128
        %6110 = vxpose.xlu0.b32.cont [15/16] 0.0, 128
        %6111 = vxpose.xlu0.b32.end [16/16] 0.0, 128
        %v6112 = vpop.trf.xlu0
        %v6113 = vpop.trf.xlu0
        %v6114 = vpop.trf.xlu0
        %v6115 = vpop.trf.xlu0
        %v6116 = vpop.trf.xlu0
        %v6117 = vpop.trf.xlu0
        %v6118 = vpop.trf.xlu0
        %v6119 = vpop.trf.xlu0
        %v6120 = vpop.trf.xlu0
        %v6121 = vpop.trf.xlu0
        %v6122 = vpop.trf.xlu0
        %v6123 = vpop.trf.xlu0
        %v6124 = vpop.trf.xlu0
        %v6125 = vpop.trf.xlu0
        %v6126 = vpop.trf.xlu0
        %v6127 = vpop.trf.xlu0
        %v6128 = vlaneseq
        %v6129 = vshrl.u32 %v6128, 7
        %v6130 = vsub.s32 0, %v6129
        %v6131 = vrot.slane %v6112, %v6130
        %6133 = vbcast.lane.b32.xlu0 %v6131, 256
        %v6134 = vpop.permute.xlu0 %6133
        %v6135 = vlaneseq
        %v6136 = vshrl.u32 %v6135, 7
        %v6137 = vsub.s32 1, %v6136
        %v6138 = vrot.slane %v6112, %v6137
        %6140 = vbcast.lane.b32.xlu0 %v6138, 256
        %v6141 = vpop.permute.xlu0 %6140
        %v6142 = vlaneseq
        %v6143 = vshrl.u32 %v6142, 7
        %v6144 = vsub.s32 2, %v6143
        %v6145 = vrot.slane %v6112, %v6144
        %6147 = vbcast.lane.b32.xlu0 %v6145, 256
        %v6148 = vpop.permute.xlu0 %6147
        %v6149 = vlaneseq
        %v6150 = vshrl.u32 %v6149, 7
        %v6151 = vsub.s32 3, %v6150
        %v6152 = vrot.slane %v6112, %v6151
        %6154 = vbcast.lane.b32.xlu0 %v6152, 256
        %v6155 = vpop.permute.xlu0 %6154
        %v6156 = vlaneseq
        %v6157 = vshrl.u32 %v6156, 7
        %v6158 = vsub.s32 4, %v6157
        %v6159 = vrot.slane %v6112, %v6158
        %6161 = vbcast.lane.b32.xlu0 %v6159, 256
        %v6162 = vpop.permute.xlu0 %6161
        %v6163 = vlaneseq
        %v6164 = vshrl.u32 %v6163, 7
        %v6165 = vsub.s32 5, %v6164
        %v6166 = vrot.slane %v6112, %v6165
        %6168 = vbcast.lane.b32.xlu0 %v6166, 256
        %v6169 = vpop.permute.xlu0 %6168
        %v6170 = vlaneseq
        %v6171 = vshrl.u32 %v6170, 7
        %v6172 = vsub.s32 6, %v6171
        %v6173 = vrot.slane %v6112, %v6172
        %6175 = vbcast.lane.b32.xlu0 %v6173, 256
        %v6176 = vpop.permute.xlu0 %6175
        %v6177 = vlaneseq
        %v6178 = vshrl.u32 %v6177, 7
        %v6179 = vsub.s32 7, %v6178
        %v6180 = vrot.slane %v6112, %v6179
        %6182 = vbcast.lane.b32.xlu0 %v6180, 256
        %v6183 = vpop.permute.xlu0 %6182
        %v6184 = vsel %vm1953, %v5985, 0.0
        %6185 = vadd.xlane.f32.xlu0 %v6184
        %v6186 = vpop.xlane.xlu0 %6185
        %v6187 = vsel %vm1953, %v5987, 0.0
        %6188 = vadd.xlane.f32.xlu0 %v6187
        %v6189 = vpop.xlane.xlu0 %6188
        %v6190 = vsel %vm1953, %v5989, 0.0
        %6191 = vadd.xlane.f32.xlu0 %v6190
        %v6192 = vpop.xlane.xlu0 %6191
        %v6193 = vsel %vm1953, %v5991, 0.0
        %6194 = vadd.xlane.f32.xlu0 %v6193
        %v6195 = vpop.xlane.xlu0 %6194
        %v6196 = vsel %vm1953, %v5993, 0.0
        %6197 = vadd.xlane.f32.xlu0 %v6196
        %v6198 = vpop.xlane.xlu0 %6197
        %v6199 = vsel %vm1953, %v5995, 0.0
        %6200 = vadd.xlane.f32.xlu0 %v6199
        %v6201 = vpop.xlane.xlu0 %6200
        %v6202 = vsel %vm1953, %v5997, 0.0
        %6203 = vadd.xlane.f32.xlu0 %v6202
        %v6204 = vpop.xlane.xlu0 %6203
        %v6205 = vsel %vm1953, %v5999, 0.0
        %6206 = vadd.xlane.f32.xlu0 %v6205
        %v6207 = vpop.xlane.xlu0 %6206
        %v6208 = vadd.f32 %v6186, %v6134
        %v6209 = vadd.f32 %v6189, %v6141
        %v6210 = vadd.f32 %v6192, %v6148
        %v6211 = vadd.f32 %v6195, %v6155
        %v6212 = vadd.f32 %v6198, %v6162
        %v6213 = vadd.f32 %v6201, %v6169
        %v6214 = vadd.f32 %v6204, %v6176
        %v6215 = vadd.f32 %v6207, %v6183
        %v6216 = vrcp.pop %v6208
        %v6217 = vrcp.pop %v6209
        %v6218 = vrcp.pop %v6210
        %v6219 = vrcp.pop %v6211
        %v6220 = vrcp.pop %v6212
        %v6221 = vrcp.pop %v6213
        %v6222 = vrcp.pop %v6214
        %v6223 = vrcp.pop %v6215
        %v6232 = vlaneseq
        %v6233 = vshrl.u32 %v6232, 7
        %v6234 = vsub.s32 %v1941, %v6233
        %v6235 = vrot.slane %v6216, %v6234
        %v6236 = vlaneseq
        %v6237 = vshrl.u32 %v6236, 7
        %v6238 = vsub.s32 %v1941, %v6237
        %v6239 = vrot.slane %v6217, %v6238
        %v6240 = vlaneseq
        %v6241 = vshrl.u32 %v6240, 7
        %v6242 = vsub.s32 %v1941, %v6241
        %v6243 = vrot.slane %v6218, %v6242
        %v6244 = vlaneseq
        %v6245 = vshrl.u32 %v6244, 7
        %v6246 = vsub.s32 %v1941, %v6245
        %v6247 = vrot.slane %v6219, %v6246
        %v6248 = vlaneseq
        %v6249 = vshrl.u32 %v6248, 7
        %v6250 = vsub.s32 %v1941, %v6249
        %v6251 = vrot.slane %v6220, %v6250
        %v6252 = vlaneseq
        %v6253 = vshrl.u32 %v6252, 7
        %v6254 = vsub.s32 %v1941, %v6253
        %v6255 = vrot.slane %v6221, %v6254
        %v6256 = vlaneseq
        %v6257 = vshrl.u32 %v6256, 7
        %v6258 = vsub.s32 %v1941, %v6257
        %v6259 = vrot.slane %v6222, %v6258
        %v6260 = vlaneseq
        %v6261 = vshrl.u32 %v6260, 7
        %v6262 = vsub.s32 %v1941, %v6261
        %v6263 = vrot.slane %v6223, %v6262
        %v6264 = vsel %vm2018, %v6239, %v6235
        %v6265 = vsel %vm2020, %v6243, %v6264
        %v6266 = vsel %vm2022, %v6247, %v6265
        %v6267 = vsel %vm2024, %v6251, %v6266
        %v6268 = vsel %vm2026, %v6255, %v6267
        %v6269 = vsel %vm2028, %v6259, %v6268
        %v6270 = vsel %vm2030, %v6263, %v6269
        %6272 = vxpose.xlu0.b32.start [1/16] %v6270, 128
        %6273 = vxpose.xlu0.b32.cont [2/16] 0.0, 128
        %6274 = vxpose.xlu0.b32.cont [3/16] 0.0, 128
        %6275 = vxpose.xlu0.b32.cont [4/16] 0.0, 128
        %6276 = vxpose.xlu0.b32.cont [5/16] 0.0, 128
        %6277 = vxpose.xlu0.b32.cont [6/16] 0.0, 128
        %6278 = vxpose.xlu0.b32.cont [7/16] 0.0, 128
        %6279 = vxpose.xlu0.b32.cont [8/16] 0.0, 128
        %6280 = vxpose.xlu0.b32.cont [9/16] 0.0, 128
        %6281 = vxpose.xlu0.b32.cont [10/16] 0.0, 128
        %6282 = vxpose.xlu0.b32.cont [11/16] 0.0, 128
        %6283 = vxpose.xlu0.b32.cont [12/16] 0.0, 128
        %6284 = vxpose.xlu0.b32.cont [13/16] 0.0, 128
        %6285 = vxpose.xlu0.b32.cont [14/16] 0.0, 128
        %6286 = vxpose.xlu0.b32.cont [15/16] 0.0, 128
        %6287 = vxpose.xlu0.b32.end [16/16] 0.0, 128
        %v6288 = vpop.trf.xlu0
        %v6289 = vpop.trf.xlu0
        %v6290 = vpop.trf.xlu0
        %v6291 = vpop.trf.xlu0
        %v6292 = vpop.trf.xlu0
        %v6293 = vpop.trf.xlu0
        %v6294 = vpop.trf.xlu0
        %v6295 = vpop.trf.xlu0
        %v6296 = vpop.trf.xlu0
        %v6297 = vpop.trf.xlu0
        %v6298 = vpop.trf.xlu0
        %v6299 = vpop.trf.xlu0
        %v6300 = vpop.trf.xlu0
        %v6301 = vpop.trf.xlu0
        %v6302 = vpop.trf.xlu0
        %v6303 = vpop.trf.xlu0
        %v6304 = vlaneseq
        %v6305 = vshrl.u32 %v6304, 7
        %v6306 = vsub.s32 0, %v6305
        %v6307 = vrot.slane %v6288, %v6306
        %6309 = vbcast.lane.b32.xlu0 %v6307, 256
        %v6310 = vpop.permute.xlu0 %6309
        %v6311 = vlaneseq
        %v6312 = vshrl.u32 %v6311, 7
        %v6313 = vsub.s32 1, %v6312
        %v6314 = vrot.slane %v6288, %v6313
        %6316 = vbcast.lane.b32.xlu0 %v6314, 256
        %v6317 = vpop.permute.xlu0 %6316
        %v6318 = vlaneseq
        %v6319 = vshrl.u32 %v6318, 7
        %v6320 = vsub.s32 2, %v6319
        %v6321 = vrot.slane %v6288, %v6320
        %6323 = vbcast.lane.b32.xlu0 %v6321, 256
        %v6324 = vpop.permute.xlu0 %6323
        %v6325 = vlaneseq
        %v6326 = vshrl.u32 %v6325, 7
        %v6327 = vsub.s32 3, %v6326
        %v6328 = vrot.slane %v6288, %v6327
        %6330 = vbcast.lane.b32.xlu0 %v6328, 256
        %v6331 = vpop.permute.xlu0 %6330
        %v6332 = vlaneseq
        %v6333 = vshrl.u32 %v6332, 7
        %v6334 = vsub.s32 4, %v6333
        %v6335 = vrot.slane %v6288, %v6334
        %6337 = vbcast.lane.b32.xlu0 %v6335, 256
        %v6338 = vpop.permute.xlu0 %6337
        %v6339 = vlaneseq
        %v6340 = vshrl.u32 %v6339, 7
        %v6341 = vsub.s32 5, %v6340
        %v6342 = vrot.slane %v6288, %v6341
        %6344 = vbcast.lane.b32.xlu0 %v6342, 256
        %v6345 = vpop.permute.xlu0 %6344
        %v6346 = vlaneseq
        %v6347 = vshrl.u32 %v6346, 7
        %v6348 = vsub.s32 6, %v6347
        %v6349 = vrot.slane %v6288, %v6348
        %6351 = vbcast.lane.b32.xlu0 %v6349, 256
        %v6352 = vpop.permute.xlu0 %6351
        %v6353 = vlaneseq
        %v6354 = vshrl.u32 %v6353, 7
        %v6355 = vsub.s32 7, %v6354
        %v6356 = vrot.slane %v6288, %v6355
        %6358 = vbcast.lane.b32.xlu0 %v6356, 256
        %v6359 = vpop.permute.xlu0 %6358
        %v6360 = vmul.f32 %v5985, %v6216
        %v6361 = vmul.f32 %v5987, %v6217
        %v6362 = vmul.f32 %v5989, %v6218
        %v6363 = vmul.f32 %v5991, %v6219
        %v6364 = vmul.f32 %v5993, %v6220
        %v6365 = vmul.f32 %v5995, %v6221
        %v6366 = vmul.f32 %v5997, %v6222
        %v6367 = vmul.f32 %v5999, %v6223
        %v6368 = vmul.f32 %v6009, %v6310
        %v6369 = vmul.f32 %v6011, %v6317
        %v6370 = vmul.f32 %v6013, %v6324
        %v6371 = vmul.f32 %v6015, %v6331
        %v6372 = vmul.f32 %v6017, %v6338
        %v6373 = vmul.f32 %v6019, %v6345
        %v6374 = vmul.f32 %v6021, %v6352
        %v6375 = vmul.f32 %v6023, %v6359
        %6376 = vrot.lane.b32.xlu0 %v4305, 96
        %v6377 = vpop.permute.xlu0 %6376
        %v6380 = vsel %vm1953, %v6360, 0
        %6382 = vmatprep.subr.mxu0 0.0
        %6383 = vmatpush1.msra.mxu0 %v6377
        %6384 = vmatprep.subr.mxu0 0.0
        %6385 = vmatpush1.msra.mxu0 0.0
        %6386 = vmatprep.subr.mxu0 0.0
        %6387 = vmatpush1.msra.mxu0 0.0
        %6388 = vmatprep.subr.mxu0 0.0
        %6389 = vmatpush1.msra.mxu0 0.0
        %6390 = vmatprep.subr.mxu0 0.0
        %6391 = vmatpush1.msra.mxu0 0.0
        %6392 = vmatprep.subr.mxu0 0.0
        %6393 = vmatpush1.msra.mxu0 0.0
        %6394 = vmatprep.subr.mxu0 0.0
        %6395 = vmatpush1.msra.mxu0 0.0
        %6396 = vmatprep.subr.mxu0 0.0
        %6397 = vmatpush1.msra.mxu0 0.0
        %6398 = vmatprep.subr.mxu0 0.0
        %6399 = vmatpush1.msra.mxu0 0.0
        %6400 = vmatprep.subr.mxu0 0.0
        %6401 = vmatpush1.msra.mxu0 0.0
        %6402 = vmatprep.subr.mxu0 0.0
        %6403 = vmatpush1.msra.mxu0 0.0
        %6404 = vmatprep.subr.mxu0 0.0
        %6405 = vmatpush1.msra.mxu0 0.0
        %6406 = vmatprep.subr.mxu0 0.0
        %6407 = vmatpush1.msra.mxu0 0.0
        %6408 = vmatprep.subr.mxu0 0.0
        %6409 = vmatpush1.msra.mxu0 0.0
        %6410 = vmatprep.subr.mxu0 0.0
        %6411 = vmatpush1.msra.mxu0 0.0
        %6412 = vmatprep.subr.mxu0 0.0
        %6413 = vmatpush1.msra.mxu0 0.0
        %6414 = vmatprep.subr.mxu0 0.0
        %6415 = vmatpush1.msra.mxu0 0.0
        %6416 = vmatprep.subr.mxu0 0.0
        %6417 = vmatpush1.msra.mxu0 0.0
        %6418 = vmatprep.subr.mxu0 0.0
        %6419 = vmatpush1.msra.mxu0 0.0
        %6420 = vmatprep.subr.mxu0 0.0
        %6421 = vmatpush1.msra.mxu0 0.0
        %6422 = vmatprep.subr.mxu0 0.0
        %6423 = vmatpush1.msra.mxu0 0.0
        %6424 = vmatprep.subr.mxu0 0.0
        %6425 = vmatpush1.msra.mxu0 0.0
        %6426 = vmatprep.subr.mxu0 0.0
        %6427 = vmatpush1.msra.mxu0 0.0
        %6428 = vmatprep.subr.mxu0 0.0
        %6429 = vmatpush1.msra.mxu0 0.0
        %6430 = vmatprep.subr.mxu0 0.0
        %6431 = vmatpush1.msra.mxu0 0.0
        %6432 = vmatprep.subr.mxu0 0.0
        %6433 = vmatpush1.msra.mxu0 0.0
        %6434 = vmatprep.subr.mxu0 0.0
        %6435 = vmatpush1.msra.mxu0 0.0
        %6436 = vmatprep.subr.mxu0 0.0
        %6437 = vmatpush1.msra.mxu0 0.0
        %6438 = vmatprep.subr.mxu0 0.0
        %6439 = vmatpush1.msra.mxu0 0.0
        %6440 = vmatprep.subr.mxu0 0.0
        %6441 = vmatpush1.msra.mxu0 0.0
        %6442 = vmatprep.subr.mxu0 0.0
        %6443 = vmatpush1.msra.mxu0 0.0
        %6444 = vmatprep.subr.mxu0 0.0
        %6445 = vmatpush1.msra.mxu0 0.0
        %6446 = vmatprep.mubr.f32.mxu0 0.0
        %6447 = vmatmul.mubr.f32.gmra.mrb[0].mxu0 %v6380
        %v6448 = vpop.f32.mrb[0].mxu0
        %v6449 = vadd.f32 0.0, %v6448
        %v6450 = vpop.f32.mrb[0].mxu0
        %6451 = vdwg.mxu0
        %6452 = vrot.lane.b32.xlu0 %v4310, 96
        %v6453 = vpop.permute.xlu0 %6452
        %v6456 = vsel %vm1953, %v6361, 0
        %6458 = vmatprep.subr.mxu0 0.0
        %6459 = vmatpush1.msra.mxu0 %v6453
        %6460 = vmatprep.subr.mxu0 0.0
        %6461 = vmatpush1.msra.mxu0 0.0
        %6462 = vmatprep.subr.mxu0 0.0
        %6463 = vmatpush1.msra.mxu0 0.0
        %6464 = vmatprep.subr.mxu0 0.0
        %6465 = vmatpush1.msra.mxu0 0.0
        %6466 = vmatprep.subr.mxu0 0.0
        %6467 = vmatpush1.msra.mxu0 0.0
        %6468 = vmatprep.subr.mxu0 0.0
        %6469 = vmatpush1.msra.mxu0 0.0
        %6470 = vmatprep.subr.mxu0 0.0
        %6471 = vmatpush1.msra.mxu0 0.0
        %6472 = vmatprep.subr.mxu0 0.0
        %6473 = vmatpush1.msra.mxu0 0.0
        %6474 = vmatprep.subr.mxu0 0.0
        %6475 = vmatpush1.msra.mxu0 0.0
        %6476 = vmatprep.subr.mxu0 0.0
        %6477 = vmatpush1.msra.mxu0 0.0
        %6478 = vmatprep.subr.mxu0 0.0
        %6479 = vmatpush1.msra.mxu0 0.0
        %6480 = vmatprep.subr.mxu0 0.0
        %6481 = vmatpush1.msra.mxu0 0.0
        %6482 = vmatprep.subr.mxu0 0.0
        %6483 = vmatpush1.msra.mxu0 0.0
        %6484 = vmatprep.subr.mxu0 0.0
        %6485 = vmatpush1.msra.mxu0 0.0
        %6486 = vmatprep.subr.mxu0 0.0
        %6487 = vmatpush1.msra.mxu0 0.0
        %6488 = vmatprep.subr.mxu0 0.0
        %6489 = vmatpush1.msra.mxu0 0.0
        %6490 = vmatprep.subr.mxu0 0.0
        %6491 = vmatpush1.msra.mxu0 0.0
        %6492 = vmatprep.subr.mxu0 0.0
        %6493 = vmatpush1.msra.mxu0 0.0
        %6494 = vmatprep.subr.mxu0 0.0
        %6495 = vmatpush1.msra.mxu0 0.0
        %6496 = vmatprep.subr.mxu0 0.0
        %6497 = vmatpush1.msra.mxu0 0.0
        %6498 = vmatprep.subr.mxu0 0.0
        %6499 = vmatpush1.msra.mxu0 0.0
        %6500 = vmatprep.subr.mxu0 0.0
        %6501 = vmatpush1.msra.mxu0 0.0
        %6502 = vmatprep.subr.mxu0 0.0
        %6503 = vmatpush1.msra.mxu0 0.0
        %6504 = vmatprep.subr.mxu0 0.0
        %6505 = vmatpush1.msra.mxu0 0.0
        %6506 = vmatprep.subr.mxu0 0.0
        %6507 = vmatpush1.msra.mxu0 0.0
        %6508 = vmatprep.subr.mxu0 0.0
        %6509 = vmatpush1.msra.mxu0 0.0
        %6510 = vmatprep.subr.mxu0 0.0
        %6511 = vmatpush1.msra.mxu0 0.0
        %6512 = vmatprep.subr.mxu0 0.0
        %6513 = vmatpush1.msra.mxu0 0.0
        %6514 = vmatprep.subr.mxu0 0.0
        %6515 = vmatpush1.msra.mxu0 0.0
        %6516 = vmatprep.subr.mxu0 0.0
        %6517 = vmatpush1.msra.mxu0 0.0
        %6518 = vmatprep.subr.mxu0 0.0
        %6519 = vmatpush1.msra.mxu0 0.0
        %6520 = vmatprep.subr.mxu0 0.0
        %6521 = vmatpush1.msra.mxu0 0.0
        %6522 = vmatprep.mubr.f32.mxu0 0.0
        %6523 = vmatmul.mubr.f32.gmra.mrb[0].mxu0 %v6456
        %v6524 = vpop.f32.mrb[0].mxu0
        %v6525 = vadd.f32 0.0, %v6524
        %v6526 = vpop.f32.mrb[0].mxu0
        %6527 = vdwg.mxu0
        %6528 = vrot.lane.b32.xlu0 %v4315, 96
        %v6529 = vpop.permute.xlu0 %6528
        %v6532 = vsel %vm1953, %v6362, 0
        %6534 = vmatprep.subr.mxu0 0.0
        %6535 = vmatpush1.msra.mxu0 %v6529
        %6536 = vmatprep.subr.mxu0 0.0
        %6537 = vmatpush1.msra.mxu0 0.0
        %6538 = vmatprep.subr.mxu0 0.0
        %6539 = vmatpush1.msra.mxu0 0.0
        %6540 = vmatprep.subr.mxu0 0.0
        %6541 = vmatpush1.msra.mxu0 0.0
        %6542 = vmatprep.subr.mxu0 0.0
        %6543 = vmatpush1.msra.mxu0 0.0
        %6544 = vmatprep.subr.mxu0 0.0
        %6545 = vmatpush1.msra.mxu0 0.0
        %6546 = vmatprep.subr.mxu0 0.0
        %6547 = vmatpush1.msra.mxu0 0.0
        %6548 = vmatprep.subr.mxu0 0.0
        %6549 = vmatpush1.msra.mxu0 0.0
        %6550 = vmatprep.subr.mxu0 0.0
        %6551 = vmatpush1.msra.mxu0 0.0
        %6552 = vmatprep.subr.mxu0 0.0
        %6553 = vmatpush1.msra.mxu0 0.0
        %6554 = vmatprep.subr.mxu0 0.0
        %6555 = vmatpush1.msra.mxu0 0.0
        %6556 = vmatprep.subr.mxu0 0.0
        %6557 = vmatpush1.msra.mxu0 0.0
        %6558 = vmatprep.subr.mxu0 0.0
        %6559 = vmatpush1.msra.mxu0 0.0
        %6560 = vmatprep.subr.mxu0 0.0
        %6561 = vmatpush1.msra.mxu0 0.0
        %6562 = vmatprep.subr.mxu0 0.0
        %6563 = vmatpush1.msra.mxu0 0.0
        %6564 = vmatprep.subr.mxu0 0.0
        %6565 = vmatpush1.msra.mxu0 0.0
        %6566 = vmatprep.subr.mxu0 0.0
        %6567 = vmatpush1.msra.mxu0 0.0
        %6568 = vmatprep.subr.mxu0 0.0
        %6569 = vmatpush1.msra.mxu0 0.0
        %6570 = vmatprep.subr.mxu0 0.0
        %6571 = vmatpush1.msra.mxu0 0.0
        %6572 = vmatprep.subr.mxu0 0.0
        %6573 = vmatpush1.msra.mxu0 0.0
        %6574 = vmatprep.subr.mxu0 0.0
        %6575 = vmatpush1.msra.mxu0 0.0
        %6576 = vmatprep.subr.mxu0 0.0
        %6577 = vmatpush1.msra.mxu0 0.0
        %6578 = vmatprep.subr.mxu0 0.0
        %6579 = vmatpush1.msra.mxu0 0.0
        %6580 = vmatprep.subr.mxu0 0.0
        %6581 = vmatpush1.msra.mxu0 0.0
        %6582 = vmatprep.subr.mxu0 0.0
        %6583 = vmatpush1.msra.mxu0 0.0
        %6584 = vmatprep.subr.mxu0 0.0
        %6585 = vmatpush1.msra.mxu0 0.0
        %6586 = vmatprep.subr.mxu0 0.0
        %6587 = vmatpush1.msra.mxu0 0.0
        %6588 = vmatprep.subr.mxu0 0.0
        %6589 = vmatpush1.msra.mxu0 0.0
        %6590 = vmatprep.subr.mxu0 0.0
        %6591 = vmatpush1.msra.mxu0 0.0
        %6592 = vmatprep.subr.mxu0 0.0
        %6593 = vmatpush1.msra.mxu0 0.0
        %6594 = vmatprep.subr.mxu0 0.0
        %6595 = vmatpush1.msra.mxu0 0.0
        %6596 = vmatprep.subr.mxu0 0.0
        %6597 = vmatpush1.msra.mxu0 0.0
        %6598 = vmatprep.mubr.f32.mxu0 0.0
        %6599 = vmatmul.mubr.f32.gmra.mrb[0].mxu0 %v6532
        %v6600 = vpop.f32.mrb[0].mxu0
        %v6601 = vadd.f32 0.0, %v6600
        %v6602 = vpop.f32.mrb[0].mxu0
        %6603 = vdwg.mxu0
        %6604 = vrot.lane.b32.xlu0 %v4320, 96
        %v6605 = vpop.permute.xlu0 %6604
        %v6608 = vsel %vm1953, %v6363, 0
        %6610 = vmatprep.subr.mxu0 0.0
        %6611 = vmatpush1.msra.mxu0 %v6605
        %6612 = vmatprep.subr.mxu0 0.0
        %6613 = vmatpush1.msra.mxu0 0.0
        %6614 = vmatprep.subr.mxu0 0.0
        %6615 = vmatpush1.msra.mxu0 0.0
        %6616 = vmatprep.subr.mxu0 0.0
        %6617 = vmatpush1.msra.mxu0 0.0
        %6618 = vmatprep.subr.mxu0 0.0
        %6619 = vmatpush1.msra.mxu0 0.0
        %6620 = vmatprep.subr.mxu0 0.0
        %6621 = vmatpush1.msra.mxu0 0.0
        %6622 = vmatprep.subr.mxu0 0.0
        %6623 = vmatpush1.msra.mxu0 0.0
        %6624 = vmatprep.subr.mxu0 0.0
        %6625 = vmatpush1.msra.mxu0 0.0
        %6626 = vmatprep.subr.mxu0 0.0
        %6627 = vmatpush1.msra.mxu0 0.0
        %6628 = vmatprep.subr.mxu0 0.0
        %6629 = vmatpush1.msra.mxu0 0.0
        %6630 = vmatprep.subr.mxu0 0.0
        %6631 = vmatpush1.msra.mxu0 0.0
        %6632 = vmatprep.subr.mxu0 0.0
        %6633 = vmatpush1.msra.mxu0 0.0
        %6634 = vmatprep.subr.mxu0 0.0
        %6635 = vmatpush1.msra.mxu0 0.0
        %6636 = vmatprep.subr.mxu0 0.0
        %6637 = vmatpush1.msra.mxu0 0.0
        %6638 = vmatprep.subr.mxu0 0.0
        %6639 = vmatpush1.msra.mxu0 0.0
        %6640 = vmatprep.subr.mxu0 0.0
        %6641 = vmatpush1.msra.mxu0 0.0
        %6642 = vmatprep.subr.mxu0 0.0
        %6643 = vmatpush1.msra.mxu0 0.0
        %6644 = vmatprep.subr.mxu0 0.0
        %6645 = vmatpush1.msra.mxu0 0.0
        %6646 = vmatprep.subr.mxu0 0.0
        %6647 = vmatpush1.msra.mxu0 0.0
        %6648 = vmatprep.subr.mxu0 0.0
        %6649 = vmatpush1.msra.mxu0 0.0
        %6650 = vmatprep.subr.mxu0 0.0
        %6651 = vmatpush1.msra.mxu0 0.0
        %6652 = vmatprep.subr.mxu0 0.0
        %6653 = vmatpush1.msra.mxu0 0.0
        %6654 = vmatprep.subr.mxu0 0.0
        %6655 = vmatpush1.msra.mxu0 0.0
        %6656 = vmatprep.subr.mxu0 0.0
        %6657 = vmatpush1.msra.mxu0 0.0
        %6658 = vmatprep.subr.mxu0 0.0
        %6659 = vmatpush1.msra.mxu0 0.0
        %6660 = vmatprep.subr.mxu0 0.0
        %6661 = vmatpush1.msra.mxu0 0.0
        %6662 = vmatprep.subr.mxu0 0.0
        %6663 = vmatpush1.msra.mxu0 0.0
        %6664 = vmatprep.subr.mxu0 0.0
        %6665 = vmatpush1.msra.mxu0 0.0
        %6666 = vmatprep.subr.mxu0 0.0
        %6667 = vmatpush1.msra.mxu0 0.0
        %6668 = vmatprep.subr.mxu0 0.0
        %6669 = vmatpush1.msra.mxu0 0.0
        %6670 = vmatprep.subr.mxu0 0.0
        %6671 = vmatpush1.msra.mxu0 0.0
        %6672 = vmatprep.subr.mxu0 0.0
        %6673 = vmatpush1.msra.mxu0 0.0
        %6674 = vmatprep.mubr.f32.mxu0 0.0
        %6675 = vmatmul.mubr.f32.gmra.mrb[0].mxu0 %v6608
        %v6676 = vpop.f32.mrb[0].mxu0
        %v6677 = vadd.f32 0.0, %v6676
        %v6678 = vpop.f32.mrb[0].mxu0
        %6679 = vdwg.mxu0
        %6680 = vrot.lane.b32.xlu0 %v4325, 96
        %v6681 = vpop.permute.xlu0 %6680
        %v6684 = vsel %vm1953, %v6364, 0
        %6686 = vmatprep.subr.mxu0 0.0
        %6687 = vmatpush1.msra.mxu0 %v6681
        %6688 = vmatprep.subr.mxu0 0.0
        %6689 = vmatpush1.msra.mxu0 0.0
        %6690 = vmatprep.subr.mxu0 0.0
        %6691 = vmatpush1.msra.mxu0 0.0
        %6692 = vmatprep.subr.mxu0 0.0
        %6693 = vmatpush1.msra.mxu0 0.0
        %6694 = vmatprep.subr.mxu0 0.0
        %6695 = vmatpush1.msra.mxu0 0.0
        %6696 = vmatprep.subr.mxu0 0.0
        %6697 = vmatpush1.msra.mxu0 0.0
        %6698 = vmatprep.subr.mxu0 0.0
        %6699 = vmatpush1.msra.mxu0 0.0
        %6700 = vmatprep.subr.mxu0 0.0
        %6701 = vmatpush1.msra.mxu0 0.0
        %6702 = vmatprep.subr.mxu0 0.0
        %6703 = vmatpush1.msra.mxu0 0.0
        %6704 = vmatprep.subr.mxu0 0.0
        %6705 = vmatpush1.msra.mxu0 0.0
        %6706 = vmatprep.subr.mxu0 0.0
        %6707 = vmatpush1.msra.mxu0 0.0
        %6708 = vmatprep.subr.mxu0 0.0
        %6709 = vmatpush1.msra.mxu0 0.0
        %6710 = vmatprep.subr.mxu0 0.0
        %6711 = vmatpush1.msra.mxu0 0.0
        %6712 = vmatprep.subr.mxu0 0.0
        %6713 = vmatpush1.msra.mxu0 0.0
        %6714 = vmatprep.subr.mxu0 0.0
        %6715 = vmatpush1.msra.mxu0 0.0
        %6716 = vmatprep.subr.mxu0 0.0
        %6717 = vmatpush1.msra.mxu0 0.0
        %6718 = vmatprep.subr.mxu0 0.0
        %6719 = vmatpush1.msra.mxu0 0.0
        %6720 = vmatprep.subr.mxu0 0.0
        %6721 = vmatpush1.msra.mxu0 0.0
        %6722 = vmatprep.subr.mxu0 0.0
        %6723 = vmatpush1.msra.mxu0 0.0
        %6724 = vmatprep.subr.mxu0 0.0
        %6725 = vmatpush1.msra.mxu0 0.0
        %6726 = vmatprep.subr.mxu0 0.0
        %6727 = vmatpush1.msra.mxu0 0.0
        %6728 = vmatprep.subr.mxu0 0.0
        %6729 = vmatpush1.msra.mxu0 0.0
        %6730 = vmatprep.subr.mxu0 0.0
        %6731 = vmatpush1.msra.mxu0 0.0
        %6732 = vmatprep.subr.mxu0 0.0
        %6733 = vmatpush1.msra.mxu0 0.0
        %6734 = vmatprep.subr.mxu0 0.0
        %6735 = vmatpush1.msra.mxu0 0.0
        %6736 = vmatprep.subr.mxu0 0.0
        %6737 = vmatpush1.msra.mxu0 0.0
        %6738 = vmatprep.subr.mxu0 0.0
        %6739 = vmatpush1.msra.mxu0 0.0
        %6740 = vmatprep.subr.mxu0 0.0
        %6741 = vmatpush1.msra.mxu0 0.0
        %6742 = vmatprep.subr.mxu0 0.0
        %6743 = vmatpush1.msra.mxu0 0.0
        %6744 = vmatprep.subr.mxu0 0.0
        %6745 = vmatpush1.msra.mxu0 0.0
        %6746 = vmatprep.subr.mxu0 0.0
        %6747 = vmatpush1.msra.mxu0 0.0
        %6748 = vmatprep.subr.mxu0 0.0
        %6749 = vmatpush1.msra.mxu0 0.0
        %6750 = vmatprep.mubr.f32.mxu0 0.0
        %6751 = vmatmul.mubr.f32.gmra.mrb[0].mxu0 %v6684
        %v6752 = vpop.f32.mrb[0].mxu0
        %v6753 = vadd.f32 0.0, %v6752
        %v6754 = vpop.f32.mrb[0].mxu0
        %6755 = vdwg.mxu0
        %6756 = vrot.lane.b32.xlu0 %v4330, 96
        %v6757 = vpop.permute.xlu0 %6756
        %v6760 = vsel %vm1953, %v6365, 0
        %6762 = vmatprep.subr.mxu0 0.0
        %6763 = vmatpush1.msra.mxu0 %v6757
        %6764 = vmatprep.subr.mxu0 0.0
        %6765 = vmatpush1.msra.mxu0 0.0
        %6766 = vmatprep.subr.mxu0 0.0
        %6767 = vmatpush1.msra.mxu0 0.0
        %6768 = vmatprep.subr.mxu0 0.0
        %6769 = vmatpush1.msra.mxu0 0.0
        %6770 = vmatprep.subr.mxu0 0.0
        %6771 = vmatpush1.msra.mxu0 0.0
        %6772 = vmatprep.subr.mxu0 0.0
        %6773 = vmatpush1.msra.mxu0 0.0
        %6774 = vmatprep.subr.mxu0 0.0
        %6775 = vmatpush1.msra.mxu0 0.0
        %6776 = vmatprep.subr.mxu0 0.0
        %6777 = vmatpush1.msra.mxu0 0.0
        %6778 = vmatprep.subr.mxu0 0.0
        %6779 = vmatpush1.msra.mxu0 0.0
        %6780 = vmatprep.subr.mxu0 0.0
        %6781 = vmatpush1.msra.mxu0 0.0
        %6782 = vmatprep.subr.mxu0 0.0
        %6783 = vmatpush1.msra.mxu0 0.0
        %6784 = vmatprep.subr.mxu0 0.0
        %6785 = vmatpush1.msra.mxu0 0.0
        %6786 = vmatprep.subr.mxu0 0.0
        %6787 = vmatpush1.msra.mxu0 0.0
        %6788 = vmatprep.subr.mxu0 0.0
        %6789 = vmatpush1.msra.mxu0 0.0
        %6790 = vmatprep.subr.mxu0 0.0
        %6791 = vmatpush1.msra.mxu0 0.0
        %6792 = vmatprep.subr.mxu0 0.0
        %6793 = vmatpush1.msra.mxu0 0.0
        %6794 = vmatprep.subr.mxu0 0.0
        %6795 = vmatpush1.msra.mxu0 0.0
        %6796 = vmatprep.subr.mxu0 0.0
        %6797 = vmatpush1.msra.mxu0 0.0
        %6798 = vmatprep.subr.mxu0 0.0
        %6799 = vmatpush1.msra.mxu0 0.0
        %6800 = vmatprep.subr.mxu0 0.0
        %6801 = vmatpush1.msra.mxu0 0.0
        %6802 = vmatprep.subr.mxu0 0.0
        %6803 = vmatpush1.msra.mxu0 0.0
        %6804 = vmatprep.subr.mxu0 0.0
        %6805 = vmatpush1.msra.mxu0 0.0
        %6806 = vmatprep.subr.mxu0 0.0
        %6807 = vmatpush1.msra.mxu0 0.0
        %6808 = vmatprep.subr.mxu0 0.0
        %6809 = vmatpush1.msra.mxu0 0.0
        %6810 = vmatprep.subr.mxu0 0.0
        %6811 = vmatpush1.msra.mxu0 0.0
        %6812 = vmatprep.subr.mxu0 0.0
        %6813 = vmatpush1.msra.mxu0 0.0
        %6814 = vmatprep.subr.mxu0 0.0
        %6815 = vmatpush1.msra.mxu0 0.0
        %6816 = vmatprep.subr.mxu0 0.0
        %6817 = vmatpush1.msra.mxu0 0.0
        %6818 = vmatprep.subr.mxu0 0.0
        %6819 = vmatpush1.msra.mxu0 0.0
        %6820 = vmatprep.subr.mxu0 0.0
        %6821 = vmatpush1.msra.mxu0 0.0
        %6822 = vmatprep.subr.mxu0 0.0
        %6823 = vmatpush1.msra.mxu0 0.0
        %6824 = vmatprep.subr.mxu0 0.0
        %6825 = vmatpush1.msra.mxu0 0.0
        %6826 = vmatprep.mubr.f32.mxu0 0.0
        %6827 = vmatmul.mubr.f32.gmra.mrb[0].mxu0 %v6760
        %v6828 = vpop.f32.mrb[0].mxu0
        %v6829 = vadd.f32 0.0, %v6828
        %v6830 = vpop.f32.mrb[0].mxu0
        %6831 = vdwg.mxu0
        %6832 = vrot.lane.b32.xlu0 %v4335, 96
        %v6833 = vpop.permute.xlu0 %6832
        %v6836 = vsel %vm1953, %v6366, 0
        %6838 = vmatprep.subr.mxu0 0.0
        %6839 = vmatpush1.msra.mxu0 %v6833
        %6840 = vmatprep.subr.mxu0 0.0
        %6841 = vmatpush1.msra.mxu0 0.0
        %6842 = vmatprep.subr.mxu0 0.0
        %6843 = vmatpush1.msra.mxu0 0.0
        %6844 = vmatprep.subr.mxu0 0.0
        %6845 = vmatpush1.msra.mxu0 0.0
        %6846 = vmatprep.subr.mxu0 0.0
        %6847 = vmatpush1.msra.mxu0 0.0
        %6848 = vmatprep.subr.mxu0 0.0
        %6849 = vmatpush1.msra.mxu0 0.0
        %6850 = vmatprep.subr.mxu0 0.0
        %6851 = vmatpush1.msra.mxu0 0.0
        %6852 = vmatprep.subr.mxu0 0.0
        %6853 = vmatpush1.msra.mxu0 0.0
        %6854 = vmatprep.subr.mxu0 0.0
        %6855 = vmatpush1.msra.mxu0 0.0
        %6856 = vmatprep.subr.mxu0 0.0
        %6857 = vmatpush1.msra.mxu0 0.0
        %6858 = vmatprep.subr.mxu0 0.0
        %6859 = vmatpush1.msra.mxu0 0.0
        %6860 = vmatprep.subr.mxu0 0.0
        %6861 = vmatpush1.msra.mxu0 0.0
        %6862 = vmatprep.subr.mxu0 0.0
        %6863 = vmatpush1.msra.mxu0 0.0
        %6864 = vmatprep.subr.mxu0 0.0
        %6865 = vmatpush1.msra.mxu0 0.0
        %6866 = vmatprep.subr.mxu0 0.0
        %6867 = vmatpush1.msra.mxu0 0.0
        %6868 = vmatprep.subr.mxu0 0.0
        %6869 = vmatpush1.msra.mxu0 0.0
        %6870 = vmatprep.subr.mxu0 0.0
        %6871 = vmatpush1.msra.mxu0 0.0
        %6872 = vmatprep.subr.mxu0 0.0
        %6873 = vmatpush1.msra.mxu0 0.0
        %6874 = vmatprep.subr.mxu0 0.0
        %6875 = vmatpush1.msra.mxu0 0.0
        %6876 = vmatprep.subr.mxu0 0.0
        %6877 = vmatpush1.msra.mxu0 0.0
        %6878 = vmatprep.subr.mxu0 0.0
        %6879 = vmatpush1.msra.mxu0 0.0
        %6880 = vmatprep.subr.mxu0 0.0
        %6881 = vmatpush1.msra.mxu0 0.0
        %6882 = vmatprep.subr.mxu0 0.0
        %6883 = vmatpush1.msra.mxu0 0.0
        %6884 = vmatprep.subr.mxu0 0.0
        %6885 = vmatpush1.msra.mxu0 0.0
        %6886 = vmatprep.subr.mxu0 0.0
        %6887 = vmatpush1.msra.mxu0 0.0
        %6888 = vmatprep.subr.mxu0 0.0
        %6889 = vmatpush1.msra.mxu0 0.0
        %6890 = vmatprep.subr.mxu0 0.0
        %6891 = vmatpush1.msra.mxu0 0.0
        %6892 = vmatprep.subr.mxu0 0.0
        %6893 = vmatpush1.msra.mxu0 0.0
        %6894 = vmatprep.subr.mxu0 0.0
        %6895 = vmatpush1.msra.mxu0 0.0
        %6896 = vmatprep.subr.mxu0 0.0
        %6897 = vmatpush1.msra.mxu0 0.0
        %6898 = vmatprep.subr.mxu0 0.0
        %6899 = vmatpush1.msra.mxu0 0.0
        %6900 = vmatprep.subr.mxu0 0.0
        %6901 = vmatpush1.msra.mxu0 0.0
        %6902 = vmatprep.mubr.f32.mxu0 0.0
        %6903 = vmatmul.mubr.f32.gmra.mrb[0].mxu0 %v6836
        %v6904 = vpop.f32.mrb[0].mxu0
        %v6905 = vadd.f32 0.0, %v6904
        %v6906 = vpop.f32.mrb[0].mxu0
        %6907 = vdwg.mxu0
        %6908 = vrot.lane.b32.xlu0 %v4340, 96
        %v6909 = vpop.permute.xlu0 %6908
        %v6912 = vsel %vm1953, %v6367, 0
        %6914 = vmatprep.subr.mxu0 0.0
        %6915 = vmatpush1.msra.mxu0 %v6909
        %6916 = vmatprep.subr.mxu0 0.0
        %6917 = vmatpush1.msra.mxu0 0.0
        %6918 = vmatprep.subr.mxu0 0.0
        %6919 = vmatpush1.msra.mxu0 0.0
        %6920 = vmatprep.subr.mxu0 0.0
        %6921 = vmatpush1.msra.mxu0 0.0
        %6922 = vmatprep.subr.mxu0 0.0
        %6923 = vmatpush1.msra.mxu0 0.0
        %6924 = vmatprep.subr.mxu0 0.0
        %6925 = vmatpush1.msra.mxu0 0.0
        %6926 = vmatprep.subr.mxu0 0.0
        %6927 = vmatpush1.msra.mxu0 0.0
        %6928 = vmatprep.subr.mxu0 0.0
        %6929 = vmatpush1.msra.mxu0 0.0
        %6930 = vmatprep.subr.mxu0 0.0
        %6931 = vmatpush1.msra.mxu0 0.0
        %6932 = vmatprep.subr.mxu0 0.0
        %6933 = vmatpush1.msra.mxu0 0.0
        %6934 = vmatprep.subr.mxu0 0.0
        %6935 = vmatpush1.msra.mxu0 0.0
        %6936 = vmatprep.subr.mxu0 0.0
        %6937 = vmatpush1.msra.mxu0 0.0
        %6938 = vmatprep.subr.mxu0 0.0
        %6939 = vmatpush1.msra.mxu0 0.0
        %6940 = vmatprep.subr.mxu0 0.0
        %6941 = vmatpush1.msra.mxu0 0.0
        %6942 = vmatprep.subr.mxu0 0.0
        %6943 = vmatpush1.msra.mxu0 0.0
        %6944 = vmatprep.subr.mxu0 0.0
        %6945 = vmatpush1.msra.mxu0 0.0
        %6946 = vmatprep.subr.mxu0 0.0
        %6947 = vmatpush1.msra.mxu0 0.0
        %6948 = vmatprep.subr.mxu0 0.0
        %6949 = vmatpush1.msra.mxu0 0.0
        %6950 = vmatprep.subr.mxu0 0.0
        %6951 = vmatpush1.msra.mxu0 0.0
        %6952 = vmatprep.subr.mxu0 0.0
        %6953 = vmatpush1.msra.mxu0 0.0
        %6954 = vmatprep.subr.mxu0 0.0
        %6955 = vmatpush1.msra.mxu0 0.0
        %6956 = vmatprep.subr.mxu0 0.0
        %6957 = vmatpush1.msra.mxu0 0.0
        %6958 = vmatprep.subr.mxu0 0.0
        %6959 = vmatpush1.msra.mxu0 0.0
        %6960 = vmatprep.subr.mxu0 0.0
        %6961 = vmatpush1.msra.mxu0 0.0
        %6962 = vmatprep.subr.mxu0 0.0
        %6963 = vmatpush1.msra.mxu0 0.0
        %6964 = vmatprep.subr.mxu0 0.0
        %6965 = vmatpush1.msra.mxu0 0.0
        %6966 = vmatprep.subr.mxu0 0.0
        %6967 = vmatpush1.msra.mxu0 0.0
        %6968 = vmatprep.subr.mxu0 0.0
        %6969 = vmatpush1.msra.mxu0 0.0
        %6970 = vmatprep.subr.mxu0 0.0
        %6971 = vmatpush1.msra.mxu0 0.0
        %6972 = vmatprep.subr.mxu0 0.0
        %6973 = vmatpush1.msra.mxu0 0.0
        %6974 = vmatprep.subr.mxu0 0.0
        %6975 = vmatpush1.msra.mxu0 0.0
        %6976 = vmatprep.subr.mxu0 0.0
        %6977 = vmatpush1.msra.mxu0 0.0
        %6978 = vmatprep.mubr.f32.mxu0 0.0
        %6979 = vmatmul.mubr.f32.gmra.mrb[0].mxu0 %v6912
        %v6980 = vpop.f32.mrb[0].mxu0
        %v6981 = vadd.f32 0.0, %v6980
        %v6982 = vpop.f32.mrb[0].mxu0
        %6983 = vdwg.mxu0
        %6984 = vrot.lane.b32.xlu0 %v4434, 96
        %v6985 = vpop.permute.xlu0 %6984
        %v6988 = vsel %vm1953, %v6368, 0
        %6990 = vmatprep.subr.mxu0 0.0
        %6991 = vmatpush1.msra.mxu0 %v6985
        %6992 = vmatprep.subr.mxu0 0.0
        %6993 = vmatpush1.msra.mxu0 0.0
        %6994 = vmatprep.subr.mxu0 0.0
        %6995 = vmatpush1.msra.mxu0 0.0
        %6996 = vmatprep.subr.mxu0 0.0
        %6997 = vmatpush1.msra.mxu0 0.0
        %6998 = vmatprep.subr.mxu0 0.0
        %6999 = vmatpush1.msra.mxu0 0.0
        %7000 = vmatprep.subr.mxu0 0.0
        %7001 = vmatpush1.msra.mxu0 0.0
        %7002 = vmatprep.subr.mxu0 0.0
        %7003 = vmatpush1.msra.mxu0 0.0
        %7004 = vmatprep.subr.mxu0 0.0
        %7005 = vmatpush1.msra.mxu0 0.0
        %7006 = vmatprep.subr.mxu0 0.0
        %7007 = vmatpush1.msra.mxu0 0.0
        %7008 = vmatprep.subr.mxu0 0.0
        %7009 = vmatpush1.msra.mxu0 0.0
        %7010 = vmatprep.subr.mxu0 0.0
        %7011 = vmatpush1.msra.mxu0 0.0
        %7012 = vmatprep.subr.mxu0 0.0
        %7013 = vmatpush1.msra.mxu0 0.0
        %7014 = vmatprep.subr.mxu0 0.0
        %7015 = vmatpush1.msra.mxu0 0.0
        %7016 = vmatprep.subr.mxu0 0.0
        %7017 = vmatpush1.msra.mxu0 0.0
        %7018 = vmatprep.subr.mxu0 0.0
        %7019 = vmatpush1.msra.mxu0 0.0
        %7020 = vmatprep.subr.mxu0 0.0
        %7021 = vmatpush1.msra.mxu0 0.0
        %7022 = vmatprep.subr.mxu0 0.0
        %7023 = vmatpush1.msra.mxu0 0.0
        %7024 = vmatprep.subr.mxu0 0.0
        %7025 = vmatpush1.msra.mxu0 0.0
        %7026 = vmatprep.subr.mxu0 0.0
        %7027 = vmatpush1.msra.mxu0 0.0
        %7028 = vmatprep.subr.mxu0 0.0
        %7029 = vmatpush1.msra.mxu0 0.0
        %7030 = vmatprep.subr.mxu0 0.0
        %7031 = vmatpush1.msra.mxu0 0.0
        %7032 = vmatprep.subr.mxu0 0.0
        %7033 = vmatpush1.msra.mxu0 0.0
        %7034 = vmatprep.subr.mxu0 0.0
        %7035 = vmatpush1.msra.mxu0 0.0
        %7036 = vmatprep.subr.mxu0 0.0
        %7037 = vmatpush1.msra.mxu0 0.0
        %7038 = vmatprep.subr.mxu0 0.0
        %7039 = vmatpush1.msra.mxu0 0.0
        %7040 = vmatprep.subr.mxu0 0.0
        %7041 = vmatpush1.msra.mxu0 0.0
        %7042 = vmatprep.subr.mxu0 0.0
        %7043 = vmatpush1.msra.mxu0 0.0
        %7044 = vmatprep.subr.mxu0 0.0
        %7045 = vmatpush1.msra.mxu0 0.0
        %7046 = vmatprep.subr.mxu0 0.0
        %7047 = vmatpush1.msra.mxu0 0.0
        %7048 = vmatprep.subr.mxu0 0.0
        %7049 = vmatpush1.msra.mxu0 0.0
        %7050 = vmatprep.subr.mxu0 0.0
        %7051 = vmatpush1.msra.mxu0 0.0
        %7052 = vmatprep.subr.mxu0 0.0
        %7053 = vmatpush1.msra.mxu0 0.0
        %7054 = vmatprep.mubr.f32.mxu0 0.0
        %7055 = vmatmul.mubr.f32.gmra.mrb[0].mxu0 %v6988
        %v7056 = vpop.f32.mrb[0].mxu0
        %v7057 = vadd.f32 0.0, %v7056
        %v7058 = vpop.f32.mrb[0].mxu0
        %7059 = vdwg.mxu0
        %7060 = vrot.lane.b32.xlu0 %v4439, 96
        %v7061 = vpop.permute.xlu0 %7060
        %v7064 = vsel %vm1953, %v6369, 0
        %7066 = vmatprep.subr.mxu0 0.0
        %7067 = vmatpush1.msra.mxu0 %v7061
        %7068 = vmatprep.subr.mxu0 0.0
        %7069 = vmatpush1.msra.mxu0 0.0
        %7070 = vmatprep.subr.mxu0 0.0
        %7071 = vmatpush1.msra.mxu0 0.0
        %7072 = vmatprep.subr.mxu0 0.0
        %7073 = vmatpush1.msra.mxu0 0.0
        %7074 = vmatprep.subr.mxu0 0.0
        %7075 = vmatpush1.msra.mxu0 0.0
        %7076 = vmatprep.subr.mxu0 0.0
        %7077 = vmatpush1.msra.mxu0 0.0
        %7078 = vmatprep.subr.mxu0 0.0
        %7079 = vmatpush1.msra.mxu0 0.0
        %7080 = vmatprep.subr.mxu0 0.0
        %7081 = vmatpush1.msra.mxu0 0.0
        %7082 = vmatprep.subr.mxu0 0.0
        %7083 = vmatpush1.msra.mxu0 0.0
        %7084 = vmatprep.subr.mxu0 0.0
        %7085 = vmatpush1.msra.mxu0 0.0
        %7086 = vmatprep.subr.mxu0 0.0
        %7087 = vmatpush1.msra.mxu0 0.0
        %7088 = vmatprep.subr.mxu0 0.0
        %7089 = vmatpush1.msra.mxu0 0.0
        %7090 = vmatprep.subr.mxu0 0.0
        %7091 = vmatpush1.msra.mxu0 0.0
        %7092 = vmatprep.subr.mxu0 0.0
        %7093 = vmatpush1.msra.mxu0 0.0
        %7094 = vmatprep.subr.mxu0 0.0
        %7095 = vmatpush1.msra.mxu0 0.0
        %7096 = vmatprep.subr.mxu0 0.0
        %7097 = vmatpush1.msra.mxu0 0.0
        %7098 = vmatprep.subr.mxu0 0.0
        %7099 = vmatpush1.msra.mxu0 0.0
        %7100 = vmatprep.subr.mxu0 0.0
        %7101 = vmatpush1.msra.mxu0 0.0
        %7102 = vmatprep.subr.mxu0 0.0
        %7103 = vmatpush1.msra.mxu0 0.0
        %7104 = vmatprep.subr.mxu0 0.0
        %7105 = vmatpush1.msra.mxu0 0.0
        %7106 = vmatprep.subr.mxu0 0.0
        %7107 = vmatpush1.msra.mxu0 0.0
        %7108 = vmatprep.subr.mxu0 0.0
        %7109 = vmatpush1.msra.mxu0 0.0
        %7110 = vmatprep.subr.mxu0 0.0
        %7111 = vmatpush1.msra.mxu0 0.0
        %7112 = vmatprep.subr.mxu0 0.0
        %7113 = vmatpush1.msra.mxu0 0.0
        %7114 = vmatprep.subr.mxu0 0.0
        %7115 = vmatpush1.msra.mxu0 0.0
        %7116 = vmatprep.subr.mxu0 0.0
        %7117 = vmatpush1.msra.mxu0 0.0
        %7118 = vmatprep.subr.mxu0 0.0
        %7119 = vmatpush1.msra.mxu0 0.0
        %7120 = vmatprep.subr.mxu0 0.0
        %7121 = vmatpush1.msra.mxu0 0.0
        %7122 = vmatprep.subr.mxu0 0.0
        %7123 = vmatpush1.msra.mxu0 0.0
        %7124 = vmatprep.subr.mxu0 0.0
        %7125 = vmatpush1.msra.mxu0 0.0
        %7126 = vmatprep.subr.mxu0 0.0
        %7127 = vmatpush1.msra.mxu0 0.0
        %7128 = vmatprep.subr.mxu0 0.0
        %7129 = vmatpush1.msra.mxu0 0.0
        %7130 = vmatprep.mubr.f32.mxu0 0.0
        %7131 = vmatmul.mubr.f32.gmra.mrb[0].mxu0 %v7064
        %v7132 = vpop.f32.mrb[0].mxu0
        %v7133 = vadd.f32 0.0, %v7132
        %v7134 = vpop.f32.mrb[0].mxu0
        %7135 = vdwg.mxu0
        %7136 = vrot.lane.b32.xlu0 %v4444, 96
        %v7137 = vpop.permute.xlu0 %7136
        %v7140 = vsel %vm1953, %v6370, 0
        %7142 = vmatprep.subr.mxu0 0.0
        %7143 = vmatpush1.msra.mxu0 %v7137
        %7144 = vmatprep.subr.mxu0 0.0
        %7145 = vmatpush1.msra.mxu0 0.0
        %7146 = vmatprep.subr.mxu0 0.0
        %7147 = vmatpush1.msra.mxu0 0.0
        %7148 = vmatprep.subr.mxu0 0.0
        %7149 = vmatpush1.msra.mxu0 0.0
        %7150 = vmatprep.subr.mxu0 0.0
        %7151 = vmatpush1.msra.mxu0 0.0
        %7152 = vmatprep.subr.mxu0 0.0
        %7153 = vmatpush1.msra.mxu0 0.0
        %7154 = vmatprep.subr.mxu0 0.0
        %7155 = vmatpush1.msra.mxu0 0.0
        %7156 = vmatprep.subr.mxu0 0.0
        %7157 = vmatpush1.msra.mxu0 0.0
        %7158 = vmatprep.subr.mxu0 0.0
        %7159 = vmatpush1.msra.mxu0 0.0
        %7160 = vmatprep.subr.mxu0 0.0
        %7161 = vmatpush1.msra.mxu0 0.0
        %7162 = vmatprep.subr.mxu0 0.0
        %7163 = vmatpush1.msra.mxu0 0.0
        %7164 = vmatprep.subr.mxu0 0.0
        %7165 = vmatpush1.msra.mxu0 0.0
        %7166 = vmatprep.subr.mxu0 0.0
        %7167 = vmatpush1.msra.mxu0 0.0
        %7168 = vmatprep.subr.mxu0 0.0
        %7169 = vmatpush1.msra.mxu0 0.0
        %7170 = vmatprep.subr.mxu0 0.0
        %7171 = vmatpush1.msra.mxu0 0.0
        %7172 = vmatprep.subr.mxu0 0.0
        %7173 = vmatpush1.msra.mxu0 0.0
        %7174 = vmatprep.subr.mxu0 0.0
        %7175 = vmatpush1.msra.mxu0 0.0
        %7176 = vmatprep.subr.mxu0 0.0
        %7177 = vmatpush1.msra.mxu0 0.0
        %7178 = vmatprep.subr.mxu0 0.0
        %7179 = vmatpush1.msra.mxu0 0.0
        %7180 = vmatprep.subr.mxu0 0.0
        %7181 = vmatpush1.msra.mxu0 0.0
        %7182 = vmatprep.subr.mxu0 0.0
        %7183 = vmatpush1.msra.mxu0 0.0
        %7184 = vmatprep.subr.mxu0 0.0
        %7185 = vmatpush1.msra.mxu0 0.0
        %7186 = vmatprep.subr.mxu0 0.0
        %7187 = vmatpush1.msra.mxu0 0.0
        %7188 = vmatprep.subr.mxu0 0.0
        %7189 = vmatpush1.msra.mxu0 0.0
        %7190 = vmatprep.subr.mxu0 0.0
        %7191 = vmatpush1.msra.mxu0 0.0
        %7192 = vmatprep.subr.mxu0 0.0
        %7193 = vmatpush1.msra.mxu0 0.0
        %7194 = vmatprep.subr.mxu0 0.0
        %7195 = vmatpush1.msra.mxu0 0.0
        %7196 = vmatprep.subr.mxu0 0.0
        %7197 = vmatpush1.msra.mxu0 0.0
        %7198 = vmatprep.subr.mxu0 0.0
        %7199 = vmatpush1.msra.mxu0 0.0
        %7200 = vmatprep.subr.mxu0 0.0
        %7201 = vmatpush1.msra.mxu0 0.0
        %7202 = vmatprep.subr.mxu0 0.0
        %7203 = vmatpush1.msra.mxu0 0.0
        %7204 = vmatprep.subr.mxu0 0.0
        %7205 = vmatpush1.msra.mxu0 0.0
        %7206 = vmatprep.mubr.f32.mxu0 0.0
        %7207 = vmatmul.mubr.f32.gmra.mrb[0].mxu0 %v7140
        %v7208 = vpop.f32.mrb[0].mxu0
        %v7209 = vadd.f32 0.0, %v7208
        %v7210 = vpop.f32.mrb[0].mxu0
        %7211 = vdwg.mxu0
        %7212 = vrot.lane.b32.xlu0 %v4449, 96
        %v7213 = vpop.permute.xlu0 %7212
        %v7216 = vsel %vm1953, %v6371, 0
        %7218 = vmatprep.subr.mxu0 0.0
        %7219 = vmatpush1.msra.mxu0 %v7213
        %7220 = vmatprep.subr.mxu0 0.0
        %7221 = vmatpush1.msra.mxu0 0.0
        %7222 = vmatprep.subr.mxu0 0.0
        %7223 = vmatpush1.msra.mxu0 0.0
        %7224 = vmatprep.subr.mxu0 0.0
        %7225 = vmatpush1.msra.mxu0 0.0
        %7226 = vmatprep.subr.mxu0 0.0
        %7227 = vmatpush1.msra.mxu0 0.0
        %7228 = vmatprep.subr.mxu0 0.0
        %7229 = vmatpush1.msra.mxu0 0.0
        %7230 = vmatprep.subr.mxu0 0.0
        %7231 = vmatpush1.msra.mxu0 0.0
        %7232 = vmatprep.subr.mxu0 0.0
        %7233 = vmatpush1.msra.mxu0 0.0
        %7234 = vmatprep.subr.mxu0 0.0
        %7235 = vmatpush1.msra.mxu0 0.0
        %7236 = vmatprep.subr.mxu0 0.0
        %7237 = vmatpush1.msra.mxu0 0.0
        %7238 = vmatprep.subr.mxu0 0.0
        %7239 = vmatpush1.msra.mxu0 0.0
        %7240 = vmatprep.subr.mxu0 0.0
        %7241 = vmatpush1.msra.mxu0 0.0
        %7242 = vmatprep.subr.mxu0 0.0
        %7243 = vmatpush1.msra.mxu0 0.0
        %7244 = vmatprep.subr.mxu0 0.0
        %7245 = vmatpush1.msra.mxu0 0.0
        %7246 = vmatprep.subr.mxu0 0.0
        %7247 = vmatpush1.msra.mxu0 0.0
        %7248 = vmatprep.subr.mxu0 0.0
        %7249 = vmatpush1.msra.mxu0 0.0
        %7250 = vmatprep.subr.mxu0 0.0
        %7251 = vmatpush1.msra.mxu0 0.0
        %7252 = vmatprep.subr.mxu0 0.0
        %7253 = vmatpush1.msra.mxu0 0.0
        %7254 = vmatprep.subr.mxu0 0.0
        %7255 = vmatpush1.msra.mxu0 0.0
        %7256 = vmatprep.subr.mxu0 0.0
        %7257 = vmatpush1.msra.mxu0 0.0
        %7258 = vmatprep.subr.mxu0 0.0
        %7259 = vmatpush1.msra.mxu0 0.0
        %7260 = vmatprep.subr.mxu0 0.0
        %7261 = vmatpush1.msra.mxu0 0.0
        %7262 = vmatprep.subr.mxu0 0.0
        %7263 = vmatpush1.msra.mxu0 0.0
        %7264 = vmatprep.subr.mxu0 0.0
        %7265 = vmatpush1.msra.mxu0 0.0
        %7266 = vmatprep.subr.mxu0 0.0
        %7267 = vmatpush1.msra.mxu0 0.0
        %7268 = vmatprep.subr.mxu0 0.0
        %7269 = vmatpush1.msra.mxu0 0.0
        %7270 = vmatprep.subr.mxu0 0.0
        %7271 = vmatpush1.msra.mxu0 0.0
        %7272 = vmatprep.subr.mxu0 0.0
        %7273 = vmatpush1.msra.mxu0 0.0
        %7274 = vmatprep.subr.mxu0 0.0
        %7275 = vmatpush1.msra.mxu0 0.0
        %7276 = vmatprep.subr.mxu0 0.0
        %7277 = vmatpush1.msra.mxu0 0.0
        %7278 = vmatprep.subr.mxu0 0.0
        %7279 = vmatpush1.msra.mxu0 0.0
        %7280 = vmatprep.subr.mxu0 0.0
        %7281 = vmatpush1.msra.mxu0 0.0
        %7282 = vmatprep.mubr.f32.mxu0 0.0
        %7283 = vmatmul.mubr.f32.gmra.mrb[0].mxu0 %v7216
        %v7284 = vpop.f32.mrb[0].mxu0
        %v7285 = vadd.f32 0.0, %v7284
        %v7286 = vpop.f32.mrb[0].mxu0
        %7287 = vdwg.mxu0
        %7288 = vrot.lane.b32.xlu0 %v4454, 96
        %v7289 = vpop.permute.xlu0 %7288
        %v7292 = vsel %vm1953, %v6372, 0
        %7294 = vmatprep.subr.mxu0 0.0
        %7295 = vmatpush1.msra.mxu0 %v7289
        %7296 = vmatprep.subr.mxu0 0.0
        %7297 = vmatpush1.msra.mxu0 0.0
        %7298 = vmatprep.subr.mxu0 0.0
        %7299 = vmatpush1.msra.mxu0 0.0
        %7300 = vmatprep.subr.mxu0 0.0
        %7301 = vmatpush1.msra.mxu0 0.0
        %7302 = vmatprep.subr.mxu0 0.0
        %7303 = vmatpush1.msra.mxu0 0.0
        %7304 = vmatprep.subr.mxu0 0.0
        %7305 = vmatpush1.msra.mxu0 0.0
        %7306 = vmatprep.subr.mxu0 0.0
        %7307 = vmatpush1.msra.mxu0 0.0
        %7308 = vmatprep.subr.mxu0 0.0
        %7309 = vmatpush1.msra.mxu0 0.0
        %7310 = vmatprep.subr.mxu0 0.0
        %7311 = vmatpush1.msra.mxu0 0.0
        %7312 = vmatprep.subr.mxu0 0.0
        %7313 = vmatpush1.msra.mxu0 0.0
        %7314 = vmatprep.subr.mxu0 0.0
        %7315 = vmatpush1.msra.mxu0 0.0
        %7316 = vmatprep.subr.mxu0 0.0
        %7317 = vmatpush1.msra.mxu0 0.0
        %7318 = vmatprep.subr.mxu0 0.0
        %7319 = vmatpush1.msra.mxu0 0.0
        %7320 = vmatprep.subr.mxu0 0.0
        %7321 = vmatpush1.msra.mxu0 0.0
        %7322 = vmatprep.subr.mxu0 0.0
        %7323 = vmatpush1.msra.mxu0 0.0
        %7324 = vmatprep.subr.mxu0 0.0
        %7325 = vmatpush1.msra.mxu0 0.0
        %7326 = vmatprep.subr.mxu0 0.0
        %7327 = vmatpush1.msra.mxu0 0.0
        %7328 = vmatprep.subr.mxu0 0.0
        %7329 = vmatpush1.msra.mxu0 0.0
        %7330 = vmatprep.subr.mxu0 0.0
        %7331 = vmatpush1.msra.mxu0 0.0
        %7332 = vmatprep.subr.mxu0 0.0
        %7333 = vmatpush1.msra.mxu0 0.0
        %7334 = vmatprep.subr.mxu0 0.0
        %7335 = vmatpush1.msra.mxu0 0.0
        %7336 = vmatprep.subr.mxu0 0.0
        %7337 = vmatpush1.msra.mxu0 0.0
        %7338 = vmatprep.subr.mxu0 0.0
        %7339 = vmatpush1.msra.mxu0 0.0
        %7340 = vmatprep.subr.mxu0 0.0
        %7341 = vmatpush1.msra.mxu0 0.0
        %7342 = vmatprep.subr.mxu0 0.0
        %7343 = vmatpush1.msra.mxu0 0.0
        %7344 = vmatprep.subr.mxu0 0.0
        %7345 = vmatpush1.msra.mxu0 0.0
        %7346 = vmatprep.subr.mxu0 0.0
        %7347 = vmatpush1.msra.mxu0 0.0
        %7348 = vmatprep.subr.mxu0 0.0
        %7349 = vmatpush1.msra.mxu0 0.0
        %7350 = vmatprep.subr.mxu0 0.0
        %7351 = vmatpush1.msra.mxu0 0.0
        %7352 = vmatprep.subr.mxu0 0.0
        %7353 = vmatpush1.msra.mxu0 0.0
        %7354 = vmatprep.subr.mxu0 0.0
        %7355 = vmatpush1.msra.mxu0 0.0
        %7356 = vmatprep.subr.mxu0 0.0
        %7357 = vmatpush1.msra.mxu0 0.0
        %7358 = vmatprep.mubr.f32.mxu0 0.0
        %7359 = vmatmul.mubr.f32.gmra.mrb[0].mxu0 %v7292
        %v7360 = vpop.f32.mrb[0].mxu0
        %v7361 = vadd.f32 0.0, %v7360
        %v7362 = vpop.f32.mrb[0].mxu0
        %7363 = vdwg.mxu0
        %7364 = vrot.lane.b32.xlu0 %v4459, 96
        %v7365 = vpop.permute.xlu0 %7364
        %v7368 = vsel %vm1953, %v6373, 0
        %7370 = vmatprep.subr.mxu0 0.0
        %7371 = vmatpush1.msra.mxu0 %v7365
        %7372 = vmatprep.subr.mxu0 0.0
        %7373 = vmatpush1.msra.mxu0 0.0
        %7374 = vmatprep.subr.mxu0 0.0
        %7375 = vmatpush1.msra.mxu0 0.0
        %7376 = vmatprep.subr.mxu0 0.0
        %7377 = vmatpush1.msra.mxu0 0.0
        %7378 = vmatprep.subr.mxu0 0.0
        %7379 = vmatpush1.msra.mxu0 0.0
        %7380 = vmatprep.subr.mxu0 0.0
        %7381 = vmatpush1.msra.mxu0 0.0
        %7382 = vmatprep.subr.mxu0 0.0
        %7383 = vmatpush1.msra.mxu0 0.0
        %7384 = vmatprep.subr.mxu0 0.0
        %7385 = vmatpush1.msra.mxu0 0.0
        %7386 = vmatprep.subr.mxu0 0.0
        %7387 = vmatpush1.msra.mxu0 0.0
        %7388 = vmatprep.subr.mxu0 0.0
        %7389 = vmatpush1.msra.mxu0 0.0
        %7390 = vmatprep.subr.mxu0 0.0
        %7391 = vmatpush1.msra.mxu0 0.0
        %7392 = vmatprep.subr.mxu0 0.0
        %7393 = vmatpush1.msra.mxu0 0.0
        %7394 = vmatprep.subr.mxu0 0.0
        %7395 = vmatpush1.msra.mxu0 0.0
        %7396 = vmatprep.subr.mxu0 0.0
        %7397 = vmatpush1.msra.mxu0 0.0
        %7398 = vmatprep.subr.mxu0 0.0
        %7399 = vmatpush1.msra.mxu0 0.0
        %7400 = vmatprep.subr.mxu0 0.0
        %7401 = vmatpush1.msra.mxu0 0.0
        %7402 = vmatprep.subr.mxu0 0.0
        %7403 = vmatpush1.msra.mxu0 0.0
        %7404 = vmatprep.subr.mxu0 0.0
        %7405 = vmatpush1.msra.mxu0 0.0
        %7406 = vmatprep.subr.mxu0 0.0
        %7407 = vmatpush1.msra.mxu0 0.0
        %7408 = vmatprep.subr.mxu0 0.0
        %7409 = vmatpush1.msra.mxu0 0.0
        %7410 = vmatprep.subr.mxu0 0.0
        %7411 = vmatpush1.msra.mxu0 0.0
        %7412 = vmatprep.subr.mxu0 0.0
        %7413 = vmatpush1.msra.mxu0 0.0
        %7414 = vmatprep.subr.mxu0 0.0
        %7415 = vmatpush1.msra.mxu0 0.0
        %7416 = vmatprep.subr.mxu0 0.0
        %7417 = vmatpush1.msra.mxu0 0.0
        %7418 = vmatprep.subr.mxu0 0.0
        %7419 = vmatpush1.msra.mxu0 0.0
        %7420 = vmatprep.subr.mxu0 0.0
        %7421 = vmatpush1.msra.mxu0 0.0
        %7422 = vmatprep.subr.mxu0 0.0
        %7423 = vmatpush1.msra.mxu0 0.0
        %7424 = vmatprep.subr.mxu0 0.0
        %7425 = vmatpush1.msra.mxu0 0.0
        %7426 = vmatprep.subr.mxu0 0.0
        %7427 = vmatpush1.msra.mxu0 0.0
        %7428 = vmatprep.subr.mxu0 0.0
        %7429 = vmatpush1.msra.mxu0 0.0
        %7430 = vmatprep.subr.mxu0 0.0
        %7431 = vmatpush1.msra.mxu0 0.0
        %7432 = vmatprep.subr.mxu0 0.0
        %7433 = vmatpush1.msra.mxu0 0.0
        %7434 = vmatprep.mubr.f32.mxu0 0.0
        %7435 = vmatmul.mubr.f32.gmra.mrb[0].mxu0 %v7368
        %v7436 = vpop.f32.mrb[0].mxu0
        %v7437 = vadd.f32 0.0, %v7436
        %v7438 = vpop.f32.mrb[0].mxu0
        %7439 = vdwg.mxu0
        %7440 = vrot.lane.b32.xlu0 %v4464, 96
        %v7441 = vpop.permute.xlu0 %7440
        %v7444 = vsel %vm1953, %v6374, 0
        %7446 = vmatprep.subr.mxu0 0.0
        %7447 = vmatpush1.msra.mxu0 %v7441
        %7448 = vmatprep.subr.mxu0 0.0
        %7449 = vmatpush1.msra.mxu0 0.0
        %7450 = vmatprep.subr.mxu0 0.0
        %7451 = vmatpush1.msra.mxu0 0.0
        %7452 = vmatprep.subr.mxu0 0.0
        %7453 = vmatpush1.msra.mxu0 0.0
        %7454 = vmatprep.subr.mxu0 0.0
        %7455 = vmatpush1.msra.mxu0 0.0
        %7456 = vmatprep.subr.mxu0 0.0
        %7457 = vmatpush1.msra.mxu0 0.0
        %7458 = vmatprep.subr.mxu0 0.0
        %7459 = vmatpush1.msra.mxu0 0.0
        %7460 = vmatprep.subr.mxu0 0.0
        %7461 = vmatpush1.msra.mxu0 0.0
        %7462 = vmatprep.subr.mxu0 0.0
        %7463 = vmatpush1.msra.mxu0 0.0
        %7464 = vmatprep.subr.mxu0 0.0
        %7465 = vmatpush1.msra.mxu0 0.0
        %7466 = vmatprep.subr.mxu0 0.0
        %7467 = vmatpush1.msra.mxu0 0.0
        %7468 = vmatprep.subr.mxu0 0.0
        %7469 = vmatpush1.msra.mxu0 0.0
        %7470 = vmatprep.subr.mxu0 0.0
        %7471 = vmatpush1.msra.mxu0 0.0
        %7472 = vmatprep.subr.mxu0 0.0
        %7473 = vmatpush1.msra.mxu0 0.0
        %7474 = vmatprep.subr.mxu0 0.0
        %7475 = vmatpush1.msra.mxu0 0.0
        %7476 = vmatprep.subr.mxu0 0.0
        %7477 = vmatpush1.msra.mxu0 0.0
        %7478 = vmatprep.subr.mxu0 0.0
        %7479 = vmatpush1.msra.mxu0 0.0
        %7480 = vmatprep.subr.mxu0 0.0
        %7481 = vmatpush1.msra.mxu0 0.0
        %7482 = vmatprep.subr.mxu0 0.0
        %7483 = vmatpush1.msra.mxu0 0.0
        %7484 = vmatprep.subr.mxu0 0.0
        %7485 = vmatpush1.msra.mxu0 0.0
        %7486 = vmatprep.subr.mxu0 0.0
        %7487 = vmatpush1.msra.mxu0 0.0
        %7488 = vmatprep.subr.mxu0 0.0
        %7489 = vmatpush1.msra.mxu0 0.0
        %7490 = vmatprep.subr.mxu0 0.0
        %7491 = vmatpush1.msra.mxu0 0.0
        %7492 = vmatprep.subr.mxu0 0.0
        %7493 = vmatpush1.msra.mxu0 0.0
        %7494 = vmatprep.subr.mxu0 0.0
        %7495 = vmatpush1.msra.mxu0 0.0
        %7496 = vmatprep.subr.mxu0 0.0
        %7497 = vmatpush1.msra.mxu0 0.0
        %7498 = vmatprep.subr.mxu0 0.0
        %7499 = vmatpush1.msra.mxu0 0.0
        %7500 = vmatprep.subr.mxu0 0.0
        %7501 = vmatpush1.msra.mxu0 0.0
        %7502 = vmatprep.subr.mxu0 0.0
        %7503 = vmatpush1.msra.mxu0 0.0
        %7504 = vmatprep.subr.mxu0 0.0
        %7505 = vmatpush1.msra.mxu0 0.0
        %7506 = vmatprep.subr.mxu0 0.0
        %7507 = vmatpush1.msra.mxu0 0.0
        %7508 = vmatprep.subr.mxu0 0.0
        %7509 = vmatpush1.msra.mxu0 0.0
        %7510 = vmatprep.mubr.f32.mxu0 0.0
        %7511 = vmatmul.mubr.f32.gmra.mrb[0].mxu0 %v7444
        %v7512 = vpop.f32.mrb[0].mxu0
        %v7513 = vadd.f32 0.0, %v7512
        %v7514 = vpop.f32.mrb[0].mxu0
        %7515 = vdwg.mxu0
        %7516 = vrot.lane.b32.xlu0 %v4469, 96
        %v7517 = vpop.permute.xlu0 %7516
        %v7520 = vsel %vm1953, %v6375, 0
        %7522 = vmatprep.subr.mxu0 0.0
        %7523 = vmatpush1.msra.mxu0 %v7517
        %7524 = vmatprep.subr.mxu0 0.0
        %7525 = vmatpush1.msra.mxu0 0.0
        %7526 = vmatprep.subr.mxu0 0.0
        %7527 = vmatpush1.msra.mxu0 0.0
        %7528 = vmatprep.subr.mxu0 0.0
        %7529 = vmatpush1.msra.mxu0 0.0
        %7530 = vmatprep.subr.mxu0 0.0
        %7531 = vmatpush1.msra.mxu0 0.0
        %7532 = vmatprep.subr.mxu0 0.0
        %7533 = vmatpush1.msra.mxu0 0.0
        %7534 = vmatprep.subr.mxu0 0.0
        %7535 = vmatpush1.msra.mxu0 0.0
        %7536 = vmatprep.subr.mxu0 0.0
        %7537 = vmatpush1.msra.mxu0 0.0
        %7538 = vmatprep.subr.mxu0 0.0
        %7539 = vmatpush1.msra.mxu0 0.0
        %7540 = vmatprep.subr.mxu0 0.0
        %7541 = vmatpush1.msra.mxu0 0.0
        %7542 = vmatprep.subr.mxu0 0.0
        %7543 = vmatpush1.msra.mxu0 0.0
        %7544 = vmatprep.subr.mxu0 0.0
        %7545 = vmatpush1.msra.mxu0 0.0
        %7546 = vmatprep.subr.mxu0 0.0
        %7547 = vmatpush1.msra.mxu0 0.0
        %7548 = vmatprep.subr.mxu0 0.0
        %7549 = vmatpush1.msra.mxu0 0.0
        %7550 = vmatprep.subr.mxu0 0.0
        %7551 = vmatpush1.msra.mxu0 0.0
        %7552 = vmatprep.subr.mxu0 0.0
        %7553 = vmatpush1.msra.mxu0 0.0
        %7554 = vmatprep.subr.mxu0 0.0
        %7555 = vmatpush1.msra.mxu0 0.0
        %7556 = vmatprep.subr.mxu0 0.0
        %7557 = vmatpush1.msra.mxu0 0.0
        %7558 = vmatprep.subr.mxu0 0.0
        %7559 = vmatpush1.msra.mxu0 0.0
        %7560 = vmatprep.subr.mxu0 0.0
        %7561 = vmatpush1.msra.mxu0 0.0
        %7562 = vmatprep.subr.mxu0 0.0
        %7563 = vmatpush1.msra.mxu0 0.0
        %7564 = vmatprep.subr.mxu0 0.0
        %7565 = vmatpush1.msra.mxu0 0.0
        %7566 = vmatprep.subr.mxu0 0.0
        %7567 = vmatpush1.msra.mxu0 0.0
        %7568 = vmatprep.subr.mxu0 0.0
        %7569 = vmatpush1.msra.mxu0 0.0
        %7570 = vmatprep.subr.mxu0 0.0
        %7571 = vmatpush1.msra.mxu0 0.0
        %7572 = vmatprep.subr.mxu0 0.0
        %7573 = vmatpush1.msra.mxu0 0.0
        %7574 = vmatprep.subr.mxu0 0.0
        %7575 = vmatpush1.msra.mxu0 0.0
        %7576 = vmatprep.subr.mxu0 0.0
        %7577 = vmatpush1.msra.mxu0 0.0
        %7578 = vmatprep.subr.mxu0 0.0
        %7579 = vmatpush1.msra.mxu0 0.0
        %7580 = vmatprep.subr.mxu0 0.0
        %7581 = vmatpush1.msra.mxu0 0.0
        %7582 = vmatprep.subr.mxu0 0.0
        %7583 = vmatpush1.msra.mxu0 0.0
        %7584 = vmatprep.subr.mxu0 0.0
        %7585 = vmatpush1.msra.mxu0 0.0
        %7586 = vmatprep.mubr.f32.mxu0 0.0
        %7587 = vmatmul.mubr.f32.gmra.mrb[0].mxu0 %v7520
        %v7588 = vpop.f32.mrb[0].mxu0
        %v7589 = vadd.f32 0.0, %v7588
        %v7590 = vpop.f32.mrb[0].mxu0
        %7591 = vdwg.mxu0
        %v7592 = vcombine.low %v7057, %v7209
        %v7593 = vcombine.high %v7057, %v7209
        %v7595 = vunpack.c.l.s4 1983009808
        %v7596 = vunpack.c.0.s8 %v7595
        %v7597 = vlaneseq
        %v7598 = vshrl.u32 %v7597, 7
        %v7599 = vsub.s32 %v7596, %v7598
        %v7600 = vrot.slane %v7592, %v7599
        %v7602 = vunpack.c.l.s4 1983009808
        %v7603 = vunpack.c.0.s8 %v7602
        %v7604 = vlaneseq
        %v7605 = vshrl.u32 %v7604, 7
        %v7606 = vsub.s32 %v7603, %v7605
        %v7607 = vrot.slane %v7593, %v7606
        %v7608 = vcombine.low %v7133, %v7285
        %v7609 = vcombine.high %v7133, %v7285
        %v7611 = vunpack.c.l.s4 1983009808
        %v7612 = vunpack.c.0.s8 %v7611
        %v7613 = vlaneseq
        %v7614 = vshrl.u32 %v7613, 7
        %v7615 = vsub.s32 %v7612, %v7614
        %v7616 = vrot.slane %v7608, %v7615
        %v7618 = vunpack.c.l.s4 1983009808
        %v7619 = vunpack.c.0.s8 %v7618
        %v7620 = vlaneseq
        %v7621 = vshrl.u32 %v7620, 7
        %v7622 = vsub.s32 %v7619, %v7621
        %v7623 = vrot.slane %v7609, %v7622
        %v7624 = vcombine.low %v7361, %v7513
        %v7625 = vcombine.high %v7361, %v7513
        %v7627 = vunpack.c.l.s4 1983009808
        %v7628 = vunpack.c.0.s8 %v7627
        %v7629 = vlaneseq
        %v7630 = vshrl.u32 %v7629, 7
        %v7631 = vsub.s32 %v7628, %v7630
        %v7632 = vrot.slane %v7624, %v7631
        %v7634 = vunpack.c.l.s4 1983009808
        %v7635 = vunpack.c.0.s8 %v7634
        %v7636 = vlaneseq
        %v7637 = vshrl.u32 %v7636, 7
        %v7638 = vsub.s32 %v7635, %v7637
        %v7639 = vrot.slane %v7625, %v7638
        %v7640 = vcombine.low %v7437, %v7589
        %v7641 = vcombine.high %v7437, %v7589
        %v7643 = vunpack.c.l.s4 1983009808
        %v7644 = vunpack.c.0.s8 %v7643
        %v7645 = vlaneseq
        %v7646 = vshrl.u32 %v7645, 7
        %v7647 = vsub.s32 %v7644, %v7646
        %v7648 = vrot.slane %v7640, %v7647
        %v7650 = vunpack.c.l.s4 1983009808
        %v7651 = vunpack.c.0.s8 %v7650
        %v7652 = vlaneseq
        %v7653 = vshrl.u32 %v7652, 7
        %v7654 = vsub.s32 %v7651, %v7653
        %v7655 = vrot.slane %v7641, %v7654
        %v7656 = vcombine.low %v7600, %v7616
        %v7657 = vcombine.high %v7600, %v7616
        %v7659 = vunpack.c.l.s4 1934713408
        %v7660 = vunpack.c.0.s8 %v7659
        %v7661 = vlaneseq
        %v7662 = vshrl.u32 %v7661, 7
        %v7663 = vsub.s32 %v7660, %v7662
        %v7664 = vrot.slane %v7656, %v7663
        %v7666 = vunpack.c.l.s4 1934713408
        %v7667 = vunpack.c.0.s8 %v7666
        %v7668 = vlaneseq
        %v7669 = vshrl.u32 %v7668, 7
        %v7670 = vsub.s32 %v7667, %v7669
        %v7671 = vrot.slane %v7657, %v7670
        %v7672 = vcombine.low %v7607, %v7623
        %v7673 = vcombine.high %v7607, %v7623
        %v7675 = vunpack.c.l.s4 1934713408
        %v7676 = vunpack.c.0.s8 %v7675
        %v7677 = vlaneseq
        %v7678 = vshrl.u32 %v7677, 7
        %v7679 = vsub.s32 %v7676, %v7678
        %v7680 = vrot.slane %v7672, %v7679
        %v7682 = vunpack.c.l.s4 1934713408
        %v7683 = vunpack.c.0.s8 %v7682
        %v7684 = vlaneseq
        %v7685 = vshrl.u32 %v7684, 7
        %v7686 = vsub.s32 %v7683, %v7685
        %v7687 = vrot.slane %v7673, %v7686
        %v7688 = vcombine.low %v7632, %v7648
        %v7689 = vcombine.high %v7632, %v7648
        %v7691 = vunpack.c.l.s4 1934713408
        %v7692 = vunpack.c.0.s8 %v7691
        %v7693 = vlaneseq
        %v7694 = vshrl.u32 %v7693, 7
        %v7695 = vsub.s32 %v7692, %v7694
        %v7696 = vrot.slane %v7688, %v7695
        %v7698 = vunpack.c.l.s4 1934713408
        %v7699 = vunpack.c.0.s8 %v7698
        %v7700 = vlaneseq
        %v7701 = vshrl.u32 %v7700, 7
        %v7702 = vsub.s32 %v7699, %v7701
        %v7703 = vrot.slane %v7689, %v7702
        %v7704 = vcombine.low %v7639, %v7655
        %v7705 = vcombine.high %v7639, %v7655
        %v7707 = vunpack.c.l.s4 1934713408
        %v7708 = vunpack.c.0.s8 %v7707
        %v7709 = vlaneseq
        %v7710 = vshrl.u32 %v7709, 7
        %v7711 = vsub.s32 %v7708, %v7710
        %v7712 = vrot.slane %v7704, %v7711
        %v7714 = vunpack.c.l.s4 1934713408
        %v7715 = vunpack.c.0.s8 %v7714
        %v7716 = vlaneseq
        %v7717 = vshrl.u32 %v7716, 7
        %v7718 = vsub.s32 %v7715, %v7717
        %v7719 = vrot.slane %v7705, %v7718
        %v7720 = vcombine.low %v7664, %v7696
        %v7721 = vcombine.high %v7664, %v7696
        %v7722 = vcombine.low %v7671, %v7703
        %v7723 = vcombine.high %v7671, %v7703
        %v7724 = vcombine.low %v7680, %v7712
        %v7725 = vcombine.high %v7680, %v7712
        %v7726 = vcombine.low %v7687, %v7719
        %v7727 = vcombine.high %v7687, %v7719
        %v7728 = vadd.f32 %v7720, %v6449
        %v7729 = vadd.f32 %v7721, %v6525
        %v7730 = vadd.f32 %v7722, %v6601
        %v7731 = vadd.f32 %v7723, %v6677
        %v7732 = vadd.f32 %v7724, %v6753
        %v7733 = vadd.f32 %v7725, %v6829
        %v7734 = vadd.f32 %v7726, %v6905
        %v7735 = vadd.f32 %v7727, %v6981
        %v7736 = vstv %s4071
        %v7737 = vmul.f32 %v7736, %v7728
        %v7738 = vmul.f32 %v7736, %v7729
        %v7739 = vmul.f32 %v7736, %v7730
        %v7740 = vmul.f32 %v7736, %v7731
        %v7741 = vmul.f32 %v7736, %v7732
        %v7742 = vmul.f32 %v7736, %v7733
        %v7743 = vmul.f32 %v7736, %v7734
        %v7744 = vmul.f32 %v7736, %v7735
        %v7745 = vadd.f32 %v7737, %v4058
        %v7746 = vadd.f32 %v7738, %v4059
        %v7747 = vadd.f32 %v7739, %v4060
        %v7748 = vadd.f32 %v7740, %v4061
        %v7749 = vadd.f32 %v7741, %v4062
        %v7750 = vadd.f32 %v7742, %v4063
        %v7751 = vadd.f32 %v7743, %v4064
        %v7752 = vadd.f32 %v7744, %v4065
        %v7753 = vld [vmem:[#allocation9] sm:$0xff]
        %v7754 = vld [vmem:[#allocation9 + $0x8] sm:$0xff]
        %v7755 = vld [vmem:[#allocation9 + $0x10] sm:$0xff]
        %v7756 = vld [vmem:[#allocation9 + $0x18] sm:$0xff]
        %v7758 = vsel %vm511, %v7745, 0
        %v7761 = vsel %vm511, %v7746, 0
        %v7764 = vsel %vm511, %v7747, 0
        %v7767 = vsel %vm511, %v7748, 0
        %v7770 = vsel %vm511, %v7749, 0
        %v7773 = vsel %vm511, %v7750, 0
        %v7776 = vsel %vm511, %v7751, 0
        %v7779 = vsel %vm511, %v7752, 0
        %7781 = vmatprep.subr.mxu0 0.0
        %7782 = vmatpush1.msra.mxu0 %v7753
        %7783 = vmatprep.subr.mxu0 0.0
        %7784 = vmatpush1.msra.mxu0 %v7754
        %7785 = vmatprep.subr.mxu0 0.0
        %7786 = vmatpush1.msra.mxu0 %v7755
        %7787 = vmatprep.subr.mxu0 0.0
        %7788 = vmatpush1.msra.mxu0 %v7756
        %7789 = vmatprep.subr.mxu0 0.0
        %7790 = vmatpush1.msra.mxu0 0.0
        %7791 = vmatprep.subr.mxu0 0.0
        %7792 = vmatpush1.msra.mxu0 0.0
        %7793 = vmatprep.subr.mxu0 0.0
        %7794 = vmatpush1.msra.mxu0 0.0
        %7795 = vmatprep.subr.mxu0 0.0
        %7796 = vmatpush1.msra.mxu0 0.0
        %7797 = vmatprep.subr.mxu0 0.0
        %7798 = vmatpush1.msra.mxu0 0.0
        %7799 = vmatprep.subr.mxu0 0.0
        %7800 = vmatpush1.msra.mxu0 0.0
        %7801 = vmatprep.subr.mxu0 0.0
        %7802 = vmatpush1.msra.mxu0 0.0
        %7803 = vmatprep.subr.mxu0 0.0
        %7804 = vmatpush1.msra.mxu0 0.0
        %7805 = vmatprep.subr.mxu0 0.0
        %7806 = vmatpush1.msra.mxu0 0.0
        %7807 = vmatprep.subr.mxu0 0.0
        %7808 = vmatpush1.msra.mxu0 0.0
        %7809 = vmatprep.subr.mxu0 0.0
        %7810 = vmatpush1.msra.mxu0 0.0
        %7811 = vmatprep.subr.mxu0 0.0
        %7812 = vmatpush1.msra.mxu0 0.0
        %7813 = vmatprep.subr.mxu0 0.0
        %7814 = vmatpush1.msra.mxu0 0.0
        %7815 = vmatprep.subr.mxu0 0.0
        %7816 = vmatpush1.msra.mxu0 0.0
        %7817 = vmatprep.subr.mxu0 0.0
        %7818 = vmatpush1.msra.mxu0 0.0
        %7819 = vmatprep.subr.mxu0 0.0
        %7820 = vmatpush1.msra.mxu0 0.0
        %7821 = vmatprep.subr.mxu0 0.0
        %7822 = vmatpush1.msra.mxu0 0.0
        %7823 = vmatprep.subr.mxu0 0.0
        %7824 = vmatpush1.msra.mxu0 0.0
        %7825 = vmatprep.subr.mxu0 0.0
        %7826 = vmatpush1.msra.mxu0 0.0
        %7827 = vmatprep.subr.mxu0 0.0
        %7828 = vmatpush1.msra.mxu0 0.0
        %7829 = vmatprep.subr.mxu0 0.0
        %7830 = vmatpush1.msra.mxu0 0.0
        %7831 = vmatprep.subr.mxu0 0.0
        %7832 = vmatpush1.msra.mxu0 0.0
        %7833 = vmatprep.subr.mxu0 0.0
        %7834 = vmatpush1.msra.mxu0 0.0
        %7835 = vmatprep.subr.mxu0 0.0
        %7836 = vmatpush1.msra.mxu0 0.0
        %7837 = vmatprep.subr.mxu0 0.0
        %7838 = vmatpush1.msra.mxu0 0.0
        %7839 = vmatprep.subr.mxu0 0.0
        %7840 = vmatpush1.msra.mxu0 0.0
        %7841 = vmatprep.subr.mxu0 0.0
        %7842 = vmatpush1.msra.mxu0 0.0
        %7843 = vmatprep.subr.mxu0 0.0
        %7844 = vmatpush1.msra.mxu0 0.0
        %7845 = vmatprep.mubr.f32.mxu0 0.0
        %7846 = vmatmul.mubr.f32.gmra.mrb[0].mxu0 %v7758
        %v7847 = vpop.f32.mrb[0].mxu0
        %v7848 = vadd.f32 0.0, %v7847
        %v7849 = vpop.f32.mrb[0].mxu0
        %7850 = vmatprep.mubr.f32.mxu0 0.0
        %7851 = vmatmul.mubr.f32.gmra.mrb[0].mxu0 %v7761
        %v7852 = vpop.f32.mrb[0].mxu0
        %v7853 = vadd.f32 0.0, %v7852
        %v7854 = vpop.f32.mrb[0].mxu0
        %7855 = vmatprep.mubr.f32.mxu0 0.0
        %7856 = vmatmul.mubr.f32.gmra.mrb[0].mxu0 %v7764
        %v7857 = vpop.f32.mrb[0].mxu0
        %v7858 = vadd.f32 0.0, %v7857
        %v7859 = vpop.f32.mrb[0].mxu0
        %7860 = vmatprep.mubr.f32.mxu0 0.0
        %7861 = vmatmul.mubr.f32.gmra.mrb[0].mxu0 %v7767
        %v7862 = vpop.f32.mrb[0].mxu0
        %v7863 = vadd.f32 0.0, %v7862
        %v7864 = vpop.f32.mrb[0].mxu0
        %7865 = vmatprep.mubr.f32.mxu0 0.0
        %7866 = vmatmul.mubr.f32.gmra.mrb[0].mxu0 %v7770
        %v7867 = vpop.f32.mrb[0].mxu0
        %v7868 = vadd.f32 0.0, %v7867
        %v7869 = vpop.f32.mrb[0].mxu0
        %7870 = vmatprep.mubr.f32.mxu0 0.0
        %7871 = vmatmul.mubr.f32.gmra.mrb[0].mxu0 %v7773
        %v7872 = vpop.f32.mrb[0].mxu0
        %v7873 = vadd.f32 0.0, %v7872
        %v7874 = vpop.f32.mrb[0].mxu0
        %7875 = vmatprep.mubr.f32.mxu0 0.0
        %7876 = vmatmul.mubr.f32.gmra.mrb[0].mxu0 %v7776
        %v7877 = vpop.f32.mrb[0].mxu0
        %v7878 = vadd.f32 0.0, %v7877
        %v7879 = vpop.f32.mrb[0].mxu0
        %7880 = vmatprep.mubr.f32.mxu0 0.0
        %7881 = vmatmul.mubr.f32.gmra.mrb[0].mxu0 %v7779
        %v7882 = vpop.f32.mrb[0].mxu0
        %v7883 = vadd.f32 0.0, %v7882
        %v7884 = vpop.f32.mrb[0].mxu0
        %7885 = vdwg.mxu0
        %7894 = vrot.lane.b32.xlu0 %v7848, 64
        %v7895 = vpop.permute.xlu0 %7894
        %7896 = vrot.lane.b32.xlu0 %v7853, 64
        %v7897 = vpop.permute.xlu0 %7896
        %7898 = vrot.lane.b32.xlu0 %v7858, 64
        %v7899 = vpop.permute.xlu0 %7898
        %7900 = vrot.lane.b32.xlu0 %v7863, 64
        %v7901 = vpop.permute.xlu0 %7900
        %7902 = vrot.lane.b32.xlu0 %v7868, 64
        %v7903 = vpop.permute.xlu0 %7902
        %7904 = vrot.lane.b32.xlu0 %v7873, 64
        %v7905 = vpop.permute.xlu0 %7904
        %7906 = vrot.lane.b32.xlu0 %v7878, 64
        %v7907 = vpop.permute.xlu0 %7906
        %7908 = vrot.lane.b32.xlu0 %v7883, 64
        %v7909 = vpop.permute.xlu0 %7908
        %v7918 = vadd.f32 %v603, %v7895
        %v7919 = vadd.f32 %v608, %v7897
        %v7920 = vadd.f32 %v613, %v7899
        %v7921 = vadd.f32 %v618, %v7901
        %v7922 = vadd.f32 %v623, %v7903
        %v7923 = vadd.f32 %v628, %v7905
        %v7924 = vadd.f32 %v633, %v7907
        %v7925 = vadd.f32 %v638, %v7909
        %7934 = vrot.lane.b32.xlu0 %v7918, 64
        %v7935 = vpop.permute.xlu0 %7934
        %7936 = vrot.lane.b32.xlu0 %v7919, 64
        %v7937 = vpop.permute.xlu0 %7936
        %7938 = vrot.lane.b32.xlu0 %v7920, 64
        %v7939 = vpop.permute.xlu0 %7938
        %7940 = vrot.lane.b32.xlu0 %v7921, 64
        %v7941 = vpop.permute.xlu0 %7940
        %7942 = vrot.lane.b32.xlu0 %v7922, 64
        %v7943 = vpop.permute.xlu0 %7942
        %7944 = vrot.lane.b32.xlu0 %v7923, 64
        %v7945 = vpop.permute.xlu0 %7944
        %7946 = vrot.lane.b32.xlu0 %v7924, 64
        %v7947 = vpop.permute.xlu0 %7946
        %7948 = vrot.lane.b32.xlu0 %v7925, 64
        %v7949 = vpop.permute.xlu0 %7948
        %7958 = vst.msk [vmem:[%s354] sm:$0xff] %vm511, %v7935
        %7959 = vst.msk [vmem:[%s354 + $0x8] sm:$0xff] %vm511, %v7937
        %7960 = vst.msk [vmem:[%s354 + $0x10] sm:$0xff] %vm511, %v7939
        %7961 = vst.msk [vmem:[%s354 + $0x18] sm:$0xff] %vm511, %v7941
        %7962 = vst.msk [vmem:[%s354 + $0x20] sm:$0xff] %vm511, %v7943
        %7963 = vst.msk [vmem:[%s354 + $0x28] sm:$0xff] %vm511, %v7945
        %7964 = vst.msk [vmem:[%s354 + $0x30] sm:$0xff] %vm511, %v7947
        %7965 = vst.msk [vmem:[%s354 + $0x38] sm:$0xff] %vm511, %v7949
        %s7966 = sand.u32 %s187, 1
        %s7967 = scalar_lea.sflag [#allocation4], %s7966
        %s7968 = sand.u32 %s187, 1
        %s7969 = smul.addr %s7968, 64
        %s7970 = scalar_lea.vmem [#allocation12], %s7969
        // Predicated region
        $region69: #{_lambda_.1} parent=47 // pred_check
          %p7971 = pneg %p197
        $region70: #{_lambda_.1} parent=47 // pred_check_branch
          %7973 = sbr.rel (%p7971) target = $region72
        $region71: #{_lambda_.1} parent=47 // pred_region
          %s7975 = ssub.s32 1024, 1024
          %7976 = vsyncadd %s7967, %s7975
          %s7977 = smul.addr %s27, 8
          %s7978 = smul.addr %s7977, 128
          %s7979 = scalar_lea.hbm %s7, %s7978
          %s7980 = sshll.u32 %s7970, 4
          %s7981 = int_to_ptr.vmem [resolvable:$true] %s7980
          %7986 = dma.vmem_to_hbm [thread:$0]  %s7981, 1024, %s7979, %s7967, 128, 128, 8
        $region72: #{_lambda_.1} parent=47 // pred_fallthru
          _
      $region48: #{_lambda_.1} parent=5 // pred_fallthru
        _
      %p7987 = scmp.le.s32.totalorder 2, %s22
      // Predicated region
      $region73: #{_lambda_.1} parent=5 // pred_check
        %p7988 = pneg %p7987
      $region74: #{_lambda_.1} parent=5 // pred_check_branch
        %7990 = sbr.rel (%p7988) target = $region76
      $region75: #{_lambda_.1} parent=5 // pred_region
        %s7991 = ssub.s32 %s22, 2
        // Predicated region
        $region77: #{_lambda_.1} parent=75 // pred_check
          %p7992 = pneg %p203
        $region78: #{_lambda_.1} parent=75 // pred_check_branch
          %7994 = sbr.rel (%p7992) target = $region80
        $region79: #{_lambda_.1} parent=75 // pred_region
          %s7995 = sand.u32 %s188, 1
          %s7996 = scalar_lea.sflag [#allocation4], %s7995
          %s7997 = sand.u32 %s188, 1
          %s7998 = smul.addr %s7997, 64
          %s7999 = scalar_lea.vmem [#allocation12], %s7998
          %8000 = dma.done %s7996, 1024
        $region80: #{_lambda_.1} parent=75 // pred_fallthru
          _
      $region76: #{_lambda_.1} parent=5 // pred_fallthru
        _
    $region6: #{_lambda_.1} parent=1 // loop_footer
      %s26 = sadd.s32 1, %s22
    $region7: #{_lambda_.1} parent=1 // loop_footer_branch
      %21 = sbr.rel target = $region3
    $region8: #{_lambda_.1} parent=1 // loop_exit
      _
    %8001 = vsyncpa [#allocation3], 1
    %s8002 = scalar_lea.sflag [#allocation3], 1
    %8003 = vsyncpa %s8002, 1
    %8004 = vsyncpa [#allocation7], 1
    %8005 = vsyncpa [#allocation10], 1
    %8006 = vsyncpa [#allocation4], 1
    %s8007 = scalar_lea.sflag [#allocation4], 1
    %8008 = vsyncpa %s8007, 1
    %8009 = vsyncpa [#allocation5], 1
    %s8010 = scalar_lea.sflag [#allocation5], 1
    %8011 = vsyncpa %s8010, 1

</llo_original>
